<compile_context>
chip_gen: v7x
topology: tpu7x:2x2x1
jax: 0.10.0
libtpu: 0.0.40
codegen_flags: <defaults>
</compile_context>

<pallas_src>
import functools
import math

import jax
import jax.numpy as jnp
from jax.experimental import pallas as pl
from jax.experimental.pallas import tpu as pltpu


def _layernorm(x, g, b, eps):
    mu = jnp.mean(x, axis=-1, keepdims=True)
    xc = x - mu
    var = jnp.mean(xc * xc, axis=-1, keepdims=True)
    return xc * jax.lax.rsqrt(var + eps) * g + b


def _value_transformer_kernel(
    state_ref, posb_ref,
    wemb_ref,
    wqkv_ref, bqkv_ref,
    wo_ref, bo_ref,
    ln1g_ref, ln1b_ref,
    wff1_ref, bff1_ref,
    wff2_ref, bff2_ref,
    ln2g_ref, ln2b_ref,
    wcomb_ref, bcomb_ref,
    out_ref,
    *, bn, seq, hidden, eps, neg_slope):
    f32 = jnp.float32
    H = hidden
    ns = bn * seq

    # ---- embedding + positional encodings (embedding bias pre-folded) ------
    x2 = state_ref[...].reshape(ns, state_ref.shape[-1])          # (ns, Ds)
    h2 = jnp.dot(x2, wemb_ref[...], preferred_element_type=f32) + posb_ref[...]

    # ---- single-head self attention (fused qkv projection) -----------------
    qkv = jnp.dot(h2, wqkv_ref[...], preferred_element_type=f32) + bqkv_ref[...]
    qkv3 = qkv.reshape(bn, seq, 3 * H)
    q = qkv3[:, :, :H]
    k = qkv3[:, :, H:2 * H]
    v = qkv3[:, :, 2 * H:]
    scores = jnp.einsum('nqh,nkh->nqk', q, k,
                        preferred_element_type=f32) * (1.0 / math.sqrt(H))
    scores = scores - jnp.max(scores, axis=-1, keepdims=True)
    p = jnp.exp(scores)
    p = p / jnp.sum(p, axis=-1, keepdims=True)
    attn = jnp.einsum('nqk,nkh->nqh', p, v, preferred_element_type=f32)
    sa = jnp.dot(attn.reshape(ns, H), wo_ref[...],
                 preferred_element_type=f32) + bo_ref[...]

    # ---- residual + LayerNorm 1 ---------------------------------------------
    y = _layernorm(h2 + sa, ln1g_ref[...], ln1b_ref[...], eps)

    # ---- feed-forward (ReLU) + residual + LayerNorm 2 -----------------------
    ff = jnp.maximum(
        jnp.dot(y, wff1_ref[...], preferred_element_type=f32) + bff1_ref[...], 0.0)
    ff = jnp.dot(ff, wff2_ref[...], preferred_element_type=f32) + bff2_ref[...]
    z = _layernorm(y + ff, ln2g_ref[...], ln2b_ref[...], eps)

    # ---- leaky_relu on the transformer output -------------------------------
    t2 = jnp.where(z >= 0.0, z, neg_slope * z)                    # (ns, H)

    # ---- fused [attention_linear | value_output] head -----------------------
    # value_output is affine and the attention weights sum to 1, so pooling the
    # per-token values equals applying value_output to the pooled features.
    heads = jnp.dot(t2, wcomb_ref[...], preferred_element_type=f32) + bcomb_ref[...]
    heads3 = heads.reshape(bn, seq, 2)
    logits = heads3[:, :, 0:1]                                    # (bn, seq, 1)
    tvals = heads3[:, :, 1:2]                                     # (bn, seq, 1)
    logits = logits - jnp.max(logits, axis=1, keepdims=True)
    w = jnp.exp(logits)
    w = w / jnp.sum(w, axis=1, keepdims=True)
    out_ref[...] = jnp.sum(w * tvals, axis=1)                     # (bn, 1)


def create_positional_encodings(seq_len, d_model):
    pos = jnp.arange(seq_len, dtype=jnp.float32)[:, None]
    div_term = jnp.exp(jnp.arange(0, d_model, 2, dtype=jnp.float32)
                       * (-(math.log(10000.0) / d_model)))
    pe = jnp.zeros((seq_len, d_model), jnp.float32)
    pe = pe.at[:, 0::2].set(jnp.sin(pos * div_term))
    if d_model % 2 == 1:
        pe = pe.at[:, 1::2].set(jnp.cos(pos * div_term[:-1]))
    else:
        pe = pe.at[:, 1::2].set(jnp.cos(pos * div_term))
    return pe


def init_value_network_params(key, state_size, hidden_size, stack_size,
                              dim_feedforward=2048):
    """Linear weights stored pre-transposed as (in, out); torch-style U(+/-1/sqrt(fan_in))."""
    def linear(k, fan_in, fan_out):
        kw, kb = jax.random.split(k)
        bound = 1.0 / math.sqrt(fan_in)
        w = jax.random.uniform(kw, (fan_in, fan_out), jnp.float32, -bound, bound)
        b = jax.random.uniform(kb, (1, fan_out), jnp.float32, -bound, bound)
        return w, b

    keys = jax.random.split(key, 9)
    p = {}
    p['w_emb'], p['b_emb'] = linear(keys[0], state_size, hidden_size)
    p['pos_enc'] = create_positional_encodings(stack_size, hidden_size)
    p['w_q'], p['b_q'] = linear(keys[1], hidden_size, hidden_size)
    p['w_k'], p['b_k'] = linear(keys[2], hidden_size, hidden_size)
    p['w_v'], p['b_v'] = linear(keys[3], hidden_size, hidden_size)
    p['w_o'], p['b_o'] = linear(keys[4], hidden_size, hidden_size)
    p['ln1_g'] = jnp.ones((1, hidden_size), jnp.float32)
    p['ln1_b'] = jnp.zeros((1, hidden_size), jnp.float32)
    p['w_ff1'], p['b_ff1'] = linear(keys[5], hidden_size, dim_feedforward)
    p['w_ff2'], p['b_ff2'] = linear(keys[6], dim_feedforward, hidden_size)
    p['ln2_g'] = jnp.ones((1, hidden_size), jnp.float32)
    p['ln2_b'] = jnp.zeros((1, hidden_size), jnp.float32)
    p['w_att'], p['b_att'] = linear(keys[7], hidden_size, 1)
    p['w_val'], p['b_val'] = linear(keys[8], hidden_size, 1)
    return p


def value_network_transformer_forward(state, params, *, stack_size, block_n=8):
    if state.ndim == 2:
        state = state[:, None, :]
    num_envs, num_samples, in_features = state.shape
    state_size = in_features // stack_size
    H = params['w_emb'].shape[1]
    dff = params['w_ff1'].shape[1]

    N = num_envs * num_samples
    BN = block_n
    Np = ((N + BN - 1) // BN) * BN

    x = state.reshape(N, stack_size, state_size).astype(jnp.float32)
    if Np != N:
        x = jnp.pad(x, ((0, Np - N), (0, 0), (0, 0)))

    # --- wrapper-side layout plumbing / weight fusion (free, not compute) ----
    posb = jnp.tile(params['pos_enc'] + params['b_emb'], (BN, 1))          # (BN*S, H)
    wqkv = jnp.concatenate([params['w_q'], params['w_k'], params['w_v']], axis=1)
    bqkv = jnp.concatenate([params['b_q'], params['b_k'], params['b_v']], axis=1)
    wcomb = jnp.concatenate([params['w_att'], params['w_val']], axis=1)    # (H, 2)
    bcomb = jnp.concatenate([params['b_att'], params['b_val']], axis=1)    # (1, 2)

    const = lambda i: (0, 0)
    kernel = functools.partial(
        _value_transformer_kernel, bn=BN, seq=stack_size, hidden=H,
        eps=1e-5, neg_slope=0.01)

    out = pl.pallas_call(
        kernel,
        out_shape=jax.ShapeDtypeStruct((Np, 1), jnp.float32),
        grid=(Np // BN,),
        in_specs=[
            pl.BlockSpec((BN, stack_size, state_size), lambda i: (i, 0, 0)),
            pl.BlockSpec((BN * stack_size, H), const),
            pl.BlockSpec((state_size, H), const),
            pl.BlockSpec((H, 3 * H), const),
            pl.BlockSpec((1, 3 * H), const),
            pl.BlockSpec((H, H), const),
            pl.BlockSpec((1, H), const),
            pl.BlockSpec((1, H), const),
            pl.BlockSpec((1, H), const),
            pl.BlockSpec((H, dff), const),
            pl.BlockSpec((1, dff), const),
            pl.BlockSpec((dff, H), const),
            pl.BlockSpec((1, H), const),
            pl.BlockSpec((1, H), const),
            pl.BlockSpec((1, H), const),
            pl.BlockSpec((H, 2), const),
            pl.BlockSpec((1, 2), const),
        ],
        out_specs=pl.BlockSpec((BN, 1), lambda i: (i, 0)),
        compiler_params=pltpu.CompilerParams(
            dimension_semantics=("parallel",)),
    )(x, posb,
      params['w_emb'],
      wqkv, bqkv,
      params['w_o'], params['b_o'],
      params['ln1_g'], params['ln1_b'],
      params['w_ff1'], params['b_ff1'],
      params['w_ff2'], params['b_ff2'],
      params['ln2_g'], params['ln2_b'],
      wcomb, bcomb)

    return out[:N].reshape(num_envs, num_samples, 1)


def value_network_transformer_forward_ref(state, params, *, stack_size):
    """Pure-JAX mirror of the PyTorch forward for validation."""
    if state.ndim == 2:
        state = state[:, None, :]
    num_envs, num_samples, in_features = state.shape
    state_size = in_features // stack_size
    hp = jax.lax.Precision.HIGHEST
    x = state.reshape(num_envs * num_samples, stack_size, state_size).astype(jnp.float32)
    H = params['w_emb'].shape[1]

    h = jnp.einsum('nsd,dh->nsh', x, params['w_emb'], precision=hp) + params['b_emb']
    h = h + params['pos_enc']
    q = jnp.einsum('nsh,hk->nsk', h, params['w_q'], precision=hp) + params['b_q']
    k = jnp.einsum('nsh,hk->nsk', h, params['w_k'], precision=hp) + params['b_k']
    v = jnp.einsum('nsh,hk->nsk', h, params['w_v'], precision=hp) + params['b_v']
    scores = jnp.einsum('nqh,nkh->nqk', q, k, precision=hp) * (1.0 / math.sqrt(H))
    p = jax.nn.softmax(scores, axis=-1)
    attn = jnp.einsum('nqk,nkh->nqh', p, v, precision=hp)
    sa = jnp.einsum('nqh,ho->nqo', attn, params['w_o'], precision=hp) + params['b_o']
    y = _layernorm(h + sa, params['ln1_g'], params['ln1_b'], 1e-5)
    ff = jnp.maximum(
        jnp.einsum('nsh,hf->nsf', y, params['w_ff1'], precision=hp) + params['b_ff1'], 0.0)
    ff = jnp.einsum('nsf,fh->nsh', ff, params['w_ff2'], precision=hp) + params['b_ff2']
    z = _layernorm(y + ff, params['ln2_g'], params['ln2_b'], 1e-5)
    t = jnp.where(z >= 0.0, z, 0.01 * z)
    att = jnp.einsum('nsh,ho->nso', t, params['w_att'], precision=hp) + params['b_att']
    w = jax.nn.softmax(att, axis=1)
    pooled = jnp.sum(t * w, axis=1)
    value = jnp.einsum('nh,ho->no', pooled, params['w_val'], precision=hp) + params['b_val']
    return value.reshape(num_envs, num_samples, 1)


if __name__ == "__main__":
    # small shapes consistent with the module:
    #   stack_size=16, state_size=8 -> in_features=128, hidden=32, nhead=1,
    #   1 encoder layer with the torch-default dim_feedforward=2048,
    #   num_envs=2, num_samples=8 (so the grid actually has 2 parallel steps).
    stack_size = 16
    state_size = 8
    hidden_size = 32
    num_envs, num_samples = 2, 8
    in_features = stack_size * state_size

    key = jax.random.PRNGKey(0)
    kp, ks = jax.random.split(key)
    params = init_value_network_params(kp, state_size, hidden_size, stack_size)
    state = jax.random.normal(ks, (num_envs, num_samples, in_features), jnp.float32)

    value = value_network_transformer_forward(state, params, stack_size=stack_size)
    jax.block_until_ready(value)

    value_ref = value_network_transformer_forward_ref(state, params, stack_size=stack_size)
    assert value.shape == (num_envs, num_samples, 1), value.shape
    assert jnp.allclose(value, value_ref, rtol=2e-3, atol=2e-4), (
        float(jnp.max(jnp.abs(value - value_ref))))

    print("KERNEL_OK")
</pallas_src>

<mosaic_0001>
module attributes {stable_mosaic.version = 11 : i64} {
  func.func @_value_transformer_kernel(%arg0: i32, %arg1: memref<8x16x8xf32, #tpu.memory_space<vmem>>, %arg2: memref<128x32xf32, #tpu.memory_space<vmem>>, %arg3: memref<8x32xf32, #tpu.memory_space<vmem>>, %arg4: memref<32x96xf32, #tpu.memory_space<vmem>>, %arg5: memref<1x96xf32, #tpu.memory_space<vmem>>, %arg6: memref<32x32xf32, #tpu.memory_space<vmem>>, %arg7: memref<1x32xf32, #tpu.memory_space<vmem>>, %arg8: memref<1x32xf32, #tpu.memory_space<vmem>>, %arg9: memref<1x32xf32, #tpu.memory_space<vmem>>, %arg10: memref<32x2048xf32, #tpu.memory_space<vmem>>, %arg11: memref<1x2048xf32, #tpu.memory_space<vmem>>, %arg12: memref<2048x32xf32, #tpu.memory_space<vmem>>, %arg13: memref<1x32xf32, #tpu.memory_space<vmem>>, %arg14: memref<1x32xf32, #tpu.memory_space<vmem>>, %arg15: memref<1x32xf32, #tpu.memory_space<vmem>>, %arg16: memref<32x2xf32, #tpu.memory_space<vmem>>, %arg17: memref<1x2xf32, #tpu.memory_space<vmem>>, %arg18: memref<8x1xf32, #tpu.memory_space<vmem>>) attributes {dimension_semantics = [#tpu.dimension_semantics<parallel>], iteration_bounds = array<i64: 2>, scalar_prefetch = 0 : i64, scratch_operands = 0 : i64, tpu.core_type = #tpu.core_type<tc>, window_params = [{transform_indices = @transform_0, window_bounds = array<i64: 8, 16, 8>}, {pipeline_mode = #tpu.pipeline_mode<synchronous>, transform_indices = @transform_1, window_bounds = array<i64: 128, 32>}, {pipeline_mode = #tpu.pipeline_mode<synchronous>, transform_indices = @transform_2, window_bounds = array<i64: 8, 32>}, {pipeline_mode = #tpu.pipeline_mode<synchronous>, transform_indices = @transform_3, window_bounds = array<i64: 32, 96>}, {pipeline_mode = #tpu.pipeline_mode<synchronous>, transform_indices = @transform_4, window_bounds = array<i64: 1, 96>}, {pipeline_mode = #tpu.pipeline_mode<synchronous>, transform_indices = @transform_5, window_bounds = array<i64: 32, 32>}, {pipeline_mode = #tpu.pipeline_mode<synchronous>, transform_indices = @transform_6, window_bounds = array<i64: 1, 32>}, {pipeline_mode = #tpu.pipeline_mode<synchronous>, transform_indices = @transform_7, window_bounds = array<i64: 1, 32>}, {pipeline_mode = #tpu.pipeline_mode<synchronous>, transform_indices = @transform_8, window_bounds = array<i64: 1, 32>}, {pipeline_mode = #tpu.pipeline_mode<synchronous>, transform_indices = @transform_9, window_bounds = array<i64: 32, 2048>}, {pipeline_mode = #tpu.pipeline_mode<synchronous>, transform_indices = @transform_10, window_bounds = array<i64: 1, 2048>}, {pipeline_mode = #tpu.pipeline_mode<synchronous>, transform_indices = @transform_11, window_bounds = array<i64: 2048, 32>}, {pipeline_mode = #tpu.pipeline_mode<synchronous>, transform_indices = @transform_12, window_bounds = array<i64: 1, 32>}, {pipeline_mode = #tpu.pipeline_mode<synchronous>, transform_indices = @transform_13, window_bounds = array<i64: 1, 32>}, {pipeline_mode = #tpu.pipeline_mode<synchronous>, transform_indices = @transform_14, window_bounds = array<i64: 1, 32>}, {pipeline_mode = #tpu.pipeline_mode<synchronous>, transform_indices = @transform_15, window_bounds = array<i64: 32, 2>}, {pipeline_mode = #tpu.pipeline_mode<synchronous>, transform_indices = @transform_16, window_bounds = array<i64: 1, 2>}, {transform_indices = @transform_17, window_bounds = array<i64: 8, 1>}]} {
    %c0 = arith.constant 0 : index
    %c0_0 = arith.constant 0 : index
    %c0_1 = arith.constant 0 : index
    %0 = vector.load %arg1[%c0, %c0_0, %c0_1] : memref<8x16x8xf32, #tpu.memory_space<vmem>>, vector<8x16x8xf32>
    %1 = vector.shape_cast %0 : vector<8x16x8xf32> to vector<128x8xf32>
    %c0_2 = arith.constant 0 : index
    %c0_3 = arith.constant 0 : index
    %2 = vector.load %arg3[%c0_2, %c0_3] : memref<8x32xf32, #tpu.memory_space<vmem>>, vector<8x32xf32>
    %cst = arith.constant dense<0.000000e+00> : vector<128x32xf32>
    %3 = tpu.matmul %1, %2, %cst {dimension_numbers = #tpu.dot_dimension_numbers<[1], [0], [0], [1], [0, 0, 1, 1], [], []>} : vector<128x8xf32>, vector<8x32xf32>, vector<128x32xf32> -> vector<128x32xf32>
    %c0_4 = arith.constant 0 : index
    %c0_5 = arith.constant 0 : index
    %4 = vector.load %arg2[%c0_4, %c0_5] : memref<128x32xf32, #tpu.memory_space<vmem>>, vector<128x32xf32>
    %5 = arith.addf %3, %4 : vector<128x32xf32>
    %c0_6 = arith.constant 0 : index
    %c0_7 = arith.constant 0 : index
    %6 = vector.load %arg4[%c0_6, %c0_7] : memref<32x96xf32, #tpu.memory_space<vmem>>, vector<32x96xf32>
    %cst_8 = arith.constant dense<0.000000e+00> : vector<128x96xf32>
    %7 = tpu.matmul %5, %6, %cst_8 {dimension_numbers = #tpu.dot_dimension_numbers<[1], [0], [0], [1], [0, 0, 1, 1], [], []>} : vector<128x32xf32>, vector<32x96xf32>, vector<128x96xf32> -> vector<128x96xf32>
    %c0_9 = arith.constant 0 : index
    %c0_10 = arith.constant 0 : index
    %8 = vector.load %arg5[%c0_9, %c0_10] : memref<1x96xf32, #tpu.memory_space<vmem>>, vector<1x96xf32>
    %9 = vector.broadcast %8 : vector<1x96xf32> to vector<128x96xf32>
    %10 = arith.addf %7, %9 : vector<128x96xf32>
    %11 = vector.shape_cast %10 : vector<128x96xf32> to vector<8x16x96xf32>
    %12 = vector.extract_strided_slice %11 {offsets = [0, 0, 0], sizes = [8, 16, 32], strides = [1, 1, 1]} : vector<8x16x96xf32> to vector<8x16x32xf32>
    %13 = vector.extract_strided_slice %11 {offsets = [0, 0, 32], sizes = [8, 16, 32], strides = [1, 1, 1]} : vector<8x16x96xf32> to vector<8x16x32xf32>
    %14 = vector.extract_strided_slice %11 {offsets = [0, 0, 64], sizes = [8, 16, 32], strides = [1, 1, 1]} : vector<8x16x96xf32> to vector<8x16x32xf32>
    "tpu.trace_start"() <{level = 10 : i32, message = "nqh,nkh->nqk"}> : () -> ()
    %cst_11 = arith.constant dense<0.000000e+00> : vector<8x16x16xf32>
    %15 = tpu.matmul %12, %13, %cst_11 {dimension_numbers = #tpu.dot_dimension_numbers<[2], [2], [1], [1], [0, 0, 0, 1, 1, 1], [0], [0]>} : vector<8x16x32xf32>, vector<8x16x32xf32>, vector<8x16x16xf32> -> vector<8x16x16xf32>
    "tpu.trace_stop"() : () -> ()
    %cst_12 = arith.constant 0.176776692 : f32
    %16 = vector.broadcast %cst_12 : f32 to vector<8x16x16xf32>
    %17 = arith.mulf %15, %16 : vector<8x16x16xf32>
    %cst_13 = arith.constant dense<0xFF800000> : vector<8x16xf32>
    %18 = vector.multi_reduction <maximumf>, %17, %cst_13 [2] : vector<8x16x16xf32> to vector<8x16xf32>
    %19 = vector.shape_cast %18 : vector<8x16xf32> to vector<8x16x1xf32>
    %20 = vector.broadcast %19 : vector<8x16x1xf32> to vector<8x16x16xf32>
    %21 = arith.subf %17, %20 : vector<8x16x16xf32>
    %22 = math.exp %21 : vector<8x16x16xf32>
    %cst_14 = arith.constant dense<0.000000e+00> : vector<8x16xf32>
    %23 = vector.multi_reduction <add>, %22, %cst_14 [2] : vector<8x16x16xf32> to vector<8x16xf32>
    %24 = vector.shape_cast %23 : vector<8x16xf32> to vector<8x16x1xf32>
    %25 = vector.broadcast %24 : vector<8x16x1xf32> to vector<8x16x16xf32>
    %26 = arith.divf %22, %25 : vector<8x16x16xf32>
    "tpu.trace_start"() <{level = 10 : i32, message = "nqk,nkh->nqh"}> : () -> ()
    %cst_15 = arith.constant dense<0.000000e+00> : vector<8x16x32xf32>
    %27 = tpu.matmul %26, %14, %cst_15 {dimension_numbers = #tpu.dot_dimension_numbers<[2], [1], [1], [2], [0, 0, 0, 1, 1, 2], [0], [0]>} : vector<8x16x16xf32>, vector<8x16x32xf32>, vector<8x16x32xf32> -> vector<8x16x32xf32>
    "tpu.trace_stop"() : () -> ()
    %28 = vector.shape_cast %27 : vector<8x16x32xf32> to vector<128x32xf32>
    %c0_16 = arith.constant 0 : index
    %c0_17 = arith.constant 0 : index
    %29 = vector.load %arg6[%c0_16, %c0_17] : memref<32x32xf32, #tpu.memory_space<vmem>>, vector<32x32xf32>
    %cst_18 = arith.constant dense<0.000000e+00> : vector<128x32xf32>
    %30 = tpu.matmul %28, %29, %cst_18 {dimension_numbers = #tpu.dot_dimension_numbers<[1], [0], [0], [1], [0, 0, 1, 1], [], []>} : vector<128x32xf32>, vector<32x32xf32>, vector<128x32xf32> -> vector<128x32xf32>
    %c0_19 = arith.constant 0 : index
    %c0_20 = arith.constant 0 : index
    %31 = vector.load %arg7[%c0_19, %c0_20] : memref<1x32xf32, #tpu.memory_space<vmem>>, vector<1x32xf32>
    %32 = vector.broadcast %31 : vector<1x32xf32> to vector<128x32xf32>
    %33 = arith.addf %30, %32 : vector<128x32xf32>
    %34 = arith.addf %5, %33 : vector<128x32xf32>
    %c0_21 = arith.constant 0 : index
    %c0_22 = arith.constant 0 : index
    %35 = vector.load %arg8[%c0_21, %c0_22] : memref<1x32xf32, #tpu.memory_space<vmem>>, vector<1x32xf32>
    %c0_23 = arith.constant 0 : index
    %c0_24 = arith.constant 0 : index
    %36 = vector.load %arg9[%c0_23, %c0_24] : memref<1x32xf32, #tpu.memory_space<vmem>>, vector<1x32xf32>
    %cst_25 = arith.constant dense<0.000000e+00> : vector<128xf32>
    %37 = vector.multi_reduction <add>, %34, %cst_25 [1] : vector<128x32xf32> to vector<128xf32>
    %38 = vector.shape_cast %37 : vector<128xf32> to vector<128x1xf32>
    %cst_26 = arith.constant 3.200000e+01 : f32
    %39 = vector.broadcast %cst_26 : f32 to vector<128x1xf32>
    %40 = arith.divf %38, %39 : vector<128x1xf32>
    %41 = vector.broadcast %40 : vector<128x1xf32> to vector<128x32xf32>
    %42 = arith.subf %34, %41 : vector<128x32xf32>
    %43 = arith.mulf %42, %42 : vector<128x32xf32>
    %cst_27 = arith.constant dense<0.000000e+00> : vector<128xf32>
    %44 = vector.multi_reduction <add>, %43, %cst_27 [1] : vector<128x32xf32> to vector<128xf32>
    %45 = vector.shape_cast %44 : vector<128xf32> to vector<128x1xf32>
    %cst_28 = arith.constant 3.200000e+01 : f32
    %46 = vector.broadcast %cst_28 : f32 to vector<128x1xf32>
    %47 = arith.divf %45, %46 : vector<128x1xf32>
    %cst_29 = arith.constant 9.99999974E-6 : f32
    %48 = vector.broadcast %cst_29 : f32 to vector<128x1xf32>
    %49 = arith.addf %47, %48 : vector<128x1xf32>
    %50 = math.rsqrt %49 : vector<128x1xf32>
    %51 = vector.broadcast %50 : vector<128x1xf32> to vector<128x32xf32>
    %52 = arith.mulf %42, %51 : vector<128x32xf32>
    %53 = vector.broadcast %35 : vector<1x32xf32> to vector<128x32xf32>
    %54 = arith.mulf %52, %53 : vector<128x32xf32>
    %55 = vector.broadcast %36 : vector<1x32xf32> to vector<128x32xf32>
    %56 = arith.addf %54, %55 : vector<128x32xf32>
    %c0_30 = arith.constant 0 : index
    %c0_31 = arith.constant 0 : index
    %57 = vector.load %arg10[%c0_30, %c0_31] : memref<32x2048xf32, #tpu.memory_space<vmem>>, vector<32x2048xf32>
    %cst_32 = arith.constant dense<0.000000e+00> : vector<128x2048xf32>
    %58 = tpu.matmul %56, %57, %cst_32 {dimension_numbers = #tpu.dot_dimension_numbers<[1], [0], [0], [1], [0, 0, 1, 1], [], []>} : vector<128x32xf32>, vector<32x2048xf32>, vector<128x2048xf32> -> vector<128x2048xf32>
    %c0_33 = arith.constant 0 : index
    %c0_34 = arith.constant 0 : index
    %59 = vector.load %arg11[%c0_33, %c0_34] : memref<1x2048xf32, #tpu.memory_space<vmem>>, vector<1x2048xf32>
    %60 = vector.broadcast %59 : vector<1x2048xf32> to vector<128x2048xf32>
    %61 = arith.addf %58, %60 : vector<128x2048xf32>
    %cst_35 = arith.constant 0.000000e+00 : f32
    %62 = vector.broadcast %cst_35 : f32 to vector<128x2048xf32>
    %63 = arith.maximumf %61, %62 : vector<128x2048xf32>
    %c0_36 = arith.constant 0 : index
    %c0_37 = arith.constant 0 : index
    %64 = vector.load %arg12[%c0_36, %c0_37] : memref<2048x32xf32, #tpu.memory_space<vmem>>, vector<2048x32xf32>
    %cst_38 = arith.constant dense<0.000000e+00> : vector<128x32xf32>
    %65 = tpu.matmul %63, %64, %cst_38 {dimension_numbers = #tpu.dot_dimension_numbers<[1], [0], [0], [1], [0, 0, 1, 1], [], []>} : vector<128x2048xf32>, vector<2048x32xf32>, vector<128x32xf32> -> vector<128x32xf32>
    %c0_39 = arith.constant 0 : index
    %c0_40 = arith.constant 0 : index
    %66 = vector.load %arg13[%c0_39, %c0_40] : memref<1x32xf32, #tpu.memory_space<vmem>>, vector<1x32xf32>
    %67 = vector.broadcast %66 : vector<1x32xf32> to vector<128x32xf32>
    %68 = arith.addf %65, %67 : vector<128x32xf32>
    %69 = arith.addf %56, %68 : vector<128x32xf32>
    %c0_41 = arith.constant 0 : index
    %c0_42 = arith.constant 0 : index
    %70 = vector.load %arg14[%c0_41, %c0_42] : memref<1x32xf32, #tpu.memory_space<vmem>>, vector<1x32xf32>
    %c0_43 = arith.constant 0 : index
    %c0_44 = arith.constant 0 : index
    %71 = vector.load %arg15[%c0_43, %c0_44] : memref<1x32xf32, #tpu.memory_space<vmem>>, vector<1x32xf32>
    %cst_45 = arith.constant dense<0.000000e+00> : vector<128xf32>
    %72 = vector.multi_reduction <add>, %69, %cst_45 [1] : vector<128x32xf32> to vector<128xf32>
    %73 = vector.shape_cast %72 : vector<128xf32> to vector<128x1xf32>
    %cst_46 = arith.constant 3.200000e+01 : f32
    %74 = vector.broadcast %cst_46 : f32 to vector<128x1xf32>
    %75 = arith.divf %73, %74 : vector<128x1xf32>
    %76 = vector.broadcast %75 : vector<128x1xf32> to vector<128x32xf32>
    %77 = arith.subf %69, %76 : vector<128x32xf32>
    %78 = arith.mulf %77, %77 : vector<128x32xf32>
    %cst_47 = arith.constant dense<0.000000e+00> : vector<128xf32>
    %79 = vector.multi_reduction <add>, %78, %cst_47 [1] : vector<128x32xf32> to vector<128xf32>
    %80 = vector.shape_cast %79 : vector<128xf32> to vector<128x1xf32>
    %cst_48 = arith.constant 3.200000e+01 : f32
    %81 = vector.broadcast %cst_48 : f32 to vector<128x1xf32>
    %82 = arith.divf %80, %81 : vector<128x1xf32>
    %cst_49 = arith.constant 9.99999974E-6 : f32
    %83 = vector.broadcast %cst_49 : f32 to vector<128x1xf32>
    %84 = arith.addf %82, %83 : vector<128x1xf32>
    %85 = math.rsqrt %84 : vector<128x1xf32>
    %86 = vector.broadcast %85 : vector<128x1xf32> to vector<128x32xf32>
    %87 = arith.mulf %77, %86 : vector<128x32xf32>
    %88 = vector.broadcast %70 : vector<1x32xf32> to vector<128x32xf32>
    %89 = arith.mulf %87, %88 : vector<128x32xf32>
    %90 = vector.broadcast %71 : vector<1x32xf32> to vector<128x32xf32>
    %91 = arith.addf %89, %90 : vector<128x32xf32>
    %cst_50 = arith.constant 0.000000e+00 : f32
    %92 = vector.broadcast %cst_50 : f32 to vector<128x32xf32>
    %93 = arith.cmpf oge, %91, %92 : vector<128x32xf32>
    %cst_51 = arith.constant 0.00999999977 : f32
    %94 = vector.broadcast %cst_51 : f32 to vector<128x32xf32>
    %95 = arith.mulf %94, %91 : vector<128x32xf32>
    %96 = arith.select %93, %91, %95 : vector<128x32xi1>, vector<128x32xf32>
    %c0_52 = arith.constant 0 : index
    %c0_53 = arith.constant 0 : index
    %97 = vector.load %arg16[%c0_52, %c0_53] : memref<32x2xf32, #tpu.memory_space<vmem>>, vector<32x2xf32>
    %cst_54 = arith.constant dense<0.000000e+00> : vector<128x2xf32>
    %98 = tpu.matmul %96, %97, %cst_54 {dimension_numbers = #tpu.dot_dimension_numbers<[1], [0], [0], [1], [0, 0, 1, 1], [], []>} : vector<128x32xf32>, vector<32x2xf32>, vector<128x2xf32> -> vector<128x2xf32>
    %c0_55 = arith.constant 0 : index
    %c0_56 = arith.constant 0 : index
    %99 = vector.load %arg17[%c0_55, %c0_56] : memref<1x2xf32, #tpu.memory_space<vmem>>, vector<1x2xf32>
    %100 = vector.broadcast %99 : vector<1x2xf32> to vector<128x2xf32>
    %101 = arith.addf %98, %100 : vector<128x2xf32>
    %102 = vector.shape_cast %101 : vector<128x2xf32> to vector<8x16x2xf32>
    %103 = vector.extract_strided_slice %102 {offsets = [0, 0, 0], sizes = [8, 16, 1], strides = [1, 1, 1]} : vector<8x16x2xf32> to vector<8x16x1xf32>
    %104 = vector.extract_strided_slice %102 {offsets = [0, 0, 1], sizes = [8, 16, 1], strides = [1, 1, 1]} : vector<8x16x2xf32> to vector<8x16x1xf32>
    %cst_57 = arith.constant dense<0xFF800000> : vector<8x1xf32>
    %105 = vector.multi_reduction <maximumf>, %103, %cst_57 [1] : vector<8x16x1xf32> to vector<8x1xf32>
    %106 = vector.shape_cast %105 : vector<8x1xf32> to vector<8x1x1xf32>
    %107 = vector.broadcast %106 : vector<8x1x1xf32> to vector<8x16x1xf32>
    %108 = arith.subf %103, %107 : vector<8x16x1xf32>
    %109 = math.exp %108 : vector<8x16x1xf32>
    %cst_58 = arith.constant dense<0.000000e+00> : vector<8x1xf32>
    %110 = vector.multi_reduction <add>, %109, %cst_58 [1] : vector<8x16x1xf32> to vector<8x1xf32>
    %111 = vector.shape_cast %110 : vector<8x1xf32> to vector<8x1x1xf32>
    %112 = vector.broadcast %111 : vector<8x1x1xf32> to vector<8x16x1xf32>
    %113 = arith.divf %109, %112 : vector<8x16x1xf32>
    %114 = arith.mulf %113, %104 : vector<8x16x1xf32>
    %cst_59 = arith.constant dense<0.000000e+00> : vector<8x1xf32>
    %115 = vector.multi_reduction <add>, %114, %cst_59 [1] : vector<8x16x1xf32> to vector<8x1xf32>
    %c0_60 = arith.constant 0 : index
    %c0_61 = arith.constant 0 : index
    %116 = vector.load %arg18[%c0_60, %c0_61] : memref<8x1xf32, #tpu.memory_space<vmem>>, vector<8x1xf32>
    tpu.vector_store %arg18[%c0_60, %c0_61], %115 {strides = array<i32>} : memref<8x1xf32, #tpu.memory_space<vmem>>, vector<8x1xf32>,
    return
  }
  func.func @transform_0(%arg0: i32) -> (i32, i32, i32) {
    %c0_i32 = arith.constant 0 : i32
    %c0_i32_0 = arith.constant 0 : i32
    %c0_i32_1 = arith.constant 0 : i32
    return %arg0, %c0_i32, %c0_i32_0 : i32, i32, i32
  }
  func.func @transform_1(%arg0: i32) -> (i32, i32) {
    %c0_i32 = arith.constant 0 : i32
    %c0_i32_0 = arith.constant 0 : i32
    %c0_i32_1 = arith.constant 0 : i32
    return %c0_i32, %c0_i32_0 : i32, i32
  }
  func.func @transform_2(%arg0: i32) -> (i32, i32) {
    %c0_i32 = arith.constant 0 : i32
    %c0_i32_0 = arith.constant 0 : i32
    %c0_i32_1 = arith.constant 0 : i32
    return %c0_i32, %c0_i32_0 : i32, i32
  }
  func.func @transform_3(%arg0: i32) -> (i32, i32) {
    %c0_i32 = arith.constant 0 : i32
    %c0_i32_0 = arith.constant 0 : i32
    %c0_i32_1 = arith.constant 0 : i32
    return %c0_i32, %c0_i32_0 : i32, i32
  }
  func.func @transform_4(%arg0: i32) -> (i32, i32) {
    %c0_i32 = arith.constant 0 : i32
    %c0_i32_0 = arith.constant 0 : i32
    %c0_i32_1 = arith.constant 0 : i32
    return %c0_i32, %c0_i32_0 : i32, i32
  }
  func.func @transform_5(%arg0: i32) -> (i32, i32) {
    %c0_i32 = arith.constant 0 : i32
    %c0_i32_0 = arith.constant 0 : i32
    %c0_i32_1 = arith.constant 0 : i32
    return %c0_i32, %c0_i32_0 : i32, i32
  }
  func.func @transform_6(%arg0: i32) -> (i32, i32) {
    %c0_i32 = arith.constant 0 : i32
    %c0_i32_0 = arith.constant 0 : i32
    %c0_i32_1 = arith.constant 0 : i32
    return %c0_i32, %c0_i32_0 : i32, i32
  }
  func.func @transform_7(%arg0: i32) -> (i32, i32) {
    %c0_i32 = arith.constant 0 : i32
    %c0_i32_0 = arith.constant 0 : i32
    %c0_i32_1 = arith.constant 0 : i32
    return %c0_i32, %c0_i32_0 : i32, i32
  }
  func.func @transform_8(%arg0: i32) -> (i32, i32) {
    %c0_i32 = arith.constant 0 : i32
    %c0_i32_0 = arith.constant 0 : i32
    %c0_i32_1 = arith.constant 0 : i32
    return %c0_i32, %c0_i32_0 : i32, i32
  }
  func.func @transform_9(%arg0: i32) -> (i32, i32) {
    %c0_i32 = arith.constant 0 : i32
    %c0_i32_0 = arith.constant 0 : i32
    %c0_i32_1 = arith.constant 0 : i32
    return %c0_i32, %c0_i32_0 : i32, i32
  }
  func.func @transform_10(%arg0: i32) -> (i32, i32) {
    %c0_i32 = arith.constant 0 : i32
    %c0_i32_0 = arith.constant 0 : i32
    %c0_i32_1 = arith.constant 0 : i32
    return %c0_i32, %c0_i32_0 : i32, i32
  }
  func.func @transform_11(%arg0: i32) -> (i32, i32) {
    %c0_i32 = arith.constant 0 : i32
    %c0_i32_0 = arith.constant 0 : i32
    %c0_i32_1 = arith.constant 0 : i32
    return %c0_i32, %c0_i32_0 : i32, i32
  }
  func.func @transform_12(%arg0: i32) -> (i32, i32) {
    %c0_i32 = arith.constant 0 : i32
    %c0_i32_0 = arith.constant 0 : i32
    %c0_i32_1 = arith.constant 0 : i32
    return %c0_i32, %c0_i32_0 : i32, i32
  }
  func.func @transform_13(%arg0: i32) -> (i32, i32) {
    %c0_i32 = arith.constant 0 : i32
    %c0_i32_0 = arith.constant 0 : i32
    %c0_i32_1 = arith.constant 0 : i32
    return %c0_i32, %c0_i32_0 : i32, i32
  }
  func.func @transform_14(%arg0: i32) -> (i32, i32) {
    %c0_i32 = arith.constant 0 : i32
    %c0_i32_0 = arith.constant 0 : i32
    %c0_i32_1 = arith.constant 0 : i32
    return %c0_i32, %c0_i32_0 : i32, i32
  }
  func.func @transform_15(%arg0: i32) -> (i32, i32) {
    %c0_i32 = arith.constant 0 : i32
    %c0_i32_0 = arith.constant 0 : i32
    %c0_i32_1 = arith.constant 0 : i32
    return %c0_i32, %c0_i32_0 : i32, i32
  }
  func.func @transform_16(%arg0: i32) -> (i32, i32) {
    %c0_i32 = arith.constant 0 : i32
    %c0_i32_0 = arith.constant 0 : i32
    %c0_i32_1 = arith.constant 0 : i32
    return %c0_i32, %c0_i32_0 : i32, i32
  }
  func.func @transform_17(%arg0: i32) -> (i32, i32) {
    %c0_i32 = arith.constant 0 : i32
    %c0_i32_0 = arith.constant 0 : i32
    return %arg0, %c0_i32 : i32, i32
  }
}

</mosaic_0001>

<llo_original>
// kernel: tpu_custom_call.1
$region0: #{tpu_custom_call.1}
  #allocation0 [shape = 'u32[]', space=smem, size = 0x4, offset = 0x4, fixed_abs, tag = 'smem constant byte address 0x4 - core index']
  #allocation1 [shape = 'u32[144,128]{1,0:T(1,128)}', space=vmem, size = 0x12000, scoped, tag = 'internal scratch']
  %s0 = inlined_call_operand.vmem [shape: f32[16,16,8], index: 0, kind: input, shape index: {}]
  %s1 = inlined_call_operand.vmem [shape: f32[128,32], index: 1, kind: input, shape index: {}]
  %s2 = inlined_call_operand.vmem [shape: f32[8,32], index: 2, kind: input, shape index: {}]
  %s3 = inlined_call_operand.vmem [shape: f32[32,96], index: 3, kind: input, shape index: {}]
  %s4 = inlined_call_operand.vmem [shape: f32[1,96], index: 4, kind: input, shape index: {}]
  %s5 = inlined_call_operand.vmem [shape: f32[32,32], index: 5, kind: input, shape index: {}]
  %s6 = inlined_call_operand.vmem [shape: f32[1,32], index: 6, kind: input, shape index: {}]
  %s7 = inlined_call_operand.vmem [shape: f32[1,32], index: 7, kind: input, shape index: {}]
  %s8 = inlined_call_operand.vmem [shape: f32[1,32], index: 8, kind: input, shape index: {}]
  %s9 = inlined_call_operand.vmem [shape: f32[32,2048], index: 9, kind: input, shape index: {}]
  %s10 = inlined_call_operand.vmem [shape: f32[1,2048], index: 10, kind: input, shape index: {}]
  %s11 = inlined_call_operand.vmem [shape: f32[2048,32], index: 11, kind: input, shape index: {}]
  %s12 = inlined_call_operand.vmem [shape: f32[1,32], index: 12, kind: input, shape index: {}]
  %s13 = inlined_call_operand.vmem [shape: f32[1,32], index: 13, kind: input, shape index: {}]
  %s14 = inlined_call_operand.vmem [shape: f32[1,32], index: 14, kind: input, shape index: {}]
  %s15 = inlined_call_operand.vmem [shape: f32[32,2], index: 15, kind: input, shape index: {}]
  %s16 = inlined_call_operand.vmem [shape: f32[1,2], index: 16, kind: input, shape index: {}]
  %s17 = inlined_call_operand.vmem [shape: f32[16,1], index: 17, kind: output, shape index: {}]
  %s18 = sld [smem:[#allocation0]]
  $region101: #{tpu_custom_call.1} parent=0
    _
  %s20 = ssub.s32 1, %s18
  %s21 = scalar_select 0, %s20, %s18
  loop: start=0, step=1, limit=4
  $region2: #{tpu_custom_call.1} parent=0 // loop_pre_header
    _
  $region3: #{tpu_custom_call.1} parent=0 // loop_header
    %s23 = sphi 0, %s27
    %p24 = scmp.ge.s32.totalorder %s23, 4
    %s33 = sphi 0, %s35
    %s36 = sphi 0, %s33
    %s37 = sphi 0, %s36
    %s53 = sphi 0, %s37
    %s57 = sphi 0, %s57
    %s59 = sphi 0, %s57
    %s60 = sphi 0, %s59
    %s74 = sphi 0, %s60
    %s78 = sphi 0, %s78
    %s80 = sphi 0, %s78
    %s81 = sphi 0, %s80
    %s95 = sphi 0, %s81
    %s99 = sphi 0, %s99
    %s101 = sphi 0, %s99
    %s102 = sphi 0, %s101
    %s116 = sphi 0, %s102
    %s120 = sphi 0, %s120
    %s122 = sphi 0, %s120
    %s123 = sphi 0, %s122
    %s137 = sphi 0, %s123
    %s141 = sphi 0, %s141
    %s143 = sphi 0, %s141
    %s144 = sphi 0, %s143
    %s158 = sphi 0, %s144
    %s162 = sphi 0, %s162
    %s164 = sphi 0, %s162
    %s165 = sphi 0, %s164
    %s179 = sphi 0, %s165
    %s183 = sphi 0, %s183
    %s185 = sphi 0, %s183
    %s186 = sphi 0, %s185
    %s200 = sphi 0, %s186
    %s204 = sphi 0, %s204
    %s206 = sphi 0, %s204
    %s207 = sphi 0, %s206
    %s221 = sphi 0, %s207
    %s225 = sphi 0, %s225
    %s227 = sphi 0, %s225
    %s228 = sphi 0, %s227
    %s242 = sphi 0, %s228
    %s246 = sphi 0, %s246
    %s248 = sphi 0, %s246
    %s249 = sphi 0, %s248
    %s263 = sphi 0, %s249
    %s267 = sphi 0, %s267
    %s269 = sphi 0, %s267
    %s270 = sphi 0, %s269
    %s284 = sphi 0, %s270
    %s288 = sphi 0, %s288
    %s290 = sphi 0, %s288
    %s291 = sphi 0, %s290
    %s305 = sphi 0, %s291
    %s309 = sphi 0, %s309
    %s311 = sphi 0, %s309
    %s312 = sphi 0, %s311
    %s326 = sphi 0, %s312
    %s330 = sphi 0, %s330
    %s332 = sphi 0, %s330
    %s333 = sphi 0, %s332
    %s347 = sphi 0, %s333
    %s351 = sphi 0, %s351
    %s353 = sphi 0, %s351
    %s354 = sphi 0, %s353
    %s368 = sphi 0, %s354
    %s372 = sphi 0, %s372
    %s374 = sphi 0, %s372
    %s375 = sphi 0, %s374
    %s389 = sphi 0, %s375
    %s395 = sphi 0, %s397
    %s398 = sphi 0, %s395
    %s399 = sphi 0, %s398
    %s415 = sphi 0, %s399
  $region4: #{tpu_custom_call.1} parent=0 // loop_header_branch
    %26 = sbr.rel (%p24) target = $region8
  $region5: #{tpu_custom_call.1} parent=0 // loop_body
    %s28 = ssub.s32 %s23, 1
    %s29 = ssub.s32 %s23, 2
    %s30 = sadd.s32 %s23, 1
    %s31 = ssub.s32 %s23, %s30
    %p32 = scmp.eq.s32.totalorder %s31, 0
    %s34 = sadd.s32 %s33, 1
    %s35 = scalar_select %p32, %s33, %s34
    %p38 = pneg %p32
    %p39 = scmp.eq.s32.totalorder %s23, 1
    %p40 = por %p38, %p39
    %p41 = scmp.ne.s32.totalorder %s33, %s36
    %p42 = scmp.eq.s32.totalorder %s23, 0
    %p43 = por %p41, %p42
    %p44 = scmp.ne.s32.totalorder %s33, %s36
    %p45 = scmp.eq.s32.totalorder %s28, 1
    %p46 = por %p44, %p45
    %p47 = scmp.ne.s32.totalorder %s36, %s37
    %p48 = scmp.eq.s32.totalorder %s28, 0
    %p49 = por %p47, %p48
    %p50 = scmp.ne.s32.totalorder %s36, %s37
    %p51 = scmp.eq.s32.totalorder %s29, 1
    %p52 = por %p50, %p51
    %p54 = scmp.ne.s32.totalorder %s37, %s53
    %p55 = scmp.eq.s32.totalorder %s29, 0
    %p56 = por %p54, %p55
    %s58 = sadd.s32 %s57, 1
    %p61 = scmp.eq.s32.totalorder %s23, 1
    %p62 = scmp.ne.s32.totalorder %s57, %s59
    %p63 = scmp.eq.s32.totalorder %s23, 0
    %p64 = por %p62, %p63
    %p65 = scmp.ne.s32.totalorder %s57, %s59
    %p66 = scmp.eq.s32.totalorder %s28, 1
    %p67 = por %p65, %p66
    %p68 = scmp.ne.s32.totalorder %s59, %s60
    %p69 = scmp.eq.s32.totalorder %s28, 0
    %p70 = por %p68, %p69
    %p71 = scmp.ne.s32.totalorder %s59, %s60
    %p72 = scmp.eq.s32.totalorder %s29, 1
    %p73 = por %p71, %p72
    %p75 = scmp.ne.s32.totalorder %s60, %s74
    %p76 = scmp.eq.s32.totalorder %s29, 0
    %p77 = por %p75, %p76
    %s79 = sadd.s32 %s78, 1
    %p82 = scmp.eq.s32.totalorder %s23, 1
    %p83 = scmp.ne.s32.totalorder %s78, %s80
    %p84 = scmp.eq.s32.totalorder %s23, 0
    %p85 = por %p83, %p84
    %p86 = scmp.ne.s32.totalorder %s78, %s80
    %p87 = scmp.eq.s32.totalorder %s28, 1
    %p88 = por %p86, %p87
    %p89 = scmp.ne.s32.totalorder %s80, %s81
    %p90 = scmp.eq.s32.totalorder %s28, 0
    %p91 = por %p89, %p90
    %p92 = scmp.ne.s32.totalorder %s80, %s81
    %p93 = scmp.eq.s32.totalorder %s29, 1
    %p94 = por %p92, %p93
    %p96 = scmp.ne.s32.totalorder %s81, %s95
    %p97 = scmp.eq.s32.totalorder %s29, 0
    %p98 = por %p96, %p97
    %s100 = sadd.s32 %s99, 1
    %p103 = scmp.eq.s32.totalorder %s23, 1
    %p104 = scmp.ne.s32.totalorder %s99, %s101
    %p105 = scmp.eq.s32.totalorder %s23, 0
    %p106 = por %p104, %p105
    %p107 = scmp.ne.s32.totalorder %s99, %s101
    %p108 = scmp.eq.s32.totalorder %s28, 1
    %p109 = por %p107, %p108
    %p110 = scmp.ne.s32.totalorder %s101, %s102
    %p111 = scmp.eq.s32.totalorder %s28, 0
    %p112 = por %p110, %p111
    %p113 = scmp.ne.s32.totalorder %s101, %s102
    %p114 = scmp.eq.s32.totalorder %s29, 1
    %p115 = por %p113, %p114
    %p117 = scmp.ne.s32.totalorder %s102, %s116
    %p118 = scmp.eq.s32.totalorder %s29, 0
    %p119 = por %p117, %p118
    %s121 = sadd.s32 %s120, 1
    %p124 = scmp.eq.s32.totalorder %s23, 1
    %p125 = scmp.ne.s32.totalorder %s120, %s122
    %p126 = scmp.eq.s32.totalorder %s23, 0
    %p127 = por %p125, %p126
    %p128 = scmp.ne.s32.totalorder %s120, %s122
    %p129 = scmp.eq.s32.totalorder %s28, 1
    %p130 = por %p128, %p129
    %p131 = scmp.ne.s32.totalorder %s122, %s123
    %p132 = scmp.eq.s32.totalorder %s28, 0
    %p133 = por %p131, %p132
    %p134 = scmp.ne.s32.totalorder %s122, %s123
    %p135 = scmp.eq.s32.totalorder %s29, 1
    %p136 = por %p134, %p135
    %p138 = scmp.ne.s32.totalorder %s123, %s137
    %p139 = scmp.eq.s32.totalorder %s29, 0
    %p140 = por %p138, %p139
    %s142 = sadd.s32 %s141, 1
    %p145 = scmp.eq.s32.totalorder %s23, 1
    %p146 = scmp.ne.s32.totalorder %s141, %s143
    %p147 = scmp.eq.s32.totalorder %s23, 0
    %p148 = por %p146, %p147
    %p149 = scmp.ne.s32.totalorder %s141, %s143
    %p150 = scmp.eq.s32.totalorder %s28, 1
    %p151 = por %p149, %p150
    %p152 = scmp.ne.s32.totalorder %s143, %s144
    %p153 = scmp.eq.s32.totalorder %s28, 0
    %p154 = por %p152, %p153
    %p155 = scmp.ne.s32.totalorder %s143, %s144
    %p156 = scmp.eq.s32.totalorder %s29, 1
    %p157 = por %p155, %p156
    %p159 = scmp.ne.s32.totalorder %s144, %s158
    %p160 = scmp.eq.s32.totalorder %s29, 0
    %p161 = por %p159, %p160
    %s163 = sadd.s32 %s162, 1
    %p166 = scmp.eq.s32.totalorder %s23, 1
    %p167 = scmp.ne.s32.totalorder %s162, %s164
    %p168 = scmp.eq.s32.totalorder %s23, 0
    %p169 = por %p167, %p168
    %p170 = scmp.ne.s32.totalorder %s162, %s164
    %p171 = scmp.eq.s32.totalorder %s28, 1
    %p172 = por %p170, %p171
    %p173 = scmp.ne.s32.totalorder %s164, %s165
    %p174 = scmp.eq.s32.totalorder %s28, 0
    %p175 = por %p173, %p174
    %p176 = scmp.ne.s32.totalorder %s164, %s165
    %p177 = scmp.eq.s32.totalorder %s29, 1
    %p178 = por %p176, %p177
    %p180 = scmp.ne.s32.totalorder %s165, %s179
    %p181 = scmp.eq.s32.totalorder %s29, 0
    %p182 = por %p180, %p181
    %s184 = sadd.s32 %s183, 1
    %p187 = scmp.eq.s32.totalorder %s23, 1
    %p188 = scmp.ne.s32.totalorder %s183, %s185
    %p189 = scmp.eq.s32.totalorder %s23, 0
    %p190 = por %p188, %p189
    %p191 = scmp.ne.s32.totalorder %s183, %s185
    %p192 = scmp.eq.s32.totalorder %s28, 1
    %p193 = por %p191, %p192
    %p194 = scmp.ne.s32.totalorder %s185, %s186
    %p195 = scmp.eq.s32.totalorder %s28, 0
    %p196 = por %p194, %p195
    %p197 = scmp.ne.s32.totalorder %s185, %s186
    %p198 = scmp.eq.s32.totalorder %s29, 1
    %p199 = por %p197, %p198
    %p201 = scmp.ne.s32.totalorder %s186, %s200
    %p202 = scmp.eq.s32.totalorder %s29, 0
    %p203 = por %p201, %p202
    %s205 = sadd.s32 %s204, 1
    %p208 = scmp.eq.s32.totalorder %s23, 1
    %p209 = scmp.ne.s32.totalorder %s204, %s206
    %p210 = scmp.eq.s32.totalorder %s23, 0
    %p211 = por %p209, %p210
    %p212 = scmp.ne.s32.totalorder %s204, %s206
    %p213 = scmp.eq.s32.totalorder %s28, 1
    %p214 = por %p212, %p213
    %p215 = scmp.ne.s32.totalorder %s206, %s207
    %p216 = scmp.eq.s32.totalorder %s28, 0
    %p217 = por %p215, %p216
    %p218 = scmp.ne.s32.totalorder %s206, %s207
    %p219 = scmp.eq.s32.totalorder %s29, 1
    %p220 = por %p218, %p219
    %p222 = scmp.ne.s32.totalorder %s207, %s221
    %p223 = scmp.eq.s32.totalorder %s29, 0
    %p224 = por %p222, %p223
    %s226 = sadd.s32 %s225, 1
    %p229 = scmp.eq.s32.totalorder %s23, 1
    %p230 = scmp.ne.s32.totalorder %s225, %s227
    %p231 = scmp.eq.s32.totalorder %s23, 0
    %p232 = por %p230, %p231
    %p233 = scmp.ne.s32.totalorder %s225, %s227
    %p234 = scmp.eq.s32.totalorder %s28, 1
    %p235 = por %p233, %p234
    %p236 = scmp.ne.s32.totalorder %s227, %s228
    %p237 = scmp.eq.s32.totalorder %s28, 0
    %p238 = por %p236, %p237
    %p239 = scmp.ne.s32.totalorder %s227, %s228
    %p240 = scmp.eq.s32.totalorder %s29, 1
    %p241 = por %p239, %p240
    %p243 = scmp.ne.s32.totalorder %s228, %s242
    %p244 = scmp.eq.s32.totalorder %s29, 0
    %p245 = por %p243, %p244
    %s247 = sadd.s32 %s246, 1
    %p250 = scmp.eq.s32.totalorder %s23, 1
    %p251 = scmp.ne.s32.totalorder %s246, %s248
    %p252 = scmp.eq.s32.totalorder %s23, 0
    %p253 = por %p251, %p252
    %p254 = scmp.ne.s32.totalorder %s246, %s248
    %p255 = scmp.eq.s32.totalorder %s28, 1
    %p256 = por %p254, %p255
    %p257 = scmp.ne.s32.totalorder %s248, %s249
    %p258 = scmp.eq.s32.totalorder %s28, 0
    %p259 = por %p257, %p258
    %p260 = scmp.ne.s32.totalorder %s248, %s249
    %p261 = scmp.eq.s32.totalorder %s29, 1
    %p262 = por %p260, %p261
    %p264 = scmp.ne.s32.totalorder %s249, %s263
    %p265 = scmp.eq.s32.totalorder %s29, 0
    %p266 = por %p264, %p265
    %s268 = sadd.s32 %s267, 1
    %p271 = scmp.eq.s32.totalorder %s23, 1
    %p272 = scmp.ne.s32.totalorder %s267, %s269
    %p273 = scmp.eq.s32.totalorder %s23, 0
    %p274 = por %p272, %p273
    %p275 = scmp.ne.s32.totalorder %s267, %s269
    %p276 = scmp.eq.s32.totalorder %s28, 1
    %p277 = por %p275, %p276
    %p278 = scmp.ne.s32.totalorder %s269, %s270
    %p279 = scmp.eq.s32.totalorder %s28, 0
    %p280 = por %p278, %p279
    %p281 = scmp.ne.s32.totalorder %s269, %s270
    %p282 = scmp.eq.s32.totalorder %s29, 1
    %p283 = por %p281, %p282
    %p285 = scmp.ne.s32.totalorder %s270, %s284
    %p286 = scmp.eq.s32.totalorder %s29, 0
    %p287 = por %p285, %p286
    %s289 = sadd.s32 %s288, 1
    %p292 = scmp.eq.s32.totalorder %s23, 1
    %p293 = scmp.ne.s32.totalorder %s288, %s290
    %p294 = scmp.eq.s32.totalorder %s23, 0
    %p295 = por %p293, %p294
    %p296 = scmp.ne.s32.totalorder %s288, %s290
    %p297 = scmp.eq.s32.totalorder %s28, 1
    %p298 = por %p296, %p297
    %p299 = scmp.ne.s32.totalorder %s290, %s291
    %p300 = scmp.eq.s32.totalorder %s28, 0
    %p301 = por %p299, %p300
    %p302 = scmp.ne.s32.totalorder %s290, %s291
    %p303 = scmp.eq.s32.totalorder %s29, 1
    %p304 = por %p302, %p303
    %p306 = scmp.ne.s32.totalorder %s291, %s305
    %p307 = scmp.eq.s32.totalorder %s29, 0
    %p308 = por %p306, %p307
    %s310 = sadd.s32 %s309, 1
    %p313 = scmp.eq.s32.totalorder %s23, 1
    %p314 = scmp.ne.s32.totalorder %s309, %s311
    %p315 = scmp.eq.s32.totalorder %s23, 0
    %p316 = por %p314, %p315
    %p317 = scmp.ne.s32.totalorder %s309, %s311
    %p318 = scmp.eq.s32.totalorder %s28, 1
    %p319 = por %p317, %p318
    %p320 = scmp.ne.s32.totalorder %s311, %s312
    %p321 = scmp.eq.s32.totalorder %s28, 0
    %p322 = por %p320, %p321
    %p323 = scmp.ne.s32.totalorder %s311, %s312
    %p324 = scmp.eq.s32.totalorder %s29, 1
    %p325 = por %p323, %p324
    %p327 = scmp.ne.s32.totalorder %s312, %s326
    %p328 = scmp.eq.s32.totalorder %s29, 0
    %p329 = por %p327, %p328
    %s331 = sadd.s32 %s330, 1
    %p334 = scmp.eq.s32.totalorder %s23, 1
    %p335 = scmp.ne.s32.totalorder %s330, %s332
    %p336 = scmp.eq.s32.totalorder %s23, 0
    %p337 = por %p335, %p336
    %p338 = scmp.ne.s32.totalorder %s330, %s332
    %p339 = scmp.eq.s32.totalorder %s28, 1
    %p340 = por %p338, %p339
    %p341 = scmp.ne.s32.totalorder %s332, %s333
    %p342 = scmp.eq.s32.totalorder %s28, 0
    %p343 = por %p341, %p342
    %p344 = scmp.ne.s32.totalorder %s332, %s333
    %p345 = scmp.eq.s32.totalorder %s29, 1
    %p346 = por %p344, %p345
    %p348 = scmp.ne.s32.totalorder %s333, %s347
    %p349 = scmp.eq.s32.totalorder %s29, 0
    %p350 = por %p348, %p349
    %s352 = sadd.s32 %s351, 1
    %p355 = scmp.eq.s32.totalorder %s23, 1
    %p356 = scmp.ne.s32.totalorder %s351, %s353
    %p357 = scmp.eq.s32.totalorder %s23, 0
    %p358 = por %p356, %p357
    %p359 = scmp.ne.s32.totalorder %s351, %s353
    %p360 = scmp.eq.s32.totalorder %s28, 1
    %p361 = por %p359, %p360
    %p362 = scmp.ne.s32.totalorder %s353, %s354
    %p363 = scmp.eq.s32.totalorder %s28, 0
    %p364 = por %p362, %p363
    %p365 = scmp.ne.s32.totalorder %s353, %s354
    %p366 = scmp.eq.s32.totalorder %s29, 1
    %p367 = por %p365, %p366
    %p369 = scmp.ne.s32.totalorder %s354, %s368
    %p370 = scmp.eq.s32.totalorder %s29, 0
    %p371 = por %p369, %p370
    %s373 = sadd.s32 %s372, 1
    %p376 = scmp.eq.s32.totalorder %s23, 1
    %p377 = scmp.ne.s32.totalorder %s372, %s374
    %p378 = scmp.eq.s32.totalorder %s23, 0
    %p379 = por %p377, %p378
    %p380 = scmp.ne.s32.totalorder %s372, %s374
    %p381 = scmp.eq.s32.totalorder %s28, 1
    %p382 = por %p380, %p381
    %p383 = scmp.ne.s32.totalorder %s374, %s375
    %p384 = scmp.eq.s32.totalorder %s28, 0
    %p385 = por %p383, %p384
    %p386 = scmp.ne.s32.totalorder %s374, %s375
    %p387 = scmp.eq.s32.totalorder %s29, 1
    %p388 = por %p386, %p387
    %p390 = scmp.ne.s32.totalorder %s375, %s389
    %p391 = scmp.eq.s32.totalorder %s29, 0
    %p392 = por %p390, %p391
    %s393 = ssub.s32 %s23, %s30
    %p394 = scmp.eq.s32.totalorder %s393, 0
    %s396 = sadd.s32 %s395, 1
    %s397 = scalar_select %p394, %s395, %s396
    %p400 = pneg %p394
    %p401 = scmp.eq.s32.totalorder %s23, 1
    %p402 = por %p400, %p401
    %p403 = scmp.ne.s32.totalorder %s395, %s398
    %p404 = scmp.eq.s32.totalorder %s23, 0
    %p405 = por %p403, %p404
    %p406 = scmp.ne.s32.totalorder %s395, %s398
    %p407 = scmp.eq.s32.totalorder %s28, 1
    %p408 = por %p406, %p407
    %p409 = scmp.ne.s32.totalorder %s398, %s399
    %p410 = scmp.eq.s32.totalorder %s28, 0
    %p411 = por %p409, %p410
    %p412 = scmp.ne.s32.totalorder %s398, %s399
    %p413 = scmp.eq.s32.totalorder %s29, 1
    %p414 = por %p412, %p413
    %p416 = scmp.ne.s32.totalorder %s399, %s415
    %p417 = scmp.eq.s32.totalorder %s29, 0
    %p418 = por %p416, %p417
    %p419 = scmp.le.s32.totalorder 1, %s23
    %p420 = scmp.lt.s32.totalorder %s23, 3
    %p421 = pnand %p419, %p420
    %p422 = pneg %p421
    // Predicated region
    $region9: #{tpu_custom_call.1} parent=5 // pred_check
      _
    $region10: #{tpu_custom_call.1} parent=5 // pred_check_branch
      %424 = sbr.rel (%p421) target = $region12
    $region11: #{tpu_custom_call.1} parent=5 // pred_region
      %s425 = ssub.s32 %s23, 1
      // Predicated region
      $region13: #{tpu_custom_call.1} parent=11 // pred_check
        %p426 = pneg %p70
      $region14: #{tpu_custom_call.1} parent=11 // pred_check_branch
        %428 = sbr.rel (%p426) target = $region16
      $region15: #{tpu_custom_call.1} parent=11 // pred_region
        _
      $region16: #{tpu_custom_call.1} parent=11 // pred_fallthru
        _
      // Predicated region
      $region17: #{tpu_custom_call.1} parent=11 // pred_check
        %p429 = pneg %p91
      $region18: #{tpu_custom_call.1} parent=11 // pred_check_branch
        %431 = sbr.rel (%p429) target = $region20
      $region19: #{tpu_custom_call.1} parent=11 // pred_region
        _
      $region20: #{tpu_custom_call.1} parent=11 // pred_fallthru
        _
      // Predicated region
      $region21: #{tpu_custom_call.1} parent=11 // pred_check
        %p432 = pneg %p112
      $region22: #{tpu_custom_call.1} parent=11 // pred_check_branch
        %434 = sbr.rel (%p432) target = $region24
      $region23: #{tpu_custom_call.1} parent=11 // pred_region
        _
      $region24: #{tpu_custom_call.1} parent=11 // pred_fallthru
        _
      // Predicated region
      $region25: #{tpu_custom_call.1} parent=11 // pred_check
        %p435 = pneg %p133
      $region26: #{tpu_custom_call.1} parent=11 // pred_check_branch
        %437 = sbr.rel (%p435) target = $region28
      $region27: #{tpu_custom_call.1} parent=11 // pred_region
        _
      $region28: #{tpu_custom_call.1} parent=11 // pred_fallthru
        _
      // Predicated region
      $region29: #{tpu_custom_call.1} parent=11 // pred_check
        %p438 = pneg %p154
      $region30: #{tpu_custom_call.1} parent=11 // pred_check_branch
        %440 = sbr.rel (%p438) target = $region32
      $region31: #{tpu_custom_call.1} parent=11 // pred_region
        _
      $region32: #{tpu_custom_call.1} parent=11 // pred_fallthru
        _
      // Predicated region
      $region33: #{tpu_custom_call.1} parent=11 // pred_check
        %p441 = pneg %p175
      $region34: #{tpu_custom_call.1} parent=11 // pred_check_branch
        %443 = sbr.rel (%p441) target = $region36
      $region35: #{tpu_custom_call.1} parent=11 // pred_region
        _
      $region36: #{tpu_custom_call.1} parent=11 // pred_fallthru
        _
      // Predicated region
      $region37: #{tpu_custom_call.1} parent=11 // pred_check
        %p444 = pneg %p196
      $region38: #{tpu_custom_call.1} parent=11 // pred_check_branch
        %446 = sbr.rel (%p444) target = $region40
      $region39: #{tpu_custom_call.1} parent=11 // pred_region
        _
      $region40: #{tpu_custom_call.1} parent=11 // pred_fallthru
        _
      // Predicated region
      $region41: #{tpu_custom_call.1} parent=11 // pred_check
        %p447 = pneg %p217
      $region42: #{tpu_custom_call.1} parent=11 // pred_check_branch
        %449 = sbr.rel (%p447) target = $region44
      $region43: #{tpu_custom_call.1} parent=11 // pred_region
        _
      $region44: #{tpu_custom_call.1} parent=11 // pred_fallthru
        _
      // Predicated region
      $region45: #{tpu_custom_call.1} parent=11 // pred_check
        %p450 = pneg %p238
      $region46: #{tpu_custom_call.1} parent=11 // pred_check_branch
        %452 = sbr.rel (%p450) target = $region48
      $region47: #{tpu_custom_call.1} parent=11 // pred_region
        _
      $region48: #{tpu_custom_call.1} parent=11 // pred_fallthru
        _
      // Predicated region
      $region49: #{tpu_custom_call.1} parent=11 // pred_check
        %p453 = pneg %p259
      $region50: #{tpu_custom_call.1} parent=11 // pred_check_branch
        %455 = sbr.rel (%p453) target = $region52
      $region51: #{tpu_custom_call.1} parent=11 // pred_region
        _
      $region52: #{tpu_custom_call.1} parent=11 // pred_fallthru
        _
      // Predicated region
      $region53: #{tpu_custom_call.1} parent=11 // pred_check
        %p456 = pneg %p280
      $region54: #{tpu_custom_call.1} parent=11 // pred_check_branch
        %458 = sbr.rel (%p456) target = $region56
      $region55: #{tpu_custom_call.1} parent=11 // pred_region
        _
      $region56: #{tpu_custom_call.1} parent=11 // pred_fallthru
        _
      // Predicated region
      $region57: #{tpu_custom_call.1} parent=11 // pred_check
        %p459 = pneg %p301
      $region58: #{tpu_custom_call.1} parent=11 // pred_check_branch
        %461 = sbr.rel (%p459) target = $region60
      $region59: #{tpu_custom_call.1} parent=11 // pred_region
        _
      $region60: #{tpu_custom_call.1} parent=11 // pred_fallthru
        _
      // Predicated region
      $region61: #{tpu_custom_call.1} parent=11 // pred_check
        %p462 = pneg %p322
      $region62: #{tpu_custom_call.1} parent=11 // pred_check_branch
        %464 = sbr.rel (%p462) target = $region64
      $region63: #{tpu_custom_call.1} parent=11 // pred_region
        _
      $region64: #{tpu_custom_call.1} parent=11 // pred_fallthru
        _
      // Predicated region
      $region65: #{tpu_custom_call.1} parent=11 // pred_check
        %p465 = pneg %p343
      $region66: #{tpu_custom_call.1} parent=11 // pred_check_branch
        %467 = sbr.rel (%p465) target = $region68
      $region67: #{tpu_custom_call.1} parent=11 // pred_region
        _
      $region68: #{tpu_custom_call.1} parent=11 // pred_fallthru
        _
      // Predicated region
      $region69: #{tpu_custom_call.1} parent=11 // pred_check
        %p468 = pneg %p364
      $region70: #{tpu_custom_call.1} parent=11 // pred_check_branch
        %470 = sbr.rel (%p468) target = $region72
      $region71: #{tpu_custom_call.1} parent=11 // pred_region
        _
      $region72: #{tpu_custom_call.1} parent=11 // pred_fallthru
        _
      // Predicated region
      $region73: #{tpu_custom_call.1} parent=11 // pred_check
        %p471 = pneg %p385
      $region74: #{tpu_custom_call.1} parent=11 // pred_check_branch
        %473 = sbr.rel (%p471) target = $region76
      $region75: #{tpu_custom_call.1} parent=11 // pred_region
        _
      $region76: #{tpu_custom_call.1} parent=11 // pred_fallthru
        _
    $region12: #{tpu_custom_call.1} parent=5 // pred_fallthru
      _
    %p474 = scmp.lt.s32.totalorder %s23, 2
    // Predicated region
    $region77: #{tpu_custom_call.1} parent=5 // pred_check
      %p475 = pneg %p474
    $region78: #{tpu_custom_call.1} parent=5 // pred_check_branch
      %477 = sbr.rel (%p475) target = $region80
    $region79: #{tpu_custom_call.1} parent=5 // pred_region
      // Predicated region
      $region81: #{tpu_custom_call.1} parent=79 // pred_check
        %p478 = pneg %p43
      $region82: #{tpu_custom_call.1} parent=79 // pred_check_branch
        %480 = sbr.rel (%p478) target = $region84
      $region83: #{tpu_custom_call.1} parent=79 // pred_region
        %s481 = smul.u32 8, %s23
        %p482 = scmp.lt.s32.totalorder %s481, 15
        %s483 = scalar_select %p482, %s481, 15
        %s484 = smul.addr %s483, 2
        %s485 = smul.addr %s484, 8
        %s486 = scalar_lea.vmem %s0, %s485
        %s487 = smul.u32 8, %s23
      $region84: #{tpu_custom_call.1} parent=79 // pred_fallthru
        _
    $region80: #{tpu_custom_call.1} parent=5 // pred_fallthru
      _
    %p488 = scmp.le.s32.totalorder 1, %s23
    %p489 = scmp.lt.s32.totalorder %s23, 3
    %p490 = pnand %p488, %p489
    %p491 = pneg %p490
    // Predicated region
    $region85: #{tpu_custom_call.1} parent=5 // pred_check
      _
    $region86: #{tpu_custom_call.1} parent=5 // pred_check_branch
      %493 = sbr.rel (%p490) target = $region88
    $region87: #{tpu_custom_call.1} parent=5 // pred_region
      %s494 = ssub.s32 %s23, 1
      %s495 = smul.u32 8, %s28
      %p496 = scmp.lt.s32.totalorder %s495, 15
      %s497 = scalar_select %p496, %s495, 15
      %s498 = smul.addr %s497, 2
      %s499 = smul.addr %s498, 8
      %s500 = scalar_lea.vmem %s0, %s499
      %p501 = pneg %p49
      %p502 = pneg %p46
      %p503 = pneg %p70
      %p504 = pneg %p67
      %p505 = pneg %p91
      %p506 = pneg %p88
      %p507 = pneg %p112
      %p508 = pneg %p109
      %p509 = pneg %p133
      %p510 = pneg %p130
      %p511 = pneg %p154
      %p512 = pneg %p151
      %p513 = pneg %p175
      %p514 = pneg %p172
      %p515 = pneg %p196
      %p516 = pneg %p193
      %p517 = pneg %p217
      %p518 = pneg %p214
      %p519 = pneg %p238
      %p520 = pneg %p235
      %p521 = pneg %p259
      %p522 = pneg %p256
      %p523 = pneg %p280
      %p524 = pneg %p277
      %p525 = pneg %p301
      %p526 = pneg %p298
      %p527 = pneg %p322
      %p528 = pneg %p319
      %p529 = pneg %p343
      %p530 = pneg %p340
      %p531 = pneg %p364
      %p532 = pneg %p361
      %p533 = pneg %p385
      %p534 = pneg %p382
      %p535 = pneg %p411
      %p536 = pneg %p408
      %p537 = scmp.lt.s32.totalorder %s28, 1
      %s538 = scalar_select %p537, %s28, 1
      %s539 = smul.addr %s538, 8
      %s540 = scalar_lea.vmem %s17, %s539
      %s541 = smul.u32 8, %s28
      %p542 = scmp.lt.s32.totalorder %s541, 15
      %s543 = scalar_select %p542, %s541, 15
      %s544 = smul.addr %s543, 2
      %s545 = smul.addr %s544, 8
      %s546 = scalar_lea.vmem %s0, %s545
      %s547 = smul.u32 8, %s28
      %p548 = scmp.lt.s32.totalorder %s28, 1
      %s549 = scalar_select %p548, %s28, 1
      %s550 = smul.addr %s549, 8
      %s551 = scalar_lea.vmem %s17, %s550
      %v552 = vld [vmem:[%s546] sm:$0xff]
      %v553 = vld [vmem:[%s546 + $0x8] sm:$0xff]
      %v554 = vld [vmem:[%s546 + $0x10] sm:$0xff]
      %v555 = vld [vmem:[%s546 + $0x18] sm:$0xff]
      %v556 = vld [vmem:[%s546 + $0x20] sm:$0xff]
      %v557 = vld [vmem:[%s546 + $0x28] sm:$0xff]
      %v558 = vld [vmem:[%s546 + $0x30] sm:$0xff]
      %v559 = vld [vmem:[%s546 + $0x38] sm:$0xff]
      %v560 = vld [vmem:[%s546 + $0x40] sm:$0xff]
      %v561 = vld [vmem:[%s546 + $0x48] sm:$0xff]
      %v562 = vld [vmem:[%s546 + $0x50] sm:$0xff]
      %v563 = vld [vmem:[%s546 + $0x58] sm:$0xff]
      %v564 = vld [vmem:[%s546 + $0x60] sm:$0xff]
      %v565 = vld [vmem:[%s546 + $0x68] sm:$0xff]
      %v566 = vld [vmem:[%s546 + $0x70] sm:$0xff]
      %v567 = vld [vmem:[%s546 + $0x78] sm:$0xff]
      %v568 = vld [vmem:[%s2] sm:$0xff]
      %v569 = vld [vmem:[%s1] sm:$0xff]
      %v570 = vld [vmem:[%s1 + $0x8] sm:$0xff]
      %v571 = vld [vmem:[%s1 + $0x10] sm:$0xff]
      %v572 = vld [vmem:[%s1 + $0x18] sm:$0xff]
      %v573 = vld [vmem:[%s1 + $0x20] sm:$0xff]
      %v574 = vld [vmem:[%s1 + $0x28] sm:$0xff]
      %v575 = vld [vmem:[%s1 + $0x30] sm:$0xff]
      %v576 = vld [vmem:[%s1 + $0x38] sm:$0xff]
      %v577 = vld [vmem:[%s1 + $0x40] sm:$0xff]
      %v578 = vld [vmem:[%s1 + $0x48] sm:$0xff]
      %v579 = vld [vmem:[%s1 + $0x50] sm:$0xff]
      %v580 = vld [vmem:[%s1 + $0x58] sm:$0xff]
      %v581 = vld [vmem:[%s1 + $0x60] sm:$0xff]
      %v582 = vld [vmem:[%s1 + $0x68] sm:$0xff]
      %v583 = vld [vmem:[%s1 + $0x70] sm:$0xff]
      %v584 = vld [vmem:[%s1 + $0x78] sm:$0xff]
      %vm585 = vcmask 64512
      %v587 = vsel %vm585, %v552, 0
      %v590 = vsel %vm585, %v553, 0
      %v593 = vsel %vm585, %v554, 0
      %v596 = vsel %vm585, %v555, 0
      %v599 = vsel %vm585, %v556, 0
      %v602 = vsel %vm585, %v557, 0
      %v605 = vsel %vm585, %v558, 0
      %v608 = vsel %vm585, %v559, 0
      %v611 = vsel %vm585, %v560, 0
      %v614 = vsel %vm585, %v561, 0
      %v617 = vsel %vm585, %v562, 0
      %v620 = vsel %vm585, %v563, 0
      %v623 = vsel %vm585, %v564, 0
      %v626 = vsel %vm585, %v565, 0
      %v629 = vsel %vm585, %v566, 0
      %v632 = vsel %vm585, %v567, 0
      %634 = vmatprep.subr.mxu0 0.0
      %635 = vmatpush1.msra.mxu0 %v568
      %636 = vmatprep.subr.mxu0 0.0
      %637 = vmatpush1.msra.mxu0 0.0
      %638 = vmatprep.subr.mxu0 0.0
      %639 = vmatpush1.msra.mxu0 0.0
      %640 = vmatprep.subr.mxu0 0.0
      %641 = vmatpush1.msra.mxu0 0.0
      %642 = vmatprep.subr.mxu0 0.0
      %643 = vmatpush1.msra.mxu0 0.0
      %644 = vmatprep.subr.mxu0 0.0
      %645 = vmatpush1.msra.mxu0 0.0
      %646 = vmatprep.subr.mxu0 0.0
      %647 = vmatpush1.msra.mxu0 0.0
      %648 = vmatprep.subr.mxu0 0.0
      %649 = vmatpush1.msra.mxu0 0.0
      %650 = vmatprep.subr.mxu0 0.0
      %651 = vmatpush1.msra.mxu0 0.0
      %652 = vmatprep.subr.mxu0 0.0
      %653 = vmatpush1.msra.mxu0 0.0
      %654 = vmatprep.subr.mxu0 0.0
      %655 = vmatpush1.msra.mxu0 0.0
      %656 = vmatprep.subr.mxu0 0.0
      %657 = vmatpush1.msra.mxu0 0.0
      %658 = vmatprep.subr.mxu0 0.0
      %659 = vmatpush1.msra.mxu0 0.0
      %660 = vmatprep.subr.mxu0 0.0
      %661 = vmatpush1.msra.mxu0 0.0
      %662 = vmatprep.subr.mxu0 0.0
      %663 = vmatpush1.msra.mxu0 0.0
      %664 = vmatprep.subr.mxu0 0.0
      %665 = vmatpush1.msra.mxu0 0.0
      %666 = vmatprep.subr.mxu0 0.0
      %667 = vmatpush1.msra.mxu0 0.0
      %668 = vmatprep.subr.mxu0 0.0
      %669 = vmatpush1.msra.mxu0 0.0
      %670 = vmatprep.subr.mxu0 0.0
      %671 = vmatpush1.msra.mxu0 0.0
      %672 = vmatprep.subr.mxu0 0.0
      %673 = vmatpush1.msra.mxu0 0.0
      %674 = vmatprep.subr.mxu0 0.0
      %675 = vmatpush1.msra.mxu0 0.0
      %676 = vmatprep.subr.mxu0 0.0
      %677 = vmatpush1.msra.mxu0 0.0
      %678 = vmatprep.subr.mxu0 0.0
      %679 = vmatpush1.msra.mxu0 0.0
      %680 = vmatprep.subr.mxu0 0.0
      %681 = vmatpush1.msra.mxu0 0.0
      %682 = vmatprep.subr.mxu0 0.0
      %683 = vmatpush1.msra.mxu0 0.0
      %684 = vmatprep.subr.mxu0 0.0
      %685 = vmatpush1.msra.mxu0 0.0
      %686 = vmatprep.subr.mxu0 0.0
      %687 = vmatpush1.msra.mxu0 0.0
      %688 = vmatprep.subr.mxu0 0.0
      %689 = vmatpush1.msra.mxu0 0.0
      %690 = vmatprep.subr.mxu0 0.0
      %691 = vmatpush1.msra.mxu0 0.0
      %692 = vmatprep.subr.mxu0 0.0
      %693 = vmatpush1.msra.mxu0 0.0
      %694 = vmatprep.subr.mxu0 0.0
      %695 = vmatpush1.msra.mxu0 0.0
      %696 = vmatprep.subr.mxu0 0.0
      %697 = vmatpush1.msra.mxu0 0.0
      %698 = vmatprep.mubr.f32.mxu0 0.0
      %699 = vmatmul.mubr.f32.gmra.mrb[0].mxu0 %v587
      %v700 = vpop.f32.mrb[0].mxu0
      %v701 = vadd.f32 %v569, %v700
      %v702 = vpop.f32.mrb[0].mxu0
      %703 = vmatprep.mubr.f32.mxu0 0.0
      %704 = vmatmul.mubr.f32.gmra.mrb[0].mxu0 %v590
      %v705 = vpop.f32.mrb[0].mxu0
      %v706 = vadd.f32 %v570, %v705
      %v707 = vpop.f32.mrb[0].mxu0
      %708 = vmatprep.mubr.f32.mxu0 0.0
      %709 = vmatmul.mubr.f32.gmra.mrb[0].mxu0 %v593
      %v710 = vpop.f32.mrb[0].mxu0
      %v711 = vadd.f32 %v571, %v710
      %v712 = vpop.f32.mrb[0].mxu0
      %713 = vmatprep.mubr.f32.mxu0 0.0
      %714 = vmatmul.mubr.f32.gmra.mrb[0].mxu0 %v596
      %v715 = vpop.f32.mrb[0].mxu0
      %v716 = vadd.f32 %v572, %v715
      %v717 = vpop.f32.mrb[0].mxu0
      %718 = vmatprep.mubr.f32.mxu0 0.0
      %719 = vmatmul.mubr.f32.gmra.mrb[0].mxu0 %v599
      %v720 = vpop.f32.mrb[0].mxu0
      %v721 = vadd.f32 %v573, %v720
      %v722 = vpop.f32.mrb[0].mxu0
      %723 = vmatprep.mubr.f32.mxu0 0.0
      %724 = vmatmul.mubr.f32.gmra.mrb[0].mxu0 %v602
      %v725 = vpop.f32.mrb[0].mxu0
      %v726 = vadd.f32 %v574, %v725
      %v727 = vpop.f32.mrb[0].mxu0
      %728 = vmatprep.mubr.f32.mxu0 0.0
      %729 = vmatmul.mubr.f32.gmra.mrb[0].mxu0 %v605
      %v730 = vpop.f32.mrb[0].mxu0
      %v731 = vadd.f32 %v575, %v730
      %v732 = vpop.f32.mrb[0].mxu0
      %733 = vmatprep.mubr.f32.mxu0 0.0
      %734 = vmatmul.mubr.f32.gmra.mrb[0].mxu0 %v608
      %v735 = vpop.f32.mrb[0].mxu0
      %v736 = vadd.f32 %v576, %v735
      %v737 = vpop.f32.mrb[0].mxu0
      %738 = vmatprep.mubr.f32.mxu0 0.0
      %739 = vmatmul.mubr.f32.gmra.mrb[0].mxu0 %v611
      %v740 = vpop.f32.mrb[0].mxu0
      %v741 = vadd.f32 %v577, %v740
      %v742 = vpop.f32.mrb[0].mxu0
      %743 = vmatprep.mubr.f32.mxu0 0.0
      %744 = vmatmul.mubr.f32.gmra.mrb[0].mxu0 %v614
      %v745 = vpop.f32.mrb[0].mxu0
      %v746 = vadd.f32 %v578, %v745
      %v747 = vpop.f32.mrb[0].mxu0
      %748 = vmatprep.mubr.f32.mxu0 0.0
      %749 = vmatmul.mubr.f32.gmra.mrb[0].mxu0 %v617
      %v750 = vpop.f32.mrb[0].mxu0
      %v751 = vadd.f32 %v579, %v750
      %v752 = vpop.f32.mrb[0].mxu0
      %753 = vmatprep.mubr.f32.mxu0 0.0
      %754 = vmatmul.mubr.f32.gmra.mrb[0].mxu0 %v620
      %v755 = vpop.f32.mrb[0].mxu0
      %v756 = vadd.f32 %v580, %v755
      %v757 = vpop.f32.mrb[0].mxu0
      %758 = vmatprep.mubr.f32.mxu0 0.0
      %759 = vmatmul.mubr.f32.gmra.mrb[0].mxu0 %v623
      %v760 = vpop.f32.mrb[0].mxu0
      %v761 = vadd.f32 %v581, %v760
      %v762 = vpop.f32.mrb[0].mxu0
      %763 = vmatprep.mubr.f32.mxu0 0.0
      %764 = vmatmul.mubr.f32.gmra.mrb[0].mxu0 %v626
      %v765 = vpop.f32.mrb[0].mxu0
      %v766 = vadd.f32 %v582, %v765
      %v767 = vpop.f32.mrb[0].mxu0
      %768 = vmatprep.mubr.f32.mxu0 0.0
      %769 = vmatmul.mubr.f32.gmra.mrb[0].mxu0 %v629
      %v770 = vpop.f32.mrb[0].mxu0
      %v771 = vadd.f32 %v583, %v770
      %v772 = vpop.f32.mrb[0].mxu0
      %773 = vmatprep.mubr.f32.mxu0 0.0
      %774 = vmatmul.mubr.f32.gmra.mrb[0].mxu0 %v632
      %v775 = vpop.f32.mrb[0].mxu0
      %v776 = vadd.f32 %v584, %v775
      %v777 = vpop.f32.mrb[0].mxu0
      %778 = vdwg.mxu0
      %v779 = vld [vmem:[%s3] sm:$0xff]
      %v780 = vld [vmem:[%s3 + $0x8] sm:$0xff]
      %v781 = vld [vmem:[%s3 + $0x10] sm:$0xff]
      %v782 = vld [vmem:[%s3 + $0x18] sm:$0xff]
      %v783 = vld [vmem:[%s4] sm:$0x1]
      %v785 = vlaneseq
      %v786 = vshrl.u32 %v785, 7
      %v787 = vsub.s32 0, %v786
      %v788 = vrot.slane %v783, %v787
      %vm790 = vcmask 261120
      %v792 = vsel %vm790, %v701, 0
      %v795 = vsel %vm790, %v706, 0
      %v798 = vsel %vm790, %v711, 0
      %v801 = vsel %vm790, %v716, 0
      %v804 = vsel %vm790, %v721, 0
      %v807 = vsel %vm790, %v726, 0
      %v810 = vsel %vm790, %v731, 0
      %v813 = vsel %vm790, %v736, 0
      %v816 = vsel %vm790, %v741, 0
      %v819 = vsel %vm790, %v746, 0
      %v822 = vsel %vm790, %v751, 0
      %v825 = vsel %vm790, %v756, 0
      %v828 = vsel %vm790, %v761, 0
      %v831 = vsel %vm790, %v766, 0
      %v834 = vsel %vm790, %v771, 0
      %v837 = vsel %vm790, %v776, 0
      %839 = vmatprep.subr.mxu0 0.0
      %840 = vmatpush1.msra.mxu0 %v779
      %841 = vmatprep.subr.mxu0 0.0
      %842 = vmatpush1.msra.mxu0 %v780
      %843 = vmatprep.subr.mxu0 0.0
      %844 = vmatpush1.msra.mxu0 %v781
      %845 = vmatprep.subr.mxu0 0.0
      %846 = vmatpush1.msra.mxu0 %v782
      %847 = vmatprep.subr.mxu0 0.0
      %848 = vmatpush1.msra.mxu0 0.0
      %849 = vmatprep.subr.mxu0 0.0
      %850 = vmatpush1.msra.mxu0 0.0
      %851 = vmatprep.subr.mxu0 0.0
      %852 = vmatpush1.msra.mxu0 0.0
      %853 = vmatprep.subr.mxu0 0.0
      %854 = vmatpush1.msra.mxu0 0.0
      %855 = vmatprep.subr.mxu0 0.0
      %856 = vmatpush1.msra.mxu0 0.0
      %857 = vmatprep.subr.mxu0 0.0
      %858 = vmatpush1.msra.mxu0 0.0
      %859 = vmatprep.subr.mxu0 0.0
      %860 = vmatpush1.msra.mxu0 0.0
      %861 = vmatprep.subr.mxu0 0.0
      %862 = vmatpush1.msra.mxu0 0.0
      %863 = vmatprep.subr.mxu0 0.0
      %864 = vmatpush1.msra.mxu0 0.0
      %865 = vmatprep.subr.mxu0 0.0
      %866 = vmatpush1.msra.mxu0 0.0
      %867 = vmatprep.subr.mxu0 0.0
      %868 = vmatpush1.msra.mxu0 0.0
      %869 = vmatprep.subr.mxu0 0.0
      %870 = vmatpush1.msra.mxu0 0.0
      %871 = vmatprep.subr.mxu0 0.0
      %872 = vmatpush1.msra.mxu0 0.0
      %873 = vmatprep.subr.mxu0 0.0
      %874 = vmatpush1.msra.mxu0 0.0
      %875 = vmatprep.subr.mxu0 0.0
      %876 = vmatpush1.msra.mxu0 0.0
      %877 = vmatprep.subr.mxu0 0.0
      %878 = vmatpush1.msra.mxu0 0.0
      %879 = vmatprep.subr.mxu0 0.0
      %880 = vmatpush1.msra.mxu0 0.0
      %881 = vmatprep.subr.mxu0 0.0
      %882 = vmatpush1.msra.mxu0 0.0
      %883 = vmatprep.subr.mxu0 0.0
      %884 = vmatpush1.msra.mxu0 0.0
      %885 = vmatprep.subr.mxu0 0.0
      %886 = vmatpush1.msra.mxu0 0.0
      %887 = vmatprep.subr.mxu0 0.0
      %888 = vmatpush1.msra.mxu0 0.0
      %889 = vmatprep.subr.mxu0 0.0
      %890 = vmatpush1.msra.mxu0 0.0
      %891 = vmatprep.subr.mxu0 0.0
      %892 = vmatpush1.msra.mxu0 0.0
      %893 = vmatprep.subr.mxu0 0.0
      %894 = vmatpush1.msra.mxu0 0.0
      %895 = vmatprep.subr.mxu0 0.0
      %896 = vmatpush1.msra.mxu0 0.0
      %897 = vmatprep.subr.mxu0 0.0
      %898 = vmatpush1.msra.mxu0 0.0
      %899 = vmatprep.subr.mxu0 0.0
      %900 = vmatpush1.msra.mxu0 0.0
      %901 = vmatprep.subr.mxu0 0.0
      %902 = vmatpush1.msra.mxu0 0.0
      %903 = vmatprep.mubr.f32.mxu0 0.0
      %904 = vmatmul.mubr.f32.gmra.mrb[0].mxu0 %v792
      %v905 = vpop.f32.mrb[0].mxu0
      %v906 = vadd.f32 %v788, %v905
      %v907 = vpop.f32.mrb[0].mxu0
      %908 = vmatprep.mubr.f32.mxu0 0.0
      %909 = vmatmul.mubr.f32.gmra.mrb[0].mxu0 %v795
      %v910 = vpop.f32.mrb[0].mxu0
      %v911 = vadd.f32 %v788, %v910
      %v912 = vpop.f32.mrb[0].mxu0
      %913 = vmatprep.mubr.f32.mxu0 0.0
      %914 = vmatmul.mubr.f32.gmra.mrb[0].mxu0 %v798
      %v915 = vpop.f32.mrb[0].mxu0
      %v916 = vadd.f32 %v788, %v915
      %v917 = vpop.f32.mrb[0].mxu0
      %918 = vmatprep.mubr.f32.mxu0 0.0
      %919 = vmatmul.mubr.f32.gmra.mrb[0].mxu0 %v801
      %v920 = vpop.f32.mrb[0].mxu0
      %v921 = vadd.f32 %v788, %v920
      %v922 = vpop.f32.mrb[0].mxu0
      %923 = vmatprep.mubr.f32.mxu0 0.0
      %924 = vmatmul.mubr.f32.gmra.mrb[0].mxu0 %v804
      %v925 = vpop.f32.mrb[0].mxu0
      %v926 = vadd.f32 %v788, %v925
      %v927 = vpop.f32.mrb[0].mxu0
      %928 = vmatprep.mubr.f32.mxu0 0.0
      %929 = vmatmul.mubr.f32.gmra.mrb[0].mxu0 %v807
      %v930 = vpop.f32.mrb[0].mxu0
      %v931 = vadd.f32 %v788, %v930
      %v932 = vpop.f32.mrb[0].mxu0
      %933 = vmatprep.mubr.f32.mxu0 0.0
      %934 = vmatmul.mubr.f32.gmra.mrb[0].mxu0 %v810
      %v935 = vpop.f32.mrb[0].mxu0
      %v936 = vadd.f32 %v788, %v935
      %v937 = vpop.f32.mrb[0].mxu0
      %938 = vmatprep.mubr.f32.mxu0 0.0
      %939 = vmatmul.mubr.f32.gmra.mrb[0].mxu0 %v813
      %v940 = vpop.f32.mrb[0].mxu0
      %v941 = vadd.f32 %v788, %v940
      %v942 = vpop.f32.mrb[0].mxu0
      %943 = vmatprep.mubr.f32.mxu0 0.0
      %944 = vmatmul.mubr.f32.gmra.mrb[0].mxu0 %v816
      %v945 = vpop.f32.mrb[0].mxu0
      %v946 = vadd.f32 %v788, %v945
      %v947 = vpop.f32.mrb[0].mxu0
      %948 = vmatprep.mubr.f32.mxu0 0.0
      %949 = vmatmul.mubr.f32.gmra.mrb[0].mxu0 %v819
      %v950 = vpop.f32.mrb[0].mxu0
      %v951 = vadd.f32 %v788, %v950
      %v952 = vpop.f32.mrb[0].mxu0
      %953 = vmatprep.mubr.f32.mxu0 0.0
      %954 = vmatmul.mubr.f32.gmra.mrb[0].mxu0 %v822
      %v955 = vpop.f32.mrb[0].mxu0
      %v956 = vadd.f32 %v788, %v955
      %v957 = vpop.f32.mrb[0].mxu0
      %958 = vmatprep.mubr.f32.mxu0 0.0
      %959 = vmatmul.mubr.f32.gmra.mrb[0].mxu0 %v825
      %v960 = vpop.f32.mrb[0].mxu0
      %v961 = vadd.f32 %v788, %v960
      %v962 = vpop.f32.mrb[0].mxu0
      %963 = vmatprep.mubr.f32.mxu0 0.0
      %964 = vmatmul.mubr.f32.gmra.mrb[0].mxu0 %v828
      %v965 = vpop.f32.mrb[0].mxu0
      %v966 = vadd.f32 %v788, %v965
      %v967 = vpop.f32.mrb[0].mxu0
      %968 = vmatprep.mubr.f32.mxu0 0.0
      %969 = vmatmul.mubr.f32.gmra.mrb[0].mxu0 %v831
      %v970 = vpop.f32.mrb[0].mxu0
      %v971 = vadd.f32 %v788, %v970
      %v972 = vpop.f32.mrb[0].mxu0
      %973 = vmatprep.mubr.f32.mxu0 0.0
      %974 = vmatmul.mubr.f32.gmra.mrb[0].mxu0 %v834
      %v975 = vpop.f32.mrb[0].mxu0
      %v976 = vadd.f32 %v788, %v975
      %v977 = vpop.f32.mrb[0].mxu0
      %978 = vmatprep.mubr.f32.mxu0 0.0
      %979 = vmatmul.mubr.f32.gmra.mrb[0].mxu0 %v837
      %v980 = vpop.f32.mrb[0].mxu0
      %v981 = vadd.f32 %v788, %v980
      %v982 = vpop.f32.mrb[0].mxu0
      %983 = vdwg.mxu0
      %986 = vrot.lane.b32.xlu0 %v906, 96
      %v987 = vpop.permute.xlu0 %986
      %988 = vrot.lane.b32.xlu0 %v911, 96
      %v989 = vpop.permute.xlu0 %988
      %v990 = vsel %vm790, %v906, 0
      %v992 = vsel %vm790, %v911, 0
      %v994 = vsel %vm790, %v987, 0
      %v996 = vsel %vm790, %v989, 0
      %998 = vmatprep.subr.mxu0 0.0
      %999 = vmatpush1.xpose.msra.mxu0 %v994
      %1000 = vmatprep.subr.mxu0 0.0
      %1001 = vmatpush1.xpose.msra.mxu0 %v996
      %1002 = vmatprep.subr.mxu0 0.0
      %1003 = vmatpush1.xpose.msra.mxu0 0.0
      %1004 = vmatprep.subr.mxu0 0.0
      %1005 = vmatpush1.xpose.msra.mxu0 0.0
      %1006 = vmatprep.subr.mxu0 0.0
      %1007 = vmatpush1.xpose.msra.mxu0 0.0
      %1008 = vmatprep.subr.mxu0 0.0
      %1009 = vmatpush1.xpose.msra.mxu0 0.0
      %1010 = vmatprep.subr.mxu0 0.0
      %1011 = vmatpush1.xpose.msra.mxu0 0.0
      %1012 = vmatprep.subr.mxu0 0.0
      %1013 = vmatpush1.xpose.msra.mxu0 0.0
      %1014 = vmatprep.subr.mxu0 0.0
      %1015 = vmatpush1.xpose.msra.mxu0 0.0
      %1016 = vmatprep.subr.mxu0 0.0
      %1017 = vmatpush1.xpose.msra.mxu0 0.0
      %1018 = vmatprep.subr.mxu0 0.0
      %1019 = vmatpush1.xpose.msra.mxu0 0.0
      %1020 = vmatprep.subr.mxu0 0.0
      %1021 = vmatpush1.xpose.msra.mxu0 0.0
      %1022 = vmatprep.subr.mxu0 0.0
      %1023 = vmatpush1.xpose.msra.mxu0 0.0
      %1024 = vmatprep.subr.mxu0 0.0
      %1025 = vmatpush1.xpose.msra.mxu0 0.0
      %1026 = vmatprep.subr.mxu0 0.0
      %1027 = vmatpush1.xpose.msra.mxu0 0.0
      %1028 = vmatprep.subr.mxu0 0.0
      %1029 = vmatpush1.xpose.msra.mxu0 0.0
      %1030 = vmatprep.subr.mxu0 0.0
      %1031 = vmatpush1.xpose.msra.mxu0 0.0
      %1032 = vmatprep.subr.mxu0 0.0
      %1033 = vmatpush1.xpose.msra.mxu0 0.0
      %1034 = vmatprep.subr.mxu0 0.0
      %1035 = vmatpush1.xpose.msra.mxu0 0.0
      %1036 = vmatprep.subr.mxu0 0.0
      %1037 = vmatpush1.xpose.msra.mxu0 0.0
      %1038 = vmatprep.subr.mxu0 0.0
      %1039 = vmatpush1.xpose.msra.mxu0 0.0
      %1040 = vmatprep.subr.mxu0 0.0
      %1041 = vmatpush1.xpose.msra.mxu0 0.0
      %1042 = vmatprep.subr.mxu0 0.0
      %1043 = vmatpush1.xpose.msra.mxu0 0.0
      %1044 = vmatprep.subr.mxu0 0.0
      %1045 = vmatpush1.xpose.msra.mxu0 0.0
      %1046 = vmatprep.subr.mxu0 0.0
      %1047 = vmatpush1.xpose.msra.mxu0 0.0
      %1048 = vmatprep.subr.mxu0 0.0
      %1049 = vmatpush1.xpose.msra.mxu0 0.0
      %1050 = vmatprep.subr.mxu0 0.0
      %1051 = vmatpush1.xpose.msra.mxu0 0.0
      %1052 = vmatprep.subr.mxu0 0.0
      %1053 = vmatpush1.xpose.msra.mxu0 0.0
      %1054 = vmatprep.subr.mxu0 0.0
      %1055 = vmatpush1.xpose.msra.mxu0 0.0
      %1056 = vmatprep.subr.mxu0 0.0
      %1057 = vmatpush1.xpose.msra.mxu0 0.0
      %1058 = vmatprep.subr.mxu0 0.0
      %1059 = vmatpush1.xpose.msra.mxu0 0.0
      %1060 = vmatprep.subr.mxu0 0.0
      %1061 = vmatpush1.xpose.msra.mxu0 0.0
      %1062 = vmatprep.mubr.f32.mxu0 0.0
      %1063 = vmatmul.mubr.f32.gmra.mrb[0].mxu0 %v990
      %v1064 = vpop.f32.mrb[0].mxu0
      %v1065 = vadd.f32 0.0, %v1064
      %v1066 = vpop.f32.mrb[0].mxu0
      %1067 = vmatprep.mubr.f32.mxu0 0.0
      %1068 = vmatmul.mubr.f32.gmra.mrb[0].mxu0 %v992
      %v1069 = vpop.f32.mrb[0].mxu0
      %v1070 = vadd.f32 0.0, %v1069
      %v1071 = vpop.f32.mrb[0].mxu0
      %1072 = vdwg.mxu0
      %1075 = vrot.lane.b32.xlu0 %v916, 96
      %v1076 = vpop.permute.xlu0 %1075
      %1077 = vrot.lane.b32.xlu0 %v921, 96
      %v1078 = vpop.permute.xlu0 %1077
      %v1079 = vsel %vm790, %v916, 0
      %v1081 = vsel %vm790, %v921, 0
      %v1083 = vsel %vm790, %v1076, 0
      %v1085 = vsel %vm790, %v1078, 0
      %1087 = vmatprep.subr.mxu0 0.0
      %1088 = vmatpush1.xpose.msra.mxu0 %v1083
      %1089 = vmatprep.subr.mxu0 0.0
      %1090 = vmatpush1.xpose.msra.mxu0 %v1085
      %1091 = vmatprep.subr.mxu0 0.0
      %1092 = vmatpush1.xpose.msra.mxu0 0.0
      %1093 = vmatprep.subr.mxu0 0.0
      %1094 = vmatpush1.xpose.msra.mxu0 0.0
      %1095 = vmatprep.subr.mxu0 0.0
      %1096 = vmatpush1.xpose.msra.mxu0 0.0
      %1097 = vmatprep.subr.mxu0 0.0
      %1098 = vmatpush1.xpose.msra.mxu0 0.0
      %1099 = vmatprep.subr.mxu0 0.0
      %1100 = vmatpush1.xpose.msra.mxu0 0.0
      %1101 = vmatprep.subr.mxu0 0.0
      %1102 = vmatpush1.xpose.msra.mxu0 0.0
      %1103 = vmatprep.subr.mxu0 0.0
      %1104 = vmatpush1.xpose.msra.mxu0 0.0
      %1105 = vmatprep.subr.mxu0 0.0
      %1106 = vmatpush1.xpose.msra.mxu0 0.0
      %1107 = vmatprep.subr.mxu0 0.0
      %1108 = vmatpush1.xpose.msra.mxu0 0.0
      %1109 = vmatprep.subr.mxu0 0.0
      %1110 = vmatpush1.xpose.msra.mxu0 0.0
      %1111 = vmatprep.subr.mxu0 0.0
      %1112 = vmatpush1.xpose.msra.mxu0 0.0
      %1113 = vmatprep.subr.mxu0 0.0
      %1114 = vmatpush1.xpose.msra.mxu0 0.0
      %1115 = vmatprep.subr.mxu0 0.0
      %1116 = vmatpush1.xpose.msra.mxu0 0.0
      %1117 = vmatprep.subr.mxu0 0.0
      %1118 = vmatpush1.xpose.msra.mxu0 0.0
      %1119 = vmatprep.subr.mxu0 0.0
      %1120 = vmatpush1.xpose.msra.mxu0 0.0
      %1121 = vmatprep.subr.mxu0 0.0
      %1122 = vmatpush1.xpose.msra.mxu0 0.0
      %1123 = vmatprep.subr.mxu0 0.0
      %1124 = vmatpush1.xpose.msra.mxu0 0.0
      %1125 = vmatprep.subr.mxu0 0.0
      %1126 = vmatpush1.xpose.msra.mxu0 0.0
      %1127 = vmatprep.subr.mxu0 0.0
      %1128 = vmatpush1.xpose.msra.mxu0 0.0
      %1129 = vmatprep.subr.mxu0 0.0
      %1130 = vmatpush1.xpose.msra.mxu0 0.0
      %1131 = vmatprep.subr.mxu0 0.0
      %1132 = vmatpush1.xpose.msra.mxu0 0.0
      %1133 = vmatprep.subr.mxu0 0.0
      %1134 = vmatpush1.xpose.msra.mxu0 0.0
      %1135 = vmatprep.subr.mxu0 0.0
      %1136 = vmatpush1.xpose.msra.mxu0 0.0
      %1137 = vmatprep.subr.mxu0 0.0
      %1138 = vmatpush1.xpose.msra.mxu0 0.0
      %1139 = vmatprep.subr.mxu0 0.0
      %1140 = vmatpush1.xpose.msra.mxu0 0.0
      %1141 = vmatprep.subr.mxu0 0.0
      %1142 = vmatpush1.xpose.msra.mxu0 0.0
      %1143 = vmatprep.subr.mxu0 0.0
      %1144 = vmatpush1.xpose.msra.mxu0 0.0
      %1145 = vmatprep.subr.mxu0 0.0
      %1146 = vmatpush1.xpose.msra.mxu0 0.0
      %1147 = vmatprep.subr.mxu0 0.0
      %1148 = vmatpush1.xpose.msra.mxu0 0.0
      %1149 = vmatprep.subr.mxu0 0.0
      %1150 = vmatpush1.xpose.msra.mxu0 0.0
      %1151 = vmatprep.mubr.f32.mxu0 0.0
      %1152 = vmatmul.mubr.f32.gmra.mrb[0].mxu0 %v1079
      %v1153 = vpop.f32.mrb[0].mxu0
      %v1154 = vadd.f32 0.0, %v1153
      %v1155 = vpop.f32.mrb[0].mxu0
      %1156 = vmatprep.mubr.f32.mxu0 0.0
      %1157 = vmatmul.mubr.f32.gmra.mrb[0].mxu0 %v1081
      %v1158 = vpop.f32.mrb[0].mxu0
      %v1159 = vadd.f32 0.0, %v1158
      %v1160 = vpop.f32.mrb[0].mxu0
      %1161 = vdwg.mxu0
      %1164 = vrot.lane.b32.xlu0 %v926, 96
      %v1165 = vpop.permute.xlu0 %1164
      %1166 = vrot.lane.b32.xlu0 %v931, 96
      %v1167 = vpop.permute.xlu0 %1166
      %v1168 = vsel %vm790, %v926, 0
      %v1170 = vsel %vm790, %v931, 0
      %v1172 = vsel %vm790, %v1165, 0
      %v1174 = vsel %vm790, %v1167, 0
      %1176 = vmatprep.subr.mxu0 0.0
      %1177 = vmatpush1.xpose.msra.mxu0 %v1172
      %1178 = vmatprep.subr.mxu0 0.0
      %1179 = vmatpush1.xpose.msra.mxu0 %v1174
      %1180 = vmatprep.subr.mxu0 0.0
      %1181 = vmatpush1.xpose.msra.mxu0 0.0
      %1182 = vmatprep.subr.mxu0 0.0
      %1183 = vmatpush1.xpose.msra.mxu0 0.0
      %1184 = vmatprep.subr.mxu0 0.0
      %1185 = vmatpush1.xpose.msra.mxu0 0.0
      %1186 = vmatprep.subr.mxu0 0.0
      %1187 = vmatpush1.xpose.msra.mxu0 0.0
      %1188 = vmatprep.subr.mxu0 0.0
      %1189 = vmatpush1.xpose.msra.mxu0 0.0
      %1190 = vmatprep.subr.mxu0 0.0
      %1191 = vmatpush1.xpose.msra.mxu0 0.0
      %1192 = vmatprep.subr.mxu0 0.0
      %1193 = vmatpush1.xpose.msra.mxu0 0.0
      %1194 = vmatprep.subr.mxu0 0.0
      %1195 = vmatpush1.xpose.msra.mxu0 0.0
      %1196 = vmatprep.subr.mxu0 0.0
      %1197 = vmatpush1.xpose.msra.mxu0 0.0
      %1198 = vmatprep.subr.mxu0 0.0
      %1199 = vmatpush1.xpose.msra.mxu0 0.0
      %1200 = vmatprep.subr.mxu0 0.0
      %1201 = vmatpush1.xpose.msra.mxu0 0.0
      %1202 = vmatprep.subr.mxu0 0.0
      %1203 = vmatpush1.xpose.msra.mxu0 0.0
      %1204 = vmatprep.subr.mxu0 0.0
      %1205 = vmatpush1.xpose.msra.mxu0 0.0
      %1206 = vmatprep.subr.mxu0 0.0
      %1207 = vmatpush1.xpose.msra.mxu0 0.0
      %1208 = vmatprep.subr.mxu0 0.0
      %1209 = vmatpush1.xpose.msra.mxu0 0.0
      %1210 = vmatprep.subr.mxu0 0.0
      %1211 = vmatpush1.xpose.msra.mxu0 0.0
      %1212 = vmatprep.subr.mxu0 0.0
      %1213 = vmatpush1.xpose.msra.mxu0 0.0
      %1214 = vmatprep.subr.mxu0 0.0
      %1215 = vmatpush1.xpose.msra.mxu0 0.0
      %1216 = vmatprep.subr.mxu0 0.0
      %1217 = vmatpush1.xpose.msra.mxu0 0.0
      %1218 = vmatprep.subr.mxu0 0.0
      %1219 = vmatpush1.xpose.msra.mxu0 0.0
      %1220 = vmatprep.subr.mxu0 0.0
      %1221 = vmatpush1.xpose.msra.mxu0 0.0
      %1222 = vmatprep.subr.mxu0 0.0
      %1223 = vmatpush1.xpose.msra.mxu0 0.0
      %1224 = vmatprep.subr.mxu0 0.0
      %1225 = vmatpush1.xpose.msra.mxu0 0.0
      %1226 = vmatprep.subr.mxu0 0.0
      %1227 = vmatpush1.xpose.msra.mxu0 0.0
      %1228 = vmatprep.subr.mxu0 0.0
      %1229 = vmatpush1.xpose.msra.mxu0 0.0
      %1230 = vmatprep.subr.mxu0 0.0
      %1231 = vmatpush1.xpose.msra.mxu0 0.0
      %1232 = vmatprep.subr.mxu0 0.0
      %1233 = vmatpush1.xpose.msra.mxu0 0.0
      %1234 = vmatprep.subr.mxu0 0.0
      %1235 = vmatpush1.xpose.msra.mxu0 0.0
      %1236 = vmatprep.subr.mxu0 0.0
      %1237 = vmatpush1.xpose.msra.mxu0 0.0
      %1238 = vmatprep.subr.mxu0 0.0
      %1239 = vmatpush1.xpose.msra.mxu0 0.0
      %1240 = vmatprep.mubr.f32.mxu0 0.0
      %1241 = vmatmul.mubr.f32.gmra.mrb[0].mxu0 %v1168
      %v1242 = vpop.f32.mrb[0].mxu0
      %v1243 = vadd.f32 0.0, %v1242
      %v1244 = vpop.f32.mrb[0].mxu0
      %1245 = vmatprep.mubr.f32.mxu0 0.0
      %1246 = vmatmul.mubr.f32.gmra.mrb[0].mxu0 %v1170
      %v1247 = vpop.f32.mrb[0].mxu0
      %v1248 = vadd.f32 0.0, %v1247
      %v1249 = vpop.f32.mrb[0].mxu0
      %1250 = vdwg.mxu0
      %1253 = vrot.lane.b32.xlu0 %v936, 96
      %v1254 = vpop.permute.xlu0 %1253
      %1255 = vrot.lane.b32.xlu0 %v941, 96
      %v1256 = vpop.permute.xlu0 %1255
      %v1257 = vsel %vm790, %v936, 0
      %v1259 = vsel %vm790, %v941, 0
      %v1261 = vsel %vm790, %v1254, 0
      %v1263 = vsel %vm790, %v1256, 0
      %1265 = vmatprep.subr.mxu0 0.0
      %1266 = vmatpush1.xpose.msra.mxu0 %v1261
      %1267 = vmatprep.subr.mxu0 0.0
      %1268 = vmatpush1.xpose.msra.mxu0 %v1263
      %1269 = vmatprep.subr.mxu0 0.0
      %1270 = vmatpush1.xpose.msra.mxu0 0.0
      %1271 = vmatprep.subr.mxu0 0.0
      %1272 = vmatpush1.xpose.msra.mxu0 0.0
      %1273 = vmatprep.subr.mxu0 0.0
      %1274 = vmatpush1.xpose.msra.mxu0 0.0
      %1275 = vmatprep.subr.mxu0 0.0
      %1276 = vmatpush1.xpose.msra.mxu0 0.0
      %1277 = vmatprep.subr.mxu0 0.0
      %1278 = vmatpush1.xpose.msra.mxu0 0.0
      %1279 = vmatprep.subr.mxu0 0.0
      %1280 = vmatpush1.xpose.msra.mxu0 0.0
      %1281 = vmatprep.subr.mxu0 0.0
      %1282 = vmatpush1.xpose.msra.mxu0 0.0
      %1283 = vmatprep.subr.mxu0 0.0
      %1284 = vmatpush1.xpose.msra.mxu0 0.0
      %1285 = vmatprep.subr.mxu0 0.0
      %1286 = vmatpush1.xpose.msra.mxu0 0.0
      %1287 = vmatprep.subr.mxu0 0.0
      %1288 = vmatpush1.xpose.msra.mxu0 0.0
      %1289 = vmatprep.subr.mxu0 0.0
      %1290 = vmatpush1.xpose.msra.mxu0 0.0
      %1291 = vmatprep.subr.mxu0 0.0
      %1292 = vmatpush1.xpose.msra.mxu0 0.0
      %1293 = vmatprep.subr.mxu0 0.0
      %1294 = vmatpush1.xpose.msra.mxu0 0.0
      %1295 = vmatprep.subr.mxu0 0.0
      %1296 = vmatpush1.xpose.msra.mxu0 0.0
      %1297 = vmatprep.subr.mxu0 0.0
      %1298 = vmatpush1.xpose.msra.mxu0 0.0
      %1299 = vmatprep.subr.mxu0 0.0
      %1300 = vmatpush1.xpose.msra.mxu0 0.0
      %1301 = vmatprep.subr.mxu0 0.0
      %1302 = vmatpush1.xpose.msra.mxu0 0.0
      %1303 = vmatprep.subr.mxu0 0.0
      %1304 = vmatpush1.xpose.msra.mxu0 0.0
      %1305 = vmatprep.subr.mxu0 0.0
      %1306 = vmatpush1.xpose.msra.mxu0 0.0
      %1307 = vmatprep.subr.mxu0 0.0
      %1308 = vmatpush1.xpose.msra.mxu0 0.0
      %1309 = vmatprep.subr.mxu0 0.0
      %1310 = vmatpush1.xpose.msra.mxu0 0.0
      %1311 = vmatprep.subr.mxu0 0.0
      %1312 = vmatpush1.xpose.msra.mxu0 0.0
      %1313 = vmatprep.subr.mxu0 0.0
      %1314 = vmatpush1.xpose.msra.mxu0 0.0
      %1315 = vmatprep.subr.mxu0 0.0
      %1316 = vmatpush1.xpose.msra.mxu0 0.0
      %1317 = vmatprep.subr.mxu0 0.0
      %1318 = vmatpush1.xpose.msra.mxu0 0.0
      %1319 = vmatprep.subr.mxu0 0.0
      %1320 = vmatpush1.xpose.msra.mxu0 0.0
      %1321 = vmatprep.subr.mxu0 0.0
      %1322 = vmatpush1.xpose.msra.mxu0 0.0
      %1323 = vmatprep.subr.mxu0 0.0
      %1324 = vmatpush1.xpose.msra.mxu0 0.0
      %1325 = vmatprep.subr.mxu0 0.0
      %1326 = vmatpush1.xpose.msra.mxu0 0.0
      %1327 = vmatprep.subr.mxu0 0.0
      %1328 = vmatpush1.xpose.msra.mxu0 0.0
      %1329 = vmatprep.mubr.f32.mxu0 0.0
      %1330 = vmatmul.mubr.f32.gmra.mrb[0].mxu0 %v1257
      %v1331 = vpop.f32.mrb[0].mxu0
      %v1332 = vadd.f32 0.0, %v1331
      %v1333 = vpop.f32.mrb[0].mxu0
      %1334 = vmatprep.mubr.f32.mxu0 0.0
      %1335 = vmatmul.mubr.f32.gmra.mrb[0].mxu0 %v1259
      %v1336 = vpop.f32.mrb[0].mxu0
      %v1337 = vadd.f32 0.0, %v1336
      %v1338 = vpop.f32.mrb[0].mxu0
      %1339 = vdwg.mxu0
      %1342 = vrot.lane.b32.xlu0 %v946, 96
      %v1343 = vpop.permute.xlu0 %1342
      %1344 = vrot.lane.b32.xlu0 %v951, 96
      %v1345 = vpop.permute.xlu0 %1344
      %v1346 = vsel %vm790, %v946, 0
      %v1348 = vsel %vm790, %v951, 0
      %v1350 = vsel %vm790, %v1343, 0
      %v1352 = vsel %vm790, %v1345, 0
      %1354 = vmatprep.subr.mxu0 0.0
      %1355 = vmatpush1.xpose.msra.mxu0 %v1350
      %1356 = vmatprep.subr.mxu0 0.0
      %1357 = vmatpush1.xpose.msra.mxu0 %v1352
      %1358 = vmatprep.subr.mxu0 0.0
      %1359 = vmatpush1.xpose.msra.mxu0 0.0
      %1360 = vmatprep.subr.mxu0 0.0
      %1361 = vmatpush1.xpose.msra.mxu0 0.0
      %1362 = vmatprep.subr.mxu0 0.0
      %1363 = vmatpush1.xpose.msra.mxu0 0.0
      %1364 = vmatprep.subr.mxu0 0.0
      %1365 = vmatpush1.xpose.msra.mxu0 0.0
      %1366 = vmatprep.subr.mxu0 0.0
      %1367 = vmatpush1.xpose.msra.mxu0 0.0
      %1368 = vmatprep.subr.mxu0 0.0
      %1369 = vmatpush1.xpose.msra.mxu0 0.0
      %1370 = vmatprep.subr.mxu0 0.0
      %1371 = vmatpush1.xpose.msra.mxu0 0.0
      %1372 = vmatprep.subr.mxu0 0.0
      %1373 = vmatpush1.xpose.msra.mxu0 0.0
      %1374 = vmatprep.subr.mxu0 0.0
      %1375 = vmatpush1.xpose.msra.mxu0 0.0
      %1376 = vmatprep.subr.mxu0 0.0
      %1377 = vmatpush1.xpose.msra.mxu0 0.0
      %1378 = vmatprep.subr.mxu0 0.0
      %1379 = vmatpush1.xpose.msra.mxu0 0.0
      %1380 = vmatprep.subr.mxu0 0.0
      %1381 = vmatpush1.xpose.msra.mxu0 0.0
      %1382 = vmatprep.subr.mxu0 0.0
      %1383 = vmatpush1.xpose.msra.mxu0 0.0
      %1384 = vmatprep.subr.mxu0 0.0
      %1385 = vmatpush1.xpose.msra.mxu0 0.0
      %1386 = vmatprep.subr.mxu0 0.0
      %1387 = vmatpush1.xpose.msra.mxu0 0.0
      %1388 = vmatprep.subr.mxu0 0.0
      %1389 = vmatpush1.xpose.msra.mxu0 0.0
      %1390 = vmatprep.subr.mxu0 0.0
      %1391 = vmatpush1.xpose.msra.mxu0 0.0
      %1392 = vmatprep.subr.mxu0 0.0
      %1393 = vmatpush1.xpose.msra.mxu0 0.0
      %1394 = vmatprep.subr.mxu0 0.0
      %1395 = vmatpush1.xpose.msra.mxu0 0.0
      %1396 = vmatprep.subr.mxu0 0.0
      %1397 = vmatpush1.xpose.msra.mxu0 0.0
      %1398 = vmatprep.subr.mxu0 0.0
      %1399 = vmatpush1.xpose.msra.mxu0 0.0
      %1400 = vmatprep.subr.mxu0 0.0
      %1401 = vmatpush1.xpose.msra.mxu0 0.0
      %1402 = vmatprep.subr.mxu0 0.0
      %1403 = vmatpush1.xpose.msra.mxu0 0.0
      %1404 = vmatprep.subr.mxu0 0.0
      %1405 = vmatpush1.xpose.msra.mxu0 0.0
      %1406 = vmatprep.subr.mxu0 0.0
      %1407 = vmatpush1.xpose.msra.mxu0 0.0
      %1408 = vmatprep.subr.mxu0 0.0
      %1409 = vmatpush1.xpose.msra.mxu0 0.0
      %1410 = vmatprep.subr.mxu0 0.0
      %1411 = vmatpush1.xpose.msra.mxu0 0.0
      %1412 = vmatprep.subr.mxu0 0.0
      %1413 = vmatpush1.xpose.msra.mxu0 0.0
      %1414 = vmatprep.subr.mxu0 0.0
      %1415 = vmatpush1.xpose.msra.mxu0 0.0
      %1416 = vmatprep.subr.mxu0 0.0
      %1417 = vmatpush1.xpose.msra.mxu0 0.0
      %1418 = vmatprep.mubr.f32.mxu0 0.0
      %1419 = vmatmul.mubr.f32.gmra.mrb[0].mxu0 %v1346
      %v1420 = vpop.f32.mrb[0].mxu0
      %v1421 = vadd.f32 0.0, %v1420
      %v1422 = vpop.f32.mrb[0].mxu0
      %1423 = vmatprep.mubr.f32.mxu0 0.0
      %1424 = vmatmul.mubr.f32.gmra.mrb[0].mxu0 %v1348
      %v1425 = vpop.f32.mrb[0].mxu0
      %v1426 = vadd.f32 0.0, %v1425
      %v1427 = vpop.f32.mrb[0].mxu0
      %1428 = vdwg.mxu0
      %1431 = vrot.lane.b32.xlu0 %v956, 96
      %v1432 = vpop.permute.xlu0 %1431
      %1433 = vrot.lane.b32.xlu0 %v961, 96
      %v1434 = vpop.permute.xlu0 %1433
      %v1435 = vsel %vm790, %v956, 0
      %v1437 = vsel %vm790, %v961, 0
      %v1439 = vsel %vm790, %v1432, 0
      %v1441 = vsel %vm790, %v1434, 0
      %1443 = vmatprep.subr.mxu0 0.0
      %1444 = vmatpush1.xpose.msra.mxu0 %v1439
      %1445 = vmatprep.subr.mxu0 0.0
      %1446 = vmatpush1.xpose.msra.mxu0 %v1441
      %1447 = vmatprep.subr.mxu0 0.0
      %1448 = vmatpush1.xpose.msra.mxu0 0.0
      %1449 = vmatprep.subr.mxu0 0.0
      %1450 = vmatpush1.xpose.msra.mxu0 0.0
      %1451 = vmatprep.subr.mxu0 0.0
      %1452 = vmatpush1.xpose.msra.mxu0 0.0
      %1453 = vmatprep.subr.mxu0 0.0
      %1454 = vmatpush1.xpose.msra.mxu0 0.0
      %1455 = vmatprep.subr.mxu0 0.0
      %1456 = vmatpush1.xpose.msra.mxu0 0.0
      %1457 = vmatprep.subr.mxu0 0.0
      %1458 = vmatpush1.xpose.msra.mxu0 0.0
      %1459 = vmatprep.subr.mxu0 0.0
      %1460 = vmatpush1.xpose.msra.mxu0 0.0
      %1461 = vmatprep.subr.mxu0 0.0
      %1462 = vmatpush1.xpose.msra.mxu0 0.0
      %1463 = vmatprep.subr.mxu0 0.0
      %1464 = vmatpush1.xpose.msra.mxu0 0.0
      %1465 = vmatprep.subr.mxu0 0.0
      %1466 = vmatpush1.xpose.msra.mxu0 0.0
      %1467 = vmatprep.subr.mxu0 0.0
      %1468 = vmatpush1.xpose.msra.mxu0 0.0
      %1469 = vmatprep.subr.mxu0 0.0
      %1470 = vmatpush1.xpose.msra.mxu0 0.0
      %1471 = vmatprep.subr.mxu0 0.0
      %1472 = vmatpush1.xpose.msra.mxu0 0.0
      %1473 = vmatprep.subr.mxu0 0.0
      %1474 = vmatpush1.xpose.msra.mxu0 0.0
      %1475 = vmatprep.subr.mxu0 0.0
      %1476 = vmatpush1.xpose.msra.mxu0 0.0
      %1477 = vmatprep.subr.mxu0 0.0
      %1478 = vmatpush1.xpose.msra.mxu0 0.0
      %1479 = vmatprep.subr.mxu0 0.0
      %1480 = vmatpush1.xpose.msra.mxu0 0.0
      %1481 = vmatprep.subr.mxu0 0.0
      %1482 = vmatpush1.xpose.msra.mxu0 0.0
      %1483 = vmatprep.subr.mxu0 0.0
      %1484 = vmatpush1.xpose.msra.mxu0 0.0
      %1485 = vmatprep.subr.mxu0 0.0
      %1486 = vmatpush1.xpose.msra.mxu0 0.0
      %1487 = vmatprep.subr.mxu0 0.0
      %1488 = vmatpush1.xpose.msra.mxu0 0.0
      %1489 = vmatprep.subr.mxu0 0.0
      %1490 = vmatpush1.xpose.msra.mxu0 0.0
      %1491 = vmatprep.subr.mxu0 0.0
      %1492 = vmatpush1.xpose.msra.mxu0 0.0
      %1493 = vmatprep.subr.mxu0 0.0
      %1494 = vmatpush1.xpose.msra.mxu0 0.0
      %1495 = vmatprep.subr.mxu0 0.0
      %1496 = vmatpush1.xpose.msra.mxu0 0.0
      %1497 = vmatprep.subr.mxu0 0.0
      %1498 = vmatpush1.xpose.msra.mxu0 0.0
      %1499 = vmatprep.subr.mxu0 0.0
      %1500 = vmatpush1.xpose.msra.mxu0 0.0
      %1501 = vmatprep.subr.mxu0 0.0
      %1502 = vmatpush1.xpose.msra.mxu0 0.0
      %1503 = vmatprep.subr.mxu0 0.0
      %1504 = vmatpush1.xpose.msra.mxu0 0.0
      %1505 = vmatprep.subr.mxu0 0.0
      %1506 = vmatpush1.xpose.msra.mxu0 0.0
      %1507 = vmatprep.mubr.f32.mxu0 0.0
      %1508 = vmatmul.mubr.f32.gmra.mrb[0].mxu0 %v1435
      %v1509 = vpop.f32.mrb[0].mxu0
      %v1510 = vadd.f32 0.0, %v1509
      %v1511 = vpop.f32.mrb[0].mxu0
      %1512 = vmatprep.mubr.f32.mxu0 0.0
      %1513 = vmatmul.mubr.f32.gmra.mrb[0].mxu0 %v1437
      %v1514 = vpop.f32.mrb[0].mxu0
      %v1515 = vadd.f32 0.0, %v1514
      %v1516 = vpop.f32.mrb[0].mxu0
      %1517 = vdwg.mxu0
      %1520 = vrot.lane.b32.xlu0 %v966, 96
      %v1521 = vpop.permute.xlu0 %1520
      %1522 = vrot.lane.b32.xlu0 %v971, 96
      %v1523 = vpop.permute.xlu0 %1522
      %v1524 = vsel %vm790, %v966, 0
      %v1526 = vsel %vm790, %v971, 0
      %v1528 = vsel %vm790, %v1521, 0
      %v1530 = vsel %vm790, %v1523, 0
      %1532 = vmatprep.subr.mxu0 0.0
      %1533 = vmatpush1.xpose.msra.mxu0 %v1528
      %1534 = vmatprep.subr.mxu0 0.0
      %1535 = vmatpush1.xpose.msra.mxu0 %v1530
      %1536 = vmatprep.subr.mxu0 0.0
      %1537 = vmatpush1.xpose.msra.mxu0 0.0
      %1538 = vmatprep.subr.mxu0 0.0
      %1539 = vmatpush1.xpose.msra.mxu0 0.0
      %1540 = vmatprep.subr.mxu0 0.0
      %1541 = vmatpush1.xpose.msra.mxu0 0.0
      %1542 = vmatprep.subr.mxu0 0.0
      %1543 = vmatpush1.xpose.msra.mxu0 0.0
      %1544 = vmatprep.subr.mxu0 0.0
      %1545 = vmatpush1.xpose.msra.mxu0 0.0
      %1546 = vmatprep.subr.mxu0 0.0
      %1547 = vmatpush1.xpose.msra.mxu0 0.0
      %1548 = vmatprep.subr.mxu0 0.0
      %1549 = vmatpush1.xpose.msra.mxu0 0.0
      %1550 = vmatprep.subr.mxu0 0.0
      %1551 = vmatpush1.xpose.msra.mxu0 0.0
      %1552 = vmatprep.subr.mxu0 0.0
      %1553 = vmatpush1.xpose.msra.mxu0 0.0
      %1554 = vmatprep.subr.mxu0 0.0
      %1555 = vmatpush1.xpose.msra.mxu0 0.0
      %1556 = vmatprep.subr.mxu0 0.0
      %1557 = vmatpush1.xpose.msra.mxu0 0.0
      %1558 = vmatprep.subr.mxu0 0.0
      %1559 = vmatpush1.xpose.msra.mxu0 0.0
      %1560 = vmatprep.subr.mxu0 0.0
      %1561 = vmatpush1.xpose.msra.mxu0 0.0
      %1562 = vmatprep.subr.mxu0 0.0
      %1563 = vmatpush1.xpose.msra.mxu0 0.0
      %1564 = vmatprep.subr.mxu0 0.0
      %1565 = vmatpush1.xpose.msra.mxu0 0.0
      %1566 = vmatprep.subr.mxu0 0.0
      %1567 = vmatpush1.xpose.msra.mxu0 0.0
      %1568 = vmatprep.subr.mxu0 0.0
      %1569 = vmatpush1.xpose.msra.mxu0 0.0
      %1570 = vmatprep.subr.mxu0 0.0
      %1571 = vmatpush1.xpose.msra.mxu0 0.0
      %1572 = vmatprep.subr.mxu0 0.0
      %1573 = vmatpush1.xpose.msra.mxu0 0.0
      %1574 = vmatprep.subr.mxu0 0.0
      %1575 = vmatpush1.xpose.msra.mxu0 0.0
      %1576 = vmatprep.subr.mxu0 0.0
      %1577 = vmatpush1.xpose.msra.mxu0 0.0
      %1578 = vmatprep.subr.mxu0 0.0
      %1579 = vmatpush1.xpose.msra.mxu0 0.0
      %1580 = vmatprep.subr.mxu0 0.0
      %1581 = vmatpush1.xpose.msra.mxu0 0.0
      %1582 = vmatprep.subr.mxu0 0.0
      %1583 = vmatpush1.xpose.msra.mxu0 0.0
      %1584 = vmatprep.subr.mxu0 0.0
      %1585 = vmatpush1.xpose.msra.mxu0 0.0
      %1586 = vmatprep.subr.mxu0 0.0
      %1587 = vmatpush1.xpose.msra.mxu0 0.0
      %1588 = vmatprep.subr.mxu0 0.0
      %1589 = vmatpush1.xpose.msra.mxu0 0.0
      %1590 = vmatprep.subr.mxu0 0.0
      %1591 = vmatpush1.xpose.msra.mxu0 0.0
      %1592 = vmatprep.subr.mxu0 0.0
      %1593 = vmatpush1.xpose.msra.mxu0 0.0
      %1594 = vmatprep.subr.mxu0 0.0
      %1595 = vmatpush1.xpose.msra.mxu0 0.0
      %1596 = vmatprep.mubr.f32.mxu0 0.0
      %1597 = vmatmul.mubr.f32.gmra.mrb[0].mxu0 %v1524
      %v1598 = vpop.f32.mrb[0].mxu0
      %v1599 = vadd.f32 0.0, %v1598
      %v1600 = vpop.f32.mrb[0].mxu0
      %1601 = vmatprep.mubr.f32.mxu0 0.0
      %1602 = vmatmul.mubr.f32.gmra.mrb[0].mxu0 %v1526
      %v1603 = vpop.f32.mrb[0].mxu0
      %v1604 = vadd.f32 0.0, %v1603
      %v1605 = vpop.f32.mrb[0].mxu0
      %1606 = vdwg.mxu0
      %1609 = vrot.lane.b32.xlu0 %v976, 96
      %v1610 = vpop.permute.xlu0 %1609
      %1611 = vrot.lane.b32.xlu0 %v981, 96
      %v1612 = vpop.permute.xlu0 %1611
      %v1613 = vsel %vm790, %v976, 0
      %v1615 = vsel %vm790, %v981, 0
      %v1617 = vsel %vm790, %v1610, 0
      %v1619 = vsel %vm790, %v1612, 0
      %1621 = vmatprep.subr.mxu0 0.0
      %1622 = vmatpush1.xpose.msra.mxu0 %v1617
      %1623 = vmatprep.subr.mxu0 0.0
      %1624 = vmatpush1.xpose.msra.mxu0 %v1619
      %1625 = vmatprep.subr.mxu0 0.0
      %1626 = vmatpush1.xpose.msra.mxu0 0.0
      %1627 = vmatprep.subr.mxu0 0.0
      %1628 = vmatpush1.xpose.msra.mxu0 0.0
      %1629 = vmatprep.subr.mxu0 0.0
      %1630 = vmatpush1.xpose.msra.mxu0 0.0
      %1631 = vmatprep.subr.mxu0 0.0
      %1632 = vmatpush1.xpose.msra.mxu0 0.0
      %1633 = vmatprep.subr.mxu0 0.0
      %1634 = vmatpush1.xpose.msra.mxu0 0.0
      %1635 = vmatprep.subr.mxu0 0.0
      %1636 = vmatpush1.xpose.msra.mxu0 0.0
      %1637 = vmatprep.subr.mxu0 0.0
      %1638 = vmatpush1.xpose.msra.mxu0 0.0
      %1639 = vmatprep.subr.mxu0 0.0
      %1640 = vmatpush1.xpose.msra.mxu0 0.0
      %1641 = vmatprep.subr.mxu0 0.0
      %1642 = vmatpush1.xpose.msra.mxu0 0.0
      %1643 = vmatprep.subr.mxu0 0.0
      %1644 = vmatpush1.xpose.msra.mxu0 0.0
      %1645 = vmatprep.subr.mxu0 0.0
      %1646 = vmatpush1.xpose.msra.mxu0 0.0
      %1647 = vmatprep.subr.mxu0 0.0
      %1648 = vmatpush1.xpose.msra.mxu0 0.0
      %1649 = vmatprep.subr.mxu0 0.0
      %1650 = vmatpush1.xpose.msra.mxu0 0.0
      %1651 = vmatprep.subr.mxu0 0.0
      %1652 = vmatpush1.xpose.msra.mxu0 0.0
      %1653 = vmatprep.subr.mxu0 0.0
      %1654 = vmatpush1.xpose.msra.mxu0 0.0
      %1655 = vmatprep.subr.mxu0 0.0
      %1656 = vmatpush1.xpose.msra.mxu0 0.0
      %1657 = vmatprep.subr.mxu0 0.0
      %1658 = vmatpush1.xpose.msra.mxu0 0.0
      %1659 = vmatprep.subr.mxu0 0.0
      %1660 = vmatpush1.xpose.msra.mxu0 0.0
      %1661 = vmatprep.subr.mxu0 0.0
      %1662 = vmatpush1.xpose.msra.mxu0 0.0
      %1663 = vmatprep.subr.mxu0 0.0
      %1664 = vmatpush1.xpose.msra.mxu0 0.0
      %1665 = vmatprep.subr.mxu0 0.0
      %1666 = vmatpush1.xpose.msra.mxu0 0.0
      %1667 = vmatprep.subr.mxu0 0.0
      %1668 = vmatpush1.xpose.msra.mxu0 0.0
      %1669 = vmatprep.subr.mxu0 0.0
      %1670 = vmatpush1.xpose.msra.mxu0 0.0
      %1671 = vmatprep.subr.mxu0 0.0
      %1672 = vmatpush1.xpose.msra.mxu0 0.0
      %1673 = vmatprep.subr.mxu0 0.0
      %1674 = vmatpush1.xpose.msra.mxu0 0.0
      %1675 = vmatprep.subr.mxu0 0.0
      %1676 = vmatpush1.xpose.msra.mxu0 0.0
      %1677 = vmatprep.subr.mxu0 0.0
      %1678 = vmatpush1.xpose.msra.mxu0 0.0
      %1679 = vmatprep.subr.mxu0 0.0
      %1680 = vmatpush1.xpose.msra.mxu0 0.0
      %1681 = vmatprep.subr.mxu0 0.0
      %1682 = vmatpush1.xpose.msra.mxu0 0.0
      %1683 = vmatprep.subr.mxu0 0.0
      %1684 = vmatpush1.xpose.msra.mxu0 0.0
      %1685 = vmatprep.mubr.f32.mxu0 0.0
      %1686 = vmatmul.mubr.f32.gmra.mrb[0].mxu0 %v1613
      %v1687 = vpop.f32.mrb[0].mxu0
      %v1688 = vadd.f32 0.0, %v1687
      %v1689 = vpop.f32.mrb[0].mxu0
      %1690 = vmatprep.mubr.f32.mxu0 0.0
      %1691 = vmatmul.mubr.f32.gmra.mrb[0].mxu0 %v1615
      %v1692 = vpop.f32.mrb[0].mxu0
      %v1693 = vadd.f32 0.0, %v1692
      %v1694 = vpop.f32.mrb[0].mxu0
      %1695 = vdwg.mxu0
      %v1696 = vmul.f32 %v1065, 0.17677669
      %v1697 = vmul.f32 %v1070, 0.17677669
      %v1698 = vmul.f32 %v1154, 0.17677669
      %v1699 = vmul.f32 %v1159, 0.17677669
      %v1700 = vmul.f32 %v1243, 0.17677669
      %v1701 = vmul.f32 %v1248, 0.17677669
      %v1702 = vmul.f32 %v1332, 0.17677669
      %v1703 = vmul.f32 %v1337, 0.17677669
      %v1704 = vmul.f32 %v1421, 0.17677669
      %v1705 = vmul.f32 %v1426, 0.17677669
      %v1706 = vmul.f32 %v1510, 0.17677669
      %v1707 = vmul.f32 %v1515, 0.17677669
      %v1708 = vmul.f32 %v1599, 0.17677669
      %v1709 = vmul.f32 %v1604, 0.17677669
      %v1710 = vmul.f32 %v1688, 0.17677669
      %v1711 = vmul.f32 %v1693, 0.17677669
      %vm1712 = vcmask 130048
      %v1713 = vsel %vm1712, %v1696, -inf
      %1714 = vmax.xlane.f32.xlu0 %v1713
      %v1715 = vpop.xlane.xlu0 %1714
      %v1716 = vsel %vm1712, %v1697, -inf
      %1717 = vmax.xlane.f32.xlu0 %v1716
      %v1718 = vpop.xlane.xlu0 %1717
      %v1719 = vsel %vm1712, %v1698, -inf
      %1720 = vmax.xlane.f32.xlu0 %v1719
      %v1721 = vpop.xlane.xlu0 %1720
      %v1722 = vsel %vm1712, %v1699, -inf
      %1723 = vmax.xlane.f32.xlu0 %v1722
      %v1724 = vpop.xlane.xlu0 %1723
      %v1725 = vsel %vm1712, %v1700, -inf
      %1726 = vmax.xlane.f32.xlu0 %v1725
      %v1727 = vpop.xlane.xlu0 %1726
      %v1728 = vsel %vm1712, %v1701, -inf
      %1729 = vmax.xlane.f32.xlu0 %v1728
      %v1730 = vpop.xlane.xlu0 %1729
      %v1731 = vsel %vm1712, %v1702, -inf
      %1732 = vmax.xlane.f32.xlu0 %v1731
      %v1733 = vpop.xlane.xlu0 %1732
      %v1734 = vsel %vm1712, %v1703, -inf
      %1735 = vmax.xlane.f32.xlu0 %v1734
      %v1736 = vpop.xlane.xlu0 %1735
      %v1737 = vsel %vm1712, %v1704, -inf
      %1738 = vmax.xlane.f32.xlu0 %v1737
      %v1739 = vpop.xlane.xlu0 %1738
      %v1740 = vsel %vm1712, %v1705, -inf
      %1741 = vmax.xlane.f32.xlu0 %v1740
      %v1742 = vpop.xlane.xlu0 %1741
      %v1743 = vsel %vm1712, %v1706, -inf
      %1744 = vmax.xlane.f32.xlu0 %v1743
      %v1745 = vpop.xlane.xlu0 %1744
      %v1746 = vsel %vm1712, %v1707, -inf
      %1747 = vmax.xlane.f32.xlu0 %v1746
      %v1748 = vpop.xlane.xlu0 %1747
      %v1749 = vsel %vm1712, %v1708, -inf
      %1750 = vmax.xlane.f32.xlu0 %v1749
      %v1751 = vpop.xlane.xlu0 %1750
      %v1752 = vsel %vm1712, %v1709, -inf
      %1753 = vmax.xlane.f32.xlu0 %v1752
      %v1754 = vpop.xlane.xlu0 %1753
      %v1755 = vsel %vm1712, %v1710, -inf
      %1756 = vmax.xlane.f32.xlu0 %v1755
      %v1757 = vpop.xlane.xlu0 %1756
      %v1758 = vsel %vm1712, %v1711, -inf
      %1759 = vmax.xlane.f32.xlu0 %v1758
      %v1760 = vpop.xlane.xlu0 %1759
      %v1761 = vsub.f32 %v1696, %v1715
      %v1762 = vsub.f32 %v1697, %v1718
      %v1763 = vsub.f32 %v1698, %v1721
      %v1764 = vsub.f32 %v1699, %v1724
      %v1765 = vsub.f32 %v1700, %v1727
      %v1766 = vsub.f32 %v1701, %v1730
      %v1767 = vsub.f32 %v1702, %v1733
      %v1768 = vsub.f32 %v1703, %v1736
      %v1769 = vsub.f32 %v1704, %v1739
      %v1770 = vsub.f32 %v1705, %v1742
      %v1771 = vsub.f32 %v1706, %v1745
      %v1772 = vsub.f32 %v1707, %v1748
      %v1773 = vsub.f32 %v1708, %v1751
      %v1774 = vsub.f32 %v1709, %v1754
      %v1775 = vsub.f32 %v1710, %v1757
      %v1776 = vsub.f32 %v1711, %v1760
      %v1777 = vmul.f32 %v1761, 1.442695
      %v1778 = vpow.pop %v1777
      %v1779 = vmul.f32 %v1762, 1.442695
      %v1780 = vpow.pop %v1779
      %v1781 = vmul.f32 %v1763, 1.442695
      %v1782 = vpow.pop %v1781
      %v1783 = vmul.f32 %v1764, 1.442695
      %v1784 = vpow.pop %v1783
      %v1785 = vmul.f32 %v1765, 1.442695
      %v1786 = vpow.pop %v1785
      %v1787 = vmul.f32 %v1766, 1.442695
      %v1788 = vpow.pop %v1787
      %v1789 = vmul.f32 %v1767, 1.442695
      %v1790 = vpow.pop %v1789
      %v1791 = vmul.f32 %v1768, 1.442695
      %v1792 = vpow.pop %v1791
      %v1793 = vmul.f32 %v1769, 1.442695
      %v1794 = vpow.pop %v1793
      %v1795 = vmul.f32 %v1770, 1.442695
      %v1796 = vpow.pop %v1795
      %v1797 = vmul.f32 %v1771, 1.442695
      %v1798 = vpow.pop %v1797
      %v1799 = vmul.f32 %v1772, 1.442695
      %v1800 = vpow.pop %v1799
      %v1801 = vmul.f32 %v1773, 1.442695
      %v1802 = vpow.pop %v1801
      %v1803 = vmul.f32 %v1774, 1.442695
      %v1804 = vpow.pop %v1803
      %v1805 = vmul.f32 %v1775, 1.442695
      %v1806 = vpow.pop %v1805
      %v1807 = vmul.f32 %v1776, 1.442695
      %v1808 = vpow.pop %v1807
      %v1809 = vsel %vm1712, %v1778, 0.0
      %1810 = vadd.xlane.f32.xlu0 %v1809
      %v1811 = vpop.xlane.xlu0 %1810
      %v1812 = vsel %vm1712, %v1780, 0.0
      %1813 = vadd.xlane.f32.xlu0 %v1812
      %v1814 = vpop.xlane.xlu0 %1813
      %v1815 = vsel %vm1712, %v1782, 0.0
      %1816 = vadd.xlane.f32.xlu0 %v1815
      %v1817 = vpop.xlane.xlu0 %1816
      %v1818 = vsel %vm1712, %v1784, 0.0
      %1819 = vadd.xlane.f32.xlu0 %v1818
      %v1820 = vpop.xlane.xlu0 %1819
      %v1821 = vsel %vm1712, %v1786, 0.0
      %1822 = vadd.xlane.f32.xlu0 %v1821
      %v1823 = vpop.xlane.xlu0 %1822
      %v1824 = vsel %vm1712, %v1788, 0.0
      %1825 = vadd.xlane.f32.xlu0 %v1824
      %v1826 = vpop.xlane.xlu0 %1825
      %v1827 = vsel %vm1712, %v1790, 0.0
      %1828 = vadd.xlane.f32.xlu0 %v1827
      %v1829 = vpop.xlane.xlu0 %1828
      %v1830 = vsel %vm1712, %v1792, 0.0
      %1831 = vadd.xlane.f32.xlu0 %v1830
      %v1832 = vpop.xlane.xlu0 %1831
      %v1833 = vsel %vm1712, %v1794, 0.0
      %1834 = vadd.xlane.f32.xlu0 %v1833
      %v1835 = vpop.xlane.xlu0 %1834
      %v1836 = vsel %vm1712, %v1796, 0.0
      %1837 = vadd.xlane.f32.xlu0 %v1836
      %v1838 = vpop.xlane.xlu0 %1837
      %v1839 = vsel %vm1712, %v1798, 0.0
      %1840 = vadd.xlane.f32.xlu0 %v1839
      %v1841 = vpop.xlane.xlu0 %1840
      %v1842 = vsel %vm1712, %v1800, 0.0
      %1843 = vadd.xlane.f32.xlu0 %v1842
      %v1844 = vpop.xlane.xlu0 %1843
      %v1845 = vsel %vm1712, %v1802, 0.0
      %1846 = vadd.xlane.f32.xlu0 %v1845
      %v1847 = vpop.xlane.xlu0 %1846
      %v1848 = vsel %vm1712, %v1804, 0.0
      %1849 = vadd.xlane.f32.xlu0 %v1848
      %v1850 = vpop.xlane.xlu0 %1849
      %v1851 = vsel %vm1712, %v1806, 0.0
      %1852 = vadd.xlane.f32.xlu0 %v1851
      %v1853 = vpop.xlane.xlu0 %1852
      %v1854 = vsel %vm1712, %v1808, 0.0
      %1855 = vadd.xlane.f32.xlu0 %v1854
      %v1856 = vpop.xlane.xlu0 %1855
      %v1857 = vrcp.pop %v1811
      %v1858 = vmul.f32 %v1778, %v1857
      %v1859 = vrcp.pop %v1814
      %v1860 = vmul.f32 %v1780, %v1859
      %v1861 = vrcp.pop %v1817
      %v1862 = vmul.f32 %v1782, %v1861
      %v1863 = vrcp.pop %v1820
      %v1864 = vmul.f32 %v1784, %v1863
      %v1865 = vrcp.pop %v1823
      %v1866 = vmul.f32 %v1786, %v1865
      %v1867 = vrcp.pop %v1826
      %v1868 = vmul.f32 %v1788, %v1867
      %v1869 = vrcp.pop %v1829
      %v1870 = vmul.f32 %v1790, %v1869
      %v1871 = vrcp.pop %v1832
      %v1872 = vmul.f32 %v1792, %v1871
      %v1873 = vrcp.pop %v1835
      %v1874 = vmul.f32 %v1794, %v1873
      %v1875 = vrcp.pop %v1838
      %v1876 = vmul.f32 %v1796, %v1875
      %v1877 = vrcp.pop %v1841
      %v1878 = vmul.f32 %v1798, %v1877
      %v1879 = vrcp.pop %v1844
      %v1880 = vmul.f32 %v1800, %v1879
      %v1881 = vrcp.pop %v1847
      %v1882 = vmul.f32 %v1802, %v1881
      %v1883 = vrcp.pop %v1850
      %v1884 = vmul.f32 %v1804, %v1883
      %v1885 = vrcp.pop %v1853
      %v1886 = vmul.f32 %v1806, %v1885
      %v1887 = vrcp.pop %v1856
      %v1888 = vmul.f32 %v1808, %v1887
      %1889 = vrot.lane.b32.xlu0 %v906, 64
      %v1890 = vpop.permute.xlu0 %1889
      %1891 = vrot.lane.b32.xlu0 %v911, 64
      %v1892 = vpop.permute.xlu0 %1891
      %v1896 = vsel %vm1712, %v1858, 0
      %v1899 = vsel %vm1712, %v1860, 0
      %1901 = vmatprep.subr.mxu0 0.0
      %1902 = vmatpush1.msra.mxu0 %v1890
      %1903 = vmatprep.subr.mxu0 0.0
      %1904 = vmatpush1.msra.mxu0 %v1892
      %1905 = vmatprep.subr.mxu0 0.0
      %1906 = vmatpush1.msra.mxu0 0.0
      %1907 = vmatprep.subr.mxu0 0.0
      %1908 = vmatpush1.msra.mxu0 0.0
      %1909 = vmatprep.subr.mxu0 0.0
      %1910 = vmatpush1.msra.mxu0 0.0
      %1911 = vmatprep.subr.mxu0 0.0
      %1912 = vmatpush1.msra.mxu0 0.0
      %1913 = vmatprep.subr.mxu0 0.0
      %1914 = vmatpush1.msra.mxu0 0.0
      %1915 = vmatprep.subr.mxu0 0.0
      %1916 = vmatpush1.msra.mxu0 0.0
      %1917 = vmatprep.subr.mxu0 0.0
      %1918 = vmatpush1.msra.mxu0 0.0
      %1919 = vmatprep.subr.mxu0 0.0
      %1920 = vmatpush1.msra.mxu0 0.0
      %1921 = vmatprep.subr.mxu0 0.0
      %1922 = vmatpush1.msra.mxu0 0.0
      %1923 = vmatprep.subr.mxu0 0.0
      %1924 = vmatpush1.msra.mxu0 0.0
      %1925 = vmatprep.subr.mxu0 0.0
      %1926 = vmatpush1.msra.mxu0 0.0
      %1927 = vmatprep.subr.mxu0 0.0
      %1928 = vmatpush1.msra.mxu0 0.0
      %1929 = vmatprep.subr.mxu0 0.0
      %1930 = vmatpush1.msra.mxu0 0.0
      %1931 = vmatprep.subr.mxu0 0.0
      %1932 = vmatpush1.msra.mxu0 0.0
      %1933 = vmatprep.subr.mxu0 0.0
      %1934 = vmatpush1.msra.mxu0 0.0
      %1935 = vmatprep.subr.mxu0 0.0
      %1936 = vmatpush1.msra.mxu0 0.0
      %1937 = vmatprep.subr.mxu0 0.0
      %1938 = vmatpush1.msra.mxu0 0.0
      %1939 = vmatprep.subr.mxu0 0.0
      %1940 = vmatpush1.msra.mxu0 0.0
      %1941 = vmatprep.subr.mxu0 0.0
      %1942 = vmatpush1.msra.mxu0 0.0
      %1943 = vmatprep.subr.mxu0 0.0
      %1944 = vmatpush1.msra.mxu0 0.0
      %1945 = vmatprep.subr.mxu0 0.0
      %1946 = vmatpush1.msra.mxu0 0.0
      %1947 = vmatprep.subr.mxu0 0.0
      %1948 = vmatpush1.msra.mxu0 0.0
      %1949 = vmatprep.subr.mxu0 0.0
      %1950 = vmatpush1.msra.mxu0 0.0
      %1951 = vmatprep.subr.mxu0 0.0
      %1952 = vmatpush1.msra.mxu0 0.0
      %1953 = vmatprep.subr.mxu0 0.0
      %1954 = vmatpush1.msra.mxu0 0.0
      %1955 = vmatprep.subr.mxu0 0.0
      %1956 = vmatpush1.msra.mxu0 0.0
      %1957 = vmatprep.subr.mxu0 0.0
      %1958 = vmatpush1.msra.mxu0 0.0
      %1959 = vmatprep.subr.mxu0 0.0
      %1960 = vmatpush1.msra.mxu0 0.0
      %1961 = vmatprep.subr.mxu0 0.0
      %1962 = vmatpush1.msra.mxu0 0.0
      %1963 = vmatprep.subr.mxu0 0.0
      %1964 = vmatpush1.msra.mxu0 0.0
      %1965 = vmatprep.mubr.f32.mxu0 0.0
      %1966 = vmatmul.mubr.f32.gmra.mrb[0].mxu0 %v1896
      %v1967 = vpop.f32.mrb[0].mxu0
      %v1968 = vadd.f32 0.0, %v1967
      %v1969 = vpop.f32.mrb[0].mxu0
      %1970 = vmatprep.mubr.f32.mxu0 0.0
      %1971 = vmatmul.mubr.f32.gmra.mrb[0].mxu0 %v1899
      %v1972 = vpop.f32.mrb[0].mxu0
      %v1973 = vadd.f32 0.0, %v1972
      %v1974 = vpop.f32.mrb[0].mxu0
      %1975 = vdwg.mxu0
      %1976 = vrot.lane.b32.xlu0 %v916, 64
      %v1977 = vpop.permute.xlu0 %1976
      %1978 = vrot.lane.b32.xlu0 %v921, 64
      %v1979 = vpop.permute.xlu0 %1978
      %v1983 = vsel %vm1712, %v1862, 0
      %v1986 = vsel %vm1712, %v1864, 0
      %1988 = vmatprep.subr.mxu0 0.0
      %1989 = vmatpush1.msra.mxu0 %v1977
      %1990 = vmatprep.subr.mxu0 0.0
      %1991 = vmatpush1.msra.mxu0 %v1979
      %1992 = vmatprep.subr.mxu0 0.0
      %1993 = vmatpush1.msra.mxu0 0.0
      %1994 = vmatprep.subr.mxu0 0.0
      %1995 = vmatpush1.msra.mxu0 0.0
      %1996 = vmatprep.subr.mxu0 0.0
      %1997 = vmatpush1.msra.mxu0 0.0
      %1998 = vmatprep.subr.mxu0 0.0
      %1999 = vmatpush1.msra.mxu0 0.0
      %2000 = vmatprep.subr.mxu0 0.0
      %2001 = vmatpush1.msra.mxu0 0.0
      %2002 = vmatprep.subr.mxu0 0.0
      %2003 = vmatpush1.msra.mxu0 0.0
      %2004 = vmatprep.subr.mxu0 0.0
      %2005 = vmatpush1.msra.mxu0 0.0
      %2006 = vmatprep.subr.mxu0 0.0
      %2007 = vmatpush1.msra.mxu0 0.0
      %2008 = vmatprep.subr.mxu0 0.0
      %2009 = vmatpush1.msra.mxu0 0.0
      %2010 = vmatprep.subr.mxu0 0.0
      %2011 = vmatpush1.msra.mxu0 0.0
      %2012 = vmatprep.subr.mxu0 0.0
      %2013 = vmatpush1.msra.mxu0 0.0
      %2014 = vmatprep.subr.mxu0 0.0
      %2015 = vmatpush1.msra.mxu0 0.0
      %2016 = vmatprep.subr.mxu0 0.0
      %2017 = vmatpush1.msra.mxu0 0.0
      %2018 = vmatprep.subr.mxu0 0.0
      %2019 = vmatpush1.msra.mxu0 0.0
      %2020 = vmatprep.subr.mxu0 0.0
      %2021 = vmatpush1.msra.mxu0 0.0
      %2022 = vmatprep.subr.mxu0 0.0
      %2023 = vmatpush1.msra.mxu0 0.0
      %2024 = vmatprep.subr.mxu0 0.0
      %2025 = vmatpush1.msra.mxu0 0.0
      %2026 = vmatprep.subr.mxu0 0.0
      %2027 = vmatpush1.msra.mxu0 0.0
      %2028 = vmatprep.subr.mxu0 0.0
      %2029 = vmatpush1.msra.mxu0 0.0
      %2030 = vmatprep.subr.mxu0 0.0
      %2031 = vmatpush1.msra.mxu0 0.0
      %2032 = vmatprep.subr.mxu0 0.0
      %2033 = vmatpush1.msra.mxu0 0.0
      %2034 = vmatprep.subr.mxu0 0.0
      %2035 = vmatpush1.msra.mxu0 0.0
      %2036 = vmatprep.subr.mxu0 0.0
      %2037 = vmatpush1.msra.mxu0 0.0
      %2038 = vmatprep.subr.mxu0 0.0
      %2039 = vmatpush1.msra.mxu0 0.0
      %2040 = vmatprep.subr.mxu0 0.0
      %2041 = vmatpush1.msra.mxu0 0.0
      %2042 = vmatprep.subr.mxu0 0.0
      %2043 = vmatpush1.msra.mxu0 0.0
      %2044 = vmatprep.subr.mxu0 0.0
      %2045 = vmatpush1.msra.mxu0 0.0
      %2046 = vmatprep.subr.mxu0 0.0
      %2047 = vmatpush1.msra.mxu0 0.0
      %2048 = vmatprep.subr.mxu0 0.0
      %2049 = vmatpush1.msra.mxu0 0.0
      %2050 = vmatprep.subr.mxu0 0.0
      %2051 = vmatpush1.msra.mxu0 0.0
      %2052 = vmatprep.mubr.f32.mxu0 0.0
      %2053 = vmatmul.mubr.f32.gmra.mrb[0].mxu0 %v1983
      %v2054 = vpop.f32.mrb[0].mxu0
      %v2055 = vadd.f32 0.0, %v2054
      %v2056 = vpop.f32.mrb[0].mxu0
      %2057 = vmatprep.mubr.f32.mxu0 0.0
      %2058 = vmatmul.mubr.f32.gmra.mrb[0].mxu0 %v1986
      %v2059 = vpop.f32.mrb[0].mxu0
      %v2060 = vadd.f32 0.0, %v2059
      %v2061 = vpop.f32.mrb[0].mxu0
      %2062 = vdwg.mxu0
      %2063 = vrot.lane.b32.xlu0 %v926, 64
      %v2064 = vpop.permute.xlu0 %2063
      %2065 = vrot.lane.b32.xlu0 %v931, 64
      %v2066 = vpop.permute.xlu0 %2065
      %v2070 = vsel %vm1712, %v1866, 0
      %v2073 = vsel %vm1712, %v1868, 0
      %2075 = vmatprep.subr.mxu0 0.0
      %2076 = vmatpush1.msra.mxu0 %v2064
      %2077 = vmatprep.subr.mxu0 0.0
      %2078 = vmatpush1.msra.mxu0 %v2066
      %2079 = vmatprep.subr.mxu0 0.0
      %2080 = vmatpush1.msra.mxu0 0.0
      %2081 = vmatprep.subr.mxu0 0.0
      %2082 = vmatpush1.msra.mxu0 0.0
      %2083 = vmatprep.subr.mxu0 0.0
      %2084 = vmatpush1.msra.mxu0 0.0
      %2085 = vmatprep.subr.mxu0 0.0
      %2086 = vmatpush1.msra.mxu0 0.0
      %2087 = vmatprep.subr.mxu0 0.0
      %2088 = vmatpush1.msra.mxu0 0.0
      %2089 = vmatprep.subr.mxu0 0.0
      %2090 = vmatpush1.msra.mxu0 0.0
      %2091 = vmatprep.subr.mxu0 0.0
      %2092 = vmatpush1.msra.mxu0 0.0
      %2093 = vmatprep.subr.mxu0 0.0
      %2094 = vmatpush1.msra.mxu0 0.0
      %2095 = vmatprep.subr.mxu0 0.0
      %2096 = vmatpush1.msra.mxu0 0.0
      %2097 = vmatprep.subr.mxu0 0.0
      %2098 = vmatpush1.msra.mxu0 0.0
      %2099 = vmatprep.subr.mxu0 0.0
      %2100 = vmatpush1.msra.mxu0 0.0
      %2101 = vmatprep.subr.mxu0 0.0
      %2102 = vmatpush1.msra.mxu0 0.0
      %2103 = vmatprep.subr.mxu0 0.0
      %2104 = vmatpush1.msra.mxu0 0.0
      %2105 = vmatprep.subr.mxu0 0.0
      %2106 = vmatpush1.msra.mxu0 0.0
      %2107 = vmatprep.subr.mxu0 0.0
      %2108 = vmatpush1.msra.mxu0 0.0
      %2109 = vmatprep.subr.mxu0 0.0
      %2110 = vmatpush1.msra.mxu0 0.0
      %2111 = vmatprep.subr.mxu0 0.0
      %2112 = vmatpush1.msra.mxu0 0.0
      %2113 = vmatprep.subr.mxu0 0.0
      %2114 = vmatpush1.msra.mxu0 0.0
      %2115 = vmatprep.subr.mxu0 0.0
      %2116 = vmatpush1.msra.mxu0 0.0
      %2117 = vmatprep.subr.mxu0 0.0
      %2118 = vmatpush1.msra.mxu0 0.0
      %2119 = vmatprep.subr.mxu0 0.0
      %2120 = vmatpush1.msra.mxu0 0.0
      %2121 = vmatprep.subr.mxu0 0.0
      %2122 = vmatpush1.msra.mxu0 0.0
      %2123 = vmatprep.subr.mxu0 0.0
      %2124 = vmatpush1.msra.mxu0 0.0
      %2125 = vmatprep.subr.mxu0 0.0
      %2126 = vmatpush1.msra.mxu0 0.0
      %2127 = vmatprep.subr.mxu0 0.0
      %2128 = vmatpush1.msra.mxu0 0.0
      %2129 = vmatprep.subr.mxu0 0.0
      %2130 = vmatpush1.msra.mxu0 0.0
      %2131 = vmatprep.subr.mxu0 0.0
      %2132 = vmatpush1.msra.mxu0 0.0
      %2133 = vmatprep.subr.mxu0 0.0
      %2134 = vmatpush1.msra.mxu0 0.0
      %2135 = vmatprep.subr.mxu0 0.0
      %2136 = vmatpush1.msra.mxu0 0.0
      %2137 = vmatprep.subr.mxu0 0.0
      %2138 = vmatpush1.msra.mxu0 0.0
      %2139 = vmatprep.mubr.f32.mxu0 0.0
      %2140 = vmatmul.mubr.f32.gmra.mrb[0].mxu0 %v2070
      %v2141 = vpop.f32.mrb[0].mxu0
      %v2142 = vadd.f32 0.0, %v2141
      %v2143 = vpop.f32.mrb[0].mxu0
      %2144 = vmatprep.mubr.f32.mxu0 0.0
      %2145 = vmatmul.mubr.f32.gmra.mrb[0].mxu0 %v2073
      %v2146 = vpop.f32.mrb[0].mxu0
      %v2147 = vadd.f32 0.0, %v2146
      %v2148 = vpop.f32.mrb[0].mxu0
      %2149 = vdwg.mxu0
      %2150 = vrot.lane.b32.xlu0 %v936, 64
      %v2151 = vpop.permute.xlu0 %2150
      %2152 = vrot.lane.b32.xlu0 %v941, 64
      %v2153 = vpop.permute.xlu0 %2152
      %v2157 = vsel %vm1712, %v1870, 0
      %v2160 = vsel %vm1712, %v1872, 0
      %2162 = vmatprep.subr.mxu0 0.0
      %2163 = vmatpush1.msra.mxu0 %v2151
      %2164 = vmatprep.subr.mxu0 0.0
      %2165 = vmatpush1.msra.mxu0 %v2153
      %2166 = vmatprep.subr.mxu0 0.0
      %2167 = vmatpush1.msra.mxu0 0.0
      %2168 = vmatprep.subr.mxu0 0.0
      %2169 = vmatpush1.msra.mxu0 0.0
      %2170 = vmatprep.subr.mxu0 0.0
      %2171 = vmatpush1.msra.mxu0 0.0
      %2172 = vmatprep.subr.mxu0 0.0
      %2173 = vmatpush1.msra.mxu0 0.0
      %2174 = vmatprep.subr.mxu0 0.0
      %2175 = vmatpush1.msra.mxu0 0.0
      %2176 = vmatprep.subr.mxu0 0.0
      %2177 = vmatpush1.msra.mxu0 0.0
      %2178 = vmatprep.subr.mxu0 0.0
      %2179 = vmatpush1.msra.mxu0 0.0
      %2180 = vmatprep.subr.mxu0 0.0
      %2181 = vmatpush1.msra.mxu0 0.0
      %2182 = vmatprep.subr.mxu0 0.0
      %2183 = vmatpush1.msra.mxu0 0.0
      %2184 = vmatprep.subr.mxu0 0.0
      %2185 = vmatpush1.msra.mxu0 0.0
      %2186 = vmatprep.subr.mxu0 0.0
      %2187 = vmatpush1.msra.mxu0 0.0
      %2188 = vmatprep.subr.mxu0 0.0
      %2189 = vmatpush1.msra.mxu0 0.0
      %2190 = vmatprep.subr.mxu0 0.0
      %2191 = vmatpush1.msra.mxu0 0.0
      %2192 = vmatprep.subr.mxu0 0.0
      %2193 = vmatpush1.msra.mxu0 0.0
      %2194 = vmatprep.subr.mxu0 0.0
      %2195 = vmatpush1.msra.mxu0 0.0
      %2196 = vmatprep.subr.mxu0 0.0
      %2197 = vmatpush1.msra.mxu0 0.0
      %2198 = vmatprep.subr.mxu0 0.0
      %2199 = vmatpush1.msra.mxu0 0.0
      %2200 = vmatprep.subr.mxu0 0.0
      %2201 = vmatpush1.msra.mxu0 0.0
      %2202 = vmatprep.subr.mxu0 0.0
      %2203 = vmatpush1.msra.mxu0 0.0
      %2204 = vmatprep.subr.mxu0 0.0
      %2205 = vmatpush1.msra.mxu0 0.0
      %2206 = vmatprep.subr.mxu0 0.0
      %2207 = vmatpush1.msra.mxu0 0.0
      %2208 = vmatprep.subr.mxu0 0.0
      %2209 = vmatpush1.msra.mxu0 0.0
      %2210 = vmatprep.subr.mxu0 0.0
      %2211 = vmatpush1.msra.mxu0 0.0
      %2212 = vmatprep.subr.mxu0 0.0
      %2213 = vmatpush1.msra.mxu0 0.0
      %2214 = vmatprep.subr.mxu0 0.0
      %2215 = vmatpush1.msra.mxu0 0.0
      %2216 = vmatprep.subr.mxu0 0.0
      %2217 = vmatpush1.msra.mxu0 0.0
      %2218 = vmatprep.subr.mxu0 0.0
      %2219 = vmatpush1.msra.mxu0 0.0
      %2220 = vmatprep.subr.mxu0 0.0
      %2221 = vmatpush1.msra.mxu0 0.0
      %2222 = vmatprep.subr.mxu0 0.0
      %2223 = vmatpush1.msra.mxu0 0.0
      %2224 = vmatprep.subr.mxu0 0.0
      %2225 = vmatpush1.msra.mxu0 0.0
      %2226 = vmatprep.mubr.f32.mxu0 0.0
      %2227 = vmatmul.mubr.f32.gmra.mrb[0].mxu0 %v2157
      %v2228 = vpop.f32.mrb[0].mxu0
      %v2229 = vadd.f32 0.0, %v2228
      %v2230 = vpop.f32.mrb[0].mxu0
      %2231 = vmatprep.mubr.f32.mxu0 0.0
      %2232 = vmatmul.mubr.f32.gmra.mrb[0].mxu0 %v2160
      %v2233 = vpop.f32.mrb[0].mxu0
      %v2234 = vadd.f32 0.0, %v2233
      %v2235 = vpop.f32.mrb[0].mxu0
      %2236 = vdwg.mxu0
      %2237 = vrot.lane.b32.xlu0 %v946, 64
      %v2238 = vpop.permute.xlu0 %2237
      %2239 = vrot.lane.b32.xlu0 %v951, 64
      %v2240 = vpop.permute.xlu0 %2239
      %v2244 = vsel %vm1712, %v1874, 0
      %v2247 = vsel %vm1712, %v1876, 0
      %2249 = vmatprep.subr.mxu0 0.0
      %2250 = vmatpush1.msra.mxu0 %v2238
      %2251 = vmatprep.subr.mxu0 0.0
      %2252 = vmatpush1.msra.mxu0 %v2240
      %2253 = vmatprep.subr.mxu0 0.0
      %2254 = vmatpush1.msra.mxu0 0.0
      %2255 = vmatprep.subr.mxu0 0.0
      %2256 = vmatpush1.msra.mxu0 0.0
      %2257 = vmatprep.subr.mxu0 0.0
      %2258 = vmatpush1.msra.mxu0 0.0
      %2259 = vmatprep.subr.mxu0 0.0
      %2260 = vmatpush1.msra.mxu0 0.0
      %2261 = vmatprep.subr.mxu0 0.0
      %2262 = vmatpush1.msra.mxu0 0.0
      %2263 = vmatprep.subr.mxu0 0.0
      %2264 = vmatpush1.msra.mxu0 0.0
      %2265 = vmatprep.subr.mxu0 0.0
      %2266 = vmatpush1.msra.mxu0 0.0
      %2267 = vmatprep.subr.mxu0 0.0
      %2268 = vmatpush1.msra.mxu0 0.0
      %2269 = vmatprep.subr.mxu0 0.0
      %2270 = vmatpush1.msra.mxu0 0.0
      %2271 = vmatprep.subr.mxu0 0.0
      %2272 = vmatpush1.msra.mxu0 0.0
      %2273 = vmatprep.subr.mxu0 0.0
      %2274 = vmatpush1.msra.mxu0 0.0
      %2275 = vmatprep.subr.mxu0 0.0
      %2276 = vmatpush1.msra.mxu0 0.0
      %2277 = vmatprep.subr.mxu0 0.0
      %2278 = vmatpush1.msra.mxu0 0.0
      %2279 = vmatprep.subr.mxu0 0.0
      %2280 = vmatpush1.msra.mxu0 0.0
      %2281 = vmatprep.subr.mxu0 0.0
      %2282 = vmatpush1.msra.mxu0 0.0
      %2283 = vmatprep.subr.mxu0 0.0
      %2284 = vmatpush1.msra.mxu0 0.0
      %2285 = vmatprep.subr.mxu0 0.0
      %2286 = vmatpush1.msra.mxu0 0.0
      %2287 = vmatprep.subr.mxu0 0.0
      %2288 = vmatpush1.msra.mxu0 0.0
      %2289 = vmatprep.subr.mxu0 0.0
      %2290 = vmatpush1.msra.mxu0 0.0
      %2291 = vmatprep.subr.mxu0 0.0
      %2292 = vmatpush1.msra.mxu0 0.0
      %2293 = vmatprep.subr.mxu0 0.0
      %2294 = vmatpush1.msra.mxu0 0.0
      %2295 = vmatprep.subr.mxu0 0.0
      %2296 = vmatpush1.msra.mxu0 0.0
      %2297 = vmatprep.subr.mxu0 0.0
      %2298 = vmatpush1.msra.mxu0 0.0
      %2299 = vmatprep.subr.mxu0 0.0
      %2300 = vmatpush1.msra.mxu0 0.0
      %2301 = vmatprep.subr.mxu0 0.0
      %2302 = vmatpush1.msra.mxu0 0.0
      %2303 = vmatprep.subr.mxu0 0.0
      %2304 = vmatpush1.msra.mxu0 0.0
      %2305 = vmatprep.subr.mxu0 0.0
      %2306 = vmatpush1.msra.mxu0 0.0
      %2307 = vmatprep.subr.mxu0 0.0
      %2308 = vmatpush1.msra.mxu0 0.0
      %2309 = vmatprep.subr.mxu0 0.0
      %2310 = vmatpush1.msra.mxu0 0.0
      %2311 = vmatprep.subr.mxu0 0.0
      %2312 = vmatpush1.msra.mxu0 0.0
      %2313 = vmatprep.mubr.f32.mxu0 0.0
      %2314 = vmatmul.mubr.f32.gmra.mrb[0].mxu0 %v2244
      %v2315 = vpop.f32.mrb[0].mxu0
      %v2316 = vadd.f32 0.0, %v2315
      %v2317 = vpop.f32.mrb[0].mxu0
      %2318 = vmatprep.mubr.f32.mxu0 0.0
      %2319 = vmatmul.mubr.f32.gmra.mrb[0].mxu0 %v2247
      %v2320 = vpop.f32.mrb[0].mxu0
      %v2321 = vadd.f32 0.0, %v2320
      %v2322 = vpop.f32.mrb[0].mxu0
      %2323 = vdwg.mxu0
      %2324 = vrot.lane.b32.xlu0 %v956, 64
      %v2325 = vpop.permute.xlu0 %2324
      %2326 = vrot.lane.b32.xlu0 %v961, 64
      %v2327 = vpop.permute.xlu0 %2326
      %v2331 = vsel %vm1712, %v1878, 0
      %v2334 = vsel %vm1712, %v1880, 0
      %2336 = vmatprep.subr.mxu0 0.0
      %2337 = vmatpush1.msra.mxu0 %v2325
      %2338 = vmatprep.subr.mxu0 0.0
      %2339 = vmatpush1.msra.mxu0 %v2327
      %2340 = vmatprep.subr.mxu0 0.0
      %2341 = vmatpush1.msra.mxu0 0.0
      %2342 = vmatprep.subr.mxu0 0.0
      %2343 = vmatpush1.msra.mxu0 0.0
      %2344 = vmatprep.subr.mxu0 0.0
      %2345 = vmatpush1.msra.mxu0 0.0
      %2346 = vmatprep.subr.mxu0 0.0
      %2347 = vmatpush1.msra.mxu0 0.0
      %2348 = vmatprep.subr.mxu0 0.0
      %2349 = vmatpush1.msra.mxu0 0.0
      %2350 = vmatprep.subr.mxu0 0.0
      %2351 = vmatpush1.msra.mxu0 0.0
      %2352 = vmatprep.subr.mxu0 0.0
      %2353 = vmatpush1.msra.mxu0 0.0
      %2354 = vmatprep.subr.mxu0 0.0
      %2355 = vmatpush1.msra.mxu0 0.0
      %2356 = vmatprep.subr.mxu0 0.0
      %2357 = vmatpush1.msra.mxu0 0.0
      %2358 = vmatprep.subr.mxu0 0.0
      %2359 = vmatpush1.msra.mxu0 0.0
      %2360 = vmatprep.subr.mxu0 0.0
      %2361 = vmatpush1.msra.mxu0 0.0
      %2362 = vmatprep.subr.mxu0 0.0
      %2363 = vmatpush1.msra.mxu0 0.0
      %2364 = vmatprep.subr.mxu0 0.0
      %2365 = vmatpush1.msra.mxu0 0.0
      %2366 = vmatprep.subr.mxu0 0.0
      %2367 = vmatpush1.msra.mxu0 0.0
      %2368 = vmatprep.subr.mxu0 0.0
      %2369 = vmatpush1.msra.mxu0 0.0
      %2370 = vmatprep.subr.mxu0 0.0
      %2371 = vmatpush1.msra.mxu0 0.0
      %2372 = vmatprep.subr.mxu0 0.0
      %2373 = vmatpush1.msra.mxu0 0.0
      %2374 = vmatprep.subr.mxu0 0.0
      %2375 = vmatpush1.msra.mxu0 0.0
      %2376 = vmatprep.subr.mxu0 0.0
      %2377 = vmatpush1.msra.mxu0 0.0
      %2378 = vmatprep.subr.mxu0 0.0
      %2379 = vmatpush1.msra.mxu0 0.0
      %2380 = vmatprep.subr.mxu0 0.0
      %2381 = vmatpush1.msra.mxu0 0.0
      %2382 = vmatprep.subr.mxu0 0.0
      %2383 = vmatpush1.msra.mxu0 0.0
      %2384 = vmatprep.subr.mxu0 0.0
      %2385 = vmatpush1.msra.mxu0 0.0
      %2386 = vmatprep.subr.mxu0 0.0
      %2387 = vmatpush1.msra.mxu0 0.0
      %2388 = vmatprep.subr.mxu0 0.0
      %2389 = vmatpush1.msra.mxu0 0.0
      %2390 = vmatprep.subr.mxu0 0.0
      %2391 = vmatpush1.msra.mxu0 0.0
      %2392 = vmatprep.subr.mxu0 0.0
      %2393 = vmatpush1.msra.mxu0 0.0
      %2394 = vmatprep.subr.mxu0 0.0
      %2395 = vmatpush1.msra.mxu0 0.0
      %2396 = vmatprep.subr.mxu0 0.0
      %2397 = vmatpush1.msra.mxu0 0.0
      %2398 = vmatprep.subr.mxu0 0.0
      %2399 = vmatpush1.msra.mxu0 0.0
      %2400 = vmatprep.mubr.f32.mxu0 0.0
      %2401 = vmatmul.mubr.f32.gmra.mrb[0].mxu0 %v2331
      %v2402 = vpop.f32.mrb[0].mxu0
      %v2403 = vadd.f32 0.0, %v2402
      %v2404 = vpop.f32.mrb[0].mxu0
      %2405 = vmatprep.mubr.f32.mxu0 0.0
      %2406 = vmatmul.mubr.f32.gmra.mrb[0].mxu0 %v2334
      %v2407 = vpop.f32.mrb[0].mxu0
      %v2408 = vadd.f32 0.0, %v2407
      %v2409 = vpop.f32.mrb[0].mxu0
      %2410 = vdwg.mxu0
      %2411 = vrot.lane.b32.xlu0 %v966, 64
      %v2412 = vpop.permute.xlu0 %2411
      %2413 = vrot.lane.b32.xlu0 %v971, 64
      %v2414 = vpop.permute.xlu0 %2413
      %v2418 = vsel %vm1712, %v1882, 0
      %v2421 = vsel %vm1712, %v1884, 0
      %2423 = vmatprep.subr.mxu0 0.0
      %2424 = vmatpush1.msra.mxu0 %v2412
      %2425 = vmatprep.subr.mxu0 0.0
      %2426 = vmatpush1.msra.mxu0 %v2414
      %2427 = vmatprep.subr.mxu0 0.0
      %2428 = vmatpush1.msra.mxu0 0.0
      %2429 = vmatprep.subr.mxu0 0.0
      %2430 = vmatpush1.msra.mxu0 0.0
      %2431 = vmatprep.subr.mxu0 0.0
      %2432 = vmatpush1.msra.mxu0 0.0
      %2433 = vmatprep.subr.mxu0 0.0
      %2434 = vmatpush1.msra.mxu0 0.0
      %2435 = vmatprep.subr.mxu0 0.0
      %2436 = vmatpush1.msra.mxu0 0.0
      %2437 = vmatprep.subr.mxu0 0.0
      %2438 = vmatpush1.msra.mxu0 0.0
      %2439 = vmatprep.subr.mxu0 0.0
      %2440 = vmatpush1.msra.mxu0 0.0
      %2441 = vmatprep.subr.mxu0 0.0
      %2442 = vmatpush1.msra.mxu0 0.0
      %2443 = vmatprep.subr.mxu0 0.0
      %2444 = vmatpush1.msra.mxu0 0.0
      %2445 = vmatprep.subr.mxu0 0.0
      %2446 = vmatpush1.msra.mxu0 0.0
      %2447 = vmatprep.subr.mxu0 0.0
      %2448 = vmatpush1.msra.mxu0 0.0
      %2449 = vmatprep.subr.mxu0 0.0
      %2450 = vmatpush1.msra.mxu0 0.0
      %2451 = vmatprep.subr.mxu0 0.0
      %2452 = vmatpush1.msra.mxu0 0.0
      %2453 = vmatprep.subr.mxu0 0.0
      %2454 = vmatpush1.msra.mxu0 0.0
      %2455 = vmatprep.subr.mxu0 0.0
      %2456 = vmatpush1.msra.mxu0 0.0
      %2457 = vmatprep.subr.mxu0 0.0
      %2458 = vmatpush1.msra.mxu0 0.0
      %2459 = vmatprep.subr.mxu0 0.0
      %2460 = vmatpush1.msra.mxu0 0.0
      %2461 = vmatprep.subr.mxu0 0.0
      %2462 = vmatpush1.msra.mxu0 0.0
      %2463 = vmatprep.subr.mxu0 0.0
      %2464 = vmatpush1.msra.mxu0 0.0
      %2465 = vmatprep.subr.mxu0 0.0
      %2466 = vmatpush1.msra.mxu0 0.0
      %2467 = vmatprep.subr.mxu0 0.0
      %2468 = vmatpush1.msra.mxu0 0.0
      %2469 = vmatprep.subr.mxu0 0.0
      %2470 = vmatpush1.msra.mxu0 0.0
      %2471 = vmatprep.subr.mxu0 0.0
      %2472 = vmatpush1.msra.mxu0 0.0
      %2473 = vmatprep.subr.mxu0 0.0
      %2474 = vmatpush1.msra.mxu0 0.0
      %2475 = vmatprep.subr.mxu0 0.0
      %2476 = vmatpush1.msra.mxu0 0.0
      %2477 = vmatprep.subr.mxu0 0.0
      %2478 = vmatpush1.msra.mxu0 0.0
      %2479 = vmatprep.subr.mxu0 0.0
      %2480 = vmatpush1.msra.mxu0 0.0
      %2481 = vmatprep.subr.mxu0 0.0
      %2482 = vmatpush1.msra.mxu0 0.0
      %2483 = vmatprep.subr.mxu0 0.0
      %2484 = vmatpush1.msra.mxu0 0.0
      %2485 = vmatprep.subr.mxu0 0.0
      %2486 = vmatpush1.msra.mxu0 0.0
      %2487 = vmatprep.mubr.f32.mxu0 0.0
      %2488 = vmatmul.mubr.f32.gmra.mrb[0].mxu0 %v2418
      %v2489 = vpop.f32.mrb[0].mxu0
      %v2490 = vadd.f32 0.0, %v2489
      %v2491 = vpop.f32.mrb[0].mxu0
      %2492 = vmatprep.mubr.f32.mxu0 0.0
      %2493 = vmatmul.mubr.f32.gmra.mrb[0].mxu0 %v2421
      %v2494 = vpop.f32.mrb[0].mxu0
      %v2495 = vadd.f32 0.0, %v2494
      %v2496 = vpop.f32.mrb[0].mxu0
      %2497 = vdwg.mxu0
      %2498 = vrot.lane.b32.xlu0 %v976, 64
      %v2499 = vpop.permute.xlu0 %2498
      %2500 = vrot.lane.b32.xlu0 %v981, 64
      %v2501 = vpop.permute.xlu0 %2500
      %v2505 = vsel %vm1712, %v1886, 0
      %v2508 = vsel %vm1712, %v1888, 0
      %2510 = vmatprep.subr.mxu0 0.0
      %2511 = vmatpush1.msra.mxu0 %v2499
      %2512 = vmatprep.subr.mxu0 0.0
      %2513 = vmatpush1.msra.mxu0 %v2501
      %2514 = vmatprep.subr.mxu0 0.0
      %2515 = vmatpush1.msra.mxu0 0.0
      %2516 = vmatprep.subr.mxu0 0.0
      %2517 = vmatpush1.msra.mxu0 0.0
      %2518 = vmatprep.subr.mxu0 0.0
      %2519 = vmatpush1.msra.mxu0 0.0
      %2520 = vmatprep.subr.mxu0 0.0
      %2521 = vmatpush1.msra.mxu0 0.0
      %2522 = vmatprep.subr.mxu0 0.0
      %2523 = vmatpush1.msra.mxu0 0.0
      %2524 = vmatprep.subr.mxu0 0.0
      %2525 = vmatpush1.msra.mxu0 0.0
      %2526 = vmatprep.subr.mxu0 0.0
      %2527 = vmatpush1.msra.mxu0 0.0
      %2528 = vmatprep.subr.mxu0 0.0
      %2529 = vmatpush1.msra.mxu0 0.0
      %2530 = vmatprep.subr.mxu0 0.0
      %2531 = vmatpush1.msra.mxu0 0.0
      %2532 = vmatprep.subr.mxu0 0.0
      %2533 = vmatpush1.msra.mxu0 0.0
      %2534 = vmatprep.subr.mxu0 0.0
      %2535 = vmatpush1.msra.mxu0 0.0
      %2536 = vmatprep.subr.mxu0 0.0
      %2537 = vmatpush1.msra.mxu0 0.0
      %2538 = vmatprep.subr.mxu0 0.0
      %2539 = vmatpush1.msra.mxu0 0.0
      %2540 = vmatprep.subr.mxu0 0.0
      %2541 = vmatpush1.msra.mxu0 0.0
      %2542 = vmatprep.subr.mxu0 0.0
      %2543 = vmatpush1.msra.mxu0 0.0
      %2544 = vmatprep.subr.mxu0 0.0
      %2545 = vmatpush1.msra.mxu0 0.0
      %2546 = vmatprep.subr.mxu0 0.0
      %2547 = vmatpush1.msra.mxu0 0.0
      %2548 = vmatprep.subr.mxu0 0.0
      %2549 = vmatpush1.msra.mxu0 0.0
      %2550 = vmatprep.subr.mxu0 0.0
      %2551 = vmatpush1.msra.mxu0 0.0
      %2552 = vmatprep.subr.mxu0 0.0
      %2553 = vmatpush1.msra.mxu0 0.0
      %2554 = vmatprep.subr.mxu0 0.0
      %2555 = vmatpush1.msra.mxu0 0.0
      %2556 = vmatprep.subr.mxu0 0.0
      %2557 = vmatpush1.msra.mxu0 0.0
      %2558 = vmatprep.subr.mxu0 0.0
      %2559 = vmatpush1.msra.mxu0 0.0
      %2560 = vmatprep.subr.mxu0 0.0
      %2561 = vmatpush1.msra.mxu0 0.0
      %2562 = vmatprep.subr.mxu0 0.0
      %2563 = vmatpush1.msra.mxu0 0.0
      %2564 = vmatprep.subr.mxu0 0.0
      %2565 = vmatpush1.msra.mxu0 0.0
      %2566 = vmatprep.subr.mxu0 0.0
      %2567 = vmatpush1.msra.mxu0 0.0
      %2568 = vmatprep.subr.mxu0 0.0
      %2569 = vmatpush1.msra.mxu0 0.0
      %2570 = vmatprep.subr.mxu0 0.0
      %2571 = vmatpush1.msra.mxu0 0.0
      %2572 = vmatprep.subr.mxu0 0.0
      %2573 = vmatpush1.msra.mxu0 0.0
      %2574 = vmatprep.mubr.f32.mxu0 0.0
      %2575 = vmatmul.mubr.f32.gmra.mrb[0].mxu0 %v2505
      %v2576 = vpop.f32.mrb[0].mxu0
      %v2577 = vadd.f32 0.0, %v2576
      %v2578 = vpop.f32.mrb[0].mxu0
      %2579 = vmatprep.mubr.f32.mxu0 0.0
      %2580 = vmatmul.mubr.f32.gmra.mrb[0].mxu0 %v2508
      %v2581 = vpop.f32.mrb[0].mxu0
      %v2582 = vadd.f32 0.0, %v2581
      %v2583 = vpop.f32.mrb[0].mxu0
      %2584 = vdwg.mxu0
      %v2585 = vld [vmem:[%s5] sm:$0xff]
      %v2586 = vld [vmem:[%s5 + $0x8] sm:$0xff]
      %v2587 = vld [vmem:[%s5 + $0x10] sm:$0xff]
      %v2588 = vld [vmem:[%s5 + $0x18] sm:$0xff]
      %v2589 = vld [vmem:[%s6] sm:$0x1]
      %v2591 = vlaneseq
      %v2592 = vshrl.u32 %v2591, 7
      %v2593 = vsub.s32 0, %v2592
      %v2594 = vrot.slane %v2589, %v2593
      %v2597 = vsel %vm790, %v1968, 0
      %v2600 = vsel %vm790, %v1973, 0
      %v2603 = vsel %vm790, %v2055, 0
      %v2606 = vsel %vm790, %v2060, 0
      %v2609 = vsel %vm790, %v2142, 0
      %v2612 = vsel %vm790, %v2147, 0
      %v2615 = vsel %vm790, %v2229, 0
      %v2618 = vsel %vm790, %v2234, 0
      %v2621 = vsel %vm790, %v2316, 0
      %v2624 = vsel %vm790, %v2321, 0
      %v2627 = vsel %vm790, %v2403, 0
      %v2630 = vsel %vm790, %v2408, 0
      %v2633 = vsel %vm790, %v2490, 0
      %v2636 = vsel %vm790, %v2495, 0
      %v2639 = vsel %vm790, %v2577, 0
      %v2642 = vsel %vm790, %v2582, 0
      %2644 = vmatprep.subr.mxu0 0.0
      %2645 = vmatpush1.msra.mxu0 %v2585
      %2646 = vmatprep.subr.mxu0 0.0
      %2647 = vmatpush1.msra.mxu0 %v2586
      %2648 = vmatprep.subr.mxu0 0.0
      %2649 = vmatpush1.msra.mxu0 %v2587
      %2650 = vmatprep.subr.mxu0 0.0
      %2651 = vmatpush1.msra.mxu0 %v2588
      %2652 = vmatprep.subr.mxu0 0.0
      %2653 = vmatpush1.msra.mxu0 0.0
      %2654 = vmatprep.subr.mxu0 0.0
      %2655 = vmatpush1.msra.mxu0 0.0
      %2656 = vmatprep.subr.mxu0 0.0
      %2657 = vmatpush1.msra.mxu0 0.0
      %2658 = vmatprep.subr.mxu0 0.0
      %2659 = vmatpush1.msra.mxu0 0.0
      %2660 = vmatprep.subr.mxu0 0.0
      %2661 = vmatpush1.msra.mxu0 0.0
      %2662 = vmatprep.subr.mxu0 0.0
      %2663 = vmatpush1.msra.mxu0 0.0
      %2664 = vmatprep.subr.mxu0 0.0
      %2665 = vmatpush1.msra.mxu0 0.0
      %2666 = vmatprep.subr.mxu0 0.0
      %2667 = vmatpush1.msra.mxu0 0.0
      %2668 = vmatprep.subr.mxu0 0.0
      %2669 = vmatpush1.msra.mxu0 0.0
      %2670 = vmatprep.subr.mxu0 0.0
      %2671 = vmatpush1.msra.mxu0 0.0
      %2672 = vmatprep.subr.mxu0 0.0
      %2673 = vmatpush1.msra.mxu0 0.0
      %2674 = vmatprep.subr.mxu0 0.0
      %2675 = vmatpush1.msra.mxu0 0.0
      %2676 = vmatprep.subr.mxu0 0.0
      %2677 = vmatpush1.msra.mxu0 0.0
      %2678 = vmatprep.subr.mxu0 0.0
      %2679 = vmatpush1.msra.mxu0 0.0
      %2680 = vmatprep.subr.mxu0 0.0
      %2681 = vmatpush1.msra.mxu0 0.0
      %2682 = vmatprep.subr.mxu0 0.0
      %2683 = vmatpush1.msra.mxu0 0.0
      %2684 = vmatprep.subr.mxu0 0.0
      %2685 = vmatpush1.msra.mxu0 0.0
      %2686 = vmatprep.subr.mxu0 0.0
      %2687 = vmatpush1.msra.mxu0 0.0
      %2688 = vmatprep.subr.mxu0 0.0
      %2689 = vmatpush1.msra.mxu0 0.0
      %2690 = vmatprep.subr.mxu0 0.0
      %2691 = vmatpush1.msra.mxu0 0.0
      %2692 = vmatprep.subr.mxu0 0.0
      %2693 = vmatpush1.msra.mxu0 0.0
      %2694 = vmatprep.subr.mxu0 0.0
      %2695 = vmatpush1.msra.mxu0 0.0
      %2696 = vmatprep.subr.mxu0 0.0
      %2697 = vmatpush1.msra.mxu0 0.0
      %2698 = vmatprep.subr.mxu0 0.0
      %2699 = vmatpush1.msra.mxu0 0.0
      %2700 = vmatprep.subr.mxu0 0.0
      %2701 = vmatpush1.msra.mxu0 0.0
      %2702 = vmatprep.subr.mxu0 0.0
      %2703 = vmatpush1.msra.mxu0 0.0
      %2704 = vmatprep.subr.mxu0 0.0
      %2705 = vmatpush1.msra.mxu0 0.0
      %2706 = vmatprep.subr.mxu0 0.0
      %2707 = vmatpush1.msra.mxu0 0.0
      %2708 = vmatprep.mubr.f32.mxu0 0.0
      %2709 = vmatmul.mubr.f32.gmra.mrb[0].mxu0 %v2597
      %v2710 = vpop.f32.mrb[0].mxu0
      %v2711 = vadd.f32 %v2594, %v2710
      %v2712 = vpop.f32.mrb[0].mxu0
      %2713 = vmatprep.mubr.f32.mxu0 0.0
      %2714 = vmatmul.mubr.f32.gmra.mrb[0].mxu0 %v2600
      %v2715 = vpop.f32.mrb[0].mxu0
      %v2716 = vadd.f32 %v2594, %v2715
      %v2717 = vpop.f32.mrb[0].mxu0
      %2718 = vmatprep.mubr.f32.mxu0 0.0
      %2719 = vmatmul.mubr.f32.gmra.mrb[0].mxu0 %v2603
      %v2720 = vpop.f32.mrb[0].mxu0
      %v2721 = vadd.f32 %v2594, %v2720
      %v2722 = vpop.f32.mrb[0].mxu0
      %2723 = vmatprep.mubr.f32.mxu0 0.0
      %2724 = vmatmul.mubr.f32.gmra.mrb[0].mxu0 %v2606
      %v2725 = vpop.f32.mrb[0].mxu0
      %v2726 = vadd.f32 %v2594, %v2725
      %v2727 = vpop.f32.mrb[0].mxu0
      %2728 = vmatprep.mubr.f32.mxu0 0.0
      %2729 = vmatmul.mubr.f32.gmra.mrb[0].mxu0 %v2609
      %v2730 = vpop.f32.mrb[0].mxu0
      %v2731 = vadd.f32 %v2594, %v2730
      %v2732 = vpop.f32.mrb[0].mxu0
      %2733 = vmatprep.mubr.f32.mxu0 0.0
      %2734 = vmatmul.mubr.f32.gmra.mrb[0].mxu0 %v2612
      %v2735 = vpop.f32.mrb[0].mxu0
      %v2736 = vadd.f32 %v2594, %v2735
      %v2737 = vpop.f32.mrb[0].mxu0
      %2738 = vmatprep.mubr.f32.mxu0 0.0
      %2739 = vmatmul.mubr.f32.gmra.mrb[0].mxu0 %v2615
      %v2740 = vpop.f32.mrb[0].mxu0
      %v2741 = vadd.f32 %v2594, %v2740
      %v2742 = vpop.f32.mrb[0].mxu0
      %2743 = vmatprep.mubr.f32.mxu0 0.0
      %2744 = vmatmul.mubr.f32.gmra.mrb[0].mxu0 %v2618
      %v2745 = vpop.f32.mrb[0].mxu0
      %v2746 = vadd.f32 %v2594, %v2745
      %v2747 = vpop.f32.mrb[0].mxu0
      %2748 = vmatprep.mubr.f32.mxu0 0.0
      %2749 = vmatmul.mubr.f32.gmra.mrb[0].mxu0 %v2621
      %v2750 = vpop.f32.mrb[0].mxu0
      %v2751 = vadd.f32 %v2594, %v2750
      %v2752 = vpop.f32.mrb[0].mxu0
      %2753 = vmatprep.mubr.f32.mxu0 0.0
      %2754 = vmatmul.mubr.f32.gmra.mrb[0].mxu0 %v2624
      %v2755 = vpop.f32.mrb[0].mxu0
      %v2756 = vadd.f32 %v2594, %v2755
      %v2757 = vpop.f32.mrb[0].mxu0
      %2758 = vmatprep.mubr.f32.mxu0 0.0
      %2759 = vmatmul.mubr.f32.gmra.mrb[0].mxu0 %v2627
      %v2760 = vpop.f32.mrb[0].mxu0
      %v2761 = vadd.f32 %v2594, %v2760
      %v2762 = vpop.f32.mrb[0].mxu0
      %2763 = vmatprep.mubr.f32.mxu0 0.0
      %2764 = vmatmul.mubr.f32.gmra.mrb[0].mxu0 %v2630
      %v2765 = vpop.f32.mrb[0].mxu0
      %v2766 = vadd.f32 %v2594, %v2765
      %v2767 = vpop.f32.mrb[0].mxu0
      %2768 = vmatprep.mubr.f32.mxu0 0.0
      %2769 = vmatmul.mubr.f32.gmra.mrb[0].mxu0 %v2633
      %v2770 = vpop.f32.mrb[0].mxu0
      %v2771 = vadd.f32 %v2594, %v2770
      %v2772 = vpop.f32.mrb[0].mxu0
      %2773 = vmatprep.mubr.f32.mxu0 0.0
      %2774 = vmatmul.mubr.f32.gmra.mrb[0].mxu0 %v2636
      %v2775 = vpop.f32.mrb[0].mxu0
      %v2776 = vadd.f32 %v2594, %v2775
      %v2777 = vpop.f32.mrb[0].mxu0
      %2778 = vmatprep.mubr.f32.mxu0 0.0
      %2779 = vmatmul.mubr.f32.gmra.mrb[0].mxu0 %v2639
      %v2780 = vpop.f32.mrb[0].mxu0
      %v2781 = vadd.f32 %v2594, %v2780
      %v2782 = vpop.f32.mrb[0].mxu0
      %2783 = vmatprep.mubr.f32.mxu0 0.0
      %2784 = vmatmul.mubr.f32.gmra.mrb[0].mxu0 %v2642
      %v2785 = vpop.f32.mrb[0].mxu0
      %v2786 = vadd.f32 %v2594, %v2785
      %v2787 = vpop.f32.mrb[0].mxu0
      %2788 = vdwg.mxu0
      %v2789 = vadd.f32 %v701, %v2711
      %v2790 = vadd.f32 %v706, %v2716
      %v2791 = vadd.f32 %v711, %v2721
      %v2792 = vadd.f32 %v716, %v2726
      %v2793 = vadd.f32 %v721, %v2731
      %v2794 = vadd.f32 %v726, %v2736
      %v2795 = vadd.f32 %v731, %v2741
      %v2796 = vadd.f32 %v736, %v2746
      %v2797 = vadd.f32 %v741, %v2751
      %v2798 = vadd.f32 %v746, %v2756
      %v2799 = vadd.f32 %v751, %v2761
      %v2800 = vadd.f32 %v756, %v2766
      %v2801 = vadd.f32 %v761, %v2771
      %v2802 = vadd.f32 %v766, %v2776
      %v2803 = vadd.f32 %v771, %v2781
      %v2804 = vadd.f32 %v776, %v2786
      %v2805 = vld [vmem:[%s7] sm:$0x1]
      %v2806 = vld [vmem:[%s8] sm:$0x1]
      %v2807 = vsel %vm790, %v2789, 0.0
      %2808 = vadd.xlane.f32.xlu0 %v2807
      %v2809 = vpop.xlane.xlu0 %2808
      %v2810 = vsel %vm790, %v2790, 0.0
      %2811 = vadd.xlane.f32.xlu0 %v2810
      %v2812 = vpop.xlane.xlu0 %2811
      %v2813 = vsel %vm790, %v2791, 0.0
      %2814 = vadd.xlane.f32.xlu0 %v2813
      %v2815 = vpop.xlane.xlu0 %2814
      %v2816 = vsel %vm790, %v2792, 0.0
      %2817 = vadd.xlane.f32.xlu0 %v2816
      %v2818 = vpop.xlane.xlu0 %2817
      %v2819 = vsel %vm790, %v2793, 0.0
      %2820 = vadd.xlane.f32.xlu0 %v2819
      %v2821 = vpop.xlane.xlu0 %2820
      %v2822 = vsel %vm790, %v2794, 0.0
      %2823 = vadd.xlane.f32.xlu0 %v2822
      %v2824 = vpop.xlane.xlu0 %2823
      %v2825 = vsel %vm790, %v2795, 0.0
      %2826 = vadd.xlane.f32.xlu0 %v2825
      %v2827 = vpop.xlane.xlu0 %2826
      %v2828 = vsel %vm790, %v2796, 0.0
      %2829 = vadd.xlane.f32.xlu0 %v2828
      %v2830 = vpop.xlane.xlu0 %2829
      %v2831 = vsel %vm790, %v2797, 0.0
      %2832 = vadd.xlane.f32.xlu0 %v2831
      %v2833 = vpop.xlane.xlu0 %2832
      %v2834 = vsel %vm790, %v2798, 0.0
      %2835 = vadd.xlane.f32.xlu0 %v2834
      %v2836 = vpop.xlane.xlu0 %2835
      %v2837 = vsel %vm790, %v2799, 0.0
      %2838 = vadd.xlane.f32.xlu0 %v2837
      %v2839 = vpop.xlane.xlu0 %2838
      %v2840 = vsel %vm790, %v2800, 0.0
      %2841 = vadd.xlane.f32.xlu0 %v2840
      %v2842 = vpop.xlane.xlu0 %2841
      %v2843 = vsel %vm790, %v2801, 0.0
      %2844 = vadd.xlane.f32.xlu0 %v2843
      %v2845 = vpop.xlane.xlu0 %2844
      %v2846 = vsel %vm790, %v2802, 0.0
      %2847 = vadd.xlane.f32.xlu0 %v2846
      %v2848 = vpop.xlane.xlu0 %2847
      %v2849 = vsel %vm790, %v2803, 0.0
      %2850 = vadd.xlane.f32.xlu0 %v2849
      %v2851 = vpop.xlane.xlu0 %2850
      %v2852 = vsel %vm790, %v2804, 0.0
      %2853 = vadd.xlane.f32.xlu0 %v2852
      %v2854 = vpop.xlane.xlu0 %2853
      %v2855 = vrcp.pop 32.0
      %v2856 = vmul.f32 %v2809, %v2855
      %v2857 = vmul.f32 %v2812, %v2855
      %v2858 = vmul.f32 %v2815, %v2855
      %v2859 = vmul.f32 %v2818, %v2855
      %v2860 = vmul.f32 %v2821, %v2855
      %v2861 = vmul.f32 %v2824, %v2855
      %v2862 = vmul.f32 %v2827, %v2855
      %v2863 = vmul.f32 %v2830, %v2855
      %v2864 = vmul.f32 %v2833, %v2855
      %v2865 = vmul.f32 %v2836, %v2855
      %v2866 = vmul.f32 %v2839, %v2855
      %v2867 = vmul.f32 %v2842, %v2855
      %v2868 = vmul.f32 %v2845, %v2855
      %v2869 = vmul.f32 %v2848, %v2855
      %v2870 = vmul.f32 %v2851, %v2855
      %v2871 = vmul.f32 %v2854, %v2855
      %v2872 = vsub.f32 %v2789, %v2856
      %v2873 = vsub.f32 %v2790, %v2857
      %v2874 = vsub.f32 %v2791, %v2858
      %v2875 = vsub.f32 %v2792, %v2859
      %v2876 = vsub.f32 %v2793, %v2860
      %v2877 = vsub.f32 %v2794, %v2861
      %v2878 = vsub.f32 %v2795, %v2862
      %v2879 = vsub.f32 %v2796, %v2863
      %v2880 = vsub.f32 %v2797, %v2864
      %v2881 = vsub.f32 %v2798, %v2865
      %v2882 = vsub.f32 %v2799, %v2866
      %v2883 = vsub.f32 %v2800, %v2867
      %v2884 = vsub.f32 %v2801, %v2868
      %v2885 = vsub.f32 %v2802, %v2869
      %v2886 = vsub.f32 %v2803, %v2870
      %v2887 = vsub.f32 %v2804, %v2871
      %v2888 = vmul.f32 %v2872, %v2872
      %v2889 = vmul.f32 %v2873, %v2873
      %v2890 = vmul.f32 %v2874, %v2874
      %v2891 = vmul.f32 %v2875, %v2875
      %v2892 = vmul.f32 %v2876, %v2876
      %v2893 = vmul.f32 %v2877, %v2877
      %v2894 = vmul.f32 %v2878, %v2878
      %v2895 = vmul.f32 %v2879, %v2879
      %v2896 = vmul.f32 %v2880, %v2880
      %v2897 = vmul.f32 %v2881, %v2881
      %v2898 = vmul.f32 %v2882, %v2882
      %v2899 = vmul.f32 %v2883, %v2883
      %v2900 = vmul.f32 %v2884, %v2884
      %v2901 = vmul.f32 %v2885, %v2885
      %v2902 = vmul.f32 %v2886, %v2886
      %v2903 = vmul.f32 %v2887, %v2887
      %v2904 = vsel %vm790, %v2888, 0.0
      %2905 = vadd.xlane.f32.xlu0 %v2904
      %v2906 = vpop.xlane.xlu0 %2905
      %v2907 = vsel %vm790, %v2889, 0.0
      %2908 = vadd.xlane.f32.xlu0 %v2907
      %v2909 = vpop.xlane.xlu0 %2908
      %v2910 = vsel %vm790, %v2890, 0.0
      %2911 = vadd.xlane.f32.xlu0 %v2910
      %v2912 = vpop.xlane.xlu0 %2911
      %v2913 = vsel %vm790, %v2891, 0.0
      %2914 = vadd.xlane.f32.xlu0 %v2913
      %v2915 = vpop.xlane.xlu0 %2914
      %v2916 = vsel %vm790, %v2892, 0.0
      %2917 = vadd.xlane.f32.xlu0 %v2916
      %v2918 = vpop.xlane.xlu0 %2917
      %v2919 = vsel %vm790, %v2893, 0.0
      %2920 = vadd.xlane.f32.xlu0 %v2919
      %v2921 = vpop.xlane.xlu0 %2920
      %v2922 = vsel %vm790, %v2894, 0.0
      %2923 = vadd.xlane.f32.xlu0 %v2922
      %v2924 = vpop.xlane.xlu0 %2923
      %v2925 = vsel %vm790, %v2895, 0.0
      %2926 = vadd.xlane.f32.xlu0 %v2925
      %v2927 = vpop.xlane.xlu0 %2926
      %v2928 = vsel %vm790, %v2896, 0.0
      %2929 = vadd.xlane.f32.xlu0 %v2928
      %v2930 = vpop.xlane.xlu0 %2929
      %v2931 = vsel %vm790, %v2897, 0.0
      %2932 = vadd.xlane.f32.xlu0 %v2931
      %v2933 = vpop.xlane.xlu0 %2932
      %v2934 = vsel %vm790, %v2898, 0.0
      %2935 = vadd.xlane.f32.xlu0 %v2934
      %v2936 = vpop.xlane.xlu0 %2935
      %v2937 = vsel %vm790, %v2899, 0.0
      %2938 = vadd.xlane.f32.xlu0 %v2937
      %v2939 = vpop.xlane.xlu0 %2938
      %v2940 = vsel %vm790, %v2900, 0.0
      %2941 = vadd.xlane.f32.xlu0 %v2940
      %v2942 = vpop.xlane.xlu0 %2941
      %v2943 = vsel %vm790, %v2901, 0.0
      %2944 = vadd.xlane.f32.xlu0 %v2943
      %v2945 = vpop.xlane.xlu0 %2944
      %v2946 = vsel %vm790, %v2902, 0.0
      %2947 = vadd.xlane.f32.xlu0 %v2946
      %v2948 = vpop.xlane.xlu0 %2947
      %v2949 = vsel %vm790, %v2903, 0.0
      %2950 = vadd.xlane.f32.xlu0 %v2949
      %v2951 = vpop.xlane.xlu0 %2950
      %v2952 = vmul.f32 %v2906, %v2855
      %v2953 = vmul.f32 %v2909, %v2855
      %v2954 = vmul.f32 %v2912, %v2855
      %v2955 = vmul.f32 %v2915, %v2855
      %v2956 = vmul.f32 %v2918, %v2855
      %v2957 = vmul.f32 %v2921, %v2855
      %v2958 = vmul.f32 %v2924, %v2855
      %v2959 = vmul.f32 %v2927, %v2855
      %v2960 = vmul.f32 %v2930, %v2855
      %v2961 = vmul.f32 %v2933, %v2855
      %v2962 = vmul.f32 %v2936, %v2855
      %v2963 = vmul.f32 %v2939, %v2855
      %v2964 = vmul.f32 %v2942, %v2855
      %v2965 = vmul.f32 %v2945, %v2855
      %v2966 = vmul.f32 %v2948, %v2855
      %v2967 = vmul.f32 %v2951, %v2855
      %v2968 = vadd.f32 %v2952, 1e-05
      %v2969 = vadd.f32 %v2953, 1e-05
      %v2970 = vadd.f32 %v2954, 1e-05
      %v2971 = vadd.f32 %v2955, 1e-05
      %v2972 = vadd.f32 %v2956, 1e-05
      %v2973 = vadd.f32 %v2957, 1e-05
      %v2974 = vadd.f32 %v2958, 1e-05
      %v2975 = vadd.f32 %v2959, 1e-05
      %v2976 = vadd.f32 %v2960, 1e-05
      %v2977 = vadd.f32 %v2961, 1e-05
      %v2978 = vadd.f32 %v2962, 1e-05
      %v2979 = vadd.f32 %v2963, 1e-05
      %v2980 = vadd.f32 %v2964, 1e-05
      %v2981 = vadd.f32 %v2965, 1e-05
      %v2982 = vadd.f32 %v2966, 1e-05
      %v2983 = vadd.f32 %v2967, 1e-05
      %v2984 = vrsqrt.pop %v2968
      %v2985 = vrsqrt.pop %v2969
      %v2986 = vrsqrt.pop %v2970
      %v2987 = vrsqrt.pop %v2971
      %v2988 = vrsqrt.pop %v2972
      %v2989 = vrsqrt.pop %v2973
      %v2990 = vrsqrt.pop %v2974
      %v2991 = vrsqrt.pop %v2975
      %v2992 = vrsqrt.pop %v2976
      %v2993 = vrsqrt.pop %v2977
      %v2994 = vrsqrt.pop %v2978
      %v2995 = vrsqrt.pop %v2979
      %v2996 = vrsqrt.pop %v2980
      %v2997 = vrsqrt.pop %v2981
      %v2998 = vrsqrt.pop %v2982
      %v2999 = vrsqrt.pop %v2983
      %v3000 = vmul.f32 %v2872, %v2984
      %v3001 = vmul.f32 %v2873, %v2985
      %v3002 = vmul.f32 %v2874, %v2986
      %v3003 = vmul.f32 %v2875, %v2987
      %v3004 = vmul.f32 %v2876, %v2988
      %v3005 = vmul.f32 %v2877, %v2989
      %v3006 = vmul.f32 %v2878, %v2990
      %v3007 = vmul.f32 %v2879, %v2991
      %v3008 = vmul.f32 %v2880, %v2992
      %v3009 = vmul.f32 %v2881, %v2993
      %v3010 = vmul.f32 %v2882, %v2994
      %v3011 = vmul.f32 %v2883, %v2995
      %v3012 = vmul.f32 %v2884, %v2996
      %v3013 = vmul.f32 %v2885, %v2997
      %v3014 = vmul.f32 %v2886, %v2998
      %v3015 = vmul.f32 %v2887, %v2999
      %v3017 = vlaneseq
      %v3018 = vshrl.u32 %v3017, 7
      %v3019 = vsub.s32 0, %v3018
      %v3020 = vrot.slane %v2805, %v3019
      %v3022 = vmul.f32 %v3000, %v3020
      %v3023 = vmul.f32 %v3001, %v3020
      %v3024 = vmul.f32 %v3002, %v3020
      %v3025 = vmul.f32 %v3003, %v3020
      %v3026 = vmul.f32 %v3004, %v3020
      %v3027 = vmul.f32 %v3005, %v3020
      %v3028 = vmul.f32 %v3006, %v3020
      %v3029 = vmul.f32 %v3007, %v3020
      %v3030 = vmul.f32 %v3008, %v3020
      %v3031 = vmul.f32 %v3009, %v3020
      %v3032 = vmul.f32 %v3010, %v3020
      %v3033 = vmul.f32 %v3011, %v3020
      %v3034 = vmul.f32 %v3012, %v3020
      %v3035 = vmul.f32 %v3013, %v3020
      %v3036 = vmul.f32 %v3014, %v3020
      %v3037 = vmul.f32 %v3015, %v3020
      %v3039 = vlaneseq
      %v3040 = vshrl.u32 %v3039, 7
      %v3041 = vsub.s32 0, %v3040
      %v3042 = vrot.slane %v2806, %v3041
      %v3044 = vadd.f32 %v3022, %v3042
      %v3045 = vadd.f32 %v3023, %v3042
      %v3046 = vadd.f32 %v3024, %v3042
      %v3047 = vadd.f32 %v3025, %v3042
      %v3048 = vadd.f32 %v3026, %v3042
      %v3049 = vadd.f32 %v3027, %v3042
      %v3050 = vadd.f32 %v3028, %v3042
      %v3051 = vadd.f32 %v3029, %v3042
      %v3052 = vadd.f32 %v3030, %v3042
      %v3053 = vadd.f32 %v3031, %v3042
      %v3054 = vadd.f32 %v3032, %v3042
      %v3055 = vadd.f32 %v3033, %v3042
      %v3056 = vadd.f32 %v3034, %v3042
      %v3057 = vadd.f32 %v3035, %v3042
      %v3058 = vadd.f32 %v3036, %v3042
      %v3059 = vadd.f32 %v3037, %v3042
      %v3060 = vld [vmem:[%s9] sm:$0xff]
      %v3061 = vld [vmem:[%s9 + $0x8] sm:$0xff]
      %v3062 = vld [vmem:[%s9 + $0x10] sm:$0xff]
      %v3063 = vld [vmem:[%s9 + $0x18] sm:$0xff]
      %v3064 = vld [vmem:[%s9 + $0x20] sm:$0xff]
      %v3065 = vld [vmem:[%s9 + $0x28] sm:$0xff]
      %v3066 = vld [vmem:[%s9 + $0x30] sm:$0xff]
      %v3067 = vld [vmem:[%s9 + $0x38] sm:$0xff]
      %v3068 = vld [vmem:[%s9 + $0x40] sm:$0xff]
      %v3069 = vld [vmem:[%s9 + $0x48] sm:$0xff]
      %v3070 = vld [vmem:[%s9 + $0x50] sm:$0xff]
      %v3071 = vld [vmem:[%s9 + $0x58] sm:$0xff]
      %v3072 = vld [vmem:[%s9 + $0x60] sm:$0xff]
      %v3073 = vld [vmem:[%s9 + $0x68] sm:$0xff]
      %v3074 = vld [vmem:[%s9 + $0x70] sm:$0xff]
      %v3075 = vld [vmem:[%s9 + $0x78] sm:$0xff]
      %v3076 = vld [vmem:[%s9 + $0x80] sm:$0xff]
      %v3077 = vld [vmem:[%s9 + $0x88] sm:$0xff]
      %v3078 = vld [vmem:[%s9 + $0x90] sm:$0xff]
      %v3079 = vld [vmem:[%s9 + $0x98] sm:$0xff]
      %v3080 = vld [vmem:[%s9 + $0xa0] sm:$0xff]
      %v3081 = vld [vmem:[%s9 + $0xa8] sm:$0xff]
      %v3082 = vld [vmem:[%s9 + $0xb0] sm:$0xff]
      %v3083 = vld [vmem:[%s9 + $0xb8] sm:$0xff]
      %v3084 = vld [vmem:[%s9 + $0xc0] sm:$0xff]
      %v3085 = vld [vmem:[%s9 + $0xc8] sm:$0xff]
      %v3086 = vld [vmem:[%s9 + $0xd0] sm:$0xff]
      %v3087 = vld [vmem:[%s9 + $0xd8] sm:$0xff]
      %v3088 = vld [vmem:[%s9 + $0xe0] sm:$0xff]
      %v3089 = vld [vmem:[%s9 + $0xe8] sm:$0xff]
      %v3090 = vld [vmem:[%s9 + $0xf0] sm:$0xff]
      %v3091 = vld [vmem:[%s9 + $0xf8] sm:$0xff]
      %v3092 = vld [vmem:[%s9 + $0x100] sm:$0xff]
      %v3093 = vld [vmem:[%s9 + $0x108] sm:$0xff]
      %v3094 = vld [vmem:[%s9 + $0x110] sm:$0xff]
      %v3095 = vld [vmem:[%s9 + $0x118] sm:$0xff]
      %v3096 = vld [vmem:[%s9 + $0x120] sm:$0xff]
      %v3097 = vld [vmem:[%s9 + $0x128] sm:$0xff]
      %v3098 = vld [vmem:[%s9 + $0x130] sm:$0xff]
      %v3099 = vld [vmem:[%s9 + $0x138] sm:$0xff]
      %v3100 = vld [vmem:[%s9 + $0x140] sm:$0xff]
      %v3101 = vld [vmem:[%s9 + $0x148] sm:$0xff]
      %v3102 = vld [vmem:[%s9 + $0x150] sm:$0xff]
      %v3103 = vld [vmem:[%s9 + $0x158] sm:$0xff]
      %v3104 = vld [vmem:[%s9 + $0x160] sm:$0xff]
      %v3105 = vld [vmem:[%s9 + $0x168] sm:$0xff]
      %v3106 = vld [vmem:[%s9 + $0x170] sm:$0xff]
      %v3107 = vld [vmem:[%s9 + $0x178] sm:$0xff]
      %v3108 = vld [vmem:[%s9 + $0x180] sm:$0xff]
      %v3109 = vld [vmem:[%s9 + $0x188] sm:$0xff]
      %v3110 = vld [vmem:[%s9 + $0x190] sm:$0xff]
      %v3111 = vld [vmem:[%s9 + $0x198] sm:$0xff]
      %v3112 = vld [vmem:[%s9 + $0x1a0] sm:$0xff]
      %v3113 = vld [vmem:[%s9 + $0x1a8] sm:$0xff]
      %v3114 = vld [vmem:[%s9 + $0x1b0] sm:$0xff]
      %v3115 = vld [vmem:[%s9 + $0x1b8] sm:$0xff]
      %v3116 = vld [vmem:[%s9 + $0x1c0] sm:$0xff]
      %v3117 = vld [vmem:[%s9 + $0x1c8] sm:$0xff]
      %v3118 = vld [vmem:[%s9 + $0x1d0] sm:$0xff]
      %v3119 = vld [vmem:[%s9 + $0x1d8] sm:$0xff]
      %v3120 = vld [vmem:[%s9 + $0x1e0] sm:$0xff]
      %v3121 = vld [vmem:[%s9 + $0x1e8] sm:$0xff]
      %v3122 = vld [vmem:[%s9 + $0x1f0] sm:$0xff]
      %v3123 = vld [vmem:[%s9 + $0x1f8] sm:$0xff]
      %v3124 = vld [vmem:[%s10] sm:$0xff]
      %v3125 = vld [vmem:[%s10 + $0x8] sm:$0xff]
      %v3128 = vlaneseq
      %v3129 = vshrl.u32 %v3128, 7
      %v3130 = vsub.s32 0, %v3129
      %v3131 = vrot.slane %v3124, %v3130
      %v3132 = vlaneseq
      %v3133 = vshrl.u32 %v3132, 7
      %v3134 = vsub.s32 1, %v3133
      %v3135 = vrot.slane %v3124, %v3134
      %v3136 = vlaneseq
      %v3137 = vshrl.u32 %v3136, 7
      %v3138 = vsub.s32 2, %v3137
      %v3139 = vrot.slane %v3124, %v3138
      %v3140 = vlaneseq
      %v3141 = vshrl.u32 %v3140, 7
      %v3142 = vsub.s32 3, %v3141
      %v3143 = vrot.slane %v3124, %v3142
      %v3144 = vlaneseq
      %v3145 = vshrl.u32 %v3144, 7
      %v3146 = vsub.s32 4, %v3145
      %v3147 = vrot.slane %v3124, %v3146
      %v3148 = vlaneseq
      %v3149 = vshrl.u32 %v3148, 7
      %v3150 = vsub.s32 5, %v3149
      %v3151 = vrot.slane %v3124, %v3150
      %v3152 = vlaneseq
      %v3153 = vshrl.u32 %v3152, 7
      %v3154 = vsub.s32 6, %v3153
      %v3155 = vrot.slane %v3124, %v3154
      %v3156 = vlaneseq
      %v3157 = vshrl.u32 %v3156, 7
      %v3158 = vsub.s32 7, %v3157
      %v3159 = vrot.slane %v3124, %v3158
      %v3160 = vlaneseq
      %v3161 = vshrl.u32 %v3160, 7
      %v3162 = vsub.s32 0, %v3161
      %v3163 = vrot.slane %v3125, %v3162
      %v3164 = vlaneseq
      %v3165 = vshrl.u32 %v3164, 7
      %v3166 = vsub.s32 1, %v3165
      %v3167 = vrot.slane %v3125, %v3166
      %v3168 = vlaneseq
      %v3169 = vshrl.u32 %v3168, 7
      %v3170 = vsub.s32 2, %v3169
      %v3171 = vrot.slane %v3125, %v3170
      %v3172 = vlaneseq
      %v3173 = vshrl.u32 %v3172, 7
      %v3174 = vsub.s32 3, %v3173
      %v3175 = vrot.slane %v3125, %v3174
      %v3176 = vlaneseq
      %v3177 = vshrl.u32 %v3176, 7
      %v3178 = vsub.s32 4, %v3177
      %v3179 = vrot.slane %v3125, %v3178
      %v3180 = vlaneseq
      %v3181 = vshrl.u32 %v3180, 7
      %v3182 = vsub.s32 5, %v3181
      %v3183 = vrot.slane %v3125, %v3182
      %v3184 = vlaneseq
      %v3185 = vshrl.u32 %v3184, 7
      %v3186 = vsub.s32 6, %v3185
      %v3187 = vrot.slane %v3125, %v3186
      %v3188 = vlaneseq
      %v3189 = vshrl.u32 %v3188, 7
      %v3190 = vsub.s32 7, %v3189
      %v3191 = vrot.slane %v3125, %v3190
      %v3209 = vsel %vm790, %v3044, 0
      %v3212 = vsel %vm790, %v3045, 0
      %v3215 = vsel %vm790, %v3046, 0
      %v3218 = vsel %vm790, %v3047, 0
      %v3221 = vsel %vm790, %v3048, 0
      %v3224 = vsel %vm790, %v3049, 0
      %v3227 = vsel %vm790, %v3050, 0
      %v3230 = vsel %vm790, %v3051, 0
      %v3233 = vsel %vm790, %v3052, 0
      %v3236 = vsel %vm790, %v3053, 0
      %v3239 = vsel %vm790, %v3054, 0
      %v3242 = vsel %vm790, %v3055, 0
      %v3245 = vsel %vm790, %v3056, 0
      %v3248 = vsel %vm790, %v3057, 0
      %v3251 = vsel %vm790, %v3058, 0
      %v3254 = vsel %vm790, %v3059, 0
      %3256 = vmatprep.subr.mxu0 %v3061
      %3257 = vmatpush1.msra.mxu0 %v3060
      %3258 = vmatprep.subr.mxu0 %v3077
      %3259 = vmatpush1.msra.mxu0 %v3076
      %3260 = vmatprep.subr.mxu0 %v3093
      %3261 = vmatpush1.msra.mxu0 %v3092
      %3262 = vmatprep.subr.mxu0 %v3109
      %3263 = vmatpush1.msra.mxu0 %v3108
      %3264 = vmatprep.subr.mxu0 0.0
      %3265 = vmatpush1.msra.mxu0 0.0
      %3266 = vmatprep.subr.mxu0 0.0
      %3267 = vmatpush1.msra.mxu0 0.0
      %3268 = vmatprep.subr.mxu0 0.0
      %3269 = vmatpush1.msra.mxu0 0.0
      %3270 = vmatprep.subr.mxu0 0.0
      %3271 = vmatpush1.msra.mxu0 0.0
      %3272 = vmatprep.subr.mxu0 0.0
      %3273 = vmatpush1.msra.mxu0 0.0
      %3274 = vmatprep.subr.mxu0 0.0
      %3275 = vmatpush1.msra.mxu0 0.0
      %3276 = vmatprep.subr.mxu0 0.0
      %3277 = vmatpush1.msra.mxu0 0.0
      %3278 = vmatprep.subr.mxu0 0.0
      %3279 = vmatpush1.msra.mxu0 0.0
      %3280 = vmatprep.subr.mxu0 0.0
      %3281 = vmatpush1.msra.mxu0 0.0
      %3282 = vmatprep.subr.mxu0 0.0
      %3283 = vmatpush1.msra.mxu0 0.0
      %3284 = vmatprep.subr.mxu0 0.0
      %3285 = vmatpush1.msra.mxu0 0.0
      %3286 = vmatprep.subr.mxu0 0.0
      %3287 = vmatpush1.msra.mxu0 0.0
      %3288 = vmatprep.subr.mxu0 0.0
      %3289 = vmatpush1.msra.mxu0 0.0
      %3290 = vmatprep.subr.mxu0 0.0
      %3291 = vmatpush1.msra.mxu0 0.0
      %3292 = vmatprep.subr.mxu0 0.0
      %3293 = vmatpush1.msra.mxu0 0.0
      %3294 = vmatprep.subr.mxu0 0.0
      %3295 = vmatpush1.msra.mxu0 0.0
      %3296 = vmatprep.subr.mxu0 0.0
      %3297 = vmatpush1.msra.mxu0 0.0
      %3298 = vmatprep.subr.mxu0 0.0
      %3299 = vmatpush1.msra.mxu0 0.0
      %3300 = vmatprep.subr.mxu0 0.0
      %3301 = vmatpush1.msra.mxu0 0.0
      %3302 = vmatprep.subr.mxu0 0.0
      %3303 = vmatpush1.msra.mxu0 0.0
      %3304 = vmatprep.subr.mxu0 0.0
      %3305 = vmatpush1.msra.mxu0 0.0
      %3306 = vmatprep.subr.mxu0 0.0
      %3307 = vmatpush1.msra.mxu0 0.0
      %3308 = vmatprep.subr.mxu0 0.0
      %3309 = vmatpush1.msra.mxu0 0.0
      %3310 = vmatprep.subr.mxu0 0.0
      %3311 = vmatpush1.msra.mxu0 0.0
      %3312 = vmatprep.subr.mxu0 0.0
      %3313 = vmatpush1.msra.mxu0 0.0
      %3314 = vmatprep.subr.mxu0 0.0
      %3315 = vmatpush1.msra.mxu0 0.0
      %3316 = vmatprep.subr.mxu0 0.0
      %3317 = vmatpush1.msra.mxu0 0.0
      %3318 = vmatprep.subr.mxu0 0.0
      %3319 = vmatpush1.msra.mxu0 0.0
      %3320 = vmatprep.mubr.f32.mxu0 0.0
      %3321 = vmatmul.mubr.f32.gmra.mrb[0].mxu0 %v3209
      %v3322 = vpop.f32.mrb[0].mxu0
      %v3323 = vadd.f32 %v3131, %v3322
      %v3324 = vpop.f32.mrb[0].mxu0
      %v3325 = vadd.f32 %v3135, %v3324
      %3326 = vmatprep.mubr.f32.mxu0 0.0
      %3327 = vmatmul.mubr.f32.gmra.mrb[0].mxu0 %v3212
      %v3328 = vpop.f32.mrb[0].mxu0
      %v3329 = vadd.f32 %v3131, %v3328
      %v3330 = vpop.f32.mrb[0].mxu0
      %v3331 = vadd.f32 %v3135, %v3330
      %3332 = vmatprep.mubr.f32.mxu0 0.0
      %3333 = vmatmul.mubr.f32.gmra.mrb[0].mxu0 %v3215
      %v3334 = vpop.f32.mrb[0].mxu0
      %v3335 = vadd.f32 %v3131, %v3334
      %v3336 = vpop.f32.mrb[0].mxu0
      %v3337 = vadd.f32 %v3135, %v3336
      %3338 = vmatprep.mubr.f32.mxu0 0.0
      %3339 = vmatmul.mubr.f32.gmra.mrb[0].mxu0 %v3218
      %v3340 = vpop.f32.mrb[0].mxu0
      %v3341 = vadd.f32 %v3131, %v3340
      %v3342 = vpop.f32.mrb[0].mxu0
      %v3343 = vadd.f32 %v3135, %v3342
      %3344 = vmatprep.mubr.f32.mxu0 0.0
      %3345 = vmatmul.mubr.f32.gmra.mrb[0].mxu0 %v3221
      %v3346 = vpop.f32.mrb[0].mxu0
      %v3347 = vadd.f32 %v3131, %v3346
      %v3348 = vpop.f32.mrb[0].mxu0
      %v3349 = vadd.f32 %v3135, %v3348
      %3350 = vmatprep.mubr.f32.mxu0 0.0
      %3351 = vmatmul.mubr.f32.gmra.mrb[0].mxu0 %v3224
      %v3352 = vpop.f32.mrb[0].mxu0
      %v3353 = vadd.f32 %v3131, %v3352
      %v3354 = vpop.f32.mrb[0].mxu0
      %v3355 = vadd.f32 %v3135, %v3354
      %3356 = vmatprep.mubr.f32.mxu0 0.0
      %3357 = vmatmul.mubr.f32.gmra.mrb[0].mxu0 %v3227
      %v3358 = vpop.f32.mrb[0].mxu0
      %v3359 = vadd.f32 %v3131, %v3358
      %v3360 = vpop.f32.mrb[0].mxu0
      %v3361 = vadd.f32 %v3135, %v3360
      %3362 = vmatprep.mubr.f32.mxu0 0.0
      %3363 = vmatmul.mubr.f32.gmra.mrb[0].mxu0 %v3230
      %v3364 = vpop.f32.mrb[0].mxu0
      %v3365 = vadd.f32 %v3131, %v3364
      %v3366 = vpop.f32.mrb[0].mxu0
      %v3367 = vadd.f32 %v3135, %v3366
      %3368 = vmatprep.mubr.f32.mxu0 0.0
      %3369 = vmatmul.mubr.f32.gmra.mrb[0].mxu0 %v3233
      %v3370 = vpop.f32.mrb[0].mxu0
      %v3371 = vadd.f32 %v3131, %v3370
      %v3372 = vpop.f32.mrb[0].mxu0
      %v3373 = vadd.f32 %v3135, %v3372
      %3374 = vmatprep.mubr.f32.mxu0 0.0
      %3375 = vmatmul.mubr.f32.gmra.mrb[0].mxu0 %v3236
      %v3376 = vpop.f32.mrb[0].mxu0
      %v3377 = vadd.f32 %v3131, %v3376
      %v3378 = vpop.f32.mrb[0].mxu0
      %v3379 = vadd.f32 %v3135, %v3378
      %3380 = vmatprep.mubr.f32.mxu0 0.0
      %3381 = vmatmul.mubr.f32.gmra.mrb[0].mxu0 %v3239
      %v3382 = vpop.f32.mrb[0].mxu0
      %v3383 = vadd.f32 %v3131, %v3382
      %v3384 = vpop.f32.mrb[0].mxu0
      %v3385 = vadd.f32 %v3135, %v3384
      %3386 = vmatprep.mubr.f32.mxu0 0.0
      %3387 = vmatmul.mubr.f32.gmra.mrb[0].mxu0 %v3242
      %v3388 = vpop.f32.mrb[0].mxu0
      %v3389 = vadd.f32 %v3131, %v3388
      %v3390 = vpop.f32.mrb[0].mxu0
      %v3391 = vadd.f32 %v3135, %v3390
      %3392 = vmatprep.mubr.f32.mxu0 0.0
      %3393 = vmatmul.mubr.f32.gmra.mrb[0].mxu0 %v3245
      %v3394 = vpop.f32.mrb[0].mxu0
      %v3395 = vadd.f32 %v3131, %v3394
      %v3396 = vpop.f32.mrb[0].mxu0
      %v3397 = vadd.f32 %v3135, %v3396
      %3398 = vmatprep.mubr.f32.mxu0 0.0
      %3399 = vmatmul.mubr.f32.gmra.mrb[0].mxu0 %v3248
      %v3400 = vpop.f32.mrb[0].mxu0
      %v3401 = vadd.f32 %v3131, %v3400
      %v3402 = vpop.f32.mrb[0].mxu0
      %v3403 = vadd.f32 %v3135, %v3402
      %3404 = vmatprep.mubr.f32.mxu0 0.0
      %3405 = vmatmul.mubr.f32.gmra.mrb[0].mxu0 %v3251
      %v3406 = vpop.f32.mrb[0].mxu0
      %v3407 = vadd.f32 %v3131, %v3406
      %v3408 = vpop.f32.mrb[0].mxu0
      %v3409 = vadd.f32 %v3135, %v3408
      %3410 = vmatprep.mubr.f32.mxu0 0.0
      %3411 = vmatmul.mubr.f32.gmra.mrb[0].mxu0 %v3254
      %v3412 = vpop.f32.mrb[0].mxu0
      %v3413 = vadd.f32 %v3131, %v3412
      %v3414 = vpop.f32.mrb[0].mxu0
      %v3415 = vadd.f32 %v3135, %v3414
      %3416 = vdwg.mxu0
      %3417 = vmatprep.subr.mxu0 %v3063
      %3418 = vmatpush1.msra.mxu0 %v3062
      %3419 = vmatprep.subr.mxu0 %v3079
      %3420 = vmatpush1.msra.mxu0 %v3078
      %3421 = vmatprep.subr.mxu0 %v3095
      %3422 = vmatpush1.msra.mxu0 %v3094
      %3423 = vmatprep.subr.mxu0 %v3111
      %3424 = vmatpush1.msra.mxu0 %v3110
      %3425 = vmatprep.subr.mxu0 0.0
      %3426 = vmatpush1.msra.mxu0 0.0
      %3427 = vmatprep.subr.mxu0 0.0
      %3428 = vmatpush1.msra.mxu0 0.0
      %3429 = vmatprep.subr.mxu0 0.0
      %3430 = vmatpush1.msra.mxu0 0.0
      %3431 = vmatprep.subr.mxu0 0.0
      %3432 = vmatpush1.msra.mxu0 0.0
      %3433 = vmatprep.subr.mxu0 0.0
      %3434 = vmatpush1.msra.mxu0 0.0
      %3435 = vmatprep.subr.mxu0 0.0
      %3436 = vmatpush1.msra.mxu0 0.0
      %3437 = vmatprep.subr.mxu0 0.0
      %3438 = vmatpush1.msra.mxu0 0.0
      %3439 = vmatprep.subr.mxu0 0.0
      %3440 = vmatpush1.msra.mxu0 0.0
      %3441 = vmatprep.subr.mxu0 0.0
      %3442 = vmatpush1.msra.mxu0 0.0
      %3443 = vmatprep.subr.mxu0 0.0
      %3444 = vmatpush1.msra.mxu0 0.0
      %3445 = vmatprep.subr.mxu0 0.0
      %3446 = vmatpush1.msra.mxu0 0.0
      %3447 = vmatprep.subr.mxu0 0.0
      %3448 = vmatpush1.msra.mxu0 0.0
      %3449 = vmatprep.subr.mxu0 0.0
      %3450 = vmatpush1.msra.mxu0 0.0
      %3451 = vmatprep.subr.mxu0 0.0
      %3452 = vmatpush1.msra.mxu0 0.0
      %3453 = vmatprep.subr.mxu0 0.0
      %3454 = vmatpush1.msra.mxu0 0.0
      %3455 = vmatprep.subr.mxu0 0.0
      %3456 = vmatpush1.msra.mxu0 0.0
      %3457 = vmatprep.subr.mxu0 0.0
      %3458 = vmatpush1.msra.mxu0 0.0
      %3459 = vmatprep.subr.mxu0 0.0
      %3460 = vmatpush1.msra.mxu0 0.0
      %3461 = vmatprep.subr.mxu0 0.0
      %3462 = vmatpush1.msra.mxu0 0.0
      %3463 = vmatprep.subr.mxu0 0.0
      %3464 = vmatpush1.msra.mxu0 0.0
      %3465 = vmatprep.subr.mxu0 0.0
      %3466 = vmatpush1.msra.mxu0 0.0
      %3467 = vmatprep.subr.mxu0 0.0
      %3468 = vmatpush1.msra.mxu0 0.0
      %3469 = vmatprep.subr.mxu0 0.0
      %3470 = vmatpush1.msra.mxu0 0.0
      %3471 = vmatprep.subr.mxu0 0.0
      %3472 = vmatpush1.msra.mxu0 0.0
      %3473 = vmatprep.subr.mxu0 0.0
      %3474 = vmatpush1.msra.mxu0 0.0
      %3475 = vmatprep.subr.mxu0 0.0
      %3476 = vmatpush1.msra.mxu0 0.0
      %3477 = vmatprep.subr.mxu0 0.0
      %3478 = vmatpush1.msra.mxu0 0.0
      %3479 = vmatprep.subr.mxu0 0.0
      %3480 = vmatpush1.msra.mxu0 0.0
      %3481 = vmatprep.mubr.f32.mxu0 0.0
      %3482 = vmatmul.mubr.f32.gmra.mrb[0].mxu0 %v3209
      %v3483 = vpop.f32.mrb[0].mxu0
      %v3484 = vadd.f32 %v3139, %v3483
      %v3485 = vpop.f32.mrb[0].mxu0
      %v3486 = vadd.f32 %v3143, %v3485
      %3487 = vmatprep.mubr.f32.mxu0 0.0
      %3488 = vmatmul.mubr.f32.gmra.mrb[0].mxu0 %v3212
      %v3489 = vpop.f32.mrb[0].mxu0
      %v3490 = vadd.f32 %v3139, %v3489
      %v3491 = vpop.f32.mrb[0].mxu0
      %v3492 = vadd.f32 %v3143, %v3491
      %3493 = vmatprep.mubr.f32.mxu0 0.0
      %3494 = vmatmul.mubr.f32.gmra.mrb[0].mxu0 %v3215
      %v3495 = vpop.f32.mrb[0].mxu0
      %v3496 = vadd.f32 %v3139, %v3495
      %v3497 = vpop.f32.mrb[0].mxu0
      %v3498 = vadd.f32 %v3143, %v3497
      %3499 = vmatprep.mubr.f32.mxu0 0.0
      %3500 = vmatmul.mubr.f32.gmra.mrb[0].mxu0 %v3218
      %v3501 = vpop.f32.mrb[0].mxu0
      %v3502 = vadd.f32 %v3139, %v3501
      %v3503 = vpop.f32.mrb[0].mxu0
      %v3504 = vadd.f32 %v3143, %v3503
      %3505 = vmatprep.mubr.f32.mxu0 0.0
      %3506 = vmatmul.mubr.f32.gmra.mrb[0].mxu0 %v3221
      %v3507 = vpop.f32.mrb[0].mxu0
      %v3508 = vadd.f32 %v3139, %v3507
      %v3509 = vpop.f32.mrb[0].mxu0
      %v3510 = vadd.f32 %v3143, %v3509
      %3511 = vmatprep.mubr.f32.mxu0 0.0
      %3512 = vmatmul.mubr.f32.gmra.mrb[0].mxu0 %v3224
      %v3513 = vpop.f32.mrb[0].mxu0
      %v3514 = vadd.f32 %v3139, %v3513
      %v3515 = vpop.f32.mrb[0].mxu0
      %v3516 = vadd.f32 %v3143, %v3515
      %3517 = vmatprep.mubr.f32.mxu0 0.0
      %3518 = vmatmul.mubr.f32.gmra.mrb[0].mxu0 %v3227
      %v3519 = vpop.f32.mrb[0].mxu0
      %v3520 = vadd.f32 %v3139, %v3519
      %v3521 = vpop.f32.mrb[0].mxu0
      %v3522 = vadd.f32 %v3143, %v3521
      %3523 = vmatprep.mubr.f32.mxu0 0.0
      %3524 = vmatmul.mubr.f32.gmra.mrb[0].mxu0 %v3230
      %v3525 = vpop.f32.mrb[0].mxu0
      %v3526 = vadd.f32 %v3139, %v3525
      %v3527 = vpop.f32.mrb[0].mxu0
      %v3528 = vadd.f32 %v3143, %v3527
      %3529 = vmatprep.mubr.f32.mxu0 0.0
      %3530 = vmatmul.mubr.f32.gmra.mrb[0].mxu0 %v3233
      %v3531 = vpop.f32.mrb[0].mxu0
      %v3532 = vadd.f32 %v3139, %v3531
      %v3533 = vpop.f32.mrb[0].mxu0
      %v3534 = vadd.f32 %v3143, %v3533
      %3535 = vmatprep.mubr.f32.mxu0 0.0
      %3536 = vmatmul.mubr.f32.gmra.mrb[0].mxu0 %v3236
      %v3537 = vpop.f32.mrb[0].mxu0
      %v3538 = vadd.f32 %v3139, %v3537
      %v3539 = vpop.f32.mrb[0].mxu0
      %v3540 = vadd.f32 %v3143, %v3539
      %3541 = vmatprep.mubr.f32.mxu0 0.0
      %3542 = vmatmul.mubr.f32.gmra.mrb[0].mxu0 %v3239
      %v3543 = vpop.f32.mrb[0].mxu0
      %v3544 = vadd.f32 %v3139, %v3543
      %v3545 = vpop.f32.mrb[0].mxu0
      %v3546 = vadd.f32 %v3143, %v3545
      %3547 = vmatprep.mubr.f32.mxu0 0.0
      %3548 = vmatmul.mubr.f32.gmra.mrb[0].mxu0 %v3242
      %v3549 = vpop.f32.mrb[0].mxu0
      %v3550 = vadd.f32 %v3139, %v3549
      %v3551 = vpop.f32.mrb[0].mxu0
      %v3552 = vadd.f32 %v3143, %v3551
      %3553 = vmatprep.mubr.f32.mxu0 0.0
      %3554 = vmatmul.mubr.f32.gmra.mrb[0].mxu0 %v3245
      %v3555 = vpop.f32.mrb[0].mxu0
      %v3556 = vadd.f32 %v3139, %v3555
      %v3557 = vpop.f32.mrb[0].mxu0
      %v3558 = vadd.f32 %v3143, %v3557
      %3559 = vmatprep.mubr.f32.mxu0 0.0
      %3560 = vmatmul.mubr.f32.gmra.mrb[0].mxu0 %v3248
      %v3561 = vpop.f32.mrb[0].mxu0
      %v3562 = vadd.f32 %v3139, %v3561
      %v3563 = vpop.f32.mrb[0].mxu0
      %v3564 = vadd.f32 %v3143, %v3563
      %3565 = vmatprep.mubr.f32.mxu0 0.0
      %3566 = vmatmul.mubr.f32.gmra.mrb[0].mxu0 %v3251
      %v3567 = vpop.f32.mrb[0].mxu0
      %v3568 = vadd.f32 %v3139, %v3567
      %v3569 = vpop.f32.mrb[0].mxu0
      %v3570 = vadd.f32 %v3143, %v3569
      %3571 = vmatprep.mubr.f32.mxu0 0.0
      %3572 = vmatmul.mubr.f32.gmra.mrb[0].mxu0 %v3254
      %v3573 = vpop.f32.mrb[0].mxu0
      %v3574 = vadd.f32 %v3139, %v3573
      %v3575 = vpop.f32.mrb[0].mxu0
      %v3576 = vadd.f32 %v3143, %v3575
      %3577 = vdwg.mxu0
      %3578 = vmatprep.subr.mxu0 %v3065
      %3579 = vmatpush1.msra.mxu0 %v3064
      %3580 = vmatprep.subr.mxu0 %v3081
      %3581 = vmatpush1.msra.mxu0 %v3080
      %3582 = vmatprep.subr.mxu0 %v3097
      %3583 = vmatpush1.msra.mxu0 %v3096
      %3584 = vmatprep.subr.mxu0 %v3113
      %3585 = vmatpush1.msra.mxu0 %v3112
      %3586 = vmatprep.subr.mxu0 0.0
      %3587 = vmatpush1.msra.mxu0 0.0
      %3588 = vmatprep.subr.mxu0 0.0
      %3589 = vmatpush1.msra.mxu0 0.0
      %3590 = vmatprep.subr.mxu0 0.0
      %3591 = vmatpush1.msra.mxu0 0.0
      %3592 = vmatprep.subr.mxu0 0.0
      %3593 = vmatpush1.msra.mxu0 0.0
      %3594 = vmatprep.subr.mxu0 0.0
      %3595 = vmatpush1.msra.mxu0 0.0
      %3596 = vmatprep.subr.mxu0 0.0
      %3597 = vmatpush1.msra.mxu0 0.0
      %3598 = vmatprep.subr.mxu0 0.0
      %3599 = vmatpush1.msra.mxu0 0.0
      %3600 = vmatprep.subr.mxu0 0.0
      %3601 = vmatpush1.msra.mxu0 0.0
      %3602 = vmatprep.subr.mxu0 0.0
      %3603 = vmatpush1.msra.mxu0 0.0
      %3604 = vmatprep.subr.mxu0 0.0
      %3605 = vmatpush1.msra.mxu0 0.0
      %3606 = vmatprep.subr.mxu0 0.0
      %3607 = vmatpush1.msra.mxu0 0.0
      %3608 = vmatprep.subr.mxu0 0.0
      %3609 = vmatpush1.msra.mxu0 0.0
      %3610 = vmatprep.subr.mxu0 0.0
      %3611 = vmatpush1.msra.mxu0 0.0
      %3612 = vmatprep.subr.mxu0 0.0
      %3613 = vmatpush1.msra.mxu0 0.0
      %3614 = vmatprep.subr.mxu0 0.0
      %3615 = vmatpush1.msra.mxu0 0.0
      %3616 = vmatprep.subr.mxu0 0.0
      %3617 = vmatpush1.msra.mxu0 0.0
      %3618 = vmatprep.subr.mxu0 0.0
      %3619 = vmatpush1.msra.mxu0 0.0
      %3620 = vmatprep.subr.mxu0 0.0
      %3621 = vmatpush1.msra.mxu0 0.0
      %3622 = vmatprep.subr.mxu0 0.0
      %3623 = vmatpush1.msra.mxu0 0.0
      %3624 = vmatprep.subr.mxu0 0.0
      %3625 = vmatpush1.msra.mxu0 0.0
      %3626 = vmatprep.subr.mxu0 0.0
      %3627 = vmatpush1.msra.mxu0 0.0
      %3628 = vmatprep.subr.mxu0 0.0
      %3629 = vmatpush1.msra.mxu0 0.0
      %3630 = vmatprep.subr.mxu0 0.0
      %3631 = vmatpush1.msra.mxu0 0.0
      %3632 = vmatprep.subr.mxu0 0.0
      %3633 = vmatpush1.msra.mxu0 0.0
      %3634 = vmatprep.subr.mxu0 0.0
      %3635 = vmatpush1.msra.mxu0 0.0
      %3636 = vmatprep.subr.mxu0 0.0
      %3637 = vmatpush1.msra.mxu0 0.0
      %3638 = vmatprep.subr.mxu0 0.0
      %3639 = vmatpush1.msra.mxu0 0.0
      %3640 = vmatprep.subr.mxu0 0.0
      %3641 = vmatpush1.msra.mxu0 0.0
      %3642 = vmatprep.mubr.f32.mxu0 0.0
      %3643 = vmatmul.mubr.f32.gmra.mrb[0].mxu0 %v3209
      %v3644 = vpop.f32.mrb[0].mxu0
      %v3645 = vadd.f32 %v3147, %v3644
      %v3646 = vpop.f32.mrb[0].mxu0
      %v3647 = vadd.f32 %v3151, %v3646
      %3648 = vmatprep.mubr.f32.mxu0 0.0
      %3649 = vmatmul.mubr.f32.gmra.mrb[0].mxu0 %v3212
      %v3650 = vpop.f32.mrb[0].mxu0
      %v3651 = vadd.f32 %v3147, %v3650
      %v3652 = vpop.f32.mrb[0].mxu0
      %v3653 = vadd.f32 %v3151, %v3652
      %3654 = vmatprep.mubr.f32.mxu0 0.0
      %3655 = vmatmul.mubr.f32.gmra.mrb[0].mxu0 %v3215
      %v3656 = vpop.f32.mrb[0].mxu0
      %v3657 = vadd.f32 %v3147, %v3656
      %v3658 = vpop.f32.mrb[0].mxu0
      %v3659 = vadd.f32 %v3151, %v3658
      %3660 = vmatprep.mubr.f32.mxu0 0.0
      %3661 = vmatmul.mubr.f32.gmra.mrb[0].mxu0 %v3218
      %v3662 = vpop.f32.mrb[0].mxu0
      %v3663 = vadd.f32 %v3147, %v3662
      %v3664 = vpop.f32.mrb[0].mxu0
      %v3665 = vadd.f32 %v3151, %v3664
      %3666 = vmatprep.mubr.f32.mxu0 0.0
      %3667 = vmatmul.mubr.f32.gmra.mrb[0].mxu0 %v3221
      %v3668 = vpop.f32.mrb[0].mxu0
      %v3669 = vadd.f32 %v3147, %v3668
      %v3670 = vpop.f32.mrb[0].mxu0
      %v3671 = vadd.f32 %v3151, %v3670
      %3672 = vmatprep.mubr.f32.mxu0 0.0
      %3673 = vmatmul.mubr.f32.gmra.mrb[0].mxu0 %v3224
      %v3674 = vpop.f32.mrb[0].mxu0
      %v3675 = vadd.f32 %v3147, %v3674
      %v3676 = vpop.f32.mrb[0].mxu0
      %v3677 = vadd.f32 %v3151, %v3676
      %3678 = vmatprep.mubr.f32.mxu0 0.0
      %3679 = vmatmul.mubr.f32.gmra.mrb[0].mxu0 %v3227
      %v3680 = vpop.f32.mrb[0].mxu0
      %v3681 = vadd.f32 %v3147, %v3680
      %v3682 = vpop.f32.mrb[0].mxu0
      %v3683 = vadd.f32 %v3151, %v3682
      %3684 = vmatprep.mubr.f32.mxu0 0.0
      %3685 = vmatmul.mubr.f32.gmra.mrb[0].mxu0 %v3230
      %v3686 = vpop.f32.mrb[0].mxu0
      %v3687 = vadd.f32 %v3147, %v3686
      %v3688 = vpop.f32.mrb[0].mxu0
      %v3689 = vadd.f32 %v3151, %v3688
      %3690 = vmatprep.mubr.f32.mxu0 0.0
      %3691 = vmatmul.mubr.f32.gmra.mrb[0].mxu0 %v3233
      %v3692 = vpop.f32.mrb[0].mxu0
      %v3693 = vadd.f32 %v3147, %v3692
      %v3694 = vpop.f32.mrb[0].mxu0
      %v3695 = vadd.f32 %v3151, %v3694
      %3696 = vmatprep.mubr.f32.mxu0 0.0
      %3697 = vmatmul.mubr.f32.gmra.mrb[0].mxu0 %v3236
      %v3698 = vpop.f32.mrb[0].mxu0
      %v3699 = vadd.f32 %v3147, %v3698
      %v3700 = vpop.f32.mrb[0].mxu0
      %v3701 = vadd.f32 %v3151, %v3700
      %3702 = vmatprep.mubr.f32.mxu0 0.0
      %3703 = vmatmul.mubr.f32.gmra.mrb[0].mxu0 %v3239
      %v3704 = vpop.f32.mrb[0].mxu0
      %v3705 = vadd.f32 %v3147, %v3704
      %v3706 = vpop.f32.mrb[0].mxu0
      %v3707 = vadd.f32 %v3151, %v3706
      %3708 = vmatprep.mubr.f32.mxu0 0.0
      %3709 = vmatmul.mubr.f32.gmra.mrb[0].mxu0 %v3242
      %v3710 = vpop.f32.mrb[0].mxu0
      %v3711 = vadd.f32 %v3147, %v3710
      %v3712 = vpop.f32.mrb[0].mxu0
      %v3713 = vadd.f32 %v3151, %v3712
      %3714 = vmatprep.mubr.f32.mxu0 0.0
      %3715 = vmatmul.mubr.f32.gmra.mrb[0].mxu0 %v3245
      %v3716 = vpop.f32.mrb[0].mxu0
      %v3717 = vadd.f32 %v3147, %v3716
      %v3718 = vpop.f32.mrb[0].mxu0
      %v3719 = vadd.f32 %v3151, %v3718
      %3720 = vmatprep.mubr.f32.mxu0 0.0
      %3721 = vmatmul.mubr.f32.gmra.mrb[0].mxu0 %v3248
      %v3722 = vpop.f32.mrb[0].mxu0
      %v3723 = vadd.f32 %v3147, %v3722
      %v3724 = vpop.f32.mrb[0].mxu0
      %v3725 = vadd.f32 %v3151, %v3724
      %3726 = vmatprep.mubr.f32.mxu0 0.0
      %3727 = vmatmul.mubr.f32.gmra.mrb[0].mxu0 %v3251
      %v3728 = vpop.f32.mrb[0].mxu0
      %v3729 = vadd.f32 %v3147, %v3728
      %v3730 = vpop.f32.mrb[0].mxu0
      %v3731 = vadd.f32 %v3151, %v3730
      %3732 = vmatprep.mubr.f32.mxu0 0.0
      %3733 = vmatmul.mubr.f32.gmra.mrb[0].mxu0 %v3254
      %v3734 = vpop.f32.mrb[0].mxu0
      %v3735 = vadd.f32 %v3147, %v3734
      %v3736 = vpop.f32.mrb[0].mxu0
      %v3737 = vadd.f32 %v3151, %v3736
      %3738 = vdwg.mxu0
      %3739 = vmatprep.subr.mxu0 %v3067
      %3740 = vmatpush1.msra.mxu0 %v3066
      %3741 = vmatprep.subr.mxu0 %v3083
      %3742 = vmatpush1.msra.mxu0 %v3082
      %3743 = vmatprep.subr.mxu0 %v3099
      %3744 = vmatpush1.msra.mxu0 %v3098
      %3745 = vmatprep.subr.mxu0 %v3115
      %3746 = vmatpush1.msra.mxu0 %v3114
      %3747 = vmatprep.subr.mxu0 0.0
      %3748 = vmatpush1.msra.mxu0 0.0
      %3749 = vmatprep.subr.mxu0 0.0
      %3750 = vmatpush1.msra.mxu0 0.0
      %3751 = vmatprep.subr.mxu0 0.0
      %3752 = vmatpush1.msra.mxu0 0.0
      %3753 = vmatprep.subr.mxu0 0.0
      %3754 = vmatpush1.msra.mxu0 0.0
      %3755 = vmatprep.subr.mxu0 0.0
      %3756 = vmatpush1.msra.mxu0 0.0
      %3757 = vmatprep.subr.mxu0 0.0
      %3758 = vmatpush1.msra.mxu0 0.0
      %3759 = vmatprep.subr.mxu0 0.0
      %3760 = vmatpush1.msra.mxu0 0.0
      %3761 = vmatprep.subr.mxu0 0.0
      %3762 = vmatpush1.msra.mxu0 0.0
      %3763 = vmatprep.subr.mxu0 0.0
      %3764 = vmatpush1.msra.mxu0 0.0
      %3765 = vmatprep.subr.mxu0 0.0
      %3766 = vmatpush1.msra.mxu0 0.0
      %3767 = vmatprep.subr.mxu0 0.0
      %3768 = vmatpush1.msra.mxu0 0.0
      %3769 = vmatprep.subr.mxu0 0.0
      %3770 = vmatpush1.msra.mxu0 0.0
      %3771 = vmatprep.subr.mxu0 0.0
      %3772 = vmatpush1.msra.mxu0 0.0
      %3773 = vmatprep.subr.mxu0 0.0
      %3774 = vmatpush1.msra.mxu0 0.0
      %3775 = vmatprep.subr.mxu0 0.0
      %3776 = vmatpush1.msra.mxu0 0.0
      %3777 = vmatprep.subr.mxu0 0.0
      %3778 = vmatpush1.msra.mxu0 0.0
      %3779 = vmatprep.subr.mxu0 0.0
      %3780 = vmatpush1.msra.mxu0 0.0
      %3781 = vmatprep.subr.mxu0 0.0
      %3782 = vmatpush1.msra.mxu0 0.0
      %3783 = vmatprep.subr.mxu0 0.0
      %3784 = vmatpush1.msra.mxu0 0.0
      %3785 = vmatprep.subr.mxu0 0.0
      %3786 = vmatpush1.msra.mxu0 0.0
      %3787 = vmatprep.subr.mxu0 0.0
      %3788 = vmatpush1.msra.mxu0 0.0
      %3789 = vmatprep.subr.mxu0 0.0
      %3790 = vmatpush1.msra.mxu0 0.0
      %3791 = vmatprep.subr.mxu0 0.0
      %3792 = vmatpush1.msra.mxu0 0.0
      %3793 = vmatprep.subr.mxu0 0.0
      %3794 = vmatpush1.msra.mxu0 0.0
      %3795 = vmatprep.subr.mxu0 0.0
      %3796 = vmatpush1.msra.mxu0 0.0
      %3797 = vmatprep.subr.mxu0 0.0
      %3798 = vmatpush1.msra.mxu0 0.0
      %3799 = vmatprep.subr.mxu0 0.0
      %3800 = vmatpush1.msra.mxu0 0.0
      %3801 = vmatprep.subr.mxu0 0.0
      %3802 = vmatpush1.msra.mxu0 0.0
      %3803 = vmatprep.mubr.f32.mxu0 0.0
      %3804 = vmatmul.mubr.f32.gmra.mrb[0].mxu0 %v3209
      %v3805 = vpop.f32.mrb[0].mxu0
      %v3806 = vadd.f32 %v3155, %v3805
      %v3807 = vpop.f32.mrb[0].mxu0
      %v3808 = vadd.f32 %v3159, %v3807
      %3809 = vmatprep.mubr.f32.mxu0 0.0
      %3810 = vmatmul.mubr.f32.gmra.mrb[0].mxu0 %v3212
      %v3811 = vpop.f32.mrb[0].mxu0
      %v3812 = vadd.f32 %v3155, %v3811
      %v3813 = vpop.f32.mrb[0].mxu0
      %v3814 = vadd.f32 %v3159, %v3813
      %3815 = vmatprep.mubr.f32.mxu0 0.0
      %3816 = vmatmul.mubr.f32.gmra.mrb[0].mxu0 %v3215
      %v3817 = vpop.f32.mrb[0].mxu0
      %v3818 = vadd.f32 %v3155, %v3817
      %v3819 = vpop.f32.mrb[0].mxu0
      %v3820 = vadd.f32 %v3159, %v3819
      %3821 = vmatprep.mubr.f32.mxu0 0.0
      %3822 = vmatmul.mubr.f32.gmra.mrb[0].mxu0 %v3218
      %v3823 = vpop.f32.mrb[0].mxu0
      %v3824 = vadd.f32 %v3155, %v3823
      %v3825 = vpop.f32.mrb[0].mxu0
      %v3826 = vadd.f32 %v3159, %v3825
      %3827 = vmatprep.mubr.f32.mxu0 0.0
      %3828 = vmatmul.mubr.f32.gmra.mrb[0].mxu0 %v3221
      %v3829 = vpop.f32.mrb[0].mxu0
      %v3830 = vadd.f32 %v3155, %v3829
      %v3831 = vpop.f32.mrb[0].mxu0
      %v3832 = vadd.f32 %v3159, %v3831
      %3833 = vmatprep.mubr.f32.mxu0 0.0
      %3834 = vmatmul.mubr.f32.gmra.mrb[0].mxu0 %v3224
      %v3835 = vpop.f32.mrb[0].mxu0
      %v3836 = vadd.f32 %v3155, %v3835
      %v3837 = vpop.f32.mrb[0].mxu0
      %v3838 = vadd.f32 %v3159, %v3837
      %3839 = vmatprep.mubr.f32.mxu0 0.0
      %3840 = vmatmul.mubr.f32.gmra.mrb[0].mxu0 %v3227
      %v3841 = vpop.f32.mrb[0].mxu0
      %v3842 = vadd.f32 %v3155, %v3841
      %v3843 = vpop.f32.mrb[0].mxu0
      %v3844 = vadd.f32 %v3159, %v3843
      %3845 = vmatprep.mubr.f32.mxu0 0.0
      %3846 = vmatmul.mubr.f32.gmra.mrb[0].mxu0 %v3230
      %v3847 = vpop.f32.mrb[0].mxu0
      %v3848 = vadd.f32 %v3155, %v3847
      %v3849 = vpop.f32.mrb[0].mxu0
      %v3850 = vadd.f32 %v3159, %v3849
      %3851 = vmatprep.mubr.f32.mxu0 0.0
      %3852 = vmatmul.mubr.f32.gmra.mrb[0].mxu0 %v3233
      %v3853 = vpop.f32.mrb[0].mxu0
      %v3854 = vadd.f32 %v3155, %v3853
      %v3855 = vpop.f32.mrb[0].mxu0
      %v3856 = vadd.f32 %v3159, %v3855
      %3857 = vmatprep.mubr.f32.mxu0 0.0
      %3858 = vmatmul.mubr.f32.gmra.mrb[0].mxu0 %v3236
      %v3859 = vpop.f32.mrb[0].mxu0
      %v3860 = vadd.f32 %v3155, %v3859
      %v3861 = vpop.f32.mrb[0].mxu0
      %v3862 = vadd.f32 %v3159, %v3861
      %3863 = vmatprep.mubr.f32.mxu0 0.0
      %3864 = vmatmul.mubr.f32.gmra.mrb[0].mxu0 %v3239
      %v3865 = vpop.f32.mrb[0].mxu0
      %v3866 = vadd.f32 %v3155, %v3865
      %v3867 = vpop.f32.mrb[0].mxu0
      %v3868 = vadd.f32 %v3159, %v3867
      %3869 = vmatprep.mubr.f32.mxu0 0.0
      %3870 = vmatmul.mubr.f32.gmra.mrb[0].mxu0 %v3242
      %v3871 = vpop.f32.mrb[0].mxu0
      %v3872 = vadd.f32 %v3155, %v3871
      %v3873 = vpop.f32.mrb[0].mxu0
      %v3874 = vadd.f32 %v3159, %v3873
      %3875 = vmatprep.mubr.f32.mxu0 0.0
      %3876 = vmatmul.mubr.f32.gmra.mrb[0].mxu0 %v3245
      %v3877 = vpop.f32.mrb[0].mxu0
      %v3878 = vadd.f32 %v3155, %v3877
      %v3879 = vpop.f32.mrb[0].mxu0
      %v3880 = vadd.f32 %v3159, %v3879
      %3881 = vmatprep.mubr.f32.mxu0 0.0
      %3882 = vmatmul.mubr.f32.gmra.mrb[0].mxu0 %v3248
      %v3883 = vpop.f32.mrb[0].mxu0
      %v3884 = vadd.f32 %v3155, %v3883
      %v3885 = vpop.f32.mrb[0].mxu0
      %v3886 = vadd.f32 %v3159, %v3885
      %3887 = vmatprep.mubr.f32.mxu0 0.0
      %3888 = vmatmul.mubr.f32.gmra.mrb[0].mxu0 %v3251
      %v3889 = vpop.f32.mrb[0].mxu0
      %v3890 = vadd.f32 %v3155, %v3889
      %v3891 = vpop.f32.mrb[0].mxu0
      %v3892 = vadd.f32 %v3159, %v3891
      %3893 = vmatprep.mubr.f32.mxu0 0.0
      %3894 = vmatmul.mubr.f32.gmra.mrb[0].mxu0 %v3254
      %v3895 = vpop.f32.mrb[0].mxu0
      %v3896 = vadd.f32 %v3155, %v3895
      %v3897 = vpop.f32.mrb[0].mxu0
      %v3898 = vadd.f32 %v3159, %v3897
      %3899 = vdwg.mxu0
      %3900 = vmatprep.subr.mxu0 %v3069
      %3901 = vmatpush1.msra.mxu0 %v3068
      %3902 = vmatprep.subr.mxu0 %v3085
      %3903 = vmatpush1.msra.mxu0 %v3084
      %3904 = vmatprep.subr.mxu0 %v3101
      %3905 = vmatpush1.msra.mxu0 %v3100
      %3906 = vmatprep.subr.mxu0 %v3117
      %3907 = vmatpush1.msra.mxu0 %v3116
      %3908 = vmatprep.subr.mxu0 0.0
      %3909 = vmatpush1.msra.mxu0 0.0
      %3910 = vmatprep.subr.mxu0 0.0
      %3911 = vmatpush1.msra.mxu0 0.0
      %3912 = vmatprep.subr.mxu0 0.0
      %3913 = vmatpush1.msra.mxu0 0.0
      %3914 = vmatprep.subr.mxu0 0.0
      %3915 = vmatpush1.msra.mxu0 0.0
      %3916 = vmatprep.subr.mxu0 0.0
      %3917 = vmatpush1.msra.mxu0 0.0
      %3918 = vmatprep.subr.mxu0 0.0
      %3919 = vmatpush1.msra.mxu0 0.0
      %3920 = vmatprep.subr.mxu0 0.0
      %3921 = vmatpush1.msra.mxu0 0.0
      %3922 = vmatprep.subr.mxu0 0.0
      %3923 = vmatpush1.msra.mxu0 0.0
      %3924 = vmatprep.subr.mxu0 0.0
      %3925 = vmatpush1.msra.mxu0 0.0
      %3926 = vmatprep.subr.mxu0 0.0
      %3927 = vmatpush1.msra.mxu0 0.0
      %3928 = vmatprep.subr.mxu0 0.0
      %3929 = vmatpush1.msra.mxu0 0.0
      %3930 = vmatprep.subr.mxu0 0.0
      %3931 = vmatpush1.msra.mxu0 0.0
      %3932 = vmatprep.subr.mxu0 0.0
      %3933 = vmatpush1.msra.mxu0 0.0
      %3934 = vmatprep.subr.mxu0 0.0
      %3935 = vmatpush1.msra.mxu0 0.0
      %3936 = vmatprep.subr.mxu0 0.0
      %3937 = vmatpush1.msra.mxu0 0.0
      %3938 = vmatprep.subr.mxu0 0.0
      %3939 = vmatpush1.msra.mxu0 0.0
      %3940 = vmatprep.subr.mxu0 0.0
      %3941 = vmatpush1.msra.mxu0 0.0
      %3942 = vmatprep.subr.mxu0 0.0
      %3943 = vmatpush1.msra.mxu0 0.0
      %3944 = vmatprep.subr.mxu0 0.0
      %3945 = vmatpush1.msra.mxu0 0.0
      %3946 = vmatprep.subr.mxu0 0.0
      %3947 = vmatpush1.msra.mxu0 0.0
      %3948 = vmatprep.subr.mxu0 0.0
      %3949 = vmatpush1.msra.mxu0 0.0
      %3950 = vmatprep.subr.mxu0 0.0
      %3951 = vmatpush1.msra.mxu0 0.0
      %3952 = vmatprep.subr.mxu0 0.0
      %3953 = vmatpush1.msra.mxu0 0.0
      %3954 = vmatprep.subr.mxu0 0.0
      %3955 = vmatpush1.msra.mxu0 0.0
      %3956 = vmatprep.subr.mxu0 0.0
      %3957 = vmatpush1.msra.mxu0 0.0
      %3958 = vmatprep.subr.mxu0 0.0
      %3959 = vmatpush1.msra.mxu0 0.0
      %3960 = vmatprep.subr.mxu0 0.0
      %3961 = vmatpush1.msra.mxu0 0.0
      %3962 = vmatprep.subr.mxu0 0.0
      %3963 = vmatpush1.msra.mxu0 0.0
      %3964 = vmatprep.mubr.f32.mxu0 0.0
      %3965 = vmatmul.mubr.f32.gmra.mrb[0].mxu0 %v3209
      %v3966 = vpop.f32.mrb[0].mxu0
      %v3967 = vadd.f32 %v3163, %v3966
      %v3968 = vpop.f32.mrb[0].mxu0
      %v3969 = vadd.f32 %v3167, %v3968
      %3970 = vmatprep.mubr.f32.mxu0 0.0
      %3971 = vmatmul.mubr.f32.gmra.mrb[0].mxu0 %v3212
      %v3972 = vpop.f32.mrb[0].mxu0
      %v3973 = vadd.f32 %v3163, %v3972
      %v3974 = vpop.f32.mrb[0].mxu0
      %v3975 = vadd.f32 %v3167, %v3974
      %3976 = vmatprep.mubr.f32.mxu0 0.0
      %3977 = vmatmul.mubr.f32.gmra.mrb[0].mxu0 %v3215
      %v3978 = vpop.f32.mrb[0].mxu0
      %v3979 = vadd.f32 %v3163, %v3978
      %v3980 = vpop.f32.mrb[0].mxu0
      %v3981 = vadd.f32 %v3167, %v3980
      %3982 = vmatprep.mubr.f32.mxu0 0.0
      %3983 = vmatmul.mubr.f32.gmra.mrb[0].mxu0 %v3218
      %v3984 = vpop.f32.mrb[0].mxu0
      %v3985 = vadd.f32 %v3163, %v3984
      %v3986 = vpop.f32.mrb[0].mxu0
      %v3987 = vadd.f32 %v3167, %v3986
      %3988 = vmatprep.mubr.f32.mxu0 0.0
      %3989 = vmatmul.mubr.f32.gmra.mrb[0].mxu0 %v3221
      %v3990 = vpop.f32.mrb[0].mxu0
      %v3991 = vadd.f32 %v3163, %v3990
      %v3992 = vpop.f32.mrb[0].mxu0
      %v3993 = vadd.f32 %v3167, %v3992
      %3994 = vmatprep.mubr.f32.mxu0 0.0
      %3995 = vmatmul.mubr.f32.gmra.mrb[0].mxu0 %v3224
      %v3996 = vpop.f32.mrb[0].mxu0
      %v3997 = vadd.f32 %v3163, %v3996
      %v3998 = vpop.f32.mrb[0].mxu0
      %v3999 = vadd.f32 %v3167, %v3998
      %4000 = vmatprep.mubr.f32.mxu0 0.0
      %4001 = vmatmul.mubr.f32.gmra.mrb[0].mxu0 %v3227
      %v4002 = vpop.f32.mrb[0].mxu0
      %v4003 = vadd.f32 %v3163, %v4002
      %v4004 = vpop.f32.mrb[0].mxu0
      %v4005 = vadd.f32 %v3167, %v4004
      %4006 = vmatprep.mubr.f32.mxu0 0.0
      %4007 = vmatmul.mubr.f32.gmra.mrb[0].mxu0 %v3230
      %v4008 = vpop.f32.mrb[0].mxu0
      %v4009 = vadd.f32 %v3163, %v4008
      %v4010 = vpop.f32.mrb[0].mxu0
      %v4011 = vadd.f32 %v3167, %v4010
      %4012 = vmatprep.mubr.f32.mxu0 0.0
      %4013 = vmatmul.mubr.f32.gmra.mrb[0].mxu0 %v3233
      %v4014 = vpop.f32.mrb[0].mxu0
      %v4015 = vadd.f32 %v3163, %v4014
      %v4016 = vpop.f32.mrb[0].mxu0
      %v4017 = vadd.f32 %v3167, %v4016
      %4018 = vmatprep.mubr.f32.mxu0 0.0
      %4019 = vmatmul.mubr.f32.gmra.mrb[0].mxu0 %v3236
      %v4020 = vpop.f32.mrb[0].mxu0
      %v4021 = vadd.f32 %v3163, %v4020
      %v4022 = vpop.f32.mrb[0].mxu0
      %v4023 = vadd.f32 %v3167, %v4022
      %4024 = vmatprep.mubr.f32.mxu0 0.0
      %4025 = vmatmul.mubr.f32.gmra.mrb[0].mxu0 %v3239
      %v4026 = vpop.f32.mrb[0].mxu0
      %v4027 = vadd.f32 %v3163, %v4026
      %v4028 = vpop.f32.mrb[0].mxu0
      %v4029 = vadd.f32 %v3167, %v4028
      %4030 = vmatprep.mubr.f32.mxu0 0.0
      %4031 = vmatmul.mubr.f32.gmra.mrb[0].mxu0 %v3242
      %v4032 = vpop.f32.mrb[0].mxu0
      %v4033 = vadd.f32 %v3163, %v4032
      %v4034 = vpop.f32.mrb[0].mxu0
      %v4035 = vadd.f32 %v3167, %v4034
      %4036 = vmatprep.mubr.f32.mxu0 0.0
      %4037 = vmatmul.mubr.f32.gmra.mrb[0].mxu0 %v3245
      %v4038 = vpop.f32.mrb[0].mxu0
      %v4039 = vadd.f32 %v3163, %v4038
      %v4040 = vpop.f32.mrb[0].mxu0
      %v4041 = vadd.f32 %v3167, %v4040
      %4042 = vmatprep.mubr.f32.mxu0 0.0
      %4043 = vmatmul.mubr.f32.gmra.mrb[0].mxu0 %v3248
      %v4044 = vpop.f32.mrb[0].mxu0
      %v4045 = vadd.f32 %v3163, %v4044
      %v4046 = vpop.f32.mrb[0].mxu0
      %v4047 = vadd.f32 %v3167, %v4046
      %4048 = vmatprep.mubr.f32.mxu0 0.0
      %4049 = vmatmul.mubr.f32.gmra.mrb[0].mxu0 %v3251
      %v4050 = vpop.f32.mrb[0].mxu0
      %v4051 = vadd.f32 %v3163, %v4050
      %v4052 = vpop.f32.mrb[0].mxu0
      %v4053 = vadd.f32 %v3167, %v4052
      %4054 = vmatprep.mubr.f32.mxu0 0.0
      %4055 = vmatmul.mubr.f32.gmra.mrb[0].mxu0 %v3254
      %v4056 = vpop.f32.mrb[0].mxu0
      %v4057 = vadd.f32 %v3163, %v4056
      %v4058 = vpop.f32.mrb[0].mxu0
      %v4059 = vadd.f32 %v3167, %v4058
      %4060 = vdwg.mxu0
      %4061 = vmatprep.subr.mxu0 %v3071
      %4062 = vmatpush1.msra.mxu0 %v3070
      %4063 = vmatprep.subr.mxu0 %v3087
      %4064 = vmatpush1.msra.mxu0 %v3086
      %4065 = vmatprep.subr.mxu0 %v3103
      %4066 = vmatpush1.msra.mxu0 %v3102
      %4067 = vmatprep.subr.mxu0 %v3119
      %4068 = vmatpush1.msra.mxu0 %v3118
      %4069 = vmatprep.subr.mxu0 0.0
      %4070 = vmatpush1.msra.mxu0 0.0
      %4071 = vmatprep.subr.mxu0 0.0
      %4072 = vmatpush1.msra.mxu0 0.0
      %4073 = vmatprep.subr.mxu0 0.0
      %4074 = vmatpush1.msra.mxu0 0.0
      %4075 = vmatprep.subr.mxu0 0.0
      %4076 = vmatpush1.msra.mxu0 0.0
      %4077 = vmatprep.subr.mxu0 0.0
      %4078 = vmatpush1.msra.mxu0 0.0
      %4079 = vmatprep.subr.mxu0 0.0
      %4080 = vmatpush1.msra.mxu0 0.0
      %4081 = vmatprep.subr.mxu0 0.0
      %4082 = vmatpush1.msra.mxu0 0.0
      %4083 = vmatprep.subr.mxu0 0.0
      %4084 = vmatpush1.msra.mxu0 0.0
      %4085 = vmatprep.subr.mxu0 0.0
      %4086 = vmatpush1.msra.mxu0 0.0
      %4087 = vmatprep.subr.mxu0 0.0
      %4088 = vmatpush1.msra.mxu0 0.0
      %4089 = vmatprep.subr.mxu0 0.0
      %4090 = vmatpush1.msra.mxu0 0.0
      %4091 = vmatprep.subr.mxu0 0.0
      %4092 = vmatpush1.msra.mxu0 0.0
      %4093 = vmatprep.subr.mxu0 0.0
      %4094 = vmatpush1.msra.mxu0 0.0
      %4095 = vmatprep.subr.mxu0 0.0
      %4096 = vmatpush1.msra.mxu0 0.0
      %4097 = vmatprep.subr.mxu0 0.0
      %4098 = vmatpush1.msra.mxu0 0.0
      %4099 = vmatprep.subr.mxu0 0.0
      %4100 = vmatpush1.msra.mxu0 0.0
      %4101 = vmatprep.subr.mxu0 0.0
      %4102 = vmatpush1.msra.mxu0 0.0
      %4103 = vmatprep.subr.mxu0 0.0
      %4104 = vmatpush1.msra.mxu0 0.0
      %4105 = vmatprep.subr.mxu0 0.0
      %4106 = vmatpush1.msra.mxu0 0.0
      %4107 = vmatprep.subr.mxu0 0.0
      %4108 = vmatpush1.msra.mxu0 0.0
      %4109 = vmatprep.subr.mxu0 0.0
      %4110 = vmatpush1.msra.mxu0 0.0
      %4111 = vmatprep.subr.mxu0 0.0
      %4112 = vmatpush1.msra.mxu0 0.0
      %4113 = vmatprep.subr.mxu0 0.0
      %4114 = vmatpush1.msra.mxu0 0.0
      %4115 = vmatprep.subr.mxu0 0.0
      %4116 = vmatpush1.msra.mxu0 0.0
      %4117 = vmatprep.subr.mxu0 0.0
      %4118 = vmatpush1.msra.mxu0 0.0
      %4119 = vmatprep.subr.mxu0 0.0
      %4120 = vmatpush1.msra.mxu0 0.0
      %4121 = vmatprep.subr.mxu0 0.0
      %4122 = vmatpush1.msra.mxu0 0.0
      %4123 = vmatprep.subr.mxu0 0.0
      %4124 = vmatpush1.msra.mxu0 0.0
      %4125 = vmatprep.mubr.f32.mxu0 0.0
      %4126 = vmatmul.mubr.f32.gmra.mrb[0].mxu0 %v3209
      %v4127 = vpop.f32.mrb[0].mxu0
      %v4128 = vadd.f32 %v3171, %v4127
      %v4129 = vpop.f32.mrb[0].mxu0
      %v4130 = vadd.f32 %v3175, %v4129
      %4131 = vmatprep.mubr.f32.mxu0 0.0
      %4132 = vmatmul.mubr.f32.gmra.mrb[0].mxu0 %v3212
      %v4133 = vpop.f32.mrb[0].mxu0
      %v4134 = vadd.f32 %v3171, %v4133
      %v4135 = vpop.f32.mrb[0].mxu0
      %v4136 = vadd.f32 %v3175, %v4135
      %4137 = vmatprep.mubr.f32.mxu0 0.0
      %4138 = vmatmul.mubr.f32.gmra.mrb[0].mxu0 %v3215
      %v4139 = vpop.f32.mrb[0].mxu0
      %v4140 = vadd.f32 %v3171, %v4139
      %v4141 = vpop.f32.mrb[0].mxu0
      %v4142 = vadd.f32 %v3175, %v4141
      %4143 = vmatprep.mubr.f32.mxu0 0.0
      %4144 = vmatmul.mubr.f32.gmra.mrb[0].mxu0 %v3218
      %v4145 = vpop.f32.mrb[0].mxu0
      %v4146 = vadd.f32 %v3171, %v4145
      %v4147 = vpop.f32.mrb[0].mxu0
      %v4148 = vadd.f32 %v3175, %v4147
      %4149 = vmatprep.mubr.f32.mxu0 0.0
      %4150 = vmatmul.mubr.f32.gmra.mrb[0].mxu0 %v3221
      %v4151 = vpop.f32.mrb[0].mxu0
      %v4152 = vadd.f32 %v3171, %v4151
      %v4153 = vpop.f32.mrb[0].mxu0
      %v4154 = vadd.f32 %v3175, %v4153
      %4155 = vmatprep.mubr.f32.mxu0 0.0
      %4156 = vmatmul.mubr.f32.gmra.mrb[0].mxu0 %v3224
      %v4157 = vpop.f32.mrb[0].mxu0
      %v4158 = vadd.f32 %v3171, %v4157
      %v4159 = vpop.f32.mrb[0].mxu0
      %v4160 = vadd.f32 %v3175, %v4159
      %4161 = vmatprep.mubr.f32.mxu0 0.0
      %4162 = vmatmul.mubr.f32.gmra.mrb[0].mxu0 %v3227
      %v4163 = vpop.f32.mrb[0].mxu0
      %v4164 = vadd.f32 %v3171, %v4163
      %v4165 = vpop.f32.mrb[0].mxu0
      %v4166 = vadd.f32 %v3175, %v4165
      %4167 = vmatprep.mubr.f32.mxu0 0.0
      %4168 = vmatmul.mubr.f32.gmra.mrb[0].mxu0 %v3230
      %v4169 = vpop.f32.mrb[0].mxu0
      %v4170 = vadd.f32 %v3171, %v4169
      %v4171 = vpop.f32.mrb[0].mxu0
      %v4172 = vadd.f32 %v3175, %v4171
      %4173 = vmatprep.mubr.f32.mxu0 0.0
      %4174 = vmatmul.mubr.f32.gmra.mrb[0].mxu0 %v3233
      %v4175 = vpop.f32.mrb[0].mxu0
      %v4176 = vadd.f32 %v3171, %v4175
      %v4177 = vpop.f32.mrb[0].mxu0
      %v4178 = vadd.f32 %v3175, %v4177
      %4179 = vmatprep.mubr.f32.mxu0 0.0
      %4180 = vmatmul.mubr.f32.gmra.mrb[0].mxu0 %v3236
      %v4181 = vpop.f32.mrb[0].mxu0
      %v4182 = vadd.f32 %v3171, %v4181
      %v4183 = vpop.f32.mrb[0].mxu0
      %v4184 = vadd.f32 %v3175, %v4183
      %4185 = vmatprep.mubr.f32.mxu0 0.0
      %4186 = vmatmul.mubr.f32.gmra.mrb[0].mxu0 %v3239
      %v4187 = vpop.f32.mrb[0].mxu0
      %v4188 = vadd.f32 %v3171, %v4187
      %v4189 = vpop.f32.mrb[0].mxu0
      %v4190 = vadd.f32 %v3175, %v4189
      %4191 = vmatprep.mubr.f32.mxu0 0.0
      %4192 = vmatmul.mubr.f32.gmra.mrb[0].mxu0 %v3242
      %v4193 = vpop.f32.mrb[0].mxu0
      %v4194 = vadd.f32 %v3171, %v4193
      %v4195 = vpop.f32.mrb[0].mxu0
      %v4196 = vadd.f32 %v3175, %v4195
      %4197 = vmatprep.mubr.f32.mxu0 0.0
      %4198 = vmatmul.mubr.f32.gmra.mrb[0].mxu0 %v3245
      %v4199 = vpop.f32.mrb[0].mxu0
      %v4200 = vadd.f32 %v3171, %v4199
      %v4201 = vpop.f32.mrb[0].mxu0
      %v4202 = vadd.f32 %v3175, %v4201
      %4203 = vmatprep.mubr.f32.mxu0 0.0
      %4204 = vmatmul.mubr.f32.gmra.mrb[0].mxu0 %v3248
      %v4205 = vpop.f32.mrb[0].mxu0
      %v4206 = vadd.f32 %v3171, %v4205
      %v4207 = vpop.f32.mrb[0].mxu0
      %v4208 = vadd.f32 %v3175, %v4207
      %4209 = vmatprep.mubr.f32.mxu0 0.0
      %4210 = vmatmul.mubr.f32.gmra.mrb[0].mxu0 %v3251
      %v4211 = vpop.f32.mrb[0].mxu0
      %v4212 = vadd.f32 %v3171, %v4211
      %v4213 = vpop.f32.mrb[0].mxu0
      %v4214 = vadd.f32 %v3175, %v4213
      %4215 = vmatprep.mubr.f32.mxu0 0.0
      %4216 = vmatmul.mubr.f32.gmra.mrb[0].mxu0 %v3254
      %v4217 = vpop.f32.mrb[0].mxu0
      %v4218 = vadd.f32 %v3171, %v4217
      %v4219 = vpop.f32.mrb[0].mxu0
      %v4220 = vadd.f32 %v3175, %v4219
      %4221 = vdwg.mxu0
      %4222 = vmatprep.subr.mxu0 %v3073
      %4223 = vmatpush1.msra.mxu0 %v3072
      %4224 = vmatprep.subr.mxu0 %v3089
      %4225 = vmatpush1.msra.mxu0 %v3088
      %4226 = vmatprep.subr.mxu0 %v3105
      %4227 = vmatpush1.msra.mxu0 %v3104
      %4228 = vmatprep.subr.mxu0 %v3121
      %4229 = vmatpush1.msra.mxu0 %v3120
      %4230 = vmatprep.subr.mxu0 0.0
      %4231 = vmatpush1.msra.mxu0 0.0
      %4232 = vmatprep.subr.mxu0 0.0
      %4233 = vmatpush1.msra.mxu0 0.0
      %4234 = vmatprep.subr.mxu0 0.0
      %4235 = vmatpush1.msra.mxu0 0.0
      %4236 = vmatprep.subr.mxu0 0.0
      %4237 = vmatpush1.msra.mxu0 0.0
      %4238 = vmatprep.subr.mxu0 0.0
      %4239 = vmatpush1.msra.mxu0 0.0
      %4240 = vmatprep.subr.mxu0 0.0
      %4241 = vmatpush1.msra.mxu0 0.0
      %4242 = vmatprep.subr.mxu0 0.0
      %4243 = vmatpush1.msra.mxu0 0.0
      %4244 = vmatprep.subr.mxu0 0.0
      %4245 = vmatpush1.msra.mxu0 0.0
      %4246 = vmatprep.subr.mxu0 0.0
      %4247 = vmatpush1.msra.mxu0 0.0
      %4248 = vmatprep.subr.mxu0 0.0
      %4249 = vmatpush1.msra.mxu0 0.0
      %4250 = vmatprep.subr.mxu0 0.0
      %4251 = vmatpush1.msra.mxu0 0.0
      %4252 = vmatprep.subr.mxu0 0.0
      %4253 = vmatpush1.msra.mxu0 0.0
      %4254 = vmatprep.subr.mxu0 0.0
      %4255 = vmatpush1.msra.mxu0 0.0
      %4256 = vmatprep.subr.mxu0 0.0
      %4257 = vmatpush1.msra.mxu0 0.0
      %4258 = vmatprep.subr.mxu0 0.0
      %4259 = vmatpush1.msra.mxu0 0.0
      %4260 = vmatprep.subr.mxu0 0.0
      %4261 = vmatpush1.msra.mxu0 0.0
      %4262 = vmatprep.subr.mxu0 0.0
      %4263 = vmatpush1.msra.mxu0 0.0
      %4264 = vmatprep.subr.mxu0 0.0
      %4265 = vmatpush1.msra.mxu0 0.0
      %4266 = vmatprep.subr.mxu0 0.0
      %4267 = vmatpush1.msra.mxu0 0.0
      %4268 = vmatprep.subr.mxu0 0.0
      %4269 = vmatpush1.msra.mxu0 0.0
      %4270 = vmatprep.subr.mxu0 0.0
      %4271 = vmatpush1.msra.mxu0 0.0
      %4272 = vmatprep.subr.mxu0 0.0
      %4273 = vmatpush1.msra.mxu0 0.0
      %4274 = vmatprep.subr.mxu0 0.0
      %4275 = vmatpush1.msra.mxu0 0.0
      %4276 = vmatprep.subr.mxu0 0.0
      %4277 = vmatpush1.msra.mxu0 0.0
      %4278 = vmatprep.subr.mxu0 0.0
      %4279 = vmatpush1.msra.mxu0 0.0
      %4280 = vmatprep.subr.mxu0 0.0
      %4281 = vmatpush1.msra.mxu0 0.0
      %4282 = vmatprep.subr.mxu0 0.0
      %4283 = vmatpush1.msra.mxu0 0.0
      %4284 = vmatprep.subr.mxu0 0.0
      %4285 = vmatpush1.msra.mxu0 0.0
      %4286 = vmatprep.mubr.f32.mxu0 0.0
      %4287 = vmatmul.mubr.f32.gmra.mrb[0].mxu0 %v3209
      %v4288 = vpop.f32.mrb[0].mxu0
      %v4289 = vadd.f32 %v3179, %v4288
      %v4290 = vpop.f32.mrb[0].mxu0
      %v4291 = vadd.f32 %v3183, %v4290
      %4292 = vmatprep.mubr.f32.mxu0 0.0
      %4293 = vmatmul.mubr.f32.gmra.mrb[0].mxu0 %v3212
      %v4294 = vpop.f32.mrb[0].mxu0
      %v4295 = vadd.f32 %v3179, %v4294
      %v4296 = vpop.f32.mrb[0].mxu0
      %v4297 = vadd.f32 %v3183, %v4296
      %4298 = vmatprep.mubr.f32.mxu0 0.0
      %4299 = vmatmul.mubr.f32.gmra.mrb[0].mxu0 %v3215
      %v4300 = vpop.f32.mrb[0].mxu0
      %v4301 = vadd.f32 %v3179, %v4300
      %v4302 = vpop.f32.mrb[0].mxu0
      %v4303 = vadd.f32 %v3183, %v4302
      %4304 = vmatprep.mubr.f32.mxu0 0.0
      %4305 = vmatmul.mubr.f32.gmra.mrb[0].mxu0 %v3218
      %v4306 = vpop.f32.mrb[0].mxu0
      %v4307 = vadd.f32 %v3179, %v4306
      %v4308 = vpop.f32.mrb[0].mxu0
      %v4309 = vadd.f32 %v3183, %v4308
      %4310 = vmatprep.mubr.f32.mxu0 0.0
      %4311 = vmatmul.mubr.f32.gmra.mrb[0].mxu0 %v3221
      %v4312 = vpop.f32.mrb[0].mxu0
      %v4313 = vadd.f32 %v3179, %v4312
      %v4314 = vpop.f32.mrb[0].mxu0
      %v4315 = vadd.f32 %v3183, %v4314
      %4316 = vmatprep.mubr.f32.mxu0 0.0
      %4317 = vmatmul.mubr.f32.gmra.mrb[0].mxu0 %v3224
      %v4318 = vpop.f32.mrb[0].mxu0
      %v4319 = vadd.f32 %v3179, %v4318
      %v4320 = vpop.f32.mrb[0].mxu0
      %v4321 = vadd.f32 %v3183, %v4320
      %4322 = vmatprep.mubr.f32.mxu0 0.0
      %4323 = vmatmul.mubr.f32.gmra.mrb[0].mxu0 %v3227
      %v4324 = vpop.f32.mrb[0].mxu0
      %v4325 = vadd.f32 %v3179, %v4324
      %v4326 = vpop.f32.mrb[0].mxu0
      %v4327 = vadd.f32 %v3183, %v4326
      %4328 = vmatprep.mubr.f32.mxu0 0.0
      %4329 = vmatmul.mubr.f32.gmra.mrb[0].mxu0 %v3230
      %v4330 = vpop.f32.mrb[0].mxu0
      %v4331 = vadd.f32 %v3179, %v4330
      %v4332 = vpop.f32.mrb[0].mxu0
      %v4333 = vadd.f32 %v3183, %v4332
      %4334 = vmatprep.mubr.f32.mxu0 0.0
      %4335 = vmatmul.mubr.f32.gmra.mrb[0].mxu0 %v3233
      %v4336 = vpop.f32.mrb[0].mxu0
      %v4337 = vadd.f32 %v3179, %v4336
      %v4338 = vpop.f32.mrb[0].mxu0
      %v4339 = vadd.f32 %v3183, %v4338
      %4340 = vmatprep.mubr.f32.mxu0 0.0
      %4341 = vmatmul.mubr.f32.gmra.mrb[0].mxu0 %v3236
      %v4342 = vpop.f32.mrb[0].mxu0
      %v4343 = vadd.f32 %v3179, %v4342
      %v4344 = vpop.f32.mrb[0].mxu0
      %v4345 = vadd.f32 %v3183, %v4344
      %4346 = vmatprep.mubr.f32.mxu0 0.0
      %4347 = vmatmul.mubr.f32.gmra.mrb[0].mxu0 %v3239
      %v4348 = vpop.f32.mrb[0].mxu0
      %v4349 = vadd.f32 %v3179, %v4348
      %v4350 = vpop.f32.mrb[0].mxu0
      %v4351 = vadd.f32 %v3183, %v4350
      %4352 = vmatprep.mubr.f32.mxu0 0.0
      %4353 = vmatmul.mubr.f32.gmra.mrb[0].mxu0 %v3242
      %v4354 = vpop.f32.mrb[0].mxu0
      %v4355 = vadd.f32 %v3179, %v4354
      %v4356 = vpop.f32.mrb[0].mxu0
      %v4357 = vadd.f32 %v3183, %v4356
      %4358 = vmatprep.mubr.f32.mxu0 0.0
      %4359 = vmatmul.mubr.f32.gmra.mrb[0].mxu0 %v3245
      %v4360 = vpop.f32.mrb[0].mxu0
      %v4361 = vadd.f32 %v3179, %v4360
      %v4362 = vpop.f32.mrb[0].mxu0
      %v4363 = vadd.f32 %v3183, %v4362
      %4364 = vmatprep.mubr.f32.mxu0 0.0
      %4365 = vmatmul.mubr.f32.gmra.mrb[0].mxu0 %v3248
      %v4366 = vpop.f32.mrb[0].mxu0
      %v4367 = vadd.f32 %v3179, %v4366
      %v4368 = vpop.f32.mrb[0].mxu0
      %v4369 = vadd.f32 %v3183, %v4368
      %4370 = vmatprep.mubr.f32.mxu0 0.0
      %4371 = vmatmul.mubr.f32.gmra.mrb[0].mxu0 %v3251
      %v4372 = vpop.f32.mrb[0].mxu0
      %v4373 = vadd.f32 %v3179, %v4372
      %v4374 = vpop.f32.mrb[0].mxu0
      %v4375 = vadd.f32 %v3183, %v4374
      %4376 = vmatprep.mubr.f32.mxu0 0.0
      %4377 = vmatmul.mubr.f32.gmra.mrb[0].mxu0 %v3254
      %v4378 = vpop.f32.mrb[0].mxu0
      %v4379 = vadd.f32 %v3179, %v4378
      %v4380 = vpop.f32.mrb[0].mxu0
      %v4381 = vadd.f32 %v3183, %v4380
      %4382 = vdwg.mxu0
      %4383 = vmatprep.subr.mxu0 %v3075
      %4384 = vmatpush1.msra.mxu0 %v3074
      %4385 = vmatprep.subr.mxu0 %v3091
      %4386 = vmatpush1.msra.mxu0 %v3090
      %4387 = vmatprep.subr.mxu0 %v3107
      %4388 = vmatpush1.msra.mxu0 %v3106
      %4389 = vmatprep.subr.mxu0 %v3123
      %4390 = vmatpush1.msra.mxu0 %v3122
      %4391 = vmatprep.subr.mxu0 0.0
      %4392 = vmatpush1.msra.mxu0 0.0
      %4393 = vmatprep.subr.mxu0 0.0
      %4394 = vmatpush1.msra.mxu0 0.0
      %4395 = vmatprep.subr.mxu0 0.0
      %4396 = vmatpush1.msra.mxu0 0.0
      %4397 = vmatprep.subr.mxu0 0.0
      %4398 = vmatpush1.msra.mxu0 0.0
      %4399 = vmatprep.subr.mxu0 0.0
      %4400 = vmatpush1.msra.mxu0 0.0
      %4401 = vmatprep.subr.mxu0 0.0
      %4402 = vmatpush1.msra.mxu0 0.0
      %4403 = vmatprep.subr.mxu0 0.0
      %4404 = vmatpush1.msra.mxu0 0.0
      %4405 = vmatprep.subr.mxu0 0.0
      %4406 = vmatpush1.msra.mxu0 0.0
      %4407 = vmatprep.subr.mxu0 0.0
      %4408 = vmatpush1.msra.mxu0 0.0
      %4409 = vmatprep.subr.mxu0 0.0
      %4410 = vmatpush1.msra.mxu0 0.0
      %4411 = vmatprep.subr.mxu0 0.0
      %4412 = vmatpush1.msra.mxu0 0.0
      %4413 = vmatprep.subr.mxu0 0.0
      %4414 = vmatpush1.msra.mxu0 0.0
      %4415 = vmatprep.subr.mxu0 0.0
      %4416 = vmatpush1.msra.mxu0 0.0
      %4417 = vmatprep.subr.mxu0 0.0
      %4418 = vmatpush1.msra.mxu0 0.0
      %4419 = vmatprep.subr.mxu0 0.0
      %4420 = vmatpush1.msra.mxu0 0.0
      %4421 = vmatprep.subr.mxu0 0.0
      %4422 = vmatpush1.msra.mxu0 0.0
      %4423 = vmatprep.subr.mxu0 0.0
      %4424 = vmatpush1.msra.mxu0 0.0
      %4425 = vmatprep.subr.mxu0 0.0
      %4426 = vmatpush1.msra.mxu0 0.0
      %4427 = vmatprep.subr.mxu0 0.0
      %4428 = vmatpush1.msra.mxu0 0.0
      %4429 = vmatprep.subr.mxu0 0.0
      %4430 = vmatpush1.msra.mxu0 0.0
      %4431 = vmatprep.subr.mxu0 0.0
      %4432 = vmatpush1.msra.mxu0 0.0
      %4433 = vmatprep.subr.mxu0 0.0
      %4434 = vmatpush1.msra.mxu0 0.0
      %4435 = vmatprep.subr.mxu0 0.0
      %4436 = vmatpush1.msra.mxu0 0.0
      %4437 = vmatprep.subr.mxu0 0.0
      %4438 = vmatpush1.msra.mxu0 0.0
      %4439 = vmatprep.subr.mxu0 0.0
      %4440 = vmatpush1.msra.mxu0 0.0
      %4441 = vmatprep.subr.mxu0 0.0
      %4442 = vmatpush1.msra.mxu0 0.0
      %4443 = vmatprep.subr.mxu0 0.0
      %4444 = vmatpush1.msra.mxu0 0.0
      %4445 = vmatprep.subr.mxu0 0.0
      %4446 = vmatpush1.msra.mxu0 0.0
      %4447 = vmatprep.mubr.f32.mxu0 0.0
      %4448 = vmatmul.mubr.f32.gmra.mrb[0].mxu0 %v3209
      %v4449 = vpop.f32.mrb[0].mxu0
      %v4450 = vadd.f32 %v3187, %v4449
      %v4451 = vpop.f32.mrb[0].mxu0
      %v4452 = vadd.f32 %v3191, %v4451
      %4453 = vmatprep.mubr.f32.mxu0 0.0
      %4454 = vmatmul.mubr.f32.gmra.mrb[0].mxu0 %v3212
      %v4455 = vpop.f32.mrb[0].mxu0
      %v4456 = vadd.f32 %v3187, %v4455
      %v4457 = vpop.f32.mrb[0].mxu0
      %v4458 = vadd.f32 %v3191, %v4457
      %4459 = vmatprep.mubr.f32.mxu0 0.0
      %4460 = vmatmul.mubr.f32.gmra.mrb[0].mxu0 %v3215
      %v4461 = vpop.f32.mrb[0].mxu0
      %v4462 = vadd.f32 %v3187, %v4461
      %v4463 = vpop.f32.mrb[0].mxu0
      %v4464 = vadd.f32 %v3191, %v4463
      %4465 = vmatprep.mubr.f32.mxu0 0.0
      %4466 = vmatmul.mubr.f32.gmra.mrb[0].mxu0 %v3218
      %v4467 = vpop.f32.mrb[0].mxu0
      %v4468 = vadd.f32 %v3187, %v4467
      %v4469 = vpop.f32.mrb[0].mxu0
      %v4470 = vadd.f32 %v3191, %v4469
      %4471 = vmatprep.mubr.f32.mxu0 0.0
      %4472 = vmatmul.mubr.f32.gmra.mrb[0].mxu0 %v3221
      %v4473 = vpop.f32.mrb[0].mxu0
      %v4474 = vadd.f32 %v3187, %v4473
      %v4475 = vpop.f32.mrb[0].mxu0
      %v4476 = vadd.f32 %v3191, %v4475
      %4477 = vmatprep.mubr.f32.mxu0 0.0
      %4478 = vmatmul.mubr.f32.gmra.mrb[0].mxu0 %v3224
      %v4479 = vpop.f32.mrb[0].mxu0
      %v4480 = vadd.f32 %v3187, %v4479
      %v4481 = vpop.f32.mrb[0].mxu0
      %v4482 = vadd.f32 %v3191, %v4481
      %4483 = vmatprep.mubr.f32.mxu0 0.0
      %4484 = vmatmul.mubr.f32.gmra.mrb[0].mxu0 %v3227
      %v4485 = vpop.f32.mrb[0].mxu0
      %v4486 = vadd.f32 %v3187, %v4485
      %v4487 = vpop.f32.mrb[0].mxu0
      %v4488 = vadd.f32 %v3191, %v4487
      %4489 = vmatprep.mubr.f32.mxu0 0.0
      %4490 = vmatmul.mubr.f32.gmra.mrb[0].mxu0 %v3230
      %v4491 = vpop.f32.mrb[0].mxu0
      %v4492 = vadd.f32 %v3187, %v4491
      %v4493 = vpop.f32.mrb[0].mxu0
      %v4494 = vadd.f32 %v3191, %v4493
      %4495 = vmatprep.mubr.f32.mxu0 0.0
      %4496 = vmatmul.mubr.f32.gmra.mrb[0].mxu0 %v3233
      %v4497 = vpop.f32.mrb[0].mxu0
      %v4498 = vadd.f32 %v3187, %v4497
      %v4499 = vpop.f32.mrb[0].mxu0
      %v4500 = vadd.f32 %v3191, %v4499
      %4501 = vmatprep.mubr.f32.mxu0 0.0
      %4502 = vmatmul.mubr.f32.gmra.mrb[0].mxu0 %v3236
      %v4503 = vpop.f32.mrb[0].mxu0
      %v4504 = vadd.f32 %v3187, %v4503
      %v4505 = vpop.f32.mrb[0].mxu0
      %v4506 = vadd.f32 %v3191, %v4505
      %4507 = vmatprep.mubr.f32.mxu0 0.0
      %4508 = vmatmul.mubr.f32.gmra.mrb[0].mxu0 %v3239
      %v4509 = vpop.f32.mrb[0].mxu0
      %v4510 = vadd.f32 %v3187, %v4509
      %v4511 = vpop.f32.mrb[0].mxu0
      %v4512 = vadd.f32 %v3191, %v4511
      %4513 = vmatprep.mubr.f32.mxu0 0.0
      %4514 = vmatmul.mubr.f32.gmra.mrb[0].mxu0 %v3242
      %v4515 = vpop.f32.mrb[0].mxu0
      %v4516 = vadd.f32 %v3187, %v4515
      %v4517 = vpop.f32.mrb[0].mxu0
      %v4518 = vadd.f32 %v3191, %v4517
      %4519 = vmatprep.mubr.f32.mxu0 0.0
      %4520 = vmatmul.mubr.f32.gmra.mrb[0].mxu0 %v3245
      %v4521 = vpop.f32.mrb[0].mxu0
      %v4522 = vadd.f32 %v3187, %v4521
      %v4523 = vpop.f32.mrb[0].mxu0
      %v4524 = vadd.f32 %v3191, %v4523
      %4525 = vmatprep.mubr.f32.mxu0 0.0
      %4526 = vmatmul.mubr.f32.gmra.mrb[0].mxu0 %v3248
      %v4527 = vpop.f32.mrb[0].mxu0
      %v4528 = vadd.f32 %v3187, %v4527
      %v4529 = vpop.f32.mrb[0].mxu0
      %v4530 = vadd.f32 %v3191, %v4529
      %4531 = vmatprep.mubr.f32.mxu0 0.0
      %4532 = vmatmul.mubr.f32.gmra.mrb[0].mxu0 %v3251
      %v4533 = vpop.f32.mrb[0].mxu0
      %v4534 = vadd.f32 %v3187, %v4533
      %v4535 = vpop.f32.mrb[0].mxu0
      %v4536 = vadd.f32 %v3191, %v4535
      %4537 = vmatprep.mubr.f32.mxu0 0.0
      %4538 = vmatmul.mubr.f32.gmra.mrb[0].mxu0 %v3254
      %v4539 = vpop.f32.mrb[0].mxu0
      %v4540 = vadd.f32 %v3187, %v4539
      %v4541 = vpop.f32.mrb[0].mxu0
      %v4542 = vadd.f32 %v3191, %v4541
      %4543 = vdwg.mxu0
      %v4544 = vmax.f32 %v3323, 0.0
      %v4545 = vmax.f32 %v3325, 0.0
      %v4546 = vmax.f32 %v3484, 0.0
      %v4547 = vmax.f32 %v3486, 0.0
      %v4548 = vmax.f32 %v3645, 0.0
      %v4549 = vmax.f32 %v3647, 0.0
      %v4550 = vmax.f32 %v3806, 0.0
      %v4551 = vmax.f32 %v3808, 0.0
      %v4552 = vmax.f32 %v3967, 0.0
      %v4553 = vmax.f32 %v3969, 0.0
      %v4554 = vmax.f32 %v4128, 0.0
      %v4555 = vmax.f32 %v4130, 0.0
      %v4556 = vmax.f32 %v4289, 0.0
      %v4557 = vmax.f32 %v4291, 0.0
      %v4558 = vmax.f32 %v4450, 0.0
      %v4559 = vmax.f32 %v4452, 0.0
      %v4560 = vmax.f32 %v3329, 0.0
      %v4561 = vmax.f32 %v3331, 0.0
      %v4562 = vmax.f32 %v3490, 0.0
      %v4563 = vmax.f32 %v3492, 0.0
      %v4564 = vmax.f32 %v3651, 0.0
      %v4565 = vmax.f32 %v3653, 0.0
      %v4566 = vmax.f32 %v3812, 0.0
      %v4567 = vmax.f32 %v3814, 0.0
      %v4568 = vmax.f32 %v3973, 0.0
      %v4569 = vmax.f32 %v3975, 0.0
      %v4570 = vmax.f32 %v4134, 0.0
      %v4571 = vmax.f32 %v4136, 0.0
      %v4572 = vmax.f32 %v4295, 0.0
      %v4573 = vmax.f32 %v4297, 0.0
      %v4574 = vmax.f32 %v4456, 0.0
      %v4575 = vmax.f32 %v4458, 0.0
      %v4576 = vmax.f32 %v3335, 0.0
      %v4577 = vmax.f32 %v3337, 0.0
      %v4578 = vmax.f32 %v3496, 0.0
      %v4579 = vmax.f32 %v3498, 0.0
      %v4580 = vmax.f32 %v3657, 0.0
      %v4581 = vmax.f32 %v3659, 0.0
      %v4582 = vmax.f32 %v3818, 0.0
      %v4583 = vmax.f32 %v3820, 0.0
      %v4584 = vmax.f32 %v3979, 0.0
      %v4585 = vmax.f32 %v3981, 0.0
      %v4586 = vmax.f32 %v4140, 0.0
      %v4587 = vmax.f32 %v4142, 0.0
      %v4588 = vmax.f32 %v4301, 0.0
      %v4589 = vmax.f32 %v4303, 0.0
      %v4590 = vmax.f32 %v4462, 0.0
      %v4591 = vmax.f32 %v4464, 0.0
      %v4592 = vmax.f32 %v3341, 0.0
      %v4593 = vmax.f32 %v3343, 0.0
      %v4594 = vmax.f32 %v3502, 0.0
      %v4595 = vmax.f32 %v3504, 0.0
      %v4596 = vmax.f32 %v3663, 0.0
      %v4597 = vmax.f32 %v3665, 0.0
      %v4598 = vmax.f32 %v3824, 0.0
      %v4599 = vmax.f32 %v3826, 0.0
      %v4600 = vmax.f32 %v3985, 0.0
      %v4601 = vmax.f32 %v3987, 0.0
      %v4602 = vmax.f32 %v4146, 0.0
      %v4603 = vmax.f32 %v4148, 0.0
      %v4604 = vmax.f32 %v4307, 0.0
      %v4605 = vmax.f32 %v4309, 0.0
      %v4606 = vmax.f32 %v4468, 0.0
      %v4607 = vmax.f32 %v4470, 0.0
      %v4608 = vmax.f32 %v3347, 0.0
      %v4609 = vmax.f32 %v3349, 0.0
      %v4610 = vmax.f32 %v3508, 0.0
      %v4611 = vmax.f32 %v3510, 0.0
      %v4612 = vmax.f32 %v3669, 0.0
      %v4613 = vmax.f32 %v3671, 0.0
      %v4614 = vmax.f32 %v3830, 0.0
      %v4615 = vmax.f32 %v3832, 0.0
      %v4616 = vmax.f32 %v3991, 0.0
      %v4617 = vmax.f32 %v3993, 0.0
      %v4618 = vmax.f32 %v4152, 0.0
      %v4619 = vmax.f32 %v4154, 0.0
      %v4620 = vmax.f32 %v4313, 0.0
      %v4621 = vmax.f32 %v4315, 0.0
      %v4622 = vmax.f32 %v4474, 0.0
      %v4623 = vmax.f32 %v4476, 0.0
      %v4624 = vmax.f32 %v3353, 0.0
      %v4625 = vmax.f32 %v3355, 0.0
      %v4626 = vmax.f32 %v3514, 0.0
      %v4627 = vmax.f32 %v3516, 0.0
      %v4628 = vmax.f32 %v3675, 0.0
      %v4629 = vmax.f32 %v3677, 0.0
      %v4630 = vmax.f32 %v3836, 0.0
      %v4631 = vmax.f32 %v3838, 0.0
      %v4632 = vmax.f32 %v3997, 0.0
      %v4633 = vmax.f32 %v3999, 0.0
      %v4634 = vmax.f32 %v4158, 0.0
      %v4635 = vmax.f32 %v4160, 0.0
      %v4636 = vmax.f32 %v4319, 0.0
      %v4637 = vmax.f32 %v4321, 0.0
      %v4638 = vmax.f32 %v4480, 0.0
      %v4639 = vmax.f32 %v4482, 0.0
      %v4640 = vmax.f32 %v3359, 0.0
      %v4641 = vmax.f32 %v3361, 0.0
      %v4642 = vmax.f32 %v3520, 0.0
      %v4643 = vmax.f32 %v3522, 0.0
      %v4644 = vmax.f32 %v3681, 0.0
      %v4645 = vmax.f32 %v3683, 0.0
      %v4646 = vmax.f32 %v3842, 0.0
      %v4647 = vmax.f32 %v3844, 0.0
      %v4648 = vmax.f32 %v4003, 0.0
      %v4649 = vmax.f32 %v4005, 0.0
      %v4650 = vmax.f32 %v4164, 0.0
      %v4651 = vmax.f32 %v4166, 0.0
      %v4652 = vmax.f32 %v4325, 0.0
      %v4653 = vmax.f32 %v4327, 0.0
      %v4654 = vmax.f32 %v4486, 0.0
      %v4655 = vmax.f32 %v4488, 0.0
      %v4656 = vmax.f32 %v3365, 0.0
      %v4657 = vmax.f32 %v3367, 0.0
      %v4658 = vmax.f32 %v3526, 0.0
      %v4659 = vmax.f32 %v3528, 0.0
      %v4660 = vmax.f32 %v3687, 0.0
      %v4661 = vmax.f32 %v3689, 0.0
      %v4662 = vmax.f32 %v3848, 0.0
      %v4663 = vmax.f32 %v3850, 0.0
      %v4664 = vmax.f32 %v4009, 0.0
      %v4665 = vmax.f32 %v4011, 0.0
      %v4666 = vmax.f32 %v4170, 0.0
      %v4667 = vmax.f32 %v4172, 0.0
      %v4668 = vmax.f32 %v4331, 0.0
      %v4669 = vmax.f32 %v4333, 0.0
      %v4670 = vmax.f32 %v4492, 0.0
      %v4671 = vmax.f32 %v4494, 0.0
      %v4672 = vmax.f32 %v3371, 0.0
      %v4673 = vmax.f32 %v3373, 0.0
      %v4674 = vmax.f32 %v3532, 0.0
      %v4675 = vmax.f32 %v3534, 0.0
      %v4676 = vmax.f32 %v3693, 0.0
      %v4677 = vmax.f32 %v3695, 0.0
      %v4678 = vmax.f32 %v3854, 0.0
      %v4679 = vmax.f32 %v3856, 0.0
      %v4680 = vmax.f32 %v4015, 0.0
      %v4681 = vmax.f32 %v4017, 0.0
      %v4682 = vmax.f32 %v4176, 0.0
      %v4683 = vmax.f32 %v4178, 0.0
      %v4684 = vmax.f32 %v4337, 0.0
      %v4685 = vmax.f32 %v4339, 0.0
      %v4686 = vmax.f32 %v4498, 0.0
      %v4687 = vmax.f32 %v4500, 0.0
      %v4688 = vmax.f32 %v3377, 0.0
      %v4689 = vmax.f32 %v3379, 0.0
      %v4690 = vmax.f32 %v3538, 0.0
      %v4691 = vmax.f32 %v3540, 0.0
      %v4692 = vmax.f32 %v3699, 0.0
      %v4693 = vmax.f32 %v3701, 0.0
      %v4694 = vmax.f32 %v3860, 0.0
      %v4695 = vmax.f32 %v3862, 0.0
      %v4696 = vmax.f32 %v4021, 0.0
      %v4697 = vmax.f32 %v4023, 0.0
      %v4698 = vmax.f32 %v4182, 0.0
      %v4699 = vmax.f32 %v4184, 0.0
      %v4700 = vmax.f32 %v4343, 0.0
      %v4701 = vmax.f32 %v4345, 0.0
      %v4702 = vmax.f32 %v4504, 0.0
      %v4703 = vmax.f32 %v4506, 0.0
      %v4704 = vmax.f32 %v3383, 0.0
      %v4705 = vmax.f32 %v3385, 0.0
      %v4706 = vmax.f32 %v3544, 0.0
      %v4707 = vmax.f32 %v3546, 0.0
      %v4708 = vmax.f32 %v3705, 0.0
      %v4709 = vmax.f32 %v3707, 0.0
      %v4710 = vmax.f32 %v3866, 0.0
      %v4711 = vmax.f32 %v3868, 0.0
      %v4712 = vmax.f32 %v4027, 0.0
      %v4713 = vmax.f32 %v4029, 0.0
      %v4714 = vmax.f32 %v4188, 0.0
      %v4715 = vmax.f32 %v4190, 0.0
      %v4716 = vmax.f32 %v4349, 0.0
      %v4717 = vmax.f32 %v4351, 0.0
      %v4718 = vmax.f32 %v4510, 0.0
      %v4719 = vmax.f32 %v4512, 0.0
      %v4720 = vmax.f32 %v3389, 0.0
      %v4721 = vmax.f32 %v3391, 0.0
      %v4722 = vmax.f32 %v3550, 0.0
      %v4723 = vmax.f32 %v3552, 0.0
      %v4724 = vmax.f32 %v3711, 0.0
      %v4725 = vmax.f32 %v3713, 0.0
      %v4726 = vmax.f32 %v3872, 0.0
      %v4727 = vmax.f32 %v3874, 0.0
      %v4728 = vmax.f32 %v4033, 0.0
      %v4729 = vmax.f32 %v4035, 0.0
      %v4730 = vmax.f32 %v4194, 0.0
      %v4731 = vmax.f32 %v4196, 0.0
      %v4732 = vmax.f32 %v4355, 0.0
      %v4733 = vmax.f32 %v4357, 0.0
      %v4734 = vmax.f32 %v4516, 0.0
      %v4735 = vmax.f32 %v4518, 0.0
      %v4736 = vmax.f32 %v3395, 0.0
      %v4737 = vmax.f32 %v3397, 0.0
      %v4738 = vmax.f32 %v3556, 0.0
      %v4739 = vmax.f32 %v3558, 0.0
      %v4740 = vmax.f32 %v3717, 0.0
      %v4741 = vmax.f32 %v3719, 0.0
      %v4742 = vmax.f32 %v3878, 0.0
      %v4743 = vmax.f32 %v3880, 0.0
      %v4744 = vmax.f32 %v4039, 0.0
      %v4745 = vmax.f32 %v4041, 0.0
      %v4746 = vmax.f32 %v4200, 0.0
      %v4747 = vmax.f32 %v4202, 0.0
      %v4748 = vmax.f32 %v4361, 0.0
      %v4749 = vmax.f32 %v4363, 0.0
      %v4750 = vmax.f32 %v4522, 0.0
      %v4751 = vmax.f32 %v4524, 0.0
      %v4752 = vmax.f32 %v3401, 0.0
      %v4753 = vmax.f32 %v3403, 0.0
      %v4754 = vmax.f32 %v3562, 0.0
      %v4755 = vmax.f32 %v3564, 0.0
      %v4756 = vmax.f32 %v3723, 0.0
      %v4757 = vmax.f32 %v3725, 0.0
      %v4758 = vmax.f32 %v3884, 0.0
      %v4759 = vmax.f32 %v3886, 0.0
      %v4760 = vmax.f32 %v4045, 0.0
      %v4761 = vmax.f32 %v4047, 0.0
      %v4762 = vmax.f32 %v4206, 0.0
      %v4763 = vmax.f32 %v4208, 0.0
      %v4764 = vmax.f32 %v4367, 0.0
      %v4765 = vmax.f32 %v4369, 0.0
      %v4766 = vmax.f32 %v4528, 0.0
      %v4767 = vmax.f32 %v4530, 0.0
      %v4768 = vmax.f32 %v3407, 0.0
      %v4769 = vmax.f32 %v3409, 0.0
      %v4770 = vmax.f32 %v3568, 0.0
      %v4771 = vmax.f32 %v3570, 0.0
      %v4772 = vmax.f32 %v3729, 0.0
      %v4773 = vmax.f32 %v3731, 0.0
      %v4774 = vmax.f32 %v3890, 0.0
      %v4775 = vmax.f32 %v3892, 0.0
      %v4776 = vmax.f32 %v4051, 0.0
      %v4777 = vmax.f32 %v4053, 0.0
      %v4778 = vmax.f32 %v4212, 0.0
      %v4779 = vmax.f32 %v4214, 0.0
      %v4780 = vmax.f32 %v4373, 0.0
      %v4781 = vmax.f32 %v4375, 0.0
      %v4782 = vmax.f32 %v4534, 0.0
      %v4783 = vmax.f32 %v4536, 0.0
      %v4784 = vmax.f32 %v3413, 0.0
      %v4785 = vmax.f32 %v3415, 0.0
      %v4786 = vmax.f32 %v3574, 0.0
      %v4787 = vmax.f32 %v3576, 0.0
      %v4788 = vmax.f32 %v3735, 0.0
      %v4789 = vmax.f32 %v3737, 0.0
      %v4790 = vmax.f32 %v3896, 0.0
      %v4791 = vmax.f32 %v3898, 0.0
      %v4792 = vmax.f32 %v4057, 0.0
      %v4793 = vmax.f32 %v4059, 0.0
      %v4794 = vmax.f32 %v4218, 0.0
      %v4795 = vmax.f32 %v4220, 0.0
      %v4796 = vmax.f32 %v4379, 0.0
      %v4797 = vmax.f32 %v4381, 0.0
      %v4798 = vmax.f32 %v4540, 0.0
      %v4799 = vmax.f32 %v4542, 0.0
      %v4800 = vld [vmem:[%s11] sm:$0xff]
      %v4801 = vld [vmem:[%s11 + $0x8] sm:$0xff]
      %v4802 = vld [vmem:[%s11 + $0x10] sm:$0xff]
      %v4803 = vld [vmem:[%s11 + $0x18] sm:$0xff]
      %v4804 = vld [vmem:[%s11 + $0x20] sm:$0xff]
      %v4805 = vld [vmem:[%s11 + $0x28] sm:$0xff]
      %v4806 = vld [vmem:[%s11 + $0x30] sm:$0xff]
      %v4807 = vld [vmem:[%s11 + $0x38] sm:$0xff]
      %v4808 = vld [vmem:[%s11 + $0x40] sm:$0xff]
      %v4809 = vld [vmem:[%s11 + $0x48] sm:$0xff]
      %v4810 = vld [vmem:[%s11 + $0x50] sm:$0xff]
      %v4811 = vld [vmem:[%s11 + $0x58] sm:$0xff]
      %v4812 = vld [vmem:[%s11 + $0x60] sm:$0xff]
      %v4813 = vld [vmem:[%s11 + $0x68] sm:$0xff]
      %v4814 = vld [vmem:[%s11 + $0x70] sm:$0xff]
      %v4815 = vld [vmem:[%s11 + $0x78] sm:$0xff]
      %v4816 = vld [vmem:[%s11 + $0x80] sm:$0xff]
      %v4817 = vld [vmem:[%s11 + $0x88] sm:$0xff]
      %v4818 = vld [vmem:[%s11 + $0x90] sm:$0xff]
      %v4819 = vld [vmem:[%s11 + $0x98] sm:$0xff]
      %v4820 = vld [vmem:[%s11 + $0xa0] sm:$0xff]
      %v4821 = vld [vmem:[%s11 + $0xa8] sm:$0xff]
      %v4822 = vld [vmem:[%s11 + $0xb0] sm:$0xff]
      %v4823 = vld [vmem:[%s11 + $0xb8] sm:$0xff]
      %v4824 = vld [vmem:[%s11 + $0xc0] sm:$0xff]
      %v4825 = vld [vmem:[%s11 + $0xc8] sm:$0xff]
      %v4826 = vld [vmem:[%s11 + $0xd0] sm:$0xff]
      %v4827 = vld [vmem:[%s11 + $0xd8] sm:$0xff]
      %v4828 = vld [vmem:[%s11 + $0xe0] sm:$0xff]
      %v4829 = vld [vmem:[%s11 + $0xe8] sm:$0xff]
      %v4830 = vld [vmem:[%s11 + $0xf0] sm:$0xff]
      %v4831 = vld [vmem:[%s11 + $0xf8] sm:$0xff]
      %v4832 = vld [vmem:[%s11 + $0x100] sm:$0xff]
      %v4833 = vld [vmem:[%s11 + $0x108] sm:$0xff]
      %v4834 = vld [vmem:[%s11 + $0x110] sm:$0xff]
      %v4835 = vld [vmem:[%s11 + $0x118] sm:$0xff]
      %v4836 = vld [vmem:[%s11 + $0x120] sm:$0xff]
      %v4837 = vld [vmem:[%s11 + $0x128] sm:$0xff]
      %v4838 = vld [vmem:[%s11 + $0x130] sm:$0xff]
      %v4839 = vld [vmem:[%s11 + $0x138] sm:$0xff]
      %v4840 = vld [vmem:[%s11 + $0x140] sm:$0xff]
      %v4841 = vld [vmem:[%s11 + $0x148] sm:$0xff]
      %v4842 = vld [vmem:[%s11 + $0x150] sm:$0xff]
      %v4843 = vld [vmem:[%s11 + $0x158] sm:$0xff]
      %v4844 = vld [vmem:[%s11 + $0x160] sm:$0xff]
      %v4845 = vld [vmem:[%s11 + $0x168] sm:$0xff]
      %v4846 = vld [vmem:[%s11 + $0x170] sm:$0xff]
      %v4847 = vld [vmem:[%s11 + $0x178] sm:$0xff]
      %v4848 = vld [vmem:[%s11 + $0x180] sm:$0xff]
      %v4849 = vld [vmem:[%s11 + $0x188] sm:$0xff]
      %v4850 = vld [vmem:[%s11 + $0x190] sm:$0xff]
      %v4851 = vld [vmem:[%s11 + $0x198] sm:$0xff]
      %v4852 = vld [vmem:[%s11 + $0x1a0] sm:$0xff]
      %v4853 = vld [vmem:[%s11 + $0x1a8] sm:$0xff]
      %v4854 = vld [vmem:[%s11 + $0x1b0] sm:$0xff]
      %v4855 = vld [vmem:[%s11 + $0x1b8] sm:$0xff]
      %v4856 = vld [vmem:[%s11 + $0x1c0] sm:$0xff]
      %v4857 = vld [vmem:[%s11 + $0x1c8] sm:$0xff]
      %v4858 = vld [vmem:[%s11 + $0x1d0] sm:$0xff]
      %v4859 = vld [vmem:[%s11 + $0x1d8] sm:$0xff]
      %v4860 = vld [vmem:[%s11 + $0x1e0] sm:$0xff]
      %v4861 = vld [vmem:[%s11 + $0x1e8] sm:$0xff]
      %v4862 = vld [vmem:[%s11 + $0x1f0] sm:$0xff]
      %v4863 = vld [vmem:[%s11 + $0x1f8] sm:$0xff]
      %v4864 = vld [vmem:[%s11 + $0x200] sm:$0xff]
      %v4865 = vld [vmem:[%s11 + $0x208] sm:$0xff]
      %v4866 = vld [vmem:[%s11 + $0x210] sm:$0xff]
      %v4867 = vld [vmem:[%s11 + $0x218] sm:$0xff]
      %v4868 = vld [vmem:[%s11 + $0x220] sm:$0xff]
      %v4869 = vld [vmem:[%s11 + $0x228] sm:$0xff]
      %v4870 = vld [vmem:[%s11 + $0x230] sm:$0xff]
      %v4871 = vld [vmem:[%s11 + $0x238] sm:$0xff]
      %v4872 = vld [vmem:[%s11 + $0x240] sm:$0xff]
      %v4873 = vld [vmem:[%s11 + $0x248] sm:$0xff]
      %v4874 = vld [vmem:[%s11 + $0x250] sm:$0xff]
      %v4875 = vld [vmem:[%s11 + $0x258] sm:$0xff]
      %v4876 = vld [vmem:[%s11 + $0x260] sm:$0xff]
      %v4877 = vld [vmem:[%s11 + $0x268] sm:$0xff]
      %v4878 = vld [vmem:[%s11 + $0x270] sm:$0xff]
      %v4879 = vld [vmem:[%s11 + $0x278] sm:$0xff]
      %v4880 = vld [vmem:[%s11 + $0x280] sm:$0xff]
      %v4881 = vld [vmem:[%s11 + $0x288] sm:$0xff]
      %v4882 = vld [vmem:[%s11 + $0x290] sm:$0xff]
      %v4883 = vld [vmem:[%s11 + $0x298] sm:$0xff]
      %v4884 = vld [vmem:[%s11 + $0x2a0] sm:$0xff]
      %v4885 = vld [vmem:[%s11 + $0x2a8] sm:$0xff]
      %v4886 = vld [vmem:[%s11 + $0x2b0] sm:$0xff]
      %v4887 = vld [vmem:[%s11 + $0x2b8] sm:$0xff]
      %v4888 = vld [vmem:[%s11 + $0x2c0] sm:$0xff]
      %v4889 = vld [vmem:[%s11 + $0x2c8] sm:$0xff]
      %v4890 = vld [vmem:[%s11 + $0x2d0] sm:$0xff]
      %v4891 = vld [vmem:[%s11 + $0x2d8] sm:$0xff]
      %v4892 = vld [vmem:[%s11 + $0x2e0] sm:$0xff]
      %v4893 = vld [vmem:[%s11 + $0x2e8] sm:$0xff]
      %v4894 = vld [vmem:[%s11 + $0x2f0] sm:$0xff]
      %v4895 = vld [vmem:[%s11 + $0x2f8] sm:$0xff]
      %v4896 = vld [vmem:[%s11 + $0x300] sm:$0xff]
      %v4897 = vld [vmem:[%s11 + $0x308] sm:$0xff]
      %v4898 = vld [vmem:[%s11 + $0x310] sm:$0xff]
      %v4899 = vld [vmem:[%s11 + $0x318] sm:$0xff]
      %v4900 = vld [vmem:[%s11 + $0x320] sm:$0xff]
      %v4901 = vld [vmem:[%s11 + $0x328] sm:$0xff]
      %v4902 = vld [vmem:[%s11 + $0x330] sm:$0xff]
      %v4903 = vld [vmem:[%s11 + $0x338] sm:$0xff]
      %v4904 = vld [vmem:[%s11 + $0x340] sm:$0xff]
      %v4905 = vld [vmem:[%s11 + $0x348] sm:$0xff]
      %v4906 = vld [vmem:[%s11 + $0x350] sm:$0xff]
      %v4907 = vld [vmem:[%s11 + $0x358] sm:$0xff]
      %v4908 = vld [vmem:[%s11 + $0x360] sm:$0xff]
      %v4909 = vld [vmem:[%s11 + $0x368] sm:$0xff]
      %v4910 = vld [vmem:[%s11 + $0x370] sm:$0xff]
      %v4911 = vld [vmem:[%s11 + $0x378] sm:$0xff]
      %v4912 = vld [vmem:[%s11 + $0x380] sm:$0xff]
      %v4913 = vld [vmem:[%s11 + $0x388] sm:$0xff]
      %v4914 = vld [vmem:[%s11 + $0x390] sm:$0xff]
      %v4915 = vld [vmem:[%s11 + $0x398] sm:$0xff]
      %v4916 = vld [vmem:[%s11 + $0x3a0] sm:$0xff]
      %v4917 = vld [vmem:[%s11 + $0x3a8] sm:$0xff]
      %v4918 = vld [vmem:[%s11 + $0x3b0] sm:$0xff]
      %v4919 = vld [vmem:[%s11 + $0x3b8] sm:$0xff]
      %v4920 = vld [vmem:[%s11 + $0x3c0] sm:$0xff]
      %v4921 = vld [vmem:[%s11 + $0x3c8] sm:$0xff]
      %v4922 = vld [vmem:[%s11 + $0x3d0] sm:$0xff]
      %v4923 = vld [vmem:[%s11 + $0x3d8] sm:$0xff]
      %v4924 = vld [vmem:[%s11 + $0x3e0] sm:$0xff]
      %v4925 = vld [vmem:[%s11 + $0x3e8] sm:$0xff]
      %v4926 = vld [vmem:[%s11 + $0x3f0] sm:$0xff]
      %v4927 = vld [vmem:[%s11 + $0x3f8] sm:$0xff]
      %v4928 = vld [vmem:[%s11 + $0x400] sm:$0xff]
      %v4929 = vld [vmem:[%s11 + $0x408] sm:$0xff]
      %v4930 = vld [vmem:[%s11 + $0x410] sm:$0xff]
      %v4931 = vld [vmem:[%s11 + $0x418] sm:$0xff]
      %v4932 = vld [vmem:[%s11 + $0x420] sm:$0xff]
      %v4933 = vld [vmem:[%s11 + $0x428] sm:$0xff]
      %v4934 = vld [vmem:[%s11 + $0x430] sm:$0xff]
      %v4935 = vld [vmem:[%s11 + $0x438] sm:$0xff]
      %v4936 = vld [vmem:[%s11 + $0x440] sm:$0xff]
      %v4937 = vld [vmem:[%s11 + $0x448] sm:$0xff]
      %v4938 = vld [vmem:[%s11 + $0x450] sm:$0xff]
      %v4939 = vld [vmem:[%s11 + $0x458] sm:$0xff]
      %v4940 = vld [vmem:[%s11 + $0x460] sm:$0xff]
      %v4941 = vld [vmem:[%s11 + $0x468] sm:$0xff]
      %v4942 = vld [vmem:[%s11 + $0x470] sm:$0xff]
      %v4943 = vld [vmem:[%s11 + $0x478] sm:$0xff]
      %v4944 = vld [vmem:[%s11 + $0x480] sm:$0xff]
      %v4945 = vld [vmem:[%s11 + $0x488] sm:$0xff]
      %v4946 = vld [vmem:[%s11 + $0x490] sm:$0xff]
      %v4947 = vld [vmem:[%s11 + $0x498] sm:$0xff]
      %v4948 = vld [vmem:[%s11 + $0x4a0] sm:$0xff]
      %v4949 = vld [vmem:[%s11 + $0x4a8] sm:$0xff]
      %v4950 = vld [vmem:[%s11 + $0x4b0] sm:$0xff]
      %v4951 = vld [vmem:[%s11 + $0x4b8] sm:$0xff]
      %v4952 = vld [vmem:[%s11 + $0x4c0] sm:$0xff]
      %v4953 = vld [vmem:[%s11 + $0x4c8] sm:$0xff]
      %v4954 = vld [vmem:[%s11 + $0x4d0] sm:$0xff]
      %v4955 = vld [vmem:[%s11 + $0x4d8] sm:$0xff]
      %v4956 = vld [vmem:[%s11 + $0x4e0] sm:$0xff]
      %v4957 = vld [vmem:[%s11 + $0x4e8] sm:$0xff]
      %v4958 = vld [vmem:[%s11 + $0x4f0] sm:$0xff]
      %v4959 = vld [vmem:[%s11 + $0x4f8] sm:$0xff]
      %v4960 = vld [vmem:[%s11 + $0x500] sm:$0xff]
      %v4961 = vld [vmem:[%s11 + $0x508] sm:$0xff]
      %v4962 = vld [vmem:[%s11 + $0x510] sm:$0xff]
      %v4963 = vld [vmem:[%s11 + $0x518] sm:$0xff]
      %v4964 = vld [vmem:[%s11 + $0x520] sm:$0xff]
      %v4965 = vld [vmem:[%s11 + $0x528] sm:$0xff]
      %v4966 = vld [vmem:[%s11 + $0x530] sm:$0xff]
      %v4967 = vld [vmem:[%s11 + $0x538] sm:$0xff]
      %v4968 = vld [vmem:[%s11 + $0x540] sm:$0xff]
      %v4969 = vld [vmem:[%s11 + $0x548] sm:$0xff]
      %v4970 = vld [vmem:[%s11 + $0x550] sm:$0xff]
      %v4971 = vld [vmem:[%s11 + $0x558] sm:$0xff]
      %v4972 = vld [vmem:[%s11 + $0x560] sm:$0xff]
      %v4973 = vld [vmem:[%s11 + $0x568] sm:$0xff]
      %v4974 = vld [vmem:[%s11 + $0x570] sm:$0xff]
      %v4975 = vld [vmem:[%s11 + $0x578] sm:$0xff]
      %v4976 = vld [vmem:[%s11 + $0x580] sm:$0xff]
      %v4977 = vld [vmem:[%s11 + $0x588] sm:$0xff]
      %v4978 = vld [vmem:[%s11 + $0x590] sm:$0xff]
      %v4979 = vld [vmem:[%s11 + $0x598] sm:$0xff]
      %v4980 = vld [vmem:[%s11 + $0x5a0] sm:$0xff]
      %v4981 = vld [vmem:[%s11 + $0x5a8] sm:$0xff]
      %v4982 = vld [vmem:[%s11 + $0x5b0] sm:$0xff]
      %v4983 = vld [vmem:[%s11 + $0x5b8] sm:$0xff]
      %v4984 = vld [vmem:[%s11 + $0x5c0] sm:$0xff]
      %v4985 = vld [vmem:[%s11 + $0x5c8] sm:$0xff]
      %v4986 = vld [vmem:[%s11 + $0x5d0] sm:$0xff]
      %v4987 = vld [vmem:[%s11 + $0x5d8] sm:$0xff]
      %v4988 = vld [vmem:[%s11 + $0x5e0] sm:$0xff]
      %v4989 = vld [vmem:[%s11 + $0x5e8] sm:$0xff]
      %v4990 = vld [vmem:[%s11 + $0x5f0] sm:$0xff]
      %v4991 = vld [vmem:[%s11 + $0x5f8] sm:$0xff]
      %v4992 = vld [vmem:[%s11 + $0x600] sm:$0xff]
      %v4993 = vld [vmem:[%s11 + $0x608] sm:$0xff]
      %v4994 = vld [vmem:[%s11 + $0x610] sm:$0xff]
      %v4995 = vld [vmem:[%s11 + $0x618] sm:$0xff]
      %v4996 = vld [vmem:[%s11 + $0x620] sm:$0xff]
      %v4997 = vld [vmem:[%s11 + $0x628] sm:$0xff]
      %v4998 = vld [vmem:[%s11 + $0x630] sm:$0xff]
      %v4999 = vld [vmem:[%s11 + $0x638] sm:$0xff]
      %v5000 = vld [vmem:[%s11 + $0x640] sm:$0xff]
      %v5001 = vld [vmem:[%s11 + $0x648] sm:$0xff]
      %v5002 = vld [vmem:[%s11 + $0x650] sm:$0xff]
      %v5003 = vld [vmem:[%s11 + $0x658] sm:$0xff]
      %v5004 = vld [vmem:[%s11 + $0x660] sm:$0xff]
      %v5005 = vld [vmem:[%s11 + $0x668] sm:$0xff]
      %v5006 = vld [vmem:[%s11 + $0x670] sm:$0xff]
      %v5007 = vld [vmem:[%s11 + $0x678] sm:$0xff]
      %v5008 = vld [vmem:[%s11 + $0x680] sm:$0xff]
      %v5009 = vld [vmem:[%s11 + $0x688] sm:$0xff]
      %v5010 = vld [vmem:[%s11 + $0x690] sm:$0xff]
      %v5011 = vld [vmem:[%s11 + $0x698] sm:$0xff]
      %v5012 = vld [vmem:[%s11 + $0x6a0] sm:$0xff]
      %v5013 = vld [vmem:[%s11 + $0x6a8] sm:$0xff]
      %v5014 = vld [vmem:[%s11 + $0x6b0] sm:$0xff]
      %v5015 = vld [vmem:[%s11 + $0x6b8] sm:$0xff]
      %v5016 = vld [vmem:[%s11 + $0x6c0] sm:$0xff]
      %v5017 = vld [vmem:[%s11 + $0x6c8] sm:$0xff]
      %v5018 = vld [vmem:[%s11 + $0x6d0] sm:$0xff]
      %v5019 = vld [vmem:[%s11 + $0x6d8] sm:$0xff]
      %v5020 = vld [vmem:[%s11 + $0x6e0] sm:$0xff]
      %v5021 = vld [vmem:[%s11 + $0x6e8] sm:$0xff]
      %v5022 = vld [vmem:[%s11 + $0x6f0] sm:$0xff]
      %v5023 = vld [vmem:[%s11 + $0x6f8] sm:$0xff]
      %v5024 = vld [vmem:[%s11 + $0x700] sm:$0xff]
      %v5025 = vld [vmem:[%s11 + $0x708] sm:$0xff]
      %v5026 = vld [vmem:[%s11 + $0x710] sm:$0xff]
      %v5027 = vld [vmem:[%s11 + $0x718] sm:$0xff]
      %v5028 = vld [vmem:[%s11 + $0x720] sm:$0xff]
      %v5029 = vld [vmem:[%s11 + $0x728] sm:$0xff]
      %v5030 = vld [vmem:[%s11 + $0x730] sm:$0xff]
      %v5031 = vld [vmem:[%s11 + $0x738] sm:$0xff]
      %v5032 = vld [vmem:[%s11 + $0x740] sm:$0xff]
      %v5033 = vld [vmem:[%s11 + $0x748] sm:$0xff]
      %v5034 = vld [vmem:[%s11 + $0x750] sm:$0xff]
      %v5035 = vld [vmem:[%s11 + $0x758] sm:$0xff]
      %v5036 = vld [vmem:[%s11 + $0x760] sm:$0xff]
      %v5037 = vld [vmem:[%s11 + $0x768] sm:$0xff]
      %v5038 = vld [vmem:[%s11 + $0x770] sm:$0xff]
      %v5039 = vld [vmem:[%s11 + $0x778] sm:$0xff]
      %v5040 = vld [vmem:[%s11 + $0x780] sm:$0xff]
      %v5041 = vld [vmem:[%s11 + $0x788] sm:$0xff]
      %v5042 = vld [vmem:[%s11 + $0x790] sm:$0xff]
      %v5043 = vld [vmem:[%s11 + $0x798] sm:$0xff]
      %v5044 = vld [vmem:[%s11 + $0x7a0] sm:$0xff]
      %v5045 = vld [vmem:[%s11 + $0x7a8] sm:$0xff]
      %v5046 = vld [vmem:[%s11 + $0x7b0] sm:$0xff]
      %v5047 = vld [vmem:[%s11 + $0x7b8] sm:$0xff]
      %v5048 = vld [vmem:[%s11 + $0x7c0] sm:$0xff]
      %v5049 = vld [vmem:[%s11 + $0x7c8] sm:$0xff]
      %v5050 = vld [vmem:[%s11 + $0x7d0] sm:$0xff]
      %v5051 = vld [vmem:[%s11 + $0x7d8] sm:$0xff]
      %v5052 = vld [vmem:[%s11 + $0x7e0] sm:$0xff]
      %v5053 = vld [vmem:[%s11 + $0x7e8] sm:$0xff]
      %v5054 = vld [vmem:[%s11 + $0x7f0] sm:$0xff]
      %v5055 = vld [vmem:[%s11 + $0x7f8] sm:$0xff]
      %v5056 = vld [vmem:[%s12] sm:$0x1]
      %v5058 = vlaneseq
      %v5059 = vshrl.u32 %v5058, 7
      %v5060 = vsub.s32 0, %v5059
      %v5061 = vrot.slane %v5056, %v5060
      %5063 = vmatprep.subr.mxu0 0.0
      %5064 = vmatpush1.msra.mxu0 %v4800
      %5065 = vmatprep.subr.mxu0 0.0
      %5066 = vmatpush1.msra.mxu0 %v4801
      %5067 = vmatprep.subr.mxu0 0.0
      %5068 = vmatpush1.msra.mxu0 %v4802
      %5069 = vmatprep.subr.mxu0 0.0
      %5070 = vmatpush1.msra.mxu0 %v4803
      %5071 = vmatprep.subr.mxu0 0.0
      %5072 = vmatpush1.msra.mxu0 %v4804
      %5073 = vmatprep.subr.mxu0 0.0
      %5074 = vmatpush1.msra.mxu0 %v4805
      %5075 = vmatprep.subr.mxu0 0.0
      %5076 = vmatpush1.msra.mxu0 %v4806
      %5077 = vmatprep.subr.mxu0 0.0
      %5078 = vmatpush1.msra.mxu0 %v4807
      %5079 = vmatprep.subr.mxu0 0.0
      %5080 = vmatpush1.msra.mxu0 %v4808
      %5081 = vmatprep.subr.mxu0 0.0
      %5082 = vmatpush1.msra.mxu0 %v4809
      %5083 = vmatprep.subr.mxu0 0.0
      %5084 = vmatpush1.msra.mxu0 %v4810
      %5085 = vmatprep.subr.mxu0 0.0
      %5086 = vmatpush1.msra.mxu0 %v4811
      %5087 = vmatprep.subr.mxu0 0.0
      %5088 = vmatpush1.msra.mxu0 %v4812
      %5089 = vmatprep.subr.mxu0 0.0
      %5090 = vmatpush1.msra.mxu0 %v4813
      %5091 = vmatprep.subr.mxu0 0.0
      %5092 = vmatpush1.msra.mxu0 %v4814
      %5093 = vmatprep.subr.mxu0 0.0
      %5094 = vmatpush1.msra.mxu0 %v4815
      %5095 = vmatprep.subr.mxu0 0.0
      %5096 = vmatpush1.msra.mxu0 %v4816
      %5097 = vmatprep.subr.mxu0 0.0
      %5098 = vmatpush1.msra.mxu0 %v4817
      %5099 = vmatprep.subr.mxu0 0.0
      %5100 = vmatpush1.msra.mxu0 %v4818
      %5101 = vmatprep.subr.mxu0 0.0
      %5102 = vmatpush1.msra.mxu0 %v4819
      %5103 = vmatprep.subr.mxu0 0.0
      %5104 = vmatpush1.msra.mxu0 %v4820
      %5105 = vmatprep.subr.mxu0 0.0
      %5106 = vmatpush1.msra.mxu0 %v4821
      %5107 = vmatprep.subr.mxu0 0.0
      %5108 = vmatpush1.msra.mxu0 %v4822
      %5109 = vmatprep.subr.mxu0 0.0
      %5110 = vmatpush1.msra.mxu0 %v4823
      %5111 = vmatprep.subr.mxu0 0.0
      %5112 = vmatpush1.msra.mxu0 %v4824
      %5113 = vmatprep.subr.mxu0 0.0
      %5114 = vmatpush1.msra.mxu0 %v4825
      %5115 = vmatprep.subr.mxu0 0.0
      %5116 = vmatpush1.msra.mxu0 %v4826
      %5117 = vmatprep.subr.mxu0 0.0
      %5118 = vmatpush1.msra.mxu0 %v4827
      %5119 = vmatprep.subr.mxu0 0.0
      %5120 = vmatpush1.msra.mxu0 %v4828
      %5121 = vmatprep.subr.mxu0 0.0
      %5122 = vmatpush1.msra.mxu0 %v4829
      %5123 = vmatprep.subr.mxu0 0.0
      %5124 = vmatpush1.msra.mxu0 %v4830
      %5125 = vmatprep.subr.mxu0 0.0
      %5126 = vmatpush1.msra.mxu0 %v4831
      %5127 = vmatprep.mubr.f32.mxu0 %v4545
      %5128 = vmatmul.mubr.f32.gmra.mrb[0].mxu0 %v4544
      %v5129 = vpop.f32.mrb[0].mxu0
      %v5130 = vadd.f32 %v5061, %v5129
      %v5131 = vpop.f32.mrb[0].mxu0
      %5132 = vmatprep.mubr.f32.mxu0 %v4561
      %5133 = vmatmul.mubr.f32.gmra.mrb[0].mxu0 %v4560
      %v5134 = vpop.f32.mrb[0].mxu0
      %v5135 = vadd.f32 %v5061, %v5134
      %v5136 = vpop.f32.mrb[0].mxu0
      %5137 = vmatprep.mubr.f32.mxu0 %v4577
      %5138 = vmatmul.mubr.f32.gmra.mrb[0].mxu0 %v4576
      %v5139 = vpop.f32.mrb[0].mxu0
      %v5140 = vadd.f32 %v5061, %v5139
      %v5141 = vpop.f32.mrb[0].mxu0
      %5142 = vmatprep.mubr.f32.mxu0 %v4593
      %5143 = vmatmul.mubr.f32.gmra.mrb[0].mxu0 %v4592
      %v5144 = vpop.f32.mrb[0].mxu0
      %v5145 = vadd.f32 %v5061, %v5144
      %v5146 = vpop.f32.mrb[0].mxu0
      %5147 = vmatprep.mubr.f32.mxu0 %v4609
      %5148 = vmatmul.mubr.f32.gmra.mrb[0].mxu0 %v4608
      %v5149 = vpop.f32.mrb[0].mxu0
      %v5150 = vadd.f32 %v5061, %v5149
      %v5151 = vpop.f32.mrb[0].mxu0
      %5152 = vmatprep.mubr.f32.mxu0 %v4625
      %5153 = vmatmul.mubr.f32.gmra.mrb[0].mxu0 %v4624
      %v5154 = vpop.f32.mrb[0].mxu0
      %v5155 = vadd.f32 %v5061, %v5154
      %v5156 = vpop.f32.mrb[0].mxu0
      %5157 = vmatprep.mubr.f32.mxu0 %v4641
      %5158 = vmatmul.mubr.f32.gmra.mrb[0].mxu0 %v4640
      %v5159 = vpop.f32.mrb[0].mxu0
      %v5160 = vadd.f32 %v5061, %v5159
      %v5161 = vpop.f32.mrb[0].mxu0
      %5162 = vmatprep.mubr.f32.mxu0 %v4657
      %5163 = vmatmul.mubr.f32.gmra.mrb[0].mxu0 %v4656
      %v5164 = vpop.f32.mrb[0].mxu0
      %v5165 = vadd.f32 %v5061, %v5164
      %v5166 = vpop.f32.mrb[0].mxu0
      %5167 = vmatprep.mubr.f32.mxu0 %v4673
      %5168 = vmatmul.mubr.f32.gmra.mrb[0].mxu0 %v4672
      %v5169 = vpop.f32.mrb[0].mxu0
      %v5170 = vadd.f32 %v5061, %v5169
      %v5171 = vpop.f32.mrb[0].mxu0
      %5172 = vmatprep.mubr.f32.mxu0 %v4689
      %5173 = vmatmul.mubr.f32.gmra.mrb[0].mxu0 %v4688
      %v5174 = vpop.f32.mrb[0].mxu0
      %v5175 = vadd.f32 %v5061, %v5174
      %v5176 = vpop.f32.mrb[0].mxu0
      %5177 = vmatprep.mubr.f32.mxu0 %v4705
      %5178 = vmatmul.mubr.f32.gmra.mrb[0].mxu0 %v4704
      %v5179 = vpop.f32.mrb[0].mxu0
      %v5180 = vadd.f32 %v5061, %v5179
      %v5181 = vpop.f32.mrb[0].mxu0
      %5182 = vmatprep.mubr.f32.mxu0 %v4721
      %5183 = vmatmul.mubr.f32.gmra.mrb[0].mxu0 %v4720
      %v5184 = vpop.f32.mrb[0].mxu0
      %v5185 = vadd.f32 %v5061, %v5184
      %v5186 = vpop.f32.mrb[0].mxu0
      %5187 = vmatprep.mubr.f32.mxu0 %v4737
      %5188 = vmatmul.mubr.f32.gmra.mrb[0].mxu0 %v4736
      %v5189 = vpop.f32.mrb[0].mxu0
      %v5190 = vadd.f32 %v5061, %v5189
      %v5191 = vpop.f32.mrb[0].mxu0
      %5192 = vmatprep.mubr.f32.mxu0 %v4753
      %5193 = vmatmul.mubr.f32.gmra.mrb[0].mxu0 %v4752
      %v5194 = vpop.f32.mrb[0].mxu0
      %v5195 = vadd.f32 %v5061, %v5194
      %v5196 = vpop.f32.mrb[0].mxu0
      %5197 = vmatprep.mubr.f32.mxu0 %v4769
      %5198 = vmatmul.mubr.f32.gmra.mrb[0].mxu0 %v4768
      %v5199 = vpop.f32.mrb[0].mxu0
      %v5200 = vadd.f32 %v5061, %v5199
      %v5201 = vpop.f32.mrb[0].mxu0
      %5202 = vmatprep.mubr.f32.mxu0 %v4785
      %5203 = vmatmul.mubr.f32.gmra.mrb[0].mxu0 %v4784
      %v5204 = vpop.f32.mrb[0].mxu0
      %v5205 = vadd.f32 %v5061, %v5204
      %v5206 = vpop.f32.mrb[0].mxu0
      %5207 = vdwg.mxu0
      %5208 = vmatprep.subr.mxu0 0.0
      %5209 = vmatpush1.msra.mxu0 %v4832
      %5210 = vmatprep.subr.mxu0 0.0
      %5211 = vmatpush1.msra.mxu0 %v4833
      %5212 = vmatprep.subr.mxu0 0.0
      %5213 = vmatpush1.msra.mxu0 %v4834
      %5214 = vmatprep.subr.mxu0 0.0
      %5215 = vmatpush1.msra.mxu0 %v4835
      %5216 = vmatprep.subr.mxu0 0.0
      %5217 = vmatpush1.msra.mxu0 %v4836
      %5218 = vmatprep.subr.mxu0 0.0
      %5219 = vmatpush1.msra.mxu0 %v4837
      %5220 = vmatprep.subr.mxu0 0.0
      %5221 = vmatpush1.msra.mxu0 %v4838
      %5222 = vmatprep.subr.mxu0 0.0
      %5223 = vmatpush1.msra.mxu0 %v4839
      %5224 = vmatprep.subr.mxu0 0.0
      %5225 = vmatpush1.msra.mxu0 %v4840
      %5226 = vmatprep.subr.mxu0 0.0
      %5227 = vmatpush1.msra.mxu0 %v4841
      %5228 = vmatprep.subr.mxu0 0.0
      %5229 = vmatpush1.msra.mxu0 %v4842
      %5230 = vmatprep.subr.mxu0 0.0
      %5231 = vmatpush1.msra.mxu0 %v4843
      %5232 = vmatprep.subr.mxu0 0.0
      %5233 = vmatpush1.msra.mxu0 %v4844
      %5234 = vmatprep.subr.mxu0 0.0
      %5235 = vmatpush1.msra.mxu0 %v4845
      %5236 = vmatprep.subr.mxu0 0.0
      %5237 = vmatpush1.msra.mxu0 %v4846
      %5238 = vmatprep.subr.mxu0 0.0
      %5239 = vmatpush1.msra.mxu0 %v4847
      %5240 = vmatprep.subr.mxu0 0.0
      %5241 = vmatpush1.msra.mxu0 %v4848
      %5242 = vmatprep.subr.mxu0 0.0
      %5243 = vmatpush1.msra.mxu0 %v4849
      %5244 = vmatprep.subr.mxu0 0.0
      %5245 = vmatpush1.msra.mxu0 %v4850
      %5246 = vmatprep.subr.mxu0 0.0
      %5247 = vmatpush1.msra.mxu0 %v4851
      %5248 = vmatprep.subr.mxu0 0.0
      %5249 = vmatpush1.msra.mxu0 %v4852
      %5250 = vmatprep.subr.mxu0 0.0
      %5251 = vmatpush1.msra.mxu0 %v4853
      %5252 = vmatprep.subr.mxu0 0.0
      %5253 = vmatpush1.msra.mxu0 %v4854
      %5254 = vmatprep.subr.mxu0 0.0
      %5255 = vmatpush1.msra.mxu0 %v4855
      %5256 = vmatprep.subr.mxu0 0.0
      %5257 = vmatpush1.msra.mxu0 %v4856
      %5258 = vmatprep.subr.mxu0 0.0
      %5259 = vmatpush1.msra.mxu0 %v4857
      %5260 = vmatprep.subr.mxu0 0.0
      %5261 = vmatpush1.msra.mxu0 %v4858
      %5262 = vmatprep.subr.mxu0 0.0
      %5263 = vmatpush1.msra.mxu0 %v4859
      %5264 = vmatprep.subr.mxu0 0.0
      %5265 = vmatpush1.msra.mxu0 %v4860
      %5266 = vmatprep.subr.mxu0 0.0
      %5267 = vmatpush1.msra.mxu0 %v4861
      %5268 = vmatprep.subr.mxu0 0.0
      %5269 = vmatpush1.msra.mxu0 %v4862
      %5270 = vmatprep.subr.mxu0 0.0
      %5271 = vmatpush1.msra.mxu0 %v4863
      %5272 = vmatprep.mubr.f32.mxu0 %v4547
      %5273 = vmatmul.mubr.f32.gmra.mrb[0].mxu0 %v4546
      %v5274 = vpop.f32.mrb[0].mxu0
      %v5275 = vadd.f32 %v5130, %v5274
      %v5276 = vpop.f32.mrb[0].mxu0
      %5277 = vmatprep.mubr.f32.mxu0 %v4563
      %5278 = vmatmul.mubr.f32.gmra.mrb[0].mxu0 %v4562
      %v5279 = vpop.f32.mrb[0].mxu0
      %v5280 = vadd.f32 %v5135, %v5279
      %v5281 = vpop.f32.mrb[0].mxu0
      %5282 = vmatprep.mubr.f32.mxu0 %v4579
      %5283 = vmatmul.mubr.f32.gmra.mrb[0].mxu0 %v4578
      %v5284 = vpop.f32.mrb[0].mxu0
      %v5285 = vadd.f32 %v5140, %v5284
      %v5286 = vpop.f32.mrb[0].mxu0
      %5287 = vmatprep.mubr.f32.mxu0 %v4595
      %5288 = vmatmul.mubr.f32.gmra.mrb[0].mxu0 %v4594
      %v5289 = vpop.f32.mrb[0].mxu0
      %v5290 = vadd.f32 %v5145, %v5289
      %v5291 = vpop.f32.mrb[0].mxu0
      %5292 = vmatprep.mubr.f32.mxu0 %v4611
      %5293 = vmatmul.mubr.f32.gmra.mrb[0].mxu0 %v4610
      %v5294 = vpop.f32.mrb[0].mxu0
      %v5295 = vadd.f32 %v5150, %v5294
      %v5296 = vpop.f32.mrb[0].mxu0
      %5297 = vmatprep.mubr.f32.mxu0 %v4627
      %5298 = vmatmul.mubr.f32.gmra.mrb[0].mxu0 %v4626
      %v5299 = vpop.f32.mrb[0].mxu0
      %v5300 = vadd.f32 %v5155, %v5299
      %v5301 = vpop.f32.mrb[0].mxu0
      %5302 = vmatprep.mubr.f32.mxu0 %v4643
      %5303 = vmatmul.mubr.f32.gmra.mrb[0].mxu0 %v4642
      %v5304 = vpop.f32.mrb[0].mxu0
      %v5305 = vadd.f32 %v5160, %v5304
      %v5306 = vpop.f32.mrb[0].mxu0
      %5307 = vmatprep.mubr.f32.mxu0 %v4659
      %5308 = vmatmul.mubr.f32.gmra.mrb[0].mxu0 %v4658
      %v5309 = vpop.f32.mrb[0].mxu0
      %v5310 = vadd.f32 %v5165, %v5309
      %v5311 = vpop.f32.mrb[0].mxu0
      %5312 = vmatprep.mubr.f32.mxu0 %v4675
      %5313 = vmatmul.mubr.f32.gmra.mrb[0].mxu0 %v4674
      %v5314 = vpop.f32.mrb[0].mxu0
      %v5315 = vadd.f32 %v5170, %v5314
      %v5316 = vpop.f32.mrb[0].mxu0
      %5317 = vmatprep.mubr.f32.mxu0 %v4691
      %5318 = vmatmul.mubr.f32.gmra.mrb[0].mxu0 %v4690
      %v5319 = vpop.f32.mrb[0].mxu0
      %v5320 = vadd.f32 %v5175, %v5319
      %v5321 = vpop.f32.mrb[0].mxu0
      %5322 = vmatprep.mubr.f32.mxu0 %v4707
      %5323 = vmatmul.mubr.f32.gmra.mrb[0].mxu0 %v4706
      %v5324 = vpop.f32.mrb[0].mxu0
      %v5325 = vadd.f32 %v5180, %v5324
      %v5326 = vpop.f32.mrb[0].mxu0
      %5327 = vmatprep.mubr.f32.mxu0 %v4723
      %5328 = vmatmul.mubr.f32.gmra.mrb[0].mxu0 %v4722
      %v5329 = vpop.f32.mrb[0].mxu0
      %v5330 = vadd.f32 %v5185, %v5329
      %v5331 = vpop.f32.mrb[0].mxu0
      %5332 = vmatprep.mubr.f32.mxu0 %v4739
      %5333 = vmatmul.mubr.f32.gmra.mrb[0].mxu0 %v4738
      %v5334 = vpop.f32.mrb[0].mxu0
      %v5335 = vadd.f32 %v5190, %v5334
      %v5336 = vpop.f32.mrb[0].mxu0
      %5337 = vmatprep.mubr.f32.mxu0 %v4755
      %5338 = vmatmul.mubr.f32.gmra.mrb[0].mxu0 %v4754
      %v5339 = vpop.f32.mrb[0].mxu0
      %v5340 = vadd.f32 %v5195, %v5339
      %v5341 = vpop.f32.mrb[0].mxu0
      %5342 = vmatprep.mubr.f32.mxu0 %v4771
      %5343 = vmatmul.mubr.f32.gmra.mrb[0].mxu0 %v4770
      %v5344 = vpop.f32.mrb[0].mxu0
      %v5345 = vadd.f32 %v5200, %v5344
      %v5346 = vpop.f32.mrb[0].mxu0
      %5347 = vmatprep.mubr.f32.mxu0 %v4787
      %5348 = vmatmul.mubr.f32.gmra.mrb[0].mxu0 %v4786
      %v5349 = vpop.f32.mrb[0].mxu0
      %v5350 = vadd.f32 %v5205, %v5349
      %v5351 = vpop.f32.mrb[0].mxu0
      %5352 = vdwg.mxu0
      %5353 = vmatprep.subr.mxu0 0.0
      %5354 = vmatpush1.msra.mxu0 %v4864
      %5355 = vmatprep.subr.mxu0 0.0
      %5356 = vmatpush1.msra.mxu0 %v4865
      %5357 = vmatprep.subr.mxu0 0.0
      %5358 = vmatpush1.msra.mxu0 %v4866
      %5359 = vmatprep.subr.mxu0 0.0
      %5360 = vmatpush1.msra.mxu0 %v4867
      %5361 = vmatprep.subr.mxu0 0.0
      %5362 = vmatpush1.msra.mxu0 %v4868
      %5363 = vmatprep.subr.mxu0 0.0
      %5364 = vmatpush1.msra.mxu0 %v4869
      %5365 = vmatprep.subr.mxu0 0.0
      %5366 = vmatpush1.msra.mxu0 %v4870
      %5367 = vmatprep.subr.mxu0 0.0
      %5368 = vmatpush1.msra.mxu0 %v4871
      %5369 = vmatprep.subr.mxu0 0.0
      %5370 = vmatpush1.msra.mxu0 %v4872
      %5371 = vmatprep.subr.mxu0 0.0
      %5372 = vmatpush1.msra.mxu0 %v4873
      %5373 = vmatprep.subr.mxu0 0.0
      %5374 = vmatpush1.msra.mxu0 %v4874
      %5375 = vmatprep.subr.mxu0 0.0
      %5376 = vmatpush1.msra.mxu0 %v4875
      %5377 = vmatprep.subr.mxu0 0.0
      %5378 = vmatpush1.msra.mxu0 %v4876
      %5379 = vmatprep.subr.mxu0 0.0
      %5380 = vmatpush1.msra.mxu0 %v4877
      %5381 = vmatprep.subr.mxu0 0.0
      %5382 = vmatpush1.msra.mxu0 %v4878
      %5383 = vmatprep.subr.mxu0 0.0
      %5384 = vmatpush1.msra.mxu0 %v4879
      %5385 = vmatprep.subr.mxu0 0.0
      %5386 = vmatpush1.msra.mxu0 %v4880
      %5387 = vmatprep.subr.mxu0 0.0
      %5388 = vmatpush1.msra.mxu0 %v4881
      %5389 = vmatprep.subr.mxu0 0.0
      %5390 = vmatpush1.msra.mxu0 %v4882
      %5391 = vmatprep.subr.mxu0 0.0
      %5392 = vmatpush1.msra.mxu0 %v4883
      %5393 = vmatprep.subr.mxu0 0.0
      %5394 = vmatpush1.msra.mxu0 %v4884
      %5395 = vmatprep.subr.mxu0 0.0
      %5396 = vmatpush1.msra.mxu0 %v4885
      %5397 = vmatprep.subr.mxu0 0.0
      %5398 = vmatpush1.msra.mxu0 %v4886
      %5399 = vmatprep.subr.mxu0 0.0
      %5400 = vmatpush1.msra.mxu0 %v4887
      %5401 = vmatprep.subr.mxu0 0.0
      %5402 = vmatpush1.msra.mxu0 %v4888
      %5403 = vmatprep.subr.mxu0 0.0
      %5404 = vmatpush1.msra.mxu0 %v4889
      %5405 = vmatprep.subr.mxu0 0.0
      %5406 = vmatpush1.msra.mxu0 %v4890
      %5407 = vmatprep.subr.mxu0 0.0
      %5408 = vmatpush1.msra.mxu0 %v4891
      %5409 = vmatprep.subr.mxu0 0.0
      %5410 = vmatpush1.msra.mxu0 %v4892
      %5411 = vmatprep.subr.mxu0 0.0
      %5412 = vmatpush1.msra.mxu0 %v4893
      %5413 = vmatprep.subr.mxu0 0.0
      %5414 = vmatpush1.msra.mxu0 %v4894
      %5415 = vmatprep.subr.mxu0 0.0
      %5416 = vmatpush1.msra.mxu0 %v4895
      %5417 = vmatprep.mubr.f32.mxu0 %v4549
      %5418 = vmatmul.mubr.f32.gmra.mrb[0].mxu0 %v4548
      %v5419 = vpop.f32.mrb[0].mxu0
      %v5420 = vadd.f32 %v5275, %v5419
      %v5421 = vpop.f32.mrb[0].mxu0
      %5422 = vmatprep.mubr.f32.mxu0 %v4565
      %5423 = vmatmul.mubr.f32.gmra.mrb[0].mxu0 %v4564
      %v5424 = vpop.f32.mrb[0].mxu0
      %v5425 = vadd.f32 %v5280, %v5424
      %v5426 = vpop.f32.mrb[0].mxu0
      %5427 = vmatprep.mubr.f32.mxu0 %v4581
      %5428 = vmatmul.mubr.f32.gmra.mrb[0].mxu0 %v4580
      %v5429 = vpop.f32.mrb[0].mxu0
      %v5430 = vadd.f32 %v5285, %v5429
      %v5431 = vpop.f32.mrb[0].mxu0
      %5432 = vmatprep.mubr.f32.mxu0 %v4597
      %5433 = vmatmul.mubr.f32.gmra.mrb[0].mxu0 %v4596
      %v5434 = vpop.f32.mrb[0].mxu0
      %v5435 = vadd.f32 %v5290, %v5434
      %v5436 = vpop.f32.mrb[0].mxu0
      %5437 = vmatprep.mubr.f32.mxu0 %v4613
      %5438 = vmatmul.mubr.f32.gmra.mrb[0].mxu0 %v4612
      %v5439 = vpop.f32.mrb[0].mxu0
      %v5440 = vadd.f32 %v5295, %v5439
      %v5441 = vpop.f32.mrb[0].mxu0
      %5442 = vmatprep.mubr.f32.mxu0 %v4629
      %5443 = vmatmul.mubr.f32.gmra.mrb[0].mxu0 %v4628
      %v5444 = vpop.f32.mrb[0].mxu0
      %v5445 = vadd.f32 %v5300, %v5444
      %v5446 = vpop.f32.mrb[0].mxu0
      %5447 = vmatprep.mubr.f32.mxu0 %v4645
      %5448 = vmatmul.mubr.f32.gmra.mrb[0].mxu0 %v4644
      %v5449 = vpop.f32.mrb[0].mxu0
      %v5450 = vadd.f32 %v5305, %v5449
      %v5451 = vpop.f32.mrb[0].mxu0
      %5452 = vmatprep.mubr.f32.mxu0 %v4661
      %5453 = vmatmul.mubr.f32.gmra.mrb[0].mxu0 %v4660
      %v5454 = vpop.f32.mrb[0].mxu0
      %v5455 = vadd.f32 %v5310, %v5454
      %v5456 = vpop.f32.mrb[0].mxu0
      %5457 = vmatprep.mubr.f32.mxu0 %v4677
      %5458 = vmatmul.mubr.f32.gmra.mrb[0].mxu0 %v4676
      %v5459 = vpop.f32.mrb[0].mxu0
      %v5460 = vadd.f32 %v5315, %v5459
      %v5461 = vpop.f32.mrb[0].mxu0
      %5462 = vmatprep.mubr.f32.mxu0 %v4693
      %5463 = vmatmul.mubr.f32.gmra.mrb[0].mxu0 %v4692
      %v5464 = vpop.f32.mrb[0].mxu0
      %v5465 = vadd.f32 %v5320, %v5464
      %v5466 = vpop.f32.mrb[0].mxu0
      %5467 = vmatprep.mubr.f32.mxu0 %v4709
      %5468 = vmatmul.mubr.f32.gmra.mrb[0].mxu0 %v4708
      %v5469 = vpop.f32.mrb[0].mxu0
      %v5470 = vadd.f32 %v5325, %v5469
      %v5471 = vpop.f32.mrb[0].mxu0
      %5472 = vmatprep.mubr.f32.mxu0 %v4725
      %5473 = vmatmul.mubr.f32.gmra.mrb[0].mxu0 %v4724
      %v5474 = vpop.f32.mrb[0].mxu0
      %v5475 = vadd.f32 %v5330, %v5474
      %v5476 = vpop.f32.mrb[0].mxu0
      %5477 = vmatprep.mubr.f32.mxu0 %v4741
      %5478 = vmatmul.mubr.f32.gmra.mrb[0].mxu0 %v4740
      %v5479 = vpop.f32.mrb[0].mxu0
      %v5480 = vadd.f32 %v5335, %v5479
      %v5481 = vpop.f32.mrb[0].mxu0
      %5482 = vmatprep.mubr.f32.mxu0 %v4757
      %5483 = vmatmul.mubr.f32.gmra.mrb[0].mxu0 %v4756
      %v5484 = vpop.f32.mrb[0].mxu0
      %v5485 = vadd.f32 %v5340, %v5484
      %v5486 = vpop.f32.mrb[0].mxu0
      %5487 = vmatprep.mubr.f32.mxu0 %v4773
      %5488 = vmatmul.mubr.f32.gmra.mrb[0].mxu0 %v4772
      %v5489 = vpop.f32.mrb[0].mxu0
      %v5490 = vadd.f32 %v5345, %v5489
      %v5491 = vpop.f32.mrb[0].mxu0
      %5492 = vmatprep.mubr.f32.mxu0 %v4789
      %5493 = vmatmul.mubr.f32.gmra.mrb[0].mxu0 %v4788
      %v5494 = vpop.f32.mrb[0].mxu0
      %v5495 = vadd.f32 %v5350, %v5494
      %v5496 = vpop.f32.mrb[0].mxu0
      %5497 = vdwg.mxu0
      %5498 = vmatprep.subr.mxu0 0.0
      %5499 = vmatpush1.msra.mxu0 %v4896
      %5500 = vmatprep.subr.mxu0 0.0
      %5501 = vmatpush1.msra.mxu0 %v4897
      %5502 = vmatprep.subr.mxu0 0.0
      %5503 = vmatpush1.msra.mxu0 %v4898
      %5504 = vmatprep.subr.mxu0 0.0
      %5505 = vmatpush1.msra.mxu0 %v4899
      %5506 = vmatprep.subr.mxu0 0.0
      %5507 = vmatpush1.msra.mxu0 %v4900
      %5508 = vmatprep.subr.mxu0 0.0
      %5509 = vmatpush1.msra.mxu0 %v4901
      %5510 = vmatprep.subr.mxu0 0.0
      %5511 = vmatpush1.msra.mxu0 %v4902
      %5512 = vmatprep.subr.mxu0 0.0
      %5513 = vmatpush1.msra.mxu0 %v4903
      %5514 = vmatprep.subr.mxu0 0.0
      %5515 = vmatpush1.msra.mxu0 %v4904
      %5516 = vmatprep.subr.mxu0 0.0
      %5517 = vmatpush1.msra.mxu0 %v4905
      %5518 = vmatprep.subr.mxu0 0.0
      %5519 = vmatpush1.msra.mxu0 %v4906
      %5520 = vmatprep.subr.mxu0 0.0
      %5521 = vmatpush1.msra.mxu0 %v4907
      %5522 = vmatprep.subr.mxu0 0.0
      %5523 = vmatpush1.msra.mxu0 %v4908
      %5524 = vmatprep.subr.mxu0 0.0
      %5525 = vmatpush1.msra.mxu0 %v4909
      %5526 = vmatprep.subr.mxu0 0.0
      %5527 = vmatpush1.msra.mxu0 %v4910
      %5528 = vmatprep.subr.mxu0 0.0
      %5529 = vmatpush1.msra.mxu0 %v4911
      %5530 = vmatprep.subr.mxu0 0.0
      %5531 = vmatpush1.msra.mxu0 %v4912
      %5532 = vmatprep.subr.mxu0 0.0
      %5533 = vmatpush1.msra.mxu0 %v4913
      %5534 = vmatprep.subr.mxu0 0.0
      %5535 = vmatpush1.msra.mxu0 %v4914
      %5536 = vmatprep.subr.mxu0 0.0
      %5537 = vmatpush1.msra.mxu0 %v4915
      %5538 = vmatprep.subr.mxu0 0.0
      %5539 = vmatpush1.msra.mxu0 %v4916
      %5540 = vmatprep.subr.mxu0 0.0
      %5541 = vmatpush1.msra.mxu0 %v4917
      %5542 = vmatprep.subr.mxu0 0.0
      %5543 = vmatpush1.msra.mxu0 %v4918
      %5544 = vmatprep.subr.mxu0 0.0
      %5545 = vmatpush1.msra.mxu0 %v4919
      %5546 = vmatprep.subr.mxu0 0.0
      %5547 = vmatpush1.msra.mxu0 %v4920
      %5548 = vmatprep.subr.mxu0 0.0
      %5549 = vmatpush1.msra.mxu0 %v4921
      %5550 = vmatprep.subr.mxu0 0.0
      %5551 = vmatpush1.msra.mxu0 %v4922
      %5552 = vmatprep.subr.mxu0 0.0
      %5553 = vmatpush1.msra.mxu0 %v4923
      %5554 = vmatprep.subr.mxu0 0.0
      %5555 = vmatpush1.msra.mxu0 %v4924
      %5556 = vmatprep.subr.mxu0 0.0
      %5557 = vmatpush1.msra.mxu0 %v4925
      %5558 = vmatprep.subr.mxu0 0.0
      %5559 = vmatpush1.msra.mxu0 %v4926
      %5560 = vmatprep.subr.mxu0 0.0
      %5561 = vmatpush1.msra.mxu0 %v4927
      %5562 = vmatprep.mubr.f32.mxu0 %v4551
      %5563 = vmatmul.mubr.f32.gmra.mrb[0].mxu0 %v4550
      %v5564 = vpop.f32.mrb[0].mxu0
      %v5565 = vadd.f32 %v5420, %v5564
      %v5566 = vpop.f32.mrb[0].mxu0
      %5567 = vmatprep.mubr.f32.mxu0 %v4567
      %5568 = vmatmul.mubr.f32.gmra.mrb[0].mxu0 %v4566
      %v5569 = vpop.f32.mrb[0].mxu0
      %v5570 = vadd.f32 %v5425, %v5569
      %v5571 = vpop.f32.mrb[0].mxu0
      %5572 = vmatprep.mubr.f32.mxu0 %v4583
      %5573 = vmatmul.mubr.f32.gmra.mrb[0].mxu0 %v4582
      %v5574 = vpop.f32.mrb[0].mxu0
      %v5575 = vadd.f32 %v5430, %v5574
      %v5576 = vpop.f32.mrb[0].mxu0
      %5577 = vmatprep.mubr.f32.mxu0 %v4599
      %5578 = vmatmul.mubr.f32.gmra.mrb[0].mxu0 %v4598
      %v5579 = vpop.f32.mrb[0].mxu0
      %v5580 = vadd.f32 %v5435, %v5579
      %v5581 = vpop.f32.mrb[0].mxu0
      %5582 = vmatprep.mubr.f32.mxu0 %v4615
      %5583 = vmatmul.mubr.f32.gmra.mrb[0].mxu0 %v4614
      %v5584 = vpop.f32.mrb[0].mxu0
      %v5585 = vadd.f32 %v5440, %v5584
      %v5586 = vpop.f32.mrb[0].mxu0
      %5587 = vmatprep.mubr.f32.mxu0 %v4631
      %5588 = vmatmul.mubr.f32.gmra.mrb[0].mxu0 %v4630
      %v5589 = vpop.f32.mrb[0].mxu0
      %v5590 = vadd.f32 %v5445, %v5589
      %v5591 = vpop.f32.mrb[0].mxu0
      %5592 = vmatprep.mubr.f32.mxu0 %v4647
      %5593 = vmatmul.mubr.f32.gmra.mrb[0].mxu0 %v4646
      %v5594 = vpop.f32.mrb[0].mxu0
      %v5595 = vadd.f32 %v5450, %v5594
      %v5596 = vpop.f32.mrb[0].mxu0
      %5597 = vmatprep.mubr.f32.mxu0 %v4663
      %5598 = vmatmul.mubr.f32.gmra.mrb[0].mxu0 %v4662
      %v5599 = vpop.f32.mrb[0].mxu0
      %v5600 = vadd.f32 %v5455, %v5599
      %v5601 = vpop.f32.mrb[0].mxu0
      %5602 = vmatprep.mubr.f32.mxu0 %v4679
      %5603 = vmatmul.mubr.f32.gmra.mrb[0].mxu0 %v4678
      %v5604 = vpop.f32.mrb[0].mxu0
      %v5605 = vadd.f32 %v5460, %v5604
      %v5606 = vpop.f32.mrb[0].mxu0
      %5607 = vmatprep.mubr.f32.mxu0 %v4695
      %5608 = vmatmul.mubr.f32.gmra.mrb[0].mxu0 %v4694
      %v5609 = vpop.f32.mrb[0].mxu0
      %v5610 = vadd.f32 %v5465, %v5609
      %v5611 = vpop.f32.mrb[0].mxu0
      %5612 = vmatprep.mubr.f32.mxu0 %v4711
      %5613 = vmatmul.mubr.f32.gmra.mrb[0].mxu0 %v4710
      %v5614 = vpop.f32.mrb[0].mxu0
      %v5615 = vadd.f32 %v5470, %v5614
      %v5616 = vpop.f32.mrb[0].mxu0
      %5617 = vmatprep.mubr.f32.mxu0 %v4727
      %5618 = vmatmul.mubr.f32.gmra.mrb[0].mxu0 %v4726
      %v5619 = vpop.f32.mrb[0].mxu0
      %v5620 = vadd.f32 %v5475, %v5619
      %v5621 = vpop.f32.mrb[0].mxu0
      %5622 = vmatprep.mubr.f32.mxu0 %v4743
      %5623 = vmatmul.mubr.f32.gmra.mrb[0].mxu0 %v4742
      %v5624 = vpop.f32.mrb[0].mxu0
      %v5625 = vadd.f32 %v5480, %v5624
      %v5626 = vpop.f32.mrb[0].mxu0
      %5627 = vmatprep.mubr.f32.mxu0 %v4759
      %5628 = vmatmul.mubr.f32.gmra.mrb[0].mxu0 %v4758
      %v5629 = vpop.f32.mrb[0].mxu0
      %v5630 = vadd.f32 %v5485, %v5629
      %v5631 = vpop.f32.mrb[0].mxu0
      %5632 = vmatprep.mubr.f32.mxu0 %v4775
      %5633 = vmatmul.mubr.f32.gmra.mrb[0].mxu0 %v4774
      %v5634 = vpop.f32.mrb[0].mxu0
      %v5635 = vadd.f32 %v5490, %v5634
      %v5636 = vpop.f32.mrb[0].mxu0
      %5637 = vmatprep.mubr.f32.mxu0 %v4791
      %5638 = vmatmul.mubr.f32.gmra.mrb[0].mxu0 %v4790
      %v5639 = vpop.f32.mrb[0].mxu0
      %v5640 = vadd.f32 %v5495, %v5639
      %v5641 = vpop.f32.mrb[0].mxu0
      %5642 = vdwg.mxu0
      %5643 = vmatprep.subr.mxu0 0.0
      %5644 = vmatpush1.msra.mxu0 %v4928
      %5645 = vmatprep.subr.mxu0 0.0
      %5646 = vmatpush1.msra.mxu0 %v4929
      %5647 = vmatprep.subr.mxu0 0.0
      %5648 = vmatpush1.msra.mxu0 %v4930
      %5649 = vmatprep.subr.mxu0 0.0
      %5650 = vmatpush1.msra.mxu0 %v4931
      %5651 = vmatprep.subr.mxu0 0.0
      %5652 = vmatpush1.msra.mxu0 %v4932
      %5653 = vmatprep.subr.mxu0 0.0
      %5654 = vmatpush1.msra.mxu0 %v4933
      %5655 = vmatprep.subr.mxu0 0.0
      %5656 = vmatpush1.msra.mxu0 %v4934
      %5657 = vmatprep.subr.mxu0 0.0
      %5658 = vmatpush1.msra.mxu0 %v4935
      %5659 = vmatprep.subr.mxu0 0.0
      %5660 = vmatpush1.msra.mxu0 %v4936
      %5661 = vmatprep.subr.mxu0 0.0
      %5662 = vmatpush1.msra.mxu0 %v4937
      %5663 = vmatprep.subr.mxu0 0.0
      %5664 = vmatpush1.msra.mxu0 %v4938
      %5665 = vmatprep.subr.mxu0 0.0
      %5666 = vmatpush1.msra.mxu0 %v4939
      %5667 = vmatprep.subr.mxu0 0.0
      %5668 = vmatpush1.msra.mxu0 %v4940
      %5669 = vmatprep.subr.mxu0 0.0
      %5670 = vmatpush1.msra.mxu0 %v4941
      %5671 = vmatprep.subr.mxu0 0.0
      %5672 = vmatpush1.msra.mxu0 %v4942
      %5673 = vmatprep.subr.mxu0 0.0
      %5674 = vmatpush1.msra.mxu0 %v4943
      %5675 = vmatprep.subr.mxu0 0.0
      %5676 = vmatpush1.msra.mxu0 %v4944
      %5677 = vmatprep.subr.mxu0 0.0
      %5678 = vmatpush1.msra.mxu0 %v4945
      %5679 = vmatprep.subr.mxu0 0.0
      %5680 = vmatpush1.msra.mxu0 %v4946
      %5681 = vmatprep.subr.mxu0 0.0
      %5682 = vmatpush1.msra.mxu0 %v4947
      %5683 = vmatprep.subr.mxu0 0.0
      %5684 = vmatpush1.msra.mxu0 %v4948
      %5685 = vmatprep.subr.mxu0 0.0
      %5686 = vmatpush1.msra.mxu0 %v4949
      %5687 = vmatprep.subr.mxu0 0.0
      %5688 = vmatpush1.msra.mxu0 %v4950
      %5689 = vmatprep.subr.mxu0 0.0
      %5690 = vmatpush1.msra.mxu0 %v4951
      %5691 = vmatprep.subr.mxu0 0.0
      %5692 = vmatpush1.msra.mxu0 %v4952
      %5693 = vmatprep.subr.mxu0 0.0
      %5694 = vmatpush1.msra.mxu0 %v4953
      %5695 = vmatprep.subr.mxu0 0.0
      %5696 = vmatpush1.msra.mxu0 %v4954
      %5697 = vmatprep.subr.mxu0 0.0
      %5698 = vmatpush1.msra.mxu0 %v4955
      %5699 = vmatprep.subr.mxu0 0.0
      %5700 = vmatpush1.msra.mxu0 %v4956
      %5701 = vmatprep.subr.mxu0 0.0
      %5702 = vmatpush1.msra.mxu0 %v4957
      %5703 = vmatprep.subr.mxu0 0.0
      %5704 = vmatpush1.msra.mxu0 %v4958
      %5705 = vmatprep.subr.mxu0 0.0
      %5706 = vmatpush1.msra.mxu0 %v4959
      %5707 = vmatprep.mubr.f32.mxu0 %v4553
      %5708 = vmatmul.mubr.f32.gmra.mrb[0].mxu0 %v4552
      %v5709 = vpop.f32.mrb[0].mxu0
      %v5710 = vadd.f32 %v5565, %v5709
      %v5711 = vpop.f32.mrb[0].mxu0
      %5712 = vmatprep.mubr.f32.mxu0 %v4569
      %5713 = vmatmul.mubr.f32.gmra.mrb[0].mxu0 %v4568
      %v5714 = vpop.f32.mrb[0].mxu0
      %v5715 = vadd.f32 %v5570, %v5714
      %v5716 = vpop.f32.mrb[0].mxu0
      %5717 = vmatprep.mubr.f32.mxu0 %v4585
      %5718 = vmatmul.mubr.f32.gmra.mrb[0].mxu0 %v4584
      %v5719 = vpop.f32.mrb[0].mxu0
      %v5720 = vadd.f32 %v5575, %v5719
      %v5721 = vpop.f32.mrb[0].mxu0
      %5722 = vmatprep.mubr.f32.mxu0 %v4601
      %5723 = vmatmul.mubr.f32.gmra.mrb[0].mxu0 %v4600
      %v5724 = vpop.f32.mrb[0].mxu0
      %v5725 = vadd.f32 %v5580, %v5724
      %v5726 = vpop.f32.mrb[0].mxu0
      %5727 = vmatprep.mubr.f32.mxu0 %v4617
      %5728 = vmatmul.mubr.f32.gmra.mrb[0].mxu0 %v4616
      %v5729 = vpop.f32.mrb[0].mxu0
      %v5730 = vadd.f32 %v5585, %v5729
      %v5731 = vpop.f32.mrb[0].mxu0
      %5732 = vmatprep.mubr.f32.mxu0 %v4633
      %5733 = vmatmul.mubr.f32.gmra.mrb[0].mxu0 %v4632
      %v5734 = vpop.f32.mrb[0].mxu0
      %v5735 = vadd.f32 %v5590, %v5734
      %v5736 = vpop.f32.mrb[0].mxu0
      %5737 = vmatprep.mubr.f32.mxu0 %v4649
      %5738 = vmatmul.mubr.f32.gmra.mrb[0].mxu0 %v4648
      %v5739 = vpop.f32.mrb[0].mxu0
      %v5740 = vadd.f32 %v5595, %v5739
      %v5741 = vpop.f32.mrb[0].mxu0
      %5742 = vmatprep.mubr.f32.mxu0 %v4665
      %5743 = vmatmul.mubr.f32.gmra.mrb[0].mxu0 %v4664
      %v5744 = vpop.f32.mrb[0].mxu0
      %v5745 = vadd.f32 %v5600, %v5744
      %v5746 = vpop.f32.mrb[0].mxu0
      %5747 = vmatprep.mubr.f32.mxu0 %v4681
      %5748 = vmatmul.mubr.f32.gmra.mrb[0].mxu0 %v4680
      %v5749 = vpop.f32.mrb[0].mxu0
      %v5750 = vadd.f32 %v5605, %v5749
      %v5751 = vpop.f32.mrb[0].mxu0
      %5752 = vmatprep.mubr.f32.mxu0 %v4697
      %5753 = vmatmul.mubr.f32.gmra.mrb[0].mxu0 %v4696
      %v5754 = vpop.f32.mrb[0].mxu0
      %v5755 = vadd.f32 %v5610, %v5754
      %v5756 = vpop.f32.mrb[0].mxu0
      %5757 = vmatprep.mubr.f32.mxu0 %v4713
      %5758 = vmatmul.mubr.f32.gmra.mrb[0].mxu0 %v4712
      %v5759 = vpop.f32.mrb[0].mxu0
      %v5760 = vadd.f32 %v5615, %v5759
      %v5761 = vpop.f32.mrb[0].mxu0
      %5762 = vmatprep.mubr.f32.mxu0 %v4729
      %5763 = vmatmul.mubr.f32.gmra.mrb[0].mxu0 %v4728
      %v5764 = vpop.f32.mrb[0].mxu0
      %v5765 = vadd.f32 %v5620, %v5764
      %v5766 = vpop.f32.mrb[0].mxu0
      %5767 = vmatprep.mubr.f32.mxu0 %v4745
      %5768 = vmatmul.mubr.f32.gmra.mrb[0].mxu0 %v4744
      %v5769 = vpop.f32.mrb[0].mxu0
      %v5770 = vadd.f32 %v5625, %v5769
      %v5771 = vpop.f32.mrb[0].mxu0
      %5772 = vmatprep.mubr.f32.mxu0 %v4761
      %5773 = vmatmul.mubr.f32.gmra.mrb[0].mxu0 %v4760
      %v5774 = vpop.f32.mrb[0].mxu0
      %v5775 = vadd.f32 %v5630, %v5774
      %v5776 = vpop.f32.mrb[0].mxu0
      %5777 = vmatprep.mubr.f32.mxu0 %v4777
      %5778 = vmatmul.mubr.f32.gmra.mrb[0].mxu0 %v4776
      %v5779 = vpop.f32.mrb[0].mxu0
      %v5780 = vadd.f32 %v5635, %v5779
      %v5781 = vpop.f32.mrb[0].mxu0
      %5782 = vmatprep.mubr.f32.mxu0 %v4793
      %5783 = vmatmul.mubr.f32.gmra.mrb[0].mxu0 %v4792
      %v5784 = vpop.f32.mrb[0].mxu0
      %v5785 = vadd.f32 %v5640, %v5784
      %v5786 = vpop.f32.mrb[0].mxu0
      %5787 = vdwg.mxu0
      %5788 = vmatprep.subr.mxu0 0.0
      %5789 = vmatpush1.msra.mxu0 %v4960
      %5790 = vmatprep.subr.mxu0 0.0
      %5791 = vmatpush1.msra.mxu0 %v4961
      %5792 = vmatprep.subr.mxu0 0.0
      %5793 = vmatpush1.msra.mxu0 %v4962
      %5794 = vmatprep.subr.mxu0 0.0
      %5795 = vmatpush1.msra.mxu0 %v4963
      %5796 = vmatprep.subr.mxu0 0.0
      %5797 = vmatpush1.msra.mxu0 %v4964
      %5798 = vmatprep.subr.mxu0 0.0
      %5799 = vmatpush1.msra.mxu0 %v4965
      %5800 = vmatprep.subr.mxu0 0.0
      %5801 = vmatpush1.msra.mxu0 %v4966
      %5802 = vmatprep.subr.mxu0 0.0
      %5803 = vmatpush1.msra.mxu0 %v4967
      %5804 = vmatprep.subr.mxu0 0.0
      %5805 = vmatpush1.msra.mxu0 %v4968
      %5806 = vmatprep.subr.mxu0 0.0
      %5807 = vmatpush1.msra.mxu0 %v4969
      %5808 = vmatprep.subr.mxu0 0.0
      %5809 = vmatpush1.msra.mxu0 %v4970
      %5810 = vmatprep.subr.mxu0 0.0
      %5811 = vmatpush1.msra.mxu0 %v4971
      %5812 = vmatprep.subr.mxu0 0.0
      %5813 = vmatpush1.msra.mxu0 %v4972
      %5814 = vmatprep.subr.mxu0 0.0
      %5815 = vmatpush1.msra.mxu0 %v4973
      %5816 = vmatprep.subr.mxu0 0.0
      %5817 = vmatpush1.msra.mxu0 %v4974
      %5818 = vmatprep.subr.mxu0 0.0
      %5819 = vmatpush1.msra.mxu0 %v4975
      %5820 = vmatprep.subr.mxu0 0.0
      %5821 = vmatpush1.msra.mxu0 %v4976
      %5822 = vmatprep.subr.mxu0 0.0
      %5823 = vmatpush1.msra.mxu0 %v4977
      %5824 = vmatprep.subr.mxu0 0.0
      %5825 = vmatpush1.msra.mxu0 %v4978
      %5826 = vmatprep.subr.mxu0 0.0
      %5827 = vmatpush1.msra.mxu0 %v4979
      %5828 = vmatprep.subr.mxu0 0.0
      %5829 = vmatpush1.msra.mxu0 %v4980
      %5830 = vmatprep.subr.mxu0 0.0
      %5831 = vmatpush1.msra.mxu0 %v4981
      %5832 = vmatprep.subr.mxu0 0.0
      %5833 = vmatpush1.msra.mxu0 %v4982
      %5834 = vmatprep.subr.mxu0 0.0
      %5835 = vmatpush1.msra.mxu0 %v4983
      %5836 = vmatprep.subr.mxu0 0.0
      %5837 = vmatpush1.msra.mxu0 %v4984
      %5838 = vmatprep.subr.mxu0 0.0
      %5839 = vmatpush1.msra.mxu0 %v4985
      %5840 = vmatprep.subr.mxu0 0.0
      %5841 = vmatpush1.msra.mxu0 %v4986
      %5842 = vmatprep.subr.mxu0 0.0
      %5843 = vmatpush1.msra.mxu0 %v4987
      %5844 = vmatprep.subr.mxu0 0.0
      %5845 = vmatpush1.msra.mxu0 %v4988
      %5846 = vmatprep.subr.mxu0 0.0
      %5847 = vmatpush1.msra.mxu0 %v4989
      %5848 = vmatprep.subr.mxu0 0.0
      %5849 = vmatpush1.msra.mxu0 %v4990
      %5850 = vmatprep.subr.mxu0 0.0
      %5851 = vmatpush1.msra.mxu0 %v4991
      %5852 = vmatprep.mubr.f32.mxu0 %v4555
      %5853 = vmatmul.mubr.f32.gmra.mrb[0].mxu0 %v4554
      %v5854 = vpop.f32.mrb[0].mxu0
      %v5855 = vadd.f32 %v5710, %v5854
      %v5856 = vpop.f32.mrb[0].mxu0
      %5857 = vmatprep.mubr.f32.mxu0 %v4571
      %5858 = vmatmul.mubr.f32.gmra.mrb[0].mxu0 %v4570
      %v5859 = vpop.f32.mrb[0].mxu0
      %v5860 = vadd.f32 %v5715, %v5859
      %v5861 = vpop.f32.mrb[0].mxu0
      %5862 = vmatprep.mubr.f32.mxu0 %v4587
      %5863 = vmatmul.mubr.f32.gmra.mrb[0].mxu0 %v4586
      %v5864 = vpop.f32.mrb[0].mxu0
      %v5865 = vadd.f32 %v5720, %v5864
      %v5866 = vpop.f32.mrb[0].mxu0
      %5867 = vmatprep.mubr.f32.mxu0 %v4603
      %5868 = vmatmul.mubr.f32.gmra.mrb[0].mxu0 %v4602
      %v5869 = vpop.f32.mrb[0].mxu0
      %v5870 = vadd.f32 %v5725, %v5869
      %v5871 = vpop.f32.mrb[0].mxu0
      %5872 = vmatprep.mubr.f32.mxu0 %v4619
      %5873 = vmatmul.mubr.f32.gmra.mrb[0].mxu0 %v4618
      %v5874 = vpop.f32.mrb[0].mxu0
      %v5875 = vadd.f32 %v5730, %v5874
      %v5876 = vpop.f32.mrb[0].mxu0
      %5877 = vmatprep.mubr.f32.mxu0 %v4635
      %5878 = vmatmul.mubr.f32.gmra.mrb[0].mxu0 %v4634
      %v5879 = vpop.f32.mrb[0].mxu0
      %v5880 = vadd.f32 %v5735, %v5879
      %v5881 = vpop.f32.mrb[0].mxu0
      %5882 = vmatprep.mubr.f32.mxu0 %v4651
      %5883 = vmatmul.mubr.f32.gmra.mrb[0].mxu0 %v4650
      %v5884 = vpop.f32.mrb[0].mxu0
      %v5885 = vadd.f32 %v5740, %v5884
      %v5886 = vpop.f32.mrb[0].mxu0
      %5887 = vmatprep.mubr.f32.mxu0 %v4667
      %5888 = vmatmul.mubr.f32.gmra.mrb[0].mxu0 %v4666
      %v5889 = vpop.f32.mrb[0].mxu0
      %v5890 = vadd.f32 %v5745, %v5889
      %v5891 = vpop.f32.mrb[0].mxu0
      %5892 = vmatprep.mubr.f32.mxu0 %v4683
      %5893 = vmatmul.mubr.f32.gmra.mrb[0].mxu0 %v4682
      %v5894 = vpop.f32.mrb[0].mxu0
      %v5895 = vadd.f32 %v5750, %v5894
      %v5896 = vpop.f32.mrb[0].mxu0
      %5897 = vmatprep.mubr.f32.mxu0 %v4699
      %5898 = vmatmul.mubr.f32.gmra.mrb[0].mxu0 %v4698
      %v5899 = vpop.f32.mrb[0].mxu0
      %v5900 = vadd.f32 %v5755, %v5899
      %v5901 = vpop.f32.mrb[0].mxu0
      %5902 = vmatprep.mubr.f32.mxu0 %v4715
      %5903 = vmatmul.mubr.f32.gmra.mrb[0].mxu0 %v4714
      %v5904 = vpop.f32.mrb[0].mxu0
      %v5905 = vadd.f32 %v5760, %v5904
      %v5906 = vpop.f32.mrb[0].mxu0
      %5907 = vmatprep.mubr.f32.mxu0 %v4731
      %5908 = vmatmul.mubr.f32.gmra.mrb[0].mxu0 %v4730
      %v5909 = vpop.f32.mrb[0].mxu0
      %v5910 = vadd.f32 %v5765, %v5909
      %v5911 = vpop.f32.mrb[0].mxu0
      %5912 = vmatprep.mubr.f32.mxu0 %v4747
      %5913 = vmatmul.mubr.f32.gmra.mrb[0].mxu0 %v4746
      %v5914 = vpop.f32.mrb[0].mxu0
      %v5915 = vadd.f32 %v5770, %v5914
      %v5916 = vpop.f32.mrb[0].mxu0
      %5917 = vmatprep.mubr.f32.mxu0 %v4763
      %5918 = vmatmul.mubr.f32.gmra.mrb[0].mxu0 %v4762
      %v5919 = vpop.f32.mrb[0].mxu0
      %v5920 = vadd.f32 %v5775, %v5919
      %v5921 = vpop.f32.mrb[0].mxu0
      %5922 = vmatprep.mubr.f32.mxu0 %v4779
      %5923 = vmatmul.mubr.f32.gmra.mrb[0].mxu0 %v4778
      %v5924 = vpop.f32.mrb[0].mxu0
      %v5925 = vadd.f32 %v5780, %v5924
      %v5926 = vpop.f32.mrb[0].mxu0
      %5927 = vmatprep.mubr.f32.mxu0 %v4795
      %5928 = vmatmul.mubr.f32.gmra.mrb[0].mxu0 %v4794
      %v5929 = vpop.f32.mrb[0].mxu0
      %v5930 = vadd.f32 %v5785, %v5929
      %v5931 = vpop.f32.mrb[0].mxu0
      %5932 = vdwg.mxu0
      %5933 = vmatprep.subr.mxu0 0.0
      %5934 = vmatpush1.msra.mxu0 %v4992
      %5935 = vmatprep.subr.mxu0 0.0
      %5936 = vmatpush1.msra.mxu0 %v4993
      %5937 = vmatprep.subr.mxu0 0.0
      %5938 = vmatpush1.msra.mxu0 %v4994
      %5939 = vmatprep.subr.mxu0 0.0
      %5940 = vmatpush1.msra.mxu0 %v4995
      %5941 = vmatprep.subr.mxu0 0.0
      %5942 = vmatpush1.msra.mxu0 %v4996
      %5943 = vmatprep.subr.mxu0 0.0
      %5944 = vmatpush1.msra.mxu0 %v4997
      %5945 = vmatprep.subr.mxu0 0.0
      %5946 = vmatpush1.msra.mxu0 %v4998
      %5947 = vmatprep.subr.mxu0 0.0
      %5948 = vmatpush1.msra.mxu0 %v4999
      %5949 = vmatprep.subr.mxu0 0.0
      %5950 = vmatpush1.msra.mxu0 %v5000
      %5951 = vmatprep.subr.mxu0 0.0
      %5952 = vmatpush1.msra.mxu0 %v5001
      %5953 = vmatprep.subr.mxu0 0.0
      %5954 = vmatpush1.msra.mxu0 %v5002
      %5955 = vmatprep.subr.mxu0 0.0
      %5956 = vmatpush1.msra.mxu0 %v5003
      %5957 = vmatprep.subr.mxu0 0.0
      %5958 = vmatpush1.msra.mxu0 %v5004
      %5959 = vmatprep.subr.mxu0 0.0
      %5960 = vmatpush1.msra.mxu0 %v5005
      %5961 = vmatprep.subr.mxu0 0.0
      %5962 = vmatpush1.msra.mxu0 %v5006
      %5963 = vmatprep.subr.mxu0 0.0
      %5964 = vmatpush1.msra.mxu0 %v5007
      %5965 = vmatprep.subr.mxu0 0.0
      %5966 = vmatpush1.msra.mxu0 %v5008
      %5967 = vmatprep.subr.mxu0 0.0
      %5968 = vmatpush1.msra.mxu0 %v5009
      %5969 = vmatprep.subr.mxu0 0.0
      %5970 = vmatpush1.msra.mxu0 %v5010
      %5971 = vmatprep.subr.mxu0 0.0
      %5972 = vmatpush1.msra.mxu0 %v5011
      %5973 = vmatprep.subr.mxu0 0.0
      %5974 = vmatpush1.msra.mxu0 %v5012
      %5975 = vmatprep.subr.mxu0 0.0
      %5976 = vmatpush1.msra.mxu0 %v5013
      %5977 = vmatprep.subr.mxu0 0.0
      %5978 = vmatpush1.msra.mxu0 %v5014
      %5979 = vmatprep.subr.mxu0 0.0
      %5980 = vmatpush1.msra.mxu0 %v5015
      %5981 = vmatprep.subr.mxu0 0.0
      %5982 = vmatpush1.msra.mxu0 %v5016
      %5983 = vmatprep.subr.mxu0 0.0
      %5984 = vmatpush1.msra.mxu0 %v5017
      %5985 = vmatprep.subr.mxu0 0.0
      %5986 = vmatpush1.msra.mxu0 %v5018
      %5987 = vmatprep.subr.mxu0 0.0
      %5988 = vmatpush1.msra.mxu0 %v5019
      %5989 = vmatprep.subr.mxu0 0.0
      %5990 = vmatpush1.msra.mxu0 %v5020
      %5991 = vmatprep.subr.mxu0 0.0
      %5992 = vmatpush1.msra.mxu0 %v5021
      %5993 = vmatprep.subr.mxu0 0.0
      %5994 = vmatpush1.msra.mxu0 %v5022
      %5995 = vmatprep.subr.mxu0 0.0
      %5996 = vmatpush1.msra.mxu0 %v5023
      %5997 = vmatprep.mubr.f32.mxu0 %v4557
      %5998 = vmatmul.mubr.f32.gmra.mrb[0].mxu0 %v4556
      %v5999 = vpop.f32.mrb[0].mxu0
      %v6000 = vadd.f32 %v5855, %v5999
      %v6001 = vpop.f32.mrb[0].mxu0
      %6002 = vmatprep.mubr.f32.mxu0 %v4573
      %6003 = vmatmul.mubr.f32.gmra.mrb[0].mxu0 %v4572
      %v6004 = vpop.f32.mrb[0].mxu0
      %v6005 = vadd.f32 %v5860, %v6004
      %v6006 = vpop.f32.mrb[0].mxu0
      %6007 = vmatprep.mubr.f32.mxu0 %v4589
      %6008 = vmatmul.mubr.f32.gmra.mrb[0].mxu0 %v4588
      %v6009 = vpop.f32.mrb[0].mxu0
      %v6010 = vadd.f32 %v5865, %v6009
      %v6011 = vpop.f32.mrb[0].mxu0
      %6012 = vmatprep.mubr.f32.mxu0 %v4605
      %6013 = vmatmul.mubr.f32.gmra.mrb[0].mxu0 %v4604
      %v6014 = vpop.f32.mrb[0].mxu0
      %v6015 = vadd.f32 %v5870, %v6014
      %v6016 = vpop.f32.mrb[0].mxu0
      %6017 = vmatprep.mubr.f32.mxu0 %v4621
      %6018 = vmatmul.mubr.f32.gmra.mrb[0].mxu0 %v4620
      %v6019 = vpop.f32.mrb[0].mxu0
      %v6020 = vadd.f32 %v5875, %v6019
      %v6021 = vpop.f32.mrb[0].mxu0
      %6022 = vmatprep.mubr.f32.mxu0 %v4637
      %6023 = vmatmul.mubr.f32.gmra.mrb[0].mxu0 %v4636
      %v6024 = vpop.f32.mrb[0].mxu0
      %v6025 = vadd.f32 %v5880, %v6024
      %v6026 = vpop.f32.mrb[0].mxu0
      %6027 = vmatprep.mubr.f32.mxu0 %v4653
      %6028 = vmatmul.mubr.f32.gmra.mrb[0].mxu0 %v4652
      %v6029 = vpop.f32.mrb[0].mxu0
      %v6030 = vadd.f32 %v5885, %v6029
      %v6031 = vpop.f32.mrb[0].mxu0
      %6032 = vmatprep.mubr.f32.mxu0 %v4669
      %6033 = vmatmul.mubr.f32.gmra.mrb[0].mxu0 %v4668
      %v6034 = vpop.f32.mrb[0].mxu0
      %v6035 = vadd.f32 %v5890, %v6034
      %v6036 = vpop.f32.mrb[0].mxu0
      %6037 = vmatprep.mubr.f32.mxu0 %v4685
      %6038 = vmatmul.mubr.f32.gmra.mrb[0].mxu0 %v4684
      %v6039 = vpop.f32.mrb[0].mxu0
      %v6040 = vadd.f32 %v5895, %v6039
      %v6041 = vpop.f32.mrb[0].mxu0
      %6042 = vmatprep.mubr.f32.mxu0 %v4701
      %6043 = vmatmul.mubr.f32.gmra.mrb[0].mxu0 %v4700
      %v6044 = vpop.f32.mrb[0].mxu0
      %v6045 = vadd.f32 %v5900, %v6044
      %v6046 = vpop.f32.mrb[0].mxu0
      %6047 = vmatprep.mubr.f32.mxu0 %v4717
      %6048 = vmatmul.mubr.f32.gmra.mrb[0].mxu0 %v4716
      %v6049 = vpop.f32.mrb[0].mxu0
      %v6050 = vadd.f32 %v5905, %v6049
      %v6051 = vpop.f32.mrb[0].mxu0
      %6052 = vmatprep.mubr.f32.mxu0 %v4733
      %6053 = vmatmul.mubr.f32.gmra.mrb[0].mxu0 %v4732
      %v6054 = vpop.f32.mrb[0].mxu0
      %v6055 = vadd.f32 %v5910, %v6054
      %v6056 = vpop.f32.mrb[0].mxu0
      %6057 = vmatprep.mubr.f32.mxu0 %v4749
      %6058 = vmatmul.mubr.f32.gmra.mrb[0].mxu0 %v4748
      %v6059 = vpop.f32.mrb[0].mxu0
      %v6060 = vadd.f32 %v5915, %v6059
      %v6061 = vpop.f32.mrb[0].mxu0
      %6062 = vmatprep.mubr.f32.mxu0 %v4765
      %6063 = vmatmul.mubr.f32.gmra.mrb[0].mxu0 %v4764
      %v6064 = vpop.f32.mrb[0].mxu0
      %v6065 = vadd.f32 %v5920, %v6064
      %v6066 = vpop.f32.mrb[0].mxu0
      %6067 = vmatprep.mubr.f32.mxu0 %v4781
      %6068 = vmatmul.mubr.f32.gmra.mrb[0].mxu0 %v4780
      %v6069 = vpop.f32.mrb[0].mxu0
      %v6070 = vadd.f32 %v5925, %v6069
      %v6071 = vpop.f32.mrb[0].mxu0
      %6072 = vmatprep.mubr.f32.mxu0 %v4797
      %6073 = vmatmul.mubr.f32.gmra.mrb[0].mxu0 %v4796
      %v6074 = vpop.f32.mrb[0].mxu0
      %v6075 = vadd.f32 %v5930, %v6074
      %v6076 = vpop.f32.mrb[0].mxu0
      %6077 = vdwg.mxu0
      %6078 = vmatprep.subr.mxu0 0.0
      %6079 = vmatpush1.msra.mxu0 %v5024
      %6080 = vmatprep.subr.mxu0 0.0
      %6081 = vmatpush1.msra.mxu0 %v5025
      %6082 = vmatprep.subr.mxu0 0.0
      %6083 = vmatpush1.msra.mxu0 %v5026
      %6084 = vmatprep.subr.mxu0 0.0
      %6085 = vmatpush1.msra.mxu0 %v5027
      %6086 = vmatprep.subr.mxu0 0.0
      %6087 = vmatpush1.msra.mxu0 %v5028
      %6088 = vmatprep.subr.mxu0 0.0
      %6089 = vmatpush1.msra.mxu0 %v5029
      %6090 = vmatprep.subr.mxu0 0.0
      %6091 = vmatpush1.msra.mxu0 %v5030
      %6092 = vmatprep.subr.mxu0 0.0
      %6093 = vmatpush1.msra.mxu0 %v5031
      %6094 = vmatprep.subr.mxu0 0.0
      %6095 = vmatpush1.msra.mxu0 %v5032
      %6096 = vmatprep.subr.mxu0 0.0
      %6097 = vmatpush1.msra.mxu0 %v5033
      %6098 = vmatprep.subr.mxu0 0.0
      %6099 = vmatpush1.msra.mxu0 %v5034
      %6100 = vmatprep.subr.mxu0 0.0
      %6101 = vmatpush1.msra.mxu0 %v5035
      %6102 = vmatprep.subr.mxu0 0.0
      %6103 = vmatpush1.msra.mxu0 %v5036
      %6104 = vmatprep.subr.mxu0 0.0
      %6105 = vmatpush1.msra.mxu0 %v5037
      %6106 = vmatprep.subr.mxu0 0.0
      %6107 = vmatpush1.msra.mxu0 %v5038
      %6108 = vmatprep.subr.mxu0 0.0
      %6109 = vmatpush1.msra.mxu0 %v5039
      %6110 = vmatprep.subr.mxu0 0.0
      %6111 = vmatpush1.msra.mxu0 %v5040
      %6112 = vmatprep.subr.mxu0 0.0
      %6113 = vmatpush1.msra.mxu0 %v5041
      %6114 = vmatprep.subr.mxu0 0.0
      %6115 = vmatpush1.msra.mxu0 %v5042
      %6116 = vmatprep.subr.mxu0 0.0
      %6117 = vmatpush1.msra.mxu0 %v5043
      %6118 = vmatprep.subr.mxu0 0.0
      %6119 = vmatpush1.msra.mxu0 %v5044
      %6120 = vmatprep.subr.mxu0 0.0
      %6121 = vmatpush1.msra.mxu0 %v5045
      %6122 = vmatprep.subr.mxu0 0.0
      %6123 = vmatpush1.msra.mxu0 %v5046
      %6124 = vmatprep.subr.mxu0 0.0
      %6125 = vmatpush1.msra.mxu0 %v5047
      %6126 = vmatprep.subr.mxu0 0.0
      %6127 = vmatpush1.msra.mxu0 %v5048
      %6128 = vmatprep.subr.mxu0 0.0
      %6129 = vmatpush1.msra.mxu0 %v5049
      %6130 = vmatprep.subr.mxu0 0.0
      %6131 = vmatpush1.msra.mxu0 %v5050
      %6132 = vmatprep.subr.mxu0 0.0
      %6133 = vmatpush1.msra.mxu0 %v5051
      %6134 = vmatprep.subr.mxu0 0.0
      %6135 = vmatpush1.msra.mxu0 %v5052
      %6136 = vmatprep.subr.mxu0 0.0
      %6137 = vmatpush1.msra.mxu0 %v5053
      %6138 = vmatprep.subr.mxu0 0.0
      %6139 = vmatpush1.msra.mxu0 %v5054
      %6140 = vmatprep.subr.mxu0 0.0
      %6141 = vmatpush1.msra.mxu0 %v5055
      %6142 = vmatprep.mubr.f32.mxu0 %v4559
      %6143 = vmatmul.mubr.f32.gmra.mrb[0].mxu0 %v4558
      %v6144 = vpop.f32.mrb[0].mxu0
      %v6145 = vadd.f32 %v6000, %v6144
      %v6146 = vpop.f32.mrb[0].mxu0
      %6147 = vmatprep.mubr.f32.mxu0 %v4575
      %6148 = vmatmul.mubr.f32.gmra.mrb[0].mxu0 %v4574
      %v6149 = vpop.f32.mrb[0].mxu0
      %v6150 = vadd.f32 %v6005, %v6149
      %v6151 = vpop.f32.mrb[0].mxu0
      %6152 = vmatprep.mubr.f32.mxu0 %v4591
      %6153 = vmatmul.mubr.f32.gmra.mrb[0].mxu0 %v4590
      %v6154 = vpop.f32.mrb[0].mxu0
      %v6155 = vadd.f32 %v6010, %v6154
      %v6156 = vpop.f32.mrb[0].mxu0
      %6157 = vmatprep.mubr.f32.mxu0 %v4607
      %6158 = vmatmul.mubr.f32.gmra.mrb[0].mxu0 %v4606
      %v6159 = vpop.f32.mrb[0].mxu0
      %v6160 = vadd.f32 %v6015, %v6159
      %v6161 = vpop.f32.mrb[0].mxu0
      %6162 = vmatprep.mubr.f32.mxu0 %v4623
      %6163 = vmatmul.mubr.f32.gmra.mrb[0].mxu0 %v4622
      %v6164 = vpop.f32.mrb[0].mxu0
      %v6165 = vadd.f32 %v6020, %v6164
      %v6166 = vpop.f32.mrb[0].mxu0
      %6167 = vmatprep.mubr.f32.mxu0 %v4639
      %6168 = vmatmul.mubr.f32.gmra.mrb[0].mxu0 %v4638
      %v6169 = vpop.f32.mrb[0].mxu0
      %v6170 = vadd.f32 %v6025, %v6169
      %v6171 = vpop.f32.mrb[0].mxu0
      %6172 = vmatprep.mubr.f32.mxu0 %v4655
      %6173 = vmatmul.mubr.f32.gmra.mrb[0].mxu0 %v4654
      %v6174 = vpop.f32.mrb[0].mxu0
      %v6175 = vadd.f32 %v6030, %v6174
      %v6176 = vpop.f32.mrb[0].mxu0
      %6177 = vmatprep.mubr.f32.mxu0 %v4671
      %6178 = vmatmul.mubr.f32.gmra.mrb[0].mxu0 %v4670
      %v6179 = vpop.f32.mrb[0].mxu0
      %v6180 = vadd.f32 %v6035, %v6179
      %v6181 = vpop.f32.mrb[0].mxu0
      %6182 = vmatprep.mubr.f32.mxu0 %v4687
      %6183 = vmatmul.mubr.f32.gmra.mrb[0].mxu0 %v4686
      %v6184 = vpop.f32.mrb[0].mxu0
      %v6185 = vadd.f32 %v6040, %v6184
      %v6186 = vpop.f32.mrb[0].mxu0
      %6187 = vmatprep.mubr.f32.mxu0 %v4703
      %6188 = vmatmul.mubr.f32.gmra.mrb[0].mxu0 %v4702
      %v6189 = vpop.f32.mrb[0].mxu0
      %v6190 = vadd.f32 %v6045, %v6189
      %v6191 = vpop.f32.mrb[0].mxu0
      %6192 = vmatprep.mubr.f32.mxu0 %v4719
      %6193 = vmatmul.mubr.f32.gmra.mrb[0].mxu0 %v4718
      %v6194 = vpop.f32.mrb[0].mxu0
      %v6195 = vadd.f32 %v6050, %v6194
      %v6196 = vpop.f32.mrb[0].mxu0
      %6197 = vmatprep.mubr.f32.mxu0 %v4735
      %6198 = vmatmul.mubr.f32.gmra.mrb[0].mxu0 %v4734
      %v6199 = vpop.f32.mrb[0].mxu0
      %v6200 = vadd.f32 %v6055, %v6199
      %v6201 = vpop.f32.mrb[0].mxu0
      %6202 = vmatprep.mubr.f32.mxu0 %v4751
      %6203 = vmatmul.mubr.f32.gmra.mrb[0].mxu0 %v4750
      %v6204 = vpop.f32.mrb[0].mxu0
      %v6205 = vadd.f32 %v6060, %v6204
      %v6206 = vpop.f32.mrb[0].mxu0
      %6207 = vmatprep.mubr.f32.mxu0 %v4767
      %6208 = vmatmul.mubr.f32.gmra.mrb[0].mxu0 %v4766
      %v6209 = vpop.f32.mrb[0].mxu0
      %v6210 = vadd.f32 %v6065, %v6209
      %v6211 = vpop.f32.mrb[0].mxu0
      %6212 = vmatprep.mubr.f32.mxu0 %v4783
      %6213 = vmatmul.mubr.f32.gmra.mrb[0].mxu0 %v4782
      %v6214 = vpop.f32.mrb[0].mxu0
      %v6215 = vadd.f32 %v6070, %v6214
      %v6216 = vpop.f32.mrb[0].mxu0
      %6217 = vmatprep.mubr.f32.mxu0 %v4799
      %6218 = vmatmul.mubr.f32.gmra.mrb[0].mxu0 %v4798
      %v6219 = vpop.f32.mrb[0].mxu0
      %v6220 = vadd.f32 %v6075, %v6219
      %v6221 = vpop.f32.mrb[0].mxu0
      %6222 = vdwg.mxu0
      %v6223 = vadd.f32 %v3044, %v6145
      %v6224 = vadd.f32 %v3045, %v6150
      %v6225 = vadd.f32 %v3046, %v6155
      %v6226 = vadd.f32 %v3047, %v6160
      %v6227 = vadd.f32 %v3048, %v6165
      %v6228 = vadd.f32 %v3049, %v6170
      %v6229 = vadd.f32 %v3050, %v6175
      %v6230 = vadd.f32 %v3051, %v6180
      %v6231 = vadd.f32 %v3052, %v6185
      %v6232 = vadd.f32 %v3053, %v6190
      %v6233 = vadd.f32 %v3054, %v6195
      %v6234 = vadd.f32 %v3055, %v6200
      %v6235 = vadd.f32 %v3056, %v6205
      %v6236 = vadd.f32 %v3057, %v6210
      %v6237 = vadd.f32 %v3058, %v6215
      %v6238 = vadd.f32 %v3059, %v6220
      %v6239 = vld [vmem:[%s13] sm:$0x1]
      %v6240 = vld [vmem:[%s14] sm:$0x1]
      %v6241 = vsel %vm790, %v6223, 0.0
      %6242 = vadd.xlane.f32.xlu0 %v6241
      %v6243 = vpop.xlane.xlu0 %6242
      %v6244 = vsel %vm790, %v6224, 0.0
      %6245 = vadd.xlane.f32.xlu0 %v6244
      %v6246 = vpop.xlane.xlu0 %6245
      %v6247 = vsel %vm790, %v6225, 0.0
      %6248 = vadd.xlane.f32.xlu0 %v6247
      %v6249 = vpop.xlane.xlu0 %6248
      %v6250 = vsel %vm790, %v6226, 0.0
      %6251 = vadd.xlane.f32.xlu0 %v6250
      %v6252 = vpop.xlane.xlu0 %6251
      %v6253 = vsel %vm790, %v6227, 0.0
      %6254 = vadd.xlane.f32.xlu0 %v6253
      %v6255 = vpop.xlane.xlu0 %6254
      %v6256 = vsel %vm790, %v6228, 0.0
      %6257 = vadd.xlane.f32.xlu0 %v6256
      %v6258 = vpop.xlane.xlu0 %6257
      %v6259 = vsel %vm790, %v6229, 0.0
      %6260 = vadd.xlane.f32.xlu0 %v6259
      %v6261 = vpop.xlane.xlu0 %6260
      %v6262 = vsel %vm790, %v6230, 0.0
      %6263 = vadd.xlane.f32.xlu0 %v6262
      %v6264 = vpop.xlane.xlu0 %6263
      %v6265 = vsel %vm790, %v6231, 0.0
      %6266 = vadd.xlane.f32.xlu0 %v6265
      %v6267 = vpop.xlane.xlu0 %6266
      %v6268 = vsel %vm790, %v6232, 0.0
      %6269 = vadd.xlane.f32.xlu0 %v6268
      %v6270 = vpop.xlane.xlu0 %6269
      %v6271 = vsel %vm790, %v6233, 0.0
      %6272 = vadd.xlane.f32.xlu0 %v6271
      %v6273 = vpop.xlane.xlu0 %6272
      %v6274 = vsel %vm790, %v6234, 0.0
      %6275 = vadd.xlane.f32.xlu0 %v6274
      %v6276 = vpop.xlane.xlu0 %6275
      %v6277 = vsel %vm790, %v6235, 0.0
      %6278 = vadd.xlane.f32.xlu0 %v6277
      %v6279 = vpop.xlane.xlu0 %6278
      %v6280 = vsel %vm790, %v6236, 0.0
      %6281 = vadd.xlane.f32.xlu0 %v6280
      %v6282 = vpop.xlane.xlu0 %6281
      %v6283 = vsel %vm790, %v6237, 0.0
      %6284 = vadd.xlane.f32.xlu0 %v6283
      %v6285 = vpop.xlane.xlu0 %6284
      %v6286 = vsel %vm790, %v6238, 0.0
      %6287 = vadd.xlane.f32.xlu0 %v6286
      %v6288 = vpop.xlane.xlu0 %6287
      %v6289 = vmul.f32 %v6243, %v2855
      %v6290 = vmul.f32 %v6246, %v2855
      %v6291 = vmul.f32 %v6249, %v2855
      %v6292 = vmul.f32 %v6252, %v2855
      %v6293 = vmul.f32 %v6255, %v2855
      %v6294 = vmul.f32 %v6258, %v2855
      %v6295 = vmul.f32 %v6261, %v2855
      %v6296 = vmul.f32 %v6264, %v2855
      %v6297 = vmul.f32 %v6267, %v2855
      %v6298 = vmul.f32 %v6270, %v2855
      %v6299 = vmul.f32 %v6273, %v2855
      %v6300 = vmul.f32 %v6276, %v2855
      %v6301 = vmul.f32 %v6279, %v2855
      %v6302 = vmul.f32 %v6282, %v2855
      %v6303 = vmul.f32 %v6285, %v2855
      %v6304 = vmul.f32 %v6288, %v2855
      %v6305 = vsub.f32 %v6223, %v6289
      %v6306 = vsub.f32 %v6224, %v6290
      %v6307 = vsub.f32 %v6225, %v6291
      %v6308 = vsub.f32 %v6226, %v6292
      %v6309 = vsub.f32 %v6227, %v6293
      %v6310 = vsub.f32 %v6228, %v6294
      %v6311 = vsub.f32 %v6229, %v6295
      %v6312 = vsub.f32 %v6230, %v6296
      %v6313 = vsub.f32 %v6231, %v6297
      %v6314 = vsub.f32 %v6232, %v6298
      %v6315 = vsub.f32 %v6233, %v6299
      %v6316 = vsub.f32 %v6234, %v6300
      %v6317 = vsub.f32 %v6235, %v6301
      %v6318 = vsub.f32 %v6236, %v6302
      %v6319 = vsub.f32 %v6237, %v6303
      %v6320 = vsub.f32 %v6238, %v6304
      %v6321 = vmul.f32 %v6305, %v6305
      %v6322 = vmul.f32 %v6306, %v6306
      %v6323 = vmul.f32 %v6307, %v6307
      %v6324 = vmul.f32 %v6308, %v6308
      %v6325 = vmul.f32 %v6309, %v6309
      %v6326 = vmul.f32 %v6310, %v6310
      %v6327 = vmul.f32 %v6311, %v6311
      %v6328 = vmul.f32 %v6312, %v6312
      %v6329 = vmul.f32 %v6313, %v6313
      %v6330 = vmul.f32 %v6314, %v6314
      %v6331 = vmul.f32 %v6315, %v6315
      %v6332 = vmul.f32 %v6316, %v6316
      %v6333 = vmul.f32 %v6317, %v6317
      %v6334 = vmul.f32 %v6318, %v6318
      %v6335 = vmul.f32 %v6319, %v6319
      %v6336 = vmul.f32 %v6320, %v6320
      %v6337 = vsel %vm790, %v6321, 0.0
      %6338 = vadd.xlane.f32.xlu0 %v6337
      %v6339 = vpop.xlane.xlu0 %6338
      %v6340 = vsel %vm790, %v6322, 0.0
      %6341 = vadd.xlane.f32.xlu0 %v6340
      %v6342 = vpop.xlane.xlu0 %6341
      %v6343 = vsel %vm790, %v6323, 0.0
      %6344 = vadd.xlane.f32.xlu0 %v6343
      %v6345 = vpop.xlane.xlu0 %6344
      %v6346 = vsel %vm790, %v6324, 0.0
      %6347 = vadd.xlane.f32.xlu0 %v6346
      %v6348 = vpop.xlane.xlu0 %6347
      %v6349 = vsel %vm790, %v6325, 0.0
      %6350 = vadd.xlane.f32.xlu0 %v6349
      %v6351 = vpop.xlane.xlu0 %6350
      %v6352 = vsel %vm790, %v6326, 0.0
      %6353 = vadd.xlane.f32.xlu0 %v6352
      %v6354 = vpop.xlane.xlu0 %6353
      %v6355 = vsel %vm790, %v6327, 0.0
      %6356 = vadd.xlane.f32.xlu0 %v6355
      %v6357 = vpop.xlane.xlu0 %6356
      %v6358 = vsel %vm790, %v6328, 0.0
      %6359 = vadd.xlane.f32.xlu0 %v6358
      %v6360 = vpop.xlane.xlu0 %6359
      %v6361 = vsel %vm790, %v6329, 0.0
      %6362 = vadd.xlane.f32.xlu0 %v6361
      %v6363 = vpop.xlane.xlu0 %6362
      %v6364 = vsel %vm790, %v6330, 0.0
      %6365 = vadd.xlane.f32.xlu0 %v6364
      %v6366 = vpop.xlane.xlu0 %6365
      %v6367 = vsel %vm790, %v6331, 0.0
      %6368 = vadd.xlane.f32.xlu0 %v6367
      %v6369 = vpop.xlane.xlu0 %6368
      %v6370 = vsel %vm790, %v6332, 0.0
      %6371 = vadd.xlane.f32.xlu0 %v6370
      %v6372 = vpop.xlane.xlu0 %6371
      %v6373 = vsel %vm790, %v6333, 0.0
      %6374 = vadd.xlane.f32.xlu0 %v6373
      %v6375 = vpop.xlane.xlu0 %6374
      %v6376 = vsel %vm790, %v6334, 0.0
      %6377 = vadd.xlane.f32.xlu0 %v6376
      %v6378 = vpop.xlane.xlu0 %6377
      %v6379 = vsel %vm790, %v6335, 0.0
      %6380 = vadd.xlane.f32.xlu0 %v6379
      %v6381 = vpop.xlane.xlu0 %6380
      %v6382 = vsel %vm790, %v6336, 0.0
      %6383 = vadd.xlane.f32.xlu0 %v6382
      %v6384 = vpop.xlane.xlu0 %6383
      %v6385 = vmul.f32 %v6339, %v2855
      %v6386 = vmul.f32 %v6342, %v2855
      %v6387 = vmul.f32 %v6345, %v2855
      %v6388 = vmul.f32 %v6348, %v2855
      %v6389 = vmul.f32 %v6351, %v2855
      %v6390 = vmul.f32 %v6354, %v2855
      %v6391 = vmul.f32 %v6357, %v2855
      %v6392 = vmul.f32 %v6360, %v2855
      %v6393 = vmul.f32 %v6363, %v2855
      %v6394 = vmul.f32 %v6366, %v2855
      %v6395 = vmul.f32 %v6369, %v2855
      %v6396 = vmul.f32 %v6372, %v2855
      %v6397 = vmul.f32 %v6375, %v2855
      %v6398 = vmul.f32 %v6378, %v2855
      %v6399 = vmul.f32 %v6381, %v2855
      %v6400 = vmul.f32 %v6384, %v2855
      %v6401 = vadd.f32 %v6385, 1e-05
      %v6402 = vadd.f32 %v6386, 1e-05
      %v6403 = vadd.f32 %v6387, 1e-05
      %v6404 = vadd.f32 %v6388, 1e-05
      %v6405 = vadd.f32 %v6389, 1e-05
      %v6406 = vadd.f32 %v6390, 1e-05
      %v6407 = vadd.f32 %v6391, 1e-05
      %v6408 = vadd.f32 %v6392, 1e-05
      %v6409 = vadd.f32 %v6393, 1e-05
      %v6410 = vadd.f32 %v6394, 1e-05
      %v6411 = vadd.f32 %v6395, 1e-05
      %v6412 = vadd.f32 %v6396, 1e-05
      %v6413 = vadd.f32 %v6397, 1e-05
      %v6414 = vadd.f32 %v6398, 1e-05
      %v6415 = vadd.f32 %v6399, 1e-05
      %v6416 = vadd.f32 %v6400, 1e-05
      %v6417 = vrsqrt.pop %v6401
      %v6418 = vrsqrt.pop %v6402
      %v6419 = vrsqrt.pop %v6403
      %v6420 = vrsqrt.pop %v6404
      %v6421 = vrsqrt.pop %v6405
      %v6422 = vrsqrt.pop %v6406
      %v6423 = vrsqrt.pop %v6407
      %v6424 = vrsqrt.pop %v6408
      %v6425 = vrsqrt.pop %v6409
      %v6426 = vrsqrt.pop %v6410
      %v6427 = vrsqrt.pop %v6411
      %v6428 = vrsqrt.pop %v6412
      %v6429 = vrsqrt.pop %v6413
      %v6430 = vrsqrt.pop %v6414
      %v6431 = vrsqrt.pop %v6415
      %v6432 = vrsqrt.pop %v6416
      %v6433 = vmul.f32 %v6305, %v6417
      %v6434 = vmul.f32 %v6306, %v6418
      %v6435 = vmul.f32 %v6307, %v6419
      %v6436 = vmul.f32 %v6308, %v6420
      %v6437 = vmul.f32 %v6309, %v6421
      %v6438 = vmul.f32 %v6310, %v6422
      %v6439 = vmul.f32 %v6311, %v6423
      %v6440 = vmul.f32 %v6312, %v6424
      %v6441 = vmul.f32 %v6313, %v6425
      %v6442 = vmul.f32 %v6314, %v6426
      %v6443 = vmul.f32 %v6315, %v6427
      %v6444 = vmul.f32 %v6316, %v6428
      %v6445 = vmul.f32 %v6317, %v6429
      %v6446 = vmul.f32 %v6318, %v6430
      %v6447 = vmul.f32 %v6319, %v6431
      %v6448 = vmul.f32 %v6320, %v6432
      %v6450 = vlaneseq
      %v6451 = vshrl.u32 %v6450, 7
      %v6452 = vsub.s32 0, %v6451
      %v6453 = vrot.slane %v6239, %v6452
      %v6455 = vmul.f32 %v6433, %v6453
      %v6456 = vmul.f32 %v6434, %v6453
      %v6457 = vmul.f32 %v6435, %v6453
      %v6458 = vmul.f32 %v6436, %v6453
      %v6459 = vmul.f32 %v6437, %v6453
      %v6460 = vmul.f32 %v6438, %v6453
      %v6461 = vmul.f32 %v6439, %v6453
      %v6462 = vmul.f32 %v6440, %v6453
      %v6463 = vmul.f32 %v6441, %v6453
      %v6464 = vmul.f32 %v6442, %v6453
      %v6465 = vmul.f32 %v6443, %v6453
      %v6466 = vmul.f32 %v6444, %v6453
      %v6467 = vmul.f32 %v6445, %v6453
      %v6468 = vmul.f32 %v6446, %v6453
      %v6469 = vmul.f32 %v6447, %v6453
      %v6470 = vmul.f32 %v6448, %v6453
      %v6472 = vlaneseq
      %v6473 = vshrl.u32 %v6472, 7
      %v6474 = vsub.s32 0, %v6473
      %v6475 = vrot.slane %v6240, %v6474
      %v6477 = vadd.f32 %v6455, %v6475
      %v6478 = vadd.f32 %v6456, %v6475
      %v6479 = vadd.f32 %v6457, %v6475
      %v6480 = vadd.f32 %v6458, %v6475
      %v6481 = vadd.f32 %v6459, %v6475
      %v6482 = vadd.f32 %v6460, %v6475
      %v6483 = vadd.f32 %v6461, %v6475
      %v6484 = vadd.f32 %v6462, %v6475
      %v6485 = vadd.f32 %v6463, %v6475
      %v6486 = vadd.f32 %v6464, %v6475
      %v6487 = vadd.f32 %v6465, %v6475
      %v6488 = vadd.f32 %v6466, %v6475
      %v6489 = vadd.f32 %v6467, %v6475
      %v6490 = vadd.f32 %v6468, %v6475
      %v6491 = vadd.f32 %v6469, %v6475
      %v6492 = vadd.f32 %v6470, %v6475
      %vm6493 = vcmp.ge.f32.partialorder %v6477, 0.0
      %vm6494 = vcmp.ge.f32.partialorder %v6478, 0.0
      %vm6495 = vcmp.ge.f32.partialorder %v6479, 0.0
      %vm6496 = vcmp.ge.f32.partialorder %v6480, 0.0
      %vm6497 = vcmp.ge.f32.partialorder %v6481, 0.0
      %vm6498 = vcmp.ge.f32.partialorder %v6482, 0.0
      %vm6499 = vcmp.ge.f32.partialorder %v6483, 0.0
      %vm6500 = vcmp.ge.f32.partialorder %v6484, 0.0
      %vm6501 = vcmp.ge.f32.partialorder %v6485, 0.0
      %vm6502 = vcmp.ge.f32.partialorder %v6486, 0.0
      %vm6503 = vcmp.ge.f32.partialorder %v6487, 0.0
      %vm6504 = vcmp.ge.f32.partialorder %v6488, 0.0
      %vm6505 = vcmp.ge.f32.partialorder %v6489, 0.0
      %vm6506 = vcmp.ge.f32.partialorder %v6490, 0.0
      %vm6507 = vcmp.ge.f32.partialorder %v6491, 0.0
      %vm6508 = vcmp.ge.f32.partialorder %v6492, 0.0
      %v6509 = vmul.f32 %v6477, 0.01
      %v6510 = vmul.f32 %v6478, 0.01
      %v6511 = vmul.f32 %v6479, 0.01
      %v6512 = vmul.f32 %v6480, 0.01
      %v6513 = vmul.f32 %v6481, 0.01
      %v6514 = vmul.f32 %v6482, 0.01
      %v6515 = vmul.f32 %v6483, 0.01
      %v6516 = vmul.f32 %v6484, 0.01
      %v6517 = vmul.f32 %v6485, 0.01
      %v6518 = vmul.f32 %v6486, 0.01
      %v6519 = vmul.f32 %v6487, 0.01
      %v6520 = vmul.f32 %v6488, 0.01
      %v6521 = vmul.f32 %v6489, 0.01
      %v6522 = vmul.f32 %v6490, 0.01
      %v6523 = vmul.f32 %v6491, 0.01
      %v6524 = vmul.f32 %v6492, 0.01
      %v6525 = vsel %vm6493, %v6477, %v6509
      %v6526 = vsel %vm6494, %v6478, %v6510
      %v6527 = vsel %vm6495, %v6479, %v6511
      %v6528 = vsel %vm6496, %v6480, %v6512
      %v6529 = vsel %vm6497, %v6481, %v6513
      %v6530 = vsel %vm6498, %v6482, %v6514
      %v6531 = vsel %vm6499, %v6483, %v6515
      %v6532 = vsel %vm6500, %v6484, %v6516
      %v6533 = vsel %vm6501, %v6485, %v6517
      %v6534 = vsel %vm6502, %v6486, %v6518
      %v6535 = vsel %vm6503, %v6487, %v6519
      %v6536 = vsel %vm6504, %v6488, %v6520
      %v6537 = vsel %vm6505, %v6489, %v6521
      %v6538 = vsel %vm6506, %v6490, %v6522
      %v6539 = vsel %vm6507, %v6491, %v6523
      %v6540 = vsel %vm6508, %v6492, %v6524
      %v6541 = vld [vmem:[%s15] sm:$0xff]
      %v6542 = vld [vmem:[%s15 + $0x8] sm:$0xff]
      %v6543 = vld [vmem:[%s15 + $0x10] sm:$0xff]
      %v6544 = vld [vmem:[%s15 + $0x18] sm:$0xff]
      %v6545 = vld [vmem:[%s16] sm:$0x1]
      %v6547 = vlaneseq
      %v6548 = vshrl.u32 %v6547, 7
      %v6549 = vsub.s32 0, %v6548
      %v6550 = vrot.slane %v6545, %v6549
      %v6553 = vsel %vm790, %v6525, 0
      %v6556 = vsel %vm790, %v6526, 0
      %v6559 = vsel %vm790, %v6527, 0
      %v6562 = vsel %vm790, %v6528, 0
      %v6565 = vsel %vm790, %v6529, 0
      %v6568 = vsel %vm790, %v6530, 0
      %v6571 = vsel %vm790, %v6531, 0
      %v6574 = vsel %vm790, %v6532, 0
      %v6577 = vsel %vm790, %v6533, 0
      %v6580 = vsel %vm790, %v6534, 0
      %v6583 = vsel %vm790, %v6535, 0
      %v6586 = vsel %vm790, %v6536, 0
      %v6589 = vsel %vm790, %v6537, 0
      %v6592 = vsel %vm790, %v6538, 0
      %v6595 = vsel %vm790, %v6539, 0
      %v6598 = vsel %vm790, %v6540, 0
      %6600 = vmatprep.subr.mxu0 0.0
      %6601 = vmatpush1.msra.mxu0 %v6541
      %6602 = vmatprep.subr.mxu0 0.0
      %6603 = vmatpush1.msra.mxu0 %v6542
      %6604 = vmatprep.subr.mxu0 0.0
      %6605 = vmatpush1.msra.mxu0 %v6543
      %6606 = vmatprep.subr.mxu0 0.0
      %6607 = vmatpush1.msra.mxu0 %v6544
      %6608 = vmatprep.subr.mxu0 0.0
      %6609 = vmatpush1.msra.mxu0 0.0
      %6610 = vmatprep.subr.mxu0 0.0
      %6611 = vmatpush1.msra.mxu0 0.0
      %6612 = vmatprep.subr.mxu0 0.0
      %6613 = vmatpush1.msra.mxu0 0.0
      %6614 = vmatprep.subr.mxu0 0.0
      %6615 = vmatpush1.msra.mxu0 0.0
      %6616 = vmatprep.subr.mxu0 0.0
      %6617 = vmatpush1.msra.mxu0 0.0
      %6618 = vmatprep.subr.mxu0 0.0
      %6619 = vmatpush1.msra.mxu0 0.0
      %6620 = vmatprep.subr.mxu0 0.0
      %6621 = vmatpush1.msra.mxu0 0.0
      %6622 = vmatprep.subr.mxu0 0.0
      %6623 = vmatpush1.msra.mxu0 0.0
      %6624 = vmatprep.subr.mxu0 0.0
      %6625 = vmatpush1.msra.mxu0 0.0
      %6626 = vmatprep.subr.mxu0 0.0
      %6627 = vmatpush1.msra.mxu0 0.0
      %6628 = vmatprep.subr.mxu0 0.0
      %6629 = vmatpush1.msra.mxu0 0.0
      %6630 = vmatprep.subr.mxu0 0.0
      %6631 = vmatpush1.msra.mxu0 0.0
      %6632 = vmatprep.subr.mxu0 0.0
      %6633 = vmatpush1.msra.mxu0 0.0
      %6634 = vmatprep.subr.mxu0 0.0
      %6635 = vmatpush1.msra.mxu0 0.0
      %6636 = vmatprep.subr.mxu0 0.0
      %6637 = vmatpush1.msra.mxu0 0.0
      %6638 = vmatprep.subr.mxu0 0.0
      %6639 = vmatpush1.msra.mxu0 0.0
      %6640 = vmatprep.subr.mxu0 0.0
      %6641 = vmatpush1.msra.mxu0 0.0
      %6642 = vmatprep.subr.mxu0 0.0
      %6643 = vmatpush1.msra.mxu0 0.0
      %6644 = vmatprep.subr.mxu0 0.0
      %6645 = vmatpush1.msra.mxu0 0.0
      %6646 = vmatprep.subr.mxu0 0.0
      %6647 = vmatpush1.msra.mxu0 0.0
      %6648 = vmatprep.subr.mxu0 0.0
      %6649 = vmatpush1.msra.mxu0 0.0
      %6650 = vmatprep.subr.mxu0 0.0
      %6651 = vmatpush1.msra.mxu0 0.0
      %6652 = vmatprep.subr.mxu0 0.0
      %6653 = vmatpush1.msra.mxu0 0.0
      %6654 = vmatprep.subr.mxu0 0.0
      %6655 = vmatpush1.msra.mxu0 0.0
      %6656 = vmatprep.subr.mxu0 0.0
      %6657 = vmatpush1.msra.mxu0 0.0
      %6658 = vmatprep.subr.mxu0 0.0
      %6659 = vmatpush1.msra.mxu0 0.0
      %6660 = vmatprep.subr.mxu0 0.0
      %6661 = vmatpush1.msra.mxu0 0.0
      %6662 = vmatprep.subr.mxu0 0.0
      %6663 = vmatpush1.msra.mxu0 0.0
      %6664 = vmatprep.mubr.f32.mxu0 0.0
      %6665 = vmatmul.mubr.f32.gmra.mrb[0].mxu0 %v6553
      %v6666 = vpop.f32.mrb[0].mxu0
      %v6667 = vadd.f32 %v6550, %v6666
      %v6668 = vpop.f32.mrb[0].mxu0
      %6669 = vmatprep.mubr.f32.mxu0 0.0
      %6670 = vmatmul.mubr.f32.gmra.mrb[0].mxu0 %v6556
      %v6671 = vpop.f32.mrb[0].mxu0
      %v6672 = vadd.f32 %v6550, %v6671
      %v6673 = vpop.f32.mrb[0].mxu0
      %6674 = vmatprep.mubr.f32.mxu0 0.0
      %6675 = vmatmul.mubr.f32.gmra.mrb[0].mxu0 %v6559
      %v6676 = vpop.f32.mrb[0].mxu0
      %v6677 = vadd.f32 %v6550, %v6676
      %v6678 = vpop.f32.mrb[0].mxu0
      %6679 = vmatprep.mubr.f32.mxu0 0.0
      %6680 = vmatmul.mubr.f32.gmra.mrb[0].mxu0 %v6562
      %v6681 = vpop.f32.mrb[0].mxu0
      %v6682 = vadd.f32 %v6550, %v6681
      %v6683 = vpop.f32.mrb[0].mxu0
      %6684 = vmatprep.mubr.f32.mxu0 0.0
      %6685 = vmatmul.mubr.f32.gmra.mrb[0].mxu0 %v6565
      %v6686 = vpop.f32.mrb[0].mxu0
      %v6687 = vadd.f32 %v6550, %v6686
      %v6688 = vpop.f32.mrb[0].mxu0
      %6689 = vmatprep.mubr.f32.mxu0 0.0
      %6690 = vmatmul.mubr.f32.gmra.mrb[0].mxu0 %v6568
      %v6691 = vpop.f32.mrb[0].mxu0
      %v6692 = vadd.f32 %v6550, %v6691
      %v6693 = vpop.f32.mrb[0].mxu0
      %6694 = vmatprep.mubr.f32.mxu0 0.0
      %6695 = vmatmul.mubr.f32.gmra.mrb[0].mxu0 %v6571
      %v6696 = vpop.f32.mrb[0].mxu0
      %v6697 = vadd.f32 %v6550, %v6696
      %v6698 = vpop.f32.mrb[0].mxu0
      %6699 = vmatprep.mubr.f32.mxu0 0.0
      %6700 = vmatmul.mubr.f32.gmra.mrb[0].mxu0 %v6574
      %v6701 = vpop.f32.mrb[0].mxu0
      %v6702 = vadd.f32 %v6550, %v6701
      %v6703 = vpop.f32.mrb[0].mxu0
      %6704 = vmatprep.mubr.f32.mxu0 0.0
      %6705 = vmatmul.mubr.f32.gmra.mrb[0].mxu0 %v6577
      %v6706 = vpop.f32.mrb[0].mxu0
      %v6707 = vadd.f32 %v6550, %v6706
      %v6708 = vpop.f32.mrb[0].mxu0
      %6709 = vmatprep.mubr.f32.mxu0 0.0
      %6710 = vmatmul.mubr.f32.gmra.mrb[0].mxu0 %v6580
      %v6711 = vpop.f32.mrb[0].mxu0
      %v6712 = vadd.f32 %v6550, %v6711
      %v6713 = vpop.f32.mrb[0].mxu0
      %6714 = vmatprep.mubr.f32.mxu0 0.0
      %6715 = vmatmul.mubr.f32.gmra.mrb[0].mxu0 %v6583
      %v6716 = vpop.f32.mrb[0].mxu0
      %v6717 = vadd.f32 %v6550, %v6716
      %v6718 = vpop.f32.mrb[0].mxu0
      %6719 = vmatprep.mubr.f32.mxu0 0.0
      %6720 = vmatmul.mubr.f32.gmra.mrb[0].mxu0 %v6586
      %v6721 = vpop.f32.mrb[0].mxu0
      %v6722 = vadd.f32 %v6550, %v6721
      %v6723 = vpop.f32.mrb[0].mxu0
      %6724 = vmatprep.mubr.f32.mxu0 0.0
      %6725 = vmatmul.mubr.f32.gmra.mrb[0].mxu0 %v6589
      %v6726 = vpop.f32.mrb[0].mxu0
      %v6727 = vadd.f32 %v6550, %v6726
      %v6728 = vpop.f32.mrb[0].mxu0
      %6729 = vmatprep.mubr.f32.mxu0 0.0
      %6730 = vmatmul.mubr.f32.gmra.mrb[0].mxu0 %v6592
      %v6731 = vpop.f32.mrb[0].mxu0
      %v6732 = vadd.f32 %v6550, %v6731
      %v6733 = vpop.f32.mrb[0].mxu0
      %6734 = vmatprep.mubr.f32.mxu0 0.0
      %6735 = vmatmul.mubr.f32.gmra.mrb[0].mxu0 %v6595
      %v6736 = vpop.f32.mrb[0].mxu0
      %v6737 = vadd.f32 %v6550, %v6736
      %v6738 = vpop.f32.mrb[0].mxu0
      %6739 = vmatprep.mubr.f32.mxu0 0.0
      %6740 = vmatmul.mubr.f32.gmra.mrb[0].mxu0 %v6598
      %v6741 = vpop.f32.mrb[0].mxu0
      %v6742 = vadd.f32 %v6550, %v6741
      %v6743 = vpop.f32.mrb[0].mxu0
      %6744 = vdwg.mxu0
      %vm6745 = vcmask 7168
      %v6746 = vsel %vm6745, %v6667, -inf
      %v6747 = vsel %vm6745, %v6672, -inf
      %v6748 = vmax.f32 %v6746, %v6747
      %v6749 = vrot.slane %v6748, 4
      %v6750 = vmax.f32 %v6748, %v6749
      %v6751 = vrot.slane %v6750, 2
      %v6752 = vmax.f32 %v6750, %v6751
      %v6753 = vrot.slane %v6752, 1
      %v6754 = vmax.f32 %v6752, %v6753
      %v6755 = vsel %vm6745, %v6677, -inf
      %v6756 = vsel %vm6745, %v6682, -inf
      %v6757 = vmax.f32 %v6755, %v6756
      %v6758 = vrot.slane %v6757, 4
      %v6759 = vmax.f32 %v6757, %v6758
      %v6760 = vrot.slane %v6759, 2
      %v6761 = vmax.f32 %v6759, %v6760
      %v6762 = vrot.slane %v6761, 1
      %v6763 = vmax.f32 %v6761, %v6762
      %v6764 = vsel %vm6745, %v6687, -inf
      %v6765 = vsel %vm6745, %v6692, -inf
      %v6766 = vmax.f32 %v6764, %v6765
      %v6767 = vrot.slane %v6766, 4
      %v6768 = vmax.f32 %v6766, %v6767
      %v6769 = vrot.slane %v6768, 2
      %v6770 = vmax.f32 %v6768, %v6769
      %v6771 = vrot.slane %v6770, 1
      %v6772 = vmax.f32 %v6770, %v6771
      %v6773 = vsel %vm6745, %v6697, -inf
      %v6774 = vsel %vm6745, %v6702, -inf
      %v6775 = vmax.f32 %v6773, %v6774
      %v6776 = vrot.slane %v6775, 4
      %v6777 = vmax.f32 %v6775, %v6776
      %v6778 = vrot.slane %v6777, 2
      %v6779 = vmax.f32 %v6777, %v6778
      %v6780 = vrot.slane %v6779, 1
      %v6781 = vmax.f32 %v6779, %v6780
      %v6782 = vsel %vm6745, %v6707, -inf
      %v6783 = vsel %vm6745, %v6712, -inf
      %v6784 = vmax.f32 %v6782, %v6783
      %v6785 = vrot.slane %v6784, 4
      %v6786 = vmax.f32 %v6784, %v6785
      %v6787 = vrot.slane %v6786, 2
      %v6788 = vmax.f32 %v6786, %v6787
      %v6789 = vrot.slane %v6788, 1
      %v6790 = vmax.f32 %v6788, %v6789
      %v6791 = vsel %vm6745, %v6717, -inf
      %v6792 = vsel %vm6745, %v6722, -inf
      %v6793 = vmax.f32 %v6791, %v6792
      %v6794 = vrot.slane %v6793, 4
      %v6795 = vmax.f32 %v6793, %v6794
      %v6796 = vrot.slane %v6795, 2
      %v6797 = vmax.f32 %v6795, %v6796
      %v6798 = vrot.slane %v6797, 1
      %v6799 = vmax.f32 %v6797, %v6798
      %v6800 = vsel %vm6745, %v6727, -inf
      %v6801 = vsel %vm6745, %v6732, -inf
      %v6802 = vmax.f32 %v6800, %v6801
      %v6803 = vrot.slane %v6802, 4
      %v6804 = vmax.f32 %v6802, %v6803
      %v6805 = vrot.slane %v6804, 2
      %v6806 = vmax.f32 %v6804, %v6805
      %v6807 = vrot.slane %v6806, 1
      %v6808 = vmax.f32 %v6806, %v6807
      %v6809 = vsel %vm6745, %v6737, -inf
      %v6810 = vsel %vm6745, %v6742, -inf
      %v6811 = vmax.f32 %v6809, %v6810
      %v6812 = vrot.slane %v6811, 4
      %v6813 = vmax.f32 %v6811, %v6812
      %v6814 = vrot.slane %v6813, 2
      %v6815 = vmax.f32 %v6813, %v6814
      %v6816 = vrot.slane %v6815, 1
      %v6817 = vmax.f32 %v6815, %v6816
      %v6818 = vsub.f32 %v6667, %v6754
      %v6819 = vsub.f32 %v6672, %v6754
      %v6820 = vsub.f32 %v6677, %v6763
      %v6821 = vsub.f32 %v6682, %v6763
      %v6822 = vsub.f32 %v6687, %v6772
      %v6823 = vsub.f32 %v6692, %v6772
      %v6824 = vsub.f32 %v6697, %v6781
      %v6825 = vsub.f32 %v6702, %v6781
      %v6826 = vsub.f32 %v6707, %v6790
      %v6827 = vsub.f32 %v6712, %v6790
      %v6828 = vsub.f32 %v6717, %v6799
      %v6829 = vsub.f32 %v6722, %v6799
      %v6830 = vsub.f32 %v6727, %v6808
      %v6831 = vsub.f32 %v6732, %v6808
      %v6832 = vsub.f32 %v6737, %v6817
      %v6833 = vsub.f32 %v6742, %v6817
      %v6834 = vmul.f32 %v6818, 1.442695
      %v6835 = vpow.pop %v6834
      %v6836 = vmul.f32 %v6819, 1.442695
      %v6837 = vpow.pop %v6836
      %v6838 = vmul.f32 %v6820, 1.442695
      %v6839 = vpow.pop %v6838
      %v6840 = vmul.f32 %v6821, 1.442695
      %v6841 = vpow.pop %v6840
      %v6842 = vmul.f32 %v6822, 1.442695
      %v6843 = vpow.pop %v6842
      %v6844 = vmul.f32 %v6823, 1.442695
      %v6845 = vpow.pop %v6844
      %v6846 = vmul.f32 %v6824, 1.442695
      %v6847 = vpow.pop %v6846
      %v6848 = vmul.f32 %v6825, 1.442695
      %v6849 = vpow.pop %v6848
      %v6850 = vmul.f32 %v6826, 1.442695
      %v6851 = vpow.pop %v6850
      %v6852 = vmul.f32 %v6827, 1.442695
      %v6853 = vpow.pop %v6852
      %v6854 = vmul.f32 %v6828, 1.442695
      %v6855 = vpow.pop %v6854
      %v6856 = vmul.f32 %v6829, 1.442695
      %v6857 = vpow.pop %v6856
      %v6858 = vmul.f32 %v6830, 1.442695
      %v6859 = vpow.pop %v6858
      %v6860 = vmul.f32 %v6831, 1.442695
      %v6861 = vpow.pop %v6860
      %v6862 = vmul.f32 %v6832, 1.442695
      %v6863 = vpow.pop %v6862
      %v6864 = vmul.f32 %v6833, 1.442695
      %v6865 = vpow.pop %v6864
      %v6866 = vsel %vm6745, %v6835, 0.0
      %v6867 = vsel %vm6745, %v6837, 0.0
      %v6868 = vadd.f32 %v6866, %v6867
      %v6869 = vrot.slane %v6868, 4
      %v6870 = vadd.f32 %v6868, %v6869
      %v6871 = vrot.slane %v6870, 2
      %v6872 = vadd.f32 %v6870, %v6871
      %v6873 = vrot.slane %v6872, 1
      %v6874 = vadd.f32 %v6872, %v6873
      %v6875 = vsel %vm6745, %v6839, 0.0
      %v6876 = vsel %vm6745, %v6841, 0.0
      %v6877 = vadd.f32 %v6875, %v6876
      %v6878 = vrot.slane %v6877, 4
      %v6879 = vadd.f32 %v6877, %v6878
      %v6880 = vrot.slane %v6879, 2
      %v6881 = vadd.f32 %v6879, %v6880
      %v6882 = vrot.slane %v6881, 1
      %v6883 = vadd.f32 %v6881, %v6882
      %v6884 = vsel %vm6745, %v6843, 0.0
      %v6885 = vsel %vm6745, %v6845, 0.0
      %v6886 = vadd.f32 %v6884, %v6885
      %v6887 = vrot.slane %v6886, 4
      %v6888 = vadd.f32 %v6886, %v6887
      %v6889 = vrot.slane %v6888, 2
      %v6890 = vadd.f32 %v6888, %v6889
      %v6891 = vrot.slane %v6890, 1
      %v6892 = vadd.f32 %v6890, %v6891
      %v6893 = vsel %vm6745, %v6847, 0.0
      %v6894 = vsel %vm6745, %v6849, 0.0
      %v6895 = vadd.f32 %v6893, %v6894
      %v6896 = vrot.slane %v6895, 4
      %v6897 = vadd.f32 %v6895, %v6896
      %v6898 = vrot.slane %v6897, 2
      %v6899 = vadd.f32 %v6897, %v6898
      %v6900 = vrot.slane %v6899, 1
      %v6901 = vadd.f32 %v6899, %v6900
      %v6902 = vsel %vm6745, %v6851, 0.0
      %v6903 = vsel %vm6745, %v6853, 0.0
      %v6904 = vadd.f32 %v6902, %v6903
      %v6905 = vrot.slane %v6904, 4
      %v6906 = vadd.f32 %v6904, %v6905
      %v6907 = vrot.slane %v6906, 2
      %v6908 = vadd.f32 %v6906, %v6907
      %v6909 = vrot.slane %v6908, 1
      %v6910 = vadd.f32 %v6908, %v6909
      %v6911 = vsel %vm6745, %v6855, 0.0
      %v6912 = vsel %vm6745, %v6857, 0.0
      %v6913 = vadd.f32 %v6911, %v6912
      %v6914 = vrot.slane %v6913, 4
      %v6915 = vadd.f32 %v6913, %v6914
      %v6916 = vrot.slane %v6915, 2
      %v6917 = vadd.f32 %v6915, %v6916
      %v6918 = vrot.slane %v6917, 1
      %v6919 = vadd.f32 %v6917, %v6918
      %v6920 = vsel %vm6745, %v6859, 0.0
      %v6921 = vsel %vm6745, %v6861, 0.0
      %v6922 = vadd.f32 %v6920, %v6921
      %v6923 = vrot.slane %v6922, 4
      %v6924 = vadd.f32 %v6922, %v6923
      %v6925 = vrot.slane %v6924, 2
      %v6926 = vadd.f32 %v6924, %v6925
      %v6927 = vrot.slane %v6926, 1
      %v6928 = vadd.f32 %v6926, %v6927
      %v6929 = vsel %vm6745, %v6863, 0.0
      %v6930 = vsel %vm6745, %v6865, 0.0
      %v6931 = vadd.f32 %v6929, %v6930
      %v6932 = vrot.slane %v6931, 4
      %v6933 = vadd.f32 %v6931, %v6932
      %v6934 = vrot.slane %v6933, 2
      %v6935 = vadd.f32 %v6933, %v6934
      %v6936 = vrot.slane %v6935, 1
      %v6937 = vadd.f32 %v6935, %v6936
      %v6938 = vrcp.pop %v6874
      %v6939 = vmul.f32 %v6835, %v6938
      %v6940 = vmul.f32 %v6837, %v6938
      %v6941 = vrcp.pop %v6883
      %v6942 = vmul.f32 %v6839, %v6941
      %v6943 = vmul.f32 %v6841, %v6941
      %v6944 = vrcp.pop %v6892
      %v6945 = vmul.f32 %v6843, %v6944
      %v6946 = vmul.f32 %v6845, %v6944
      %v6947 = vrcp.pop %v6901
      %v6948 = vmul.f32 %v6847, %v6947
      %v6949 = vmul.f32 %v6849, %v6947
      %v6950 = vrcp.pop %v6910
      %v6951 = vmul.f32 %v6851, %v6950
      %v6952 = vmul.f32 %v6853, %v6950
      %v6953 = vrcp.pop %v6919
      %v6954 = vmul.f32 %v6855, %v6953
      %v6955 = vmul.f32 %v6857, %v6953
      %v6956 = vrcp.pop %v6928
      %v6957 = vmul.f32 %v6859, %v6956
      %v6958 = vmul.f32 %v6861, %v6956
      %v6959 = vrcp.pop %v6937
      %v6960 = vmul.f32 %v6863, %v6959
      %v6961 = vmul.f32 %v6865, %v6959
      %6978 = vrot.lane.b32.xlu0 %v6667, 127
      %v6979 = vpop.permute.xlu0 %6978
      %6980 = vrot.lane.b32.xlu0 %v6672, 127
      %v6981 = vpop.permute.xlu0 %6980
      %6982 = vrot.lane.b32.xlu0 %v6677, 127
      %v6983 = vpop.permute.xlu0 %6982
      %6984 = vrot.lane.b32.xlu0 %v6682, 127
      %v6985 = vpop.permute.xlu0 %6984
      %6986 = vrot.lane.b32.xlu0 %v6687, 127
      %v6987 = vpop.permute.xlu0 %6986
      %6988 = vrot.lane.b32.xlu0 %v6692, 127
      %v6989 = vpop.permute.xlu0 %6988
      %6990 = vrot.lane.b32.xlu0 %v6697, 127
      %v6991 = vpop.permute.xlu0 %6990
      %6992 = vrot.lane.b32.xlu0 %v6702, 127
      %v6993 = vpop.permute.xlu0 %6992
      %6994 = vrot.lane.b32.xlu0 %v6707, 127
      %v6995 = vpop.permute.xlu0 %6994
      %6996 = vrot.lane.b32.xlu0 %v6712, 127
      %v6997 = vpop.permute.xlu0 %6996
      %6998 = vrot.lane.b32.xlu0 %v6717, 127
      %v6999 = vpop.permute.xlu0 %6998
      %7000 = vrot.lane.b32.xlu0 %v6722, 127
      %v7001 = vpop.permute.xlu0 %7000
      %7002 = vrot.lane.b32.xlu0 %v6727, 127
      %v7003 = vpop.permute.xlu0 %7002
      %7004 = vrot.lane.b32.xlu0 %v6732, 127
      %v7005 = vpop.permute.xlu0 %7004
      %7006 = vrot.lane.b32.xlu0 %v6737, 127
      %v7007 = vpop.permute.xlu0 %7006
      %7008 = vrot.lane.b32.xlu0 %v6742, 127
      %v7009 = vpop.permute.xlu0 %7008
      %v7026 = vmul.f32 %v6939, %v6979
      %v7027 = vmul.f32 %v6940, %v6981
      %v7028 = vmul.f32 %v6942, %v6983
      %v7029 = vmul.f32 %v6943, %v6985
      %v7030 = vmul.f32 %v6945, %v6987
      %v7031 = vmul.f32 %v6946, %v6989
      %v7032 = vmul.f32 %v6948, %v6991
      %v7033 = vmul.f32 %v6949, %v6993
      %v7034 = vmul.f32 %v6951, %v6995
      %v7035 = vmul.f32 %v6952, %v6997
      %v7036 = vmul.f32 %v6954, %v6999
      %v7037 = vmul.f32 %v6955, %v7001
      %v7038 = vmul.f32 %v6957, %v7003
      %v7039 = vmul.f32 %v6958, %v7005
      %v7040 = vmul.f32 %v6960, %v7007
      %v7041 = vmul.f32 %v6961, %v7009
      %v7042 = vsel %vm6745, %v7026, 0.0
      %v7043 = vsel %vm6745, %v7027, 0.0
      %v7044 = vadd.f32 %v7042, %v7043
      %v7045 = vrot.slane %v7044, 4
      %v7046 = vadd.f32 %v7044, %v7045
      %v7047 = vrot.slane %v7046, 2
      %v7048 = vadd.f32 %v7046, %v7047
      %v7049 = vrot.slane %v7048, 1
      %v7050 = vadd.f32 %v7048, %v7049
      %v7051 = vsel %vm6745, %v7028, 0.0
      %v7052 = vsel %vm6745, %v7029, 0.0
      %v7053 = vadd.f32 %v7051, %v7052
      %v7054 = vrot.slane %v7053, 4
      %v7055 = vadd.f32 %v7053, %v7054
      %v7056 = vrot.slane %v7055, 2
      %v7057 = vadd.f32 %v7055, %v7056
      %v7058 = vrot.slane %v7057, 1
      %v7059 = vadd.f32 %v7057, %v7058
      %v7060 = vsel %vm6745, %v7030, 0.0
      %v7061 = vsel %vm6745, %v7031, 0.0
      %v7062 = vadd.f32 %v7060, %v7061
      %v7063 = vrot.slane %v7062, 4
      %v7064 = vadd.f32 %v7062, %v7063
      %v7065 = vrot.slane %v7064, 2
      %v7066 = vadd.f32 %v7064, %v7065
      %v7067 = vrot.slane %v7066, 1
      %v7068 = vadd.f32 %v7066, %v7067
      %v7069 = vsel %vm6745, %v7032, 0.0
      %v7070 = vsel %vm6745, %v7033, 0.0
      %v7071 = vadd.f32 %v7069, %v7070
      %v7072 = vrot.slane %v7071, 4
      %v7073 = vadd.f32 %v7071, %v7072
      %v7074 = vrot.slane %v7073, 2
      %v7075 = vadd.f32 %v7073, %v7074
      %v7076 = vrot.slane %v7075, 1
      %v7077 = vadd.f32 %v7075, %v7076
      %v7078 = vsel %vm6745, %v7034, 0.0
      %v7079 = vsel %vm6745, %v7035, 0.0
      %v7080 = vadd.f32 %v7078, %v7079
      %v7081 = vrot.slane %v7080, 4
      %v7082 = vadd.f32 %v7080, %v7081
      %v7083 = vrot.slane %v7082, 2
      %v7084 = vadd.f32 %v7082, %v7083
      %v7085 = vrot.slane %v7084, 1
      %v7086 = vadd.f32 %v7084, %v7085
      %v7087 = vsel %vm6745, %v7036, 0.0
      %v7088 = vsel %vm6745, %v7037, 0.0
      %v7089 = vadd.f32 %v7087, %v7088
      %v7090 = vrot.slane %v7089, 4
      %v7091 = vadd.f32 %v7089, %v7090
      %v7092 = vrot.slane %v7091, 2
      %v7093 = vadd.f32 %v7091, %v7092
      %v7094 = vrot.slane %v7093, 1
      %v7095 = vadd.f32 %v7093, %v7094
      %v7096 = vsel %vm6745, %v7038, 0.0
      %v7097 = vsel %vm6745, %v7039, 0.0
      %v7098 = vadd.f32 %v7096, %v7097
      %v7099 = vrot.slane %v7098, 4
      %v7100 = vadd.f32 %v7098, %v7099
      %v7101 = vrot.slane %v7100, 2
      %v7102 = vadd.f32 %v7100, %v7101
      %v7103 = vrot.slane %v7102, 1
      %v7104 = vadd.f32 %v7102, %v7103
      %v7105 = vsel %vm6745, %v7040, 0.0
      %v7106 = vsel %vm6745, %v7041, 0.0
      %v7107 = vadd.f32 %v7105, %v7106
      %v7108 = vrot.slane %v7107, 4
      %v7109 = vadd.f32 %v7107, %v7108
      %v7110 = vrot.slane %v7109, 2
      %v7111 = vadd.f32 %v7109, %v7110
      %v7112 = vrot.slane %v7111, 1
      %v7113 = vadd.f32 %v7111, %v7112
      %vm7122 = vcmask 1041409
      %v7123 = vsel %vm7122, %v7059, %v7050
      %vm7124 = vcmask 1042434
      %v7125 = vsel %vm7124, %v7068, %v7123
      %vm7126 = vcmask 1043459
      %v7127 = vsel %vm7126, %v7077, %v7125
      %vm7128 = vcmask 1044484
      %v7129 = vsel %vm7128, %v7086, %v7127
      %vm7130 = vcmask 1045509
      %v7131 = vsel %vm7130, %v7095, %v7129
      %vm7132 = vcmask 1046534
      %v7133 = vsel %vm7132, %v7104, %v7131
      %vm7134 = vcmask 1047559
      %v7135 = vsel %vm7134, %v7113, %v7133
      %7137 = vst.msk [vmem:[%s551] sm:$0xff] %vm6745, %v7135
      %p7138 = scmp.lt.s32.totalorder %s28, 1
      %s7139 = scalar_select %p7138, %s28, 1
      %s7140 = smul.addr %s7139, 8
      %s7141 = scalar_lea.vmem %s17, %s7140
      // Predicated region
      $region89: #{tpu_custom_call.1} parent=87 // pred_check
        %p7142 = pneg %p408
      $region90: #{tpu_custom_call.1} parent=87 // pred_check_branch
        %7144 = sbr.rel (%p7142) target = $region92
      $region91: #{tpu_custom_call.1} parent=87 // pred_region
        _
      $region92: #{tpu_custom_call.1} parent=87 // pred_fallthru
        _
    $region88: #{tpu_custom_call.1} parent=5 // pred_fallthru
      _
    %p7145 = scmp.le.s32.totalorder 2, %s23
    // Predicated region
    $region93: #{tpu_custom_call.1} parent=5 // pred_check
      %p7146 = pneg %p7145
    $region94: #{tpu_custom_call.1} parent=5 // pred_check_branch
      %7148 = sbr.rel (%p7146) target = $region96
    $region95: #{tpu_custom_call.1} parent=5 // pred_region
      %s7149 = ssub.s32 %s23, 2
      // Predicated region
      $region97: #{tpu_custom_call.1} parent=95 // pred_check
        %p7150 = pneg %p414
      $region98: #{tpu_custom_call.1} parent=95 // pred_check_branch
        %7152 = sbr.rel (%p7150) target = $region100
      $region99: #{tpu_custom_call.1} parent=95 // pred_region
        %p7153 = scmp.lt.s32.totalorder %s29, 1
        %s7154 = scalar_select %p7153, %s29, 1
        %s7155 = smul.addr %s7154, 8
        %s7156 = scalar_lea.vmem %s17, %s7155
      $region100: #{tpu_custom_call.1} parent=95 // pred_fallthru
        _
    $region96: #{tpu_custom_call.1} parent=5 // pred_fallthru
      _
  $region6: #{tpu_custom_call.1} parent=0 // loop_footer
    %s27 = sadd.s32 1, %s23
  $region7: #{tpu_custom_call.1} parent=0 // loop_footer_branch
    %22 = sbr.rel target = $region3
  $region8: #{tpu_custom_call.1} parent=0 // loop_exit
    _

</llo_original>
